<compile_context>
chip_gen: v7x
topology: tpu7x:2x2x1
jax: 0.10.0
libtpu: 0.0.40
codegen_flags: <defaults>
</compile_context>

<pallas_src>
import functools

import jax
import jax.numpy as jnp
from jax import lax
from jax.experimental import pallas as pl
from jax.experimental.pallas import tpu as pltpu

EPS = 1e-5        # nn.InstanceNorm2d default
MXU_BF16 = False  # keep fp32 MXU operands so the 1e-4 check vs fp32 ref passes


# ----------------------------- Pallas kernel ------------------------------- #

def _resblock_kernel(x_ref, m_ref, w1_ref, b1_ref, w2_ref, b2_ref, o_ref, *,
                     H, W, Lpad):
    """Fused conv1 -> IN -> ReLU -> ReflPad -> conv2 -> IN -> (+x), one sample.

    Activations live in "padded-flat" space (Cp, Lpad) with the first
    L=(H+2)*(W+2) positions being the reflection-padded grid and the tail
    zero padding up to a lane multiple.  Only the H*W interior positions are
    meaningful; halo/tail are handled with the mask rows of m_ref.
    """
    Hp, Wp = H + 2, W + 2
    inv_hw = 1.0 / (H * W)

    interior = m_ref[0]      # (1, Lpad) f32 {0,1}: true interior positions
    top = m_ref[1]           # padded-grid row 0
    bottom = m_ref[2]        # padded-grid row Hp-1
    left = m_ref[3]          # padded-grid col 0
    right = m_ref[4]         # padded-grid col Wp-1

    def shifted(a, s):
        # shifted(a, s)[:, j] == a[:, j + s] for every position that matters
        # (interior taps / halo fills never reach the roll wrap-around).
        if s == 0:
            return a
        return pltpu.roll(a, shift=(-s) % Lpad, axis=1)

    def conv3x3(a, w_ref, b_ref):
        # 9 accumulating MXU dots (K = Cin each); no (9C, L) tap matrix.
        am = a.astype(jnp.bfloat16) if MXU_BF16 else a
        acc = None
        for dy in range(3):
            for dx in range(3):
                t = 3 * dy + dx
                w_t = w_ref[t]
                if MXU_BF16:
                    w_t = w_t.astype(jnp.bfloat16)
                p = shifted(am, (dy - 1) * Wp + (dx - 1))
                d = jnp.dot(w_t, p, preferred_element_type=jnp.float32)
                acc = d if acc is None else acc + d
        return acc + b_ref[...]

    def inst_norm(z):
        # Single sweep: biased mean/var over the H*W interior positions only.
        zi = z * interior
        mean = jnp.sum(zi, axis=1, keepdims=True) * inv_hw
        ez2 = jnp.sum(zi * z, axis=1, keepdims=True) * inv_hw
        var = ez2 - mean * mean
        return (z - mean) * interior * lax.rsqrt(var + EPS)   # halo/tail -> 0

    def blend(y, mask, s):
        # exact select for {0,1} float masks (avoids any where-broadcast issue)
        r = shifted(y, s)
        return y * (1.0 - mask) + r * mask

    xpad = x_ref[...].astype(jnp.float32)      # (Cp, Lpad); interior == x

    # ---- stage 1: (ReflPad applied to x in wrapper) conv1 -> IN -> ReLU ----
    y = jnp.maximum(inst_norm(conv3x3(xpad, w1_ref, b1_ref)), 0.0)

    # ---- in-kernel ReflectionPad2d(1): fill the halo ring of y ----
    y = blend(y, top, 2 * Wp)        # row 0     <- row 2
    y = blend(y, bottom, -2 * Wp)    # row Hp-1  <- row Hp-3
    y = blend(y, left, 2)            # col 0     <- col 2 (corners use fixed rows)
    y = blend(y, right, -2)          # col Wp-1  <- col Wp-3

    # ---- stage 2: conv2 -> IN -> residual add ----
    z = inst_norm(conv3x3(y, w2_ref, b2_ref))
    o_ref[...] = (xpad + z).astype(o_ref.dtype)


# ------------------------------ JAX wrapper --------------------------------- #

def resnet_block(x, w1, b1, w2, b2):
    """x: (N, C, H, W) fp32; w*: (C, C, 3, 3); b*: (C,)."""
    N, C, H, W = x.shape
    Hp, Wp = H + 2, W + 2
    L = Hp * Wp
    Lpad = ((L + 127) // 128) * 128       # lane-dense flat length
    Cp = ((C + 7) // 8) * 8               # full f32 sublane tile

    # ReflectionPad2d(1) of the input, flattened and padded to (Cp, Lpad).
    xpad = jnp.pad(x, ((0, 0), (0, 0), (1, 1), (1, 1)), mode="reflect")
    xpad = xpad.reshape(N, C, L)
    xpad = jnp.pad(xpad, ((0, 0), (0, Cp - C), (0, Lpad - L)))

    # Per-tap weight planes: w9[t=dy*3+dx, cout, cin] = w[cout, cin, dy, dx].
    def fold_w(w):
        w = jnp.pad(w, ((0, Cp - C), (0, Cp - C), (0, 0), (0, 0)))
        return jnp.transpose(w, (2, 3, 0, 1)).reshape(9, Cp, Cp)

    w1t, w2t = fold_w(w1), fold_w(w2)
    b1c = jnp.pad(b1, (0, Cp - C)).reshape(Cp, 1)
    b2c = jnp.pad(b2, (0, Cp - C)).reshape(Cp, 1)

    # Tiny (5, 1, Lpad) mask bundle (replaces the old (2, Cp, L) pos tensor).
    j = jnp.arange(Lpad, dtype=jnp.int32)
    yp, xp = j // Wp, j % Wp
    real = j < L
    masks = jnp.stack([
        ((yp >= 1) & (yp <= H) & (xp >= 1) & (xp <= W)),  # interior
        (yp == 0),                                        # top halo row
        ((yp == Hp - 1) & real),                          # bottom halo row
        ((xp == 0) & real),                               # left halo col
        ((xp == Wp - 1) & real),                          # right halo col
    ]).astype(jnp.float32).reshape(5, 1, Lpad)

    kernel = functools.partial(_resblock_kernel, H=H, W=W, Lpad=Lpad)

    # Scoped VMEM from the real working set (+ headroom), capped well under HBM
    # of the per-core VMEM on all generations.
    act_bytes = Cp * Lpad * 4
    w_bytes = 2 * 9 * Cp * Cp * 4
    vmem_limit = int(min(100 * (1 << 20), 20 * act_bytes + 2 * w_bytes + (8 << 20)))

    def build(single_buffer_residents):
        def res_spec(shape):
            imap = (lambda n: (0, 0)) if len(shape) == 2 else (lambda n: (0, 0, 0))
            if single_buffer_residents:
                return pl.BlockSpec(shape, imap, pipeline_mode=pl.Buffered(1))
            return pl.BlockSpec(shape, imap)

        return pl.pallas_call(
            kernel,
            out_shape=jax.ShapeDtypeStruct((N, Cp, Lpad), x.dtype),
            grid=(N,),
            in_specs=[
                pl.BlockSpec((None, Cp, Lpad), lambda n: (n, 0, 0)),  # per-sample x
                res_spec((5, 1, Lpad)),    # masks     (resident)
                res_spec((9, Cp, Cp)),     # w1 taps   (resident)
                res_spec((Cp, 1)),         # b1        (resident)
                res_spec((9, Cp, Cp)),     # w2 taps   (resident)
                res_spec((Cp, 1)),         # b2        (resident)
            ],
            out_specs=pl.BlockSpec((None, Cp, Lpad), lambda n: (n, 0, 0)),
            compiler_params=pltpu.CompilerParams(
                dimension_semantics=("parallel",),
                vmem_limit_bytes=vmem_limit),
        )

    args = (xpad, masks, w1t, b1c, w2t, b2c)
    try:
        out_pad = build(True)(*args)
    except Exception:
        # pl.Buffered(1) not accepted by this JAX build -> default buffering.
        out_pad = build(False)(*args)

    # Drop channel padding, lane-tail padding and the reflection halo.
    return out_pad[:, :C, :L].reshape(N, C, Hp, Wp)[:, :, 1:-1, 1:-1]


# --------------------------- pure-JAX reference ----------------------------- #

def reference(x, w1, b1, w2, b2):
    def refl(t):
        return jnp.pad(t, ((0, 0), (0, 0), (1, 1), (1, 1)), mode="reflect")

    def conv(t, w, b):
        y = lax.conv_general_dilated(
            t, w, (1, 1), "VALID", dimension_numbers=("NCHW", "OIHW", "NCHW"))
        return y + b.reshape(1, -1, 1, 1)

    def inorm(t):
        m = jnp.mean(t, axis=(2, 3), keepdims=True)
        v = jnp.mean(jnp.square(t - m), axis=(2, 3), keepdims=True)
        return (t - m) * lax.rsqrt(v + EPS)

    y = jnp.maximum(inorm(conv(refl(x), w1, b1)), 0.0)
    y = inorm(conv(refl(y), w2, b2))
    return x + y


# --------------------------------- main ------------------------------------ #

if __name__ == "__main__":
    key = jax.random.PRNGKey(0)
    kx, kw1, kb1, kw2, kb2 = jax.random.split(key, 5)

    N, C, H, W = 2, 4, 16, 16  # dim = 4
    x = jax.random.normal(kx, (N, C, H, W), dtype=jnp.float32)
    w1 = 0.2 * jax.random.normal(kw1, (C, C, 3, 3), dtype=jnp.float32)
    b1 = 0.1 * jax.random.normal(kb1, (C,), dtype=jnp.float32)
    w2 = 0.2 * jax.random.normal(kw2, (C, C, 3, 3), dtype=jnp.float32)
    b2 = 0.1 * jax.random.normal(kb2, (C,), dtype=jnp.float32)

    out = jax.block_until_ready(resnet_block(x, w1, b1, w2, b2))
    ref = jax.block_until_ready(reference(x, w1, b1, w2, b2))

    assert out.shape == (N, C, H, W)
    err = float(jnp.max(jnp.abs(out - ref)))
    assert err < 1e-4, err

    # TODO(synk): nn.Dropout(0.5) branch (use_dropout=True) not implemented;
    # this instantiation uses use_dropout=False as in PIFu.
    print("KERNEL_OK")
</pallas_src>

<mosaic_0001>
module attributes {stable_mosaic.version = 11 : i64} {
  func.func @_resblock_kernel(%arg0: i32, %arg1: memref<1x8x384xf32, #tpu.memory_space<vmem>>, %arg2: memref<5x1x384xf32, #tpu.memory_space<vmem>>, %arg3: memref<9x8x8xf32, #tpu.memory_space<vmem>>, %arg4: memref<8x1xf32, #tpu.memory_space<vmem>>, %arg5: memref<9x8x8xf32, #tpu.memory_space<vmem>>, %arg6: memref<8x1xf32, #tpu.memory_space<vmem>>, %arg7: memref<1x8x384xf32, #tpu.memory_space<vmem>>) attributes {dimension_semantics = [#tpu.dimension_semantics<parallel>], iteration_bounds = array<i64: 2>, scalar_prefetch = 0 : i64, scratch_operands = 0 : i64, tpu.core_type = #tpu.core_type<tc>, window_params = [{transform_indices = @transform_0, window_bounds = array<i64: 1, 8, 384>}, {pipeline_mode = #tpu.pipeline_mode<synchronous>, transform_indices = @transform_1, window_bounds = array<i64: 5, 1, 384>}, {pipeline_mode = #tpu.pipeline_mode<synchronous>, transform_indices = @transform_2, window_bounds = array<i64: 9, 8, 8>}, {pipeline_mode = #tpu.pipeline_mode<synchronous>, transform_indices = @transform_3, window_bounds = array<i64: 8, 1>}, {pipeline_mode = #tpu.pipeline_mode<synchronous>, transform_indices = @transform_4, window_bounds = array<i64: 9, 8, 8>}, {pipeline_mode = #tpu.pipeline_mode<synchronous>, transform_indices = @transform_5, window_bounds = array<i64: 8, 1>}, {transform_indices = @transform_6, window_bounds = array<i64: 1, 8, 384>}]} {
    %c0 = arith.constant 0 : index
    %c0_0 = arith.constant 0 : index
    %c0_1 = arith.constant 0 : index
    %0 = vector.load %arg2[%c0, %c0_0, %c0_1] : memref<5x1x384xf32, #tpu.memory_space<vmem>>, vector<1x1x384xf32>
    %1 = vector.shape_cast %0 : vector<1x1x384xf32> to vector<1x384xf32>
    %c1 = arith.constant 1 : index
    %c0_2 = arith.constant 0 : index
    %c0_3 = arith.constant 0 : index
    %2 = vector.load %arg2[%c1, %c0_2, %c0_3] : memref<5x1x384xf32, #tpu.memory_space<vmem>>, vector<1x1x384xf32>
    %3 = vector.shape_cast %2 : vector<1x1x384xf32> to vector<1x384xf32>
    %c2 = arith.constant 2 : index
    %c0_4 = arith.constant 0 : index
    %c0_5 = arith.constant 0 : index
    %4 = vector.load %arg2[%c2, %c0_4, %c0_5] : memref<5x1x384xf32, #tpu.memory_space<vmem>>, vector<1x1x384xf32>
    %5 = vector.shape_cast %4 : vector<1x1x384xf32> to vector<1x384xf32>
    %c3 = arith.constant 3 : index
    %c0_6 = arith.constant 0 : index
    %c0_7 = arith.constant 0 : index
    %6 = vector.load %arg2[%c3, %c0_6, %c0_7] : memref<5x1x384xf32, #tpu.memory_space<vmem>>, vector<1x1x384xf32>
    %7 = vector.shape_cast %6 : vector<1x1x384xf32> to vector<1x384xf32>
    %c4 = arith.constant 4 : index
    %c0_8 = arith.constant 0 : index
    %c0_9 = arith.constant 0 : index
    %8 = vector.load %arg2[%c4, %c0_8, %c0_9] : memref<5x1x384xf32, #tpu.memory_space<vmem>>, vector<1x1x384xf32>
    %9 = vector.shape_cast %8 : vector<1x1x384xf32> to vector<1x384xf32>
    %c0_10 = arith.constant 0 : index
    %c0_11 = arith.constant 0 : index
    %c0_12 = arith.constant 0 : index
    %10 = vector.load %arg1[%c0_10, %c0_11, %c0_12] : memref<1x8x384xf32, #tpu.memory_space<vmem>>, vector<1x8x384xf32>
    %11 = vector.shape_cast %10 : vector<1x8x384xf32> to vector<8x384xf32>
    %c0_13 = arith.constant 0 : index
    %c0_14 = arith.constant 0 : index
    %c0_15 = arith.constant 0 : index
    %12 = vector.load %arg3[%c0_13, %c0_14, %c0_15] : memref<9x8x8xf32, #tpu.memory_space<vmem>>, vector<1x8x8xf32>
    %13 = vector.shape_cast %12 : vector<1x8x8xf32> to vector<8x8xf32>
    %c19_i32 = arith.constant 19 : i32
    %14 = tpu.dynamic_rotate %11 by %c19_i32 dim 1 : vector<8x384xf32>, i32 -> vector<8x384xf32>
    %cst = arith.constant dense<0.000000e+00> : vector<8x384xf32>
    %15 = tpu.matmul %13, %14, %cst {dimension_numbers = #tpu.dot_dimension_numbers<[1], [0], [0], [1], [0, 0, 1, 1], [], []>} : vector<8x8xf32>, vector<8x384xf32>, vector<8x384xf32> -> vector<8x384xf32>
    %c1_16 = arith.constant 1 : index
    %c0_17 = arith.constant 0 : index
    %c0_18 = arith.constant 0 : index
    %16 = vector.load %arg3[%c1_16, %c0_17, %c0_18] : memref<9x8x8xf32, #tpu.memory_space<vmem>>, vector<1x8x8xf32>
    %17 = vector.shape_cast %16 : vector<1x8x8xf32> to vector<8x8xf32>
    %c18_i32 = arith.constant 18 : i32
    %18 = tpu.dynamic_rotate %11 by %c18_i32 dim 1 : vector<8x384xf32>, i32 -> vector<8x384xf32>
    %cst_19 = arith.constant dense<0.000000e+00> : vector<8x384xf32>
    %19 = tpu.matmul %17, %18, %cst_19 {dimension_numbers = #tpu.dot_dimension_numbers<[1], [0], [0], [1], [0, 0, 1, 1], [], []>} : vector<8x8xf32>, vector<8x384xf32>, vector<8x384xf32> -> vector<8x384xf32>
    %20 = arith.addf %15, %19 : vector<8x384xf32>
    %c2_20 = arith.constant 2 : index
    %c0_21 = arith.constant 0 : index
    %c0_22 = arith.constant 0 : index
    %21 = vector.load %arg3[%c2_20, %c0_21, %c0_22] : memref<9x8x8xf32, #tpu.memory_space<vmem>>, vector<1x8x8xf32>
    %22 = vector.shape_cast %21 : vector<1x8x8xf32> to vector<8x8xf32>
    %c17_i32 = arith.constant 17 : i32
    %23 = tpu.dynamic_rotate %11 by %c17_i32 dim 1 : vector<8x384xf32>, i32 -> vector<8x384xf32>
    %cst_23 = arith.constant dense<0.000000e+00> : vector<8x384xf32>
    %24 = tpu.matmul %22, %23, %cst_23 {dimension_numbers = #tpu.dot_dimension_numbers<[1], [0], [0], [1], [0, 0, 1, 1], [], []>} : vector<8x8xf32>, vector<8x384xf32>, vector<8x384xf32> -> vector<8x384xf32>
    %25 = arith.addf %20, %24 : vector<8x384xf32>
    %c3_24 = arith.constant 3 : index
    %c0_25 = arith.constant 0 : index
    %c0_26 = arith.constant 0 : index
    %26 = vector.load %arg3[%c3_24, %c0_25, %c0_26] : memref<9x8x8xf32, #tpu.memory_space<vmem>>, vector<1x8x8xf32>
    %27 = vector.shape_cast %26 : vector<1x8x8xf32> to vector<8x8xf32>
    %c1_i32 = arith.constant 1 : i32
    %28 = tpu.dynamic_rotate %11 by %c1_i32 dim 1 : vector<8x384xf32>, i32 -> vector<8x384xf32>
    %cst_27 = arith.constant dense<0.000000e+00> : vector<8x384xf32>
    %29 = tpu.matmul %27, %28, %cst_27 {dimension_numbers = #tpu.dot_dimension_numbers<[1], [0], [0], [1], [0, 0, 1, 1], [], []>} : vector<8x8xf32>, vector<8x384xf32>, vector<8x384xf32> -> vector<8x384xf32>
    %30 = arith.addf %25, %29 : vector<8x384xf32>
    %c4_28 = arith.constant 4 : index
    %c0_29 = arith.constant 0 : index
    %c0_30 = arith.constant 0 : index
    %31 = vector.load %arg3[%c4_28, %c0_29, %c0_30] : memref<9x8x8xf32, #tpu.memory_space<vmem>>, vector<1x8x8xf32>
    %32 = vector.shape_cast %31 : vector<1x8x8xf32> to vector<8x8xf32>
    %cst_31 = arith.constant dense<0.000000e+00> : vector<8x384xf32>
    %33 = tpu.matmul %32, %11, %cst_31 {dimension_numbers = #tpu.dot_dimension_numbers<[1], [0], [0], [1], [0, 0, 1, 1], [], []>} : vector<8x8xf32>, vector<8x384xf32>, vector<8x384xf32> -> vector<8x384xf32>
    %34 = arith.addf %30, %33 : vector<8x384xf32>
    %c5 = arith.constant 5 : index
    %c0_32 = arith.constant 0 : index
    %c0_33 = arith.constant 0 : index
    %35 = vector.load %arg3[%c5, %c0_32, %c0_33] : memref<9x8x8xf32, #tpu.memory_space<vmem>>, vector<1x8x8xf32>
    %36 = vector.shape_cast %35 : vector<1x8x8xf32> to vector<8x8xf32>
    %c383_i32 = arith.constant 383 : i32
    %37 = tpu.dynamic_rotate %11 by %c383_i32 dim 1 : vector<8x384xf32>, i32 -> vector<8x384xf32>
    %cst_34 = arith.constant dense<0.000000e+00> : vector<8x384xf32>
    %38 = tpu.matmul %36, %37, %cst_34 {dimension_numbers = #tpu.dot_dimension_numbers<[1], [0], [0], [1], [0, 0, 1, 1], [], []>} : vector<8x8xf32>, vector<8x384xf32>, vector<8x384xf32> -> vector<8x384xf32>
    %39 = arith.addf %34, %38 : vector<8x384xf32>
    %c6 = arith.constant 6 : index
    %c0_35 = arith.constant 0 : index
    %c0_36 = arith.constant 0 : index
    %40 = vector.load %arg3[%c6, %c0_35, %c0_36] : memref<9x8x8xf32, #tpu.memory_space<vmem>>, vector<1x8x8xf32>
    %41 = vector.shape_cast %40 : vector<1x8x8xf32> to vector<8x8xf32>
    %c367_i32 = arith.constant 367 : i32
    %42 = tpu.dynamic_rotate %11 by %c367_i32 dim 1 : vector<8x384xf32>, i32 -> vector<8x384xf32>
    %cst_37 = arith.constant dense<0.000000e+00> : vector<8x384xf32>
    %43 = tpu.matmul %41, %42, %cst_37 {dimension_numbers = #tpu.dot_dimension_numbers<[1], [0], [0], [1], [0, 0, 1, 1], [], []>} : vector<8x8xf32>, vector<8x384xf32>, vector<8x384xf32> -> vector<8x384xf32>
    %44 = arith.addf %39, %43 : vector<8x384xf32>
    %c7 = arith.constant 7 : index
    %c0_38 = arith.constant 0 : index
    %c0_39 = arith.constant 0 : index
    %45 = vector.load %arg3[%c7, %c0_38, %c0_39] : memref<9x8x8xf32, #tpu.memory_space<vmem>>, vector<1x8x8xf32>
    %46 = vector.shape_cast %45 : vector<1x8x8xf32> to vector<8x8xf32>
    %c366_i32 = arith.constant 366 : i32
    %47 = tpu.dynamic_rotate %11 by %c366_i32 dim 1 : vector<8x384xf32>, i32 -> vector<8x384xf32>
    %cst_40 = arith.constant dense<0.000000e+00> : vector<8x384xf32>
    %48 = tpu.matmul %46, %47, %cst_40 {dimension_numbers = #tpu.dot_dimension_numbers<[1], [0], [0], [1], [0, 0, 1, 1], [], []>} : vector<8x8xf32>, vector<8x384xf32>, vector<8x384xf32> -> vector<8x384xf32>
    %49 = arith.addf %44, %48 : vector<8x384xf32>
    %c8 = arith.constant 8 : index
    %c0_41 = arith.constant 0 : index
    %c0_42 = arith.constant 0 : index
    %50 = vector.load %arg3[%c8, %c0_41, %c0_42] : memref<9x8x8xf32, #tpu.memory_space<vmem>>, vector<1x8x8xf32>
    %51 = vector.shape_cast %50 : vector<1x8x8xf32> to vector<8x8xf32>
    %c365_i32 = arith.constant 365 : i32
    %52 = tpu.dynamic_rotate %11 by %c365_i32 dim 1 : vector<8x384xf32>, i32 -> vector<8x384xf32>
    %cst_43 = arith.constant dense<0.000000e+00> : vector<8x384xf32>
    %53 = tpu.matmul %51, %52, %cst_43 {dimension_numbers = #tpu.dot_dimension_numbers<[1], [0], [0], [1], [0, 0, 1, 1], [], []>} : vector<8x8xf32>, vector<8x384xf32>, vector<8x384xf32> -> vector<8x384xf32>
    %54 = arith.addf %49, %53 : vector<8x384xf32>
    %c0_44 = arith.constant 0 : index
    %c0_45 = arith.constant 0 : index
    %55 = vector.load %arg4[%c0_44, %c0_45] : memref<8x1xf32, #tpu.memory_space<vmem>>, vector<8x1xf32>
    %56 = vector.broadcast %55 : vector<8x1xf32> to vector<8x384xf32>
    %57 = arith.addf %54, %56 : vector<8x384xf32>
    %58 = vector.broadcast %1 : vector<1x384xf32> to vector<8x384xf32>
    %59 = arith.mulf %57, %58 : vector<8x384xf32>
    %cst_46 = arith.constant dense<0.000000e+00> : vector<8xf32>
    %60 = vector.multi_reduction <add>, %59, %cst_46 [1] : vector<8x384xf32> to vector<8xf32>
    %61 = vector.shape_cast %60 : vector<8xf32> to vector<8x1xf32>
    %cst_47 = arith.constant 3.906250e-03 : f32
    %62 = vector.broadcast %cst_47 : f32 to vector<8x1xf32>
    %63 = arith.mulf %61, %62 : vector<8x1xf32>
    %64 = arith.mulf %59, %57 : vector<8x384xf32>
    %cst_48 = arith.constant dense<0.000000e+00> : vector<8xf32>
    %65 = vector.multi_reduction <add>, %64, %cst_48 [1] : vector<8x384xf32> to vector<8xf32>
    %66 = vector.shape_cast %65 : vector<8xf32> to vector<8x1xf32>
    %cst_49 = arith.constant 3.906250e-03 : f32
    %67 = vector.broadcast %cst_49 : f32 to vector<8x1xf32>
    %68 = arith.mulf %66, %67 : vector<8x1xf32>
    %69 = arith.mulf %63, %63 : vector<8x1xf32>
    %70 = arith.subf %68, %69 : vector<8x1xf32>
    %71 = vector.broadcast %63 : vector<8x1xf32> to vector<8x384xf32>
    %72 = arith.subf %57, %71 : vector<8x384xf32>
    %73 = vector.broadcast %1 : vector<1x384xf32> to vector<8x384xf32>
    %74 = arith.mulf %72, %73 : vector<8x384xf32>
    %cst_50 = arith.constant 9.99999974E-6 : f32
    %75 = vector.broadcast %cst_50 : f32 to vector<8x1xf32>
    %76 = arith.addf %70, %75 : vector<8x1xf32>
    %77 = math.rsqrt %76 : vector<8x1xf32>
    %78 = vector.broadcast %77 : vector<8x1xf32> to vector<8x384xf32>
    %79 = arith.mulf %74, %78 : vector<8x384xf32>
    %cst_51 = arith.constant 0.000000e+00 : f32
    %80 = vector.broadcast %cst_51 : f32 to vector<8x384xf32>
    %81 = arith.maximumf %79, %80 : vector<8x384xf32>
    %c348_i32 = arith.constant 348 : i32
    %82 = tpu.dynamic_rotate %81 by %c348_i32 dim 1 : vector<8x384xf32>, i32 -> vector<8x384xf32>
    %cst_52 = arith.constant 1.000000e+00 : f32
    %83 = vector.broadcast %cst_52 : f32 to vector<1x384xf32>
    %84 = arith.subf %83, %3 : vector<1x384xf32>
    %85 = vector.broadcast %84 : vector<1x384xf32> to vector<8x384xf32>
    %86 = arith.mulf %81, %85 : vector<8x384xf32>
    %87 = vector.broadcast %3 : vector<1x384xf32> to vector<8x384xf32>
    %88 = arith.mulf %82, %87 : vector<8x384xf32>
    %89 = arith.addf %86, %88 : vector<8x384xf32>
    %c36_i32 = arith.constant 36 : i32
    %90 = tpu.dynamic_rotate %89 by %c36_i32 dim 1 : vector<8x384xf32>, i32 -> vector<8x384xf32>
    %cst_53 = arith.constant 1.000000e+00 : f32
    %91 = vector.broadcast %cst_53 : f32 to vector<1x384xf32>
    %92 = arith.subf %91, %5 : vector<1x384xf32>
    %93 = vector.broadcast %92 : vector<1x384xf32> to vector<8x384xf32>
    %94 = arith.mulf %89, %93 : vector<8x384xf32>
    %95 = vector.broadcast %5 : vector<1x384xf32> to vector<8x384xf32>
    %96 = arith.mulf %90, %95 : vector<8x384xf32>
    %97 = arith.addf %94, %96 : vector<8x384xf32>
    %c382_i32 = arith.constant 382 : i32
    %98 = tpu.dynamic_rotate %97 by %c382_i32 dim 1 : vector<8x384xf32>, i32 -> vector<8x384xf32>
    %cst_54 = arith.constant 1.000000e+00 : f32
    %99 = vector.broadcast %cst_54 : f32 to vector<1x384xf32>
    %100 = arith.subf %99, %7 : vector<1x384xf32>
    %101 = vector.broadcast %100 : vector<1x384xf32> to vector<8x384xf32>
    %102 = arith.mulf %97, %101 : vector<8x384xf32>
    %103 = vector.broadcast %7 : vector<1x384xf32> to vector<8x384xf32>
    %104 = arith.mulf %98, %103 : vector<8x384xf32>
    %105 = arith.addf %102, %104 : vector<8x384xf32>
    %c2_i32 = arith.constant 2 : i32
    %106 = tpu.dynamic_rotate %105 by %c2_i32 dim 1 : vector<8x384xf32>, i32 -> vector<8x384xf32>
    %cst_55 = arith.constant 1.000000e+00 : f32
    %107 = vector.broadcast %cst_55 : f32 to vector<1x384xf32>
    %108 = arith.subf %107, %9 : vector<1x384xf32>
    %109 = vector.broadcast %108 : vector<1x384xf32> to vector<8x384xf32>
    %110 = arith.mulf %105, %109 : vector<8x384xf32>
    %111 = vector.broadcast %9 : vector<1x384xf32> to vector<8x384xf32>
    %112 = arith.mulf %106, %111 : vector<8x384xf32>
    %113 = arith.addf %110, %112 : vector<8x384xf32>
    %c0_56 = arith.constant 0 : index
    %c0_57 = arith.constant 0 : index
    %c0_58 = arith.constant 0 : index
    %114 = vector.load %arg5[%c0_56, %c0_57, %c0_58] : memref<9x8x8xf32, #tpu.memory_space<vmem>>, vector<1x8x8xf32>
    %115 = vector.shape_cast %114 : vector<1x8x8xf32> to vector<8x8xf32>
    %c19_i32_59 = arith.constant 19 : i32
    %116 = tpu.dynamic_rotate %113 by %c19_i32_59 dim 1 : vector<8x384xf32>, i32 -> vector<8x384xf32>
    %cst_60 = arith.constant dense<0.000000e+00> : vector<8x384xf32>
    %117 = tpu.matmul %115, %116, %cst_60 {dimension_numbers = #tpu.dot_dimension_numbers<[1], [0], [0], [1], [0, 0, 1, 1], [], []>} : vector<8x8xf32>, vector<8x384xf32>, vector<8x384xf32> -> vector<8x384xf32>
    %c1_61 = arith.constant 1 : index
    %c0_62 = arith.constant 0 : index
    %c0_63 = arith.constant 0 : index
    %118 = vector.load %arg5[%c1_61, %c0_62, %c0_63] : memref<9x8x8xf32, #tpu.memory_space<vmem>>, vector<1x8x8xf32>
    %119 = vector.shape_cast %118 : vector<1x8x8xf32> to vector<8x8xf32>
    %c18_i32_64 = arith.constant 18 : i32
    %120 = tpu.dynamic_rotate %113 by %c18_i32_64 dim 1 : vector<8x384xf32>, i32 -> vector<8x384xf32>
    %cst_65 = arith.constant dense<0.000000e+00> : vector<8x384xf32>
    %121 = tpu.matmul %119, %120, %cst_65 {dimension_numbers = #tpu.dot_dimension_numbers<[1], [0], [0], [1], [0, 0, 1, 1], [], []>} : vector<8x8xf32>, vector<8x384xf32>, vector<8x384xf32> -> vector<8x384xf32>
    %122 = arith.addf %117, %121 : vector<8x384xf32>
    %c2_66 = arith.constant 2 : index
    %c0_67 = arith.constant 0 : index
    %c0_68 = arith.constant 0 : index
    %123 = vector.load %arg5[%c2_66, %c0_67, %c0_68] : memref<9x8x8xf32, #tpu.memory_space<vmem>>, vector<1x8x8xf32>
    %124 = vector.shape_cast %123 : vector<1x8x8xf32> to vector<8x8xf32>
    %c17_i32_69 = arith.constant 17 : i32
    %125 = tpu.dynamic_rotate %113 by %c17_i32_69 dim 1 : vector<8x384xf32>, i32 -> vector<8x384xf32>
    %cst_70 = arith.constant dense<0.000000e+00> : vector<8x384xf32>
    %126 = tpu.matmul %124, %125, %cst_70 {dimension_numbers = #tpu.dot_dimension_numbers<[1], [0], [0], [1], [0, 0, 1, 1], [], []>} : vector<8x8xf32>, vector<8x384xf32>, vector<8x384xf32> -> vector<8x384xf32>
    %127 = arith.addf %122, %126 : vector<8x384xf32>
    %c3_71 = arith.constant 3 : index
    %c0_72 = arith.constant 0 : index
    %c0_73 = arith.constant 0 : index
    %128 = vector.load %arg5[%c3_71, %c0_72, %c0_73] : memref<9x8x8xf32, #tpu.memory_space<vmem>>, vector<1x8x8xf32>
    %129 = vector.shape_cast %128 : vector<1x8x8xf32> to vector<8x8xf32>
    %c1_i32_74 = arith.constant 1 : i32
    %130 = tpu.dynamic_rotate %113 by %c1_i32_74 dim 1 : vector<8x384xf32>, i32 -> vector<8x384xf32>
    %cst_75 = arith.constant dense<0.000000e+00> : vector<8x384xf32>
    %131 = tpu.matmul %129, %130, %cst_75 {dimension_numbers = #tpu.dot_dimension_numbers<[1], [0], [0], [1], [0, 0, 1, 1], [], []>} : vector<8x8xf32>, vector<8x384xf32>, vector<8x384xf32> -> vector<8x384xf32>
    %132 = arith.addf %127, %131 : vector<8x384xf32>
    %c4_76 = arith.constant 4 : index
    %c0_77 = arith.constant 0 : index
    %c0_78 = arith.constant 0 : index
    %133 = vector.load %arg5[%c4_76, %c0_77, %c0_78] : memref<9x8x8xf32, #tpu.memory_space<vmem>>, vector<1x8x8xf32>
    %134 = vector.shape_cast %133 : vector<1x8x8xf32> to vector<8x8xf32>
    %cst_79 = arith.constant dense<0.000000e+00> : vector<8x384xf32>
    %135 = tpu.matmul %134, %113, %cst_79 {dimension_numbers = #tpu.dot_dimension_numbers<[1], [0], [0], [1], [0, 0, 1, 1], [], []>} : vector<8x8xf32>, vector<8x384xf32>, vector<8x384xf32> -> vector<8x384xf32>
    %136 = arith.addf %132, %135 : vector<8x384xf32>
    %c5_80 = arith.constant 5 : index
    %c0_81 = arith.constant 0 : index
    %c0_82 = arith.constant 0 : index
    %137 = vector.load %arg5[%c5_80, %c0_81, %c0_82] : memref<9x8x8xf32, #tpu.memory_space<vmem>>, vector<1x8x8xf32>
    %138 = vector.shape_cast %137 : vector<1x8x8xf32> to vector<8x8xf32>
    %c383_i32_83 = arith.constant 383 : i32
    %139 = tpu.dynamic_rotate %113 by %c383_i32_83 dim 1 : vector<8x384xf32>, i32 -> vector<8x384xf32>
    %cst_84 = arith.constant dense<0.000000e+00> : vector<8x384xf32>
    %140 = tpu.matmul %138, %139, %cst_84 {dimension_numbers = #tpu.dot_dimension_numbers<[1], [0], [0], [1], [0, 0, 1, 1], [], []>} : vector<8x8xf32>, vector<8x384xf32>, vector<8x384xf32> -> vector<8x384xf32>
    %141 = arith.addf %136, %140 : vector<8x384xf32>
    %c6_85 = arith.constant 6 : index
    %c0_86 = arith.constant 0 : index
    %c0_87 = arith.constant 0 : index
    %142 = vector.load %arg5[%c6_85, %c0_86, %c0_87] : memref<9x8x8xf32, #tpu.memory_space<vmem>>, vector<1x8x8xf32>
    %143 = vector.shape_cast %142 : vector<1x8x8xf32> to vector<8x8xf32>
    %c367_i32_88 = arith.constant 367 : i32
    %144 = tpu.dynamic_rotate %113 by %c367_i32_88 dim 1 : vector<8x384xf32>, i32 -> vector<8x384xf32>
    %cst_89 = arith.constant dense<0.000000e+00> : vector<8x384xf32>
    %145 = tpu.matmul %143, %144, %cst_89 {dimension_numbers = #tpu.dot_dimension_numbers<[1], [0], [0], [1], [0, 0, 1, 1], [], []>} : vector<8x8xf32>, vector<8x384xf32>, vector<8x384xf32> -> vector<8x384xf32>
    %146 = arith.addf %141, %145 : vector<8x384xf32>
    %c7_90 = arith.constant 7 : index
    %c0_91 = arith.constant 0 : index
    %c0_92 = arith.constant 0 : index
    %147 = vector.load %arg5[%c7_90, %c0_91, %c0_92] : memref<9x8x8xf32, #tpu.memory_space<vmem>>, vector<1x8x8xf32>
    %148 = vector.shape_cast %147 : vector<1x8x8xf32> to vector<8x8xf32>
    %c366_i32_93 = arith.constant 366 : i32
    %149 = tpu.dynamic_rotate %113 by %c366_i32_93 dim 1 : vector<8x384xf32>, i32 -> vector<8x384xf32>
    %cst_94 = arith.constant dense<0.000000e+00> : vector<8x384xf32>
    %150 = tpu.matmul %148, %149, %cst_94 {dimension_numbers = #tpu.dot_dimension_numbers<[1], [0], [0], [1], [0, 0, 1, 1], [], []>} : vector<8x8xf32>, vector<8x384xf32>, vector<8x384xf32> -> vector<8x384xf32>
    %151 = arith.addf %146, %150 : vector<8x384xf32>
    %c8_95 = arith.constant 8 : index
    %c0_96 = arith.constant 0 : index
    %c0_97 = arith.constant 0 : index
    %152 = vector.load %arg5[%c8_95, %c0_96, %c0_97] : memref<9x8x8xf32, #tpu.memory_space<vmem>>, vector<1x8x8xf32>
    %153 = vector.shape_cast %152 : vector<1x8x8xf32> to vector<8x8xf32>
    %c365_i32_98 = arith.constant 365 : i32
    %154 = tpu.dynamic_rotate %113 by %c365_i32_98 dim 1 : vector<8x384xf32>, i32 -> vector<8x384xf32>
    %cst_99 = arith.constant dense<0.000000e+00> : vector<8x384xf32>
    %155 = tpu.matmul %153, %154, %cst_99 {dimension_numbers = #tpu.dot_dimension_numbers<[1], [0], [0], [1], [0, 0, 1, 1], [], []>} : vector<8x8xf32>, vector<8x384xf32>, vector<8x384xf32> -> vector<8x384xf32>
    %156 = arith.addf %151, %155 : vector<8x384xf32>
    %c0_100 = arith.constant 0 : index
    %c0_101 = arith.constant 0 : index
    %157 = vector.load %arg6[%c0_100, %c0_101] : memref<8x1xf32, #tpu.memory_space<vmem>>, vector<8x1xf32>
    %158 = vector.broadcast %157 : vector<8x1xf32> to vector<8x384xf32>
    %159 = arith.addf %156, %158 : vector<8x384xf32>
    %160 = vector.broadcast %1 : vector<1x384xf32> to vector<8x384xf32>
    %161 = arith.mulf %159, %160 : vector<8x384xf32>
    %cst_102 = arith.constant dense<0.000000e+00> : vector<8xf32>
    %162 = vector.multi_reduction <add>, %161, %cst_102 [1] : vector<8x384xf32> to vector<8xf32>
    %163 = vector.shape_cast %162 : vector<8xf32> to vector<8x1xf32>
    %cst_103 = arith.constant 3.906250e-03 : f32
    %164 = vector.broadcast %cst_103 : f32 to vector<8x1xf32>
    %165 = arith.mulf %163, %164 : vector<8x1xf32>
    %166 = arith.mulf %161, %159 : vector<8x384xf32>
    %cst_104 = arith.constant dense<0.000000e+00> : vector<8xf32>
    %167 = vector.multi_reduction <add>, %166, %cst_104 [1] : vector<8x384xf32> to vector<8xf32>
    %168 = vector.shape_cast %167 : vector<8xf32> to vector<8x1xf32>
    %cst_105 = arith.constant 3.906250e-03 : f32
    %169 = vector.broadcast %cst_105 : f32 to vector<8x1xf32>
    %170 = arith.mulf %168, %169 : vector<8x1xf32>
    %171 = arith.mulf %165, %165 : vector<8x1xf32>
    %172 = arith.subf %170, %171 : vector<8x1xf32>
    %173 = vector.broadcast %165 : vector<8x1xf32> to vector<8x384xf32>
    %174 = arith.subf %159, %173 : vector<8x384xf32>
    %175 = vector.broadcast %1 : vector<1x384xf32> to vector<8x384xf32>
    %176 = arith.mulf %174, %175 : vector<8x384xf32>
    %cst_106 = arith.constant 9.99999974E-6 : f32
    %177 = vector.broadcast %cst_106 : f32 to vector<8x1xf32>
    %178 = arith.addf %172, %177 : vector<8x1xf32>
    %179 = math.rsqrt %178 : vector<8x1xf32>
    %180 = vector.broadcast %179 : vector<8x1xf32> to vector<8x384xf32>
    %181 = arith.mulf %176, %180 : vector<8x384xf32>
    %182 = arith.addf %11, %181 : vector<8x384xf32>
    %c0_107 = arith.constant 0 : index
    %c0_108 = arith.constant 0 : index
    %c0_109 = arith.constant 0 : index
    %183 = vector.load %arg7[%c0_107, %c0_108, %c0_109] : memref<1x8x384xf32, #tpu.memory_space<vmem>>, vector<1x8x384xf32>
    %184 = vector.shape_cast %183 : vector<1x8x384xf32> to vector<8x384xf32>
    %185 = vector.shape_cast %182 : vector<8x384xf32> to vector<1x8x384xf32>
    tpu.vector_store %arg7[%c0_107, %c0_108, %c0_109], %185 {strides = array<i32>} : memref<1x8x384xf32, #tpu.memory_space<vmem>>, vector<1x8x384xf32>,
    return
  }
  func.func @transform_0(%arg0: i32) -> (i32, i32, i32) {
    %c0_i32 = arith.constant 0 : i32
    %c0_i32_0 = arith.constant 0 : i32
    %c0_i32_1 = arith.constant 0 : i32
    return %arg0, %c0_i32, %c0_i32_0 : i32, i32, i32
  }
  func.func @transform_1(%arg0: i32) -> (i32, i32, i32) {
    %c0_i32 = arith.constant 0 : i32
    %c0_i32_0 = arith.constant 0 : i32
    %c0_i32_1 = arith.constant 0 : i32
    %c0_i32_2 = arith.constant 0 : i32
    return %c0_i32, %c0_i32_0, %c0_i32_1 : i32, i32, i32
  }
  func.func @transform_2(%arg0: i32) -> (i32, i32, i32) {
    %c0_i32 = arith.constant 0 : i32
    %c0_i32_0 = arith.constant 0 : i32
    %c0_i32_1 = arith.constant 0 : i32
    %c0_i32_2 = arith.constant 0 : i32
    return %c0_i32, %c0_i32_0, %c0_i32_1 : i32, i32, i32
  }
  func.func @transform_3(%arg0: i32) -> (i32, i32) {
    %c0_i32 = arith.constant 0 : i32
    %c0_i32_0 = arith.constant 0 : i32
    %c0_i32_1 = arith.constant 0 : i32
    return %c0_i32, %c0_i32_0 : i32, i32
  }
  func.func @transform_4(%arg0: i32) -> (i32, i32, i32) {
    %c0_i32 = arith.constant 0 : i32
    %c0_i32_0 = arith.constant 0 : i32
    %c0_i32_1 = arith.constant 0 : i32
    %c0_i32_2 = arith.constant 0 : i32
    return %c0_i32, %c0_i32_0, %c0_i32_1 : i32, i32, i32
  }
  func.func @transform_5(%arg0: i32) -> (i32, i32) {
    %c0_i32 = arith.constant 0 : i32
    %c0_i32_0 = arith.constant 0 : i32
    %c0_i32_1 = arith.constant 0 : i32
    return %c0_i32, %c0_i32_0 : i32, i32
  }
  func.func @transform_6(%arg0: i32) -> (i32, i32, i32) {
    %c0_i32 = arith.constant 0 : i32
    %c0_i32_0 = arith.constant 0 : i32
    %c0_i32_1 = arith.constant 0 : i32
    return %arg0, %c0_i32, %c0_i32_0 : i32, i32, i32
  }
}

module attributes {stable_mosaic.version = 11 : i64} {
  func.func @_resblock_kernel(%arg0: i32, %arg1: memref<1x8x384xf32, #tpu.memory_space<vmem>>, %arg2: memref<5x1x384xf32, #tpu.memory_space<vmem>>, %arg3: memref<9x8x8xf32, #tpu.memory_space<vmem>>, %arg4: memref<8x1xf32, #tpu.memory_space<vmem>>, %arg5: memref<9x8x8xf32, #tpu.memory_space<vmem>>, %arg6: memref<8x1xf32, #tpu.memory_space<vmem>>, %arg7: memref<1x8x384xf32, #tpu.memory_space<vmem>>) attributes {dimension_semantics = [#tpu.dimension_semantics<parallel>], iteration_bounds = array<i64: 2>, scalar_prefetch = 0 : i64, scratch_operands = 0 : i64, tpu.core_type = #tpu.core_type<tc>, window_params = [{transform_indices = @transform_0, window_bounds = array<i64: 1, 8, 384>}, {pipeline_mode = #tpu.pipeline_mode<synchronous>, transform_indices = @transform_1, window_bounds = array<i64: 5, 1, 384>}, {pipeline_mode = #tpu.pipeline_mode<synchronous>, transform_indices = @transform_2, window_bounds = array<i64: 9, 8, 8>}, {pipeline_mode = #tpu.pipeline_mode<synchronous>, transform_indices = @transform_3, window_bounds = array<i64: 8, 1>}, {pipeline_mode = #tpu.pipeline_mode<synchronous>, transform_indices = @transform_4, window_bounds = array<i64: 9, 8, 8>}, {pipeline_mode = #tpu.pipeline_mode<synchronous>, transform_indices = @transform_5, window_bounds = array<i64: 8, 1>}, {transform_indices = @transform_6, window_bounds = array<i64: 1, 8, 384>}]} {
    %c0 = arith.constant 0 : index
    %c0_0 = arith.constant 0 : index
    %c0_1 = arith.constant 0 : index
    %0 = vector.load %arg2[%c0, %c0_0, %c0_1] : memref<5x1x384xf32, #tpu.memory_space<vmem>>, vector<1x1x384xf32>
    %1 = vector.shape_cast %0 : vector<1x1x384xf32> to vector<1x384xf32>
    %c1 = arith.constant 1 : index
    %c0_2 = arith.constant 0 : index
    %c0_3 = arith.constant 0 : index
    %2 = vector.load %arg2[%c1, %c0_2, %c0_3] : memref<5x1x384xf32, #tpu.memory_space<vmem>>, vector<1x1x384xf32>
    %3 = vector.shape_cast %2 : vector<1x1x384xf32> to vector<1x384xf32>
    %c2 = arith.constant 2 : index
    %c0_4 = arith.constant 0 : index
    %c0_5 = arith.constant 0 : index
    %4 = vector.load %arg2[%c2, %c0_4, %c0_5] : memref<5x1x384xf32, #tpu.memory_space<vmem>>, vector<1x1x384xf32>
    %5 = vector.shape_cast %4 : vector<1x1x384xf32> to vector<1x384xf32>
    %c3 = arith.constant 3 : index
    %c0_6 = arith.constant 0 : index
    %c0_7 = arith.constant 0 : index
    %6 = vector.load %arg2[%c3, %c0_6, %c0_7] : memref<5x1x384xf32, #tpu.memory_space<vmem>>, vector<1x1x384xf32>
    %7 = vector.shape_cast %6 : vector<1x1x384xf32> to vector<1x384xf32>
    %c4 = arith.constant 4 : index
    %c0_8 = arith.constant 0 : index
    %c0_9 = arith.constant 0 : index
    %8 = vector.load %arg2[%c4, %c0_8, %c0_9] : memref<5x1x384xf32, #tpu.memory_space<vmem>>, vector<1x1x384xf32>
    %9 = vector.shape_cast %8 : vector<1x1x384xf32> to vector<1x384xf32>
    %c0_10 = arith.constant 0 : index
    %c0_11 = arith.constant 0 : index
    %c0_12 = arith.constant 0 : index
    %10 = vector.load %arg1[%c0_10, %c0_11, %c0_12] : memref<1x8x384xf32, #tpu.memory_space<vmem>>, vector<1x8x384xf32>
    %11 = vector.shape_cast %10 : vector<1x8x384xf32> to vector<8x384xf32>
    %c0_13 = arith.constant 0 : index
    %c0_14 = arith.constant 0 : index
    %c0_15 = arith.constant 0 : index
    %12 = vector.load %arg3[%c0_13, %c0_14, %c0_15] : memref<9x8x8xf32, #tpu.memory_space<vmem>>, vector<1x8x8xf32>
    %13 = vector.shape_cast %12 : vector<1x8x8xf32> to vector<8x8xf32>
    %c19_i32 = arith.constant 19 : i32
    %14 = tpu.dynamic_rotate %11 by %c19_i32 dim 1 : vector<8x384xf32>, i32 -> vector<8x384xf32>
    %cst = arith.constant dense<0.000000e+00> : vector<8x384xf32>
    %15 = tpu.matmul %13, %14, %cst {dimension_numbers = #tpu.dot_dimension_numbers<[1], [0], [0], [1], [0, 0, 1, 1], [], []>} : vector<8x8xf32>, vector<8x384xf32>, vector<8x384xf32> -> vector<8x384xf32>
    %c1_16 = arith.constant 1 : index
    %c0_17 = arith.constant 0 : index
    %c0_18 = arith.constant 0 : index
    %16 = vector.load %arg3[%c1_16, %c0_17, %c0_18] : memref<9x8x8xf32, #tpu.memory_space<vmem>>, vector<1x8x8xf32>
    %17 = vector.shape_cast %16 : vector<1x8x8xf32> to vector<8x8xf32>
    %c18_i32 = arith.constant 18 : i32
    %18 = tpu.dynamic_rotate %11 by %c18_i32 dim 1 : vector<8x384xf32>, i32 -> vector<8x384xf32>
    %cst_19 = arith.constant dense<0.000000e+00> : vector<8x384xf32>
    %19 = tpu.matmul %17, %18, %cst_19 {dimension_numbers = #tpu.dot_dimension_numbers<[1], [0], [0], [1], [0, 0, 1, 1], [], []>} : vector<8x8xf32>, vector<8x384xf32>, vector<8x384xf32> -> vector<8x384xf32>
    %20 = arith.addf %15, %19 : vector<8x384xf32>
    %c2_20 = arith.constant 2 : index
    %c0_21 = arith.constant 0 : index
    %c0_22 = arith.constant 0 : index
    %21 = vector.load %arg3[%c2_20, %c0_21, %c0_22] : memref<9x8x8xf32, #tpu.memory_space<vmem>>, vector<1x8x8xf32>
    %22 = vector.shape_cast %21 : vector<1x8x8xf32> to vector<8x8xf32>
    %c17_i32 = arith.constant 17 : i32
    %23 = tpu.dynamic_rotate %11 by %c17_i32 dim 1 : vector<8x384xf32>, i32 -> vector<8x384xf32>
    %cst_23 = arith.constant dense<0.000000e+00> : vector<8x384xf32>
    %24 = tpu.matmul %22, %23, %cst_23 {dimension_numbers = #tpu.dot_dimension_numbers<[1], [0], [0], [1], [0, 0, 1, 1], [], []>} : vector<8x8xf32>, vector<8x384xf32>, vector<8x384xf32> -> vector<8x384xf32>
    %25 = arith.addf %20, %24 : vector<8x384xf32>
    %c3_24 = arith.constant 3 : index
    %c0_25 = arith.constant 0 : index
    %c0_26 = arith.constant 0 : index
    %26 = vector.load %arg3[%c3_24, %c0_25, %c0_26] : memref<9x8x8xf32, #tpu.memory_space<vmem>>, vector<1x8x8xf32>
    %27 = vector.shape_cast %26 : vector<1x8x8xf32> to vector<8x8xf32>
    %c1_i32 = arith.constant 1 : i32
    %28 = tpu.dynamic_rotate %11 by %c1_i32 dim 1 : vector<8x384xf32>, i32 -> vector<8x384xf32>
    %cst_27 = arith.constant dense<0.000000e+00> : vector<8x384xf32>
    %29 = tpu.matmul %27, %28, %cst_27 {dimension_numbers = #tpu.dot_dimension_numbers<[1], [0], [0], [1], [0, 0, 1, 1], [], []>} : vector<8x8xf32>, vector<8x384xf32>, vector<8x384xf32> -> vector<8x384xf32>
    %30 = arith.addf %25, %29 : vector<8x384xf32>
    %c4_28 = arith.constant 4 : index
    %c0_29 = arith.constant 0 : index
    %c0_30 = arith.constant 0 : index
    %31 = vector.load %arg3[%c4_28, %c0_29, %c0_30] : memref<9x8x8xf32, #tpu.memory_space<vmem>>, vector<1x8x8xf32>
    %32 = vector.shape_cast %31 : vector<1x8x8xf32> to vector<8x8xf32>
    %cst_31 = arith.constant dense<0.000000e+00> : vector<8x384xf32>
    %33 = tpu.matmul %32, %11, %cst_31 {dimension_numbers = #tpu.dot_dimension_numbers<[1], [0], [0], [1], [0, 0, 1, 1], [], []>} : vector<8x8xf32>, vector<8x384xf32>, vector<8x384xf32> -> vector<8x384xf32>
    %34 = arith.addf %30, %33 : vector<8x384xf32>
    %c5 = arith.constant 5 : index
    %c0_32 = arith.constant 0 : index
    %c0_33 = arith.constant 0 : index
    %35 = vector.load %arg3[%c5, %c0_32, %c0_33] : memref<9x8x8xf32, #tpu.memory_space<vmem>>, vector<1x8x8xf32>
    %36 = vector.shape_cast %35 : vector<1x8x8xf32> to vector<8x8xf32>
    %c383_i32 = arith.constant 383 : i32
    %37 = tpu.dynamic_rotate %11 by %c383_i32 dim 1 : vector<8x384xf32>, i32 -> vector<8x384xf32>
    %cst_34 = arith.constant dense<0.000000e+00> : vector<8x384xf32>
    %38 = tpu.matmul %36, %37, %cst_34 {dimension_numbers = #tpu.dot_dimension_numbers<[1], [0], [0], [1], [0, 0, 1, 1], [], []>} : vector<8x8xf32>, vector<8x384xf32>, vector<8x384xf32> -> vector<8x384xf32>
    %39 = arith.addf %34, %38 : vector<8x384xf32>
    %c6 = arith.constant 6 : index
    %c0_35 = arith.constant 0 : index
    %c0_36 = arith.constant 0 : index
    %40 = vector.load %arg3[%c6, %c0_35, %c0_36] : memref<9x8x8xf32, #tpu.memory_space<vmem>>, vector<1x8x8xf32>
    %41 = vector.shape_cast %40 : vector<1x8x8xf32> to vector<8x8xf32>
    %c367_i32 = arith.constant 367 : i32
    %42 = tpu.dynamic_rotate %11 by %c367_i32 dim 1 : vector<8x384xf32>, i32 -> vector<8x384xf32>
    %cst_37 = arith.constant dense<0.000000e+00> : vector<8x384xf32>
    %43 = tpu.matmul %41, %42, %cst_37 {dimension_numbers = #tpu.dot_dimension_numbers<[1], [0], [0], [1], [0, 0, 1, 1], [], []>} : vector<8x8xf32>, vector<8x384xf32>, vector<8x384xf32> -> vector<8x384xf32>
    %44 = arith.addf %39, %43 : vector<8x384xf32>
    %c7 = arith.constant 7 : index
    %c0_38 = arith.constant 0 : index
    %c0_39 = arith.constant 0 : index
    %45 = vector.load %arg3[%c7, %c0_38, %c0_39] : memref<9x8x8xf32, #tpu.memory_space<vmem>>, vector<1x8x8xf32>
    %46 = vector.shape_cast %45 : vector<1x8x8xf32> to vector<8x8xf32>
    %c366_i32 = arith.constant 366 : i32
    %47 = tpu.dynamic_rotate %11 by %c366_i32 dim 1 : vector<8x384xf32>, i32 -> vector<8x384xf32>
    %cst_40 = arith.constant dense<0.000000e+00> : vector<8x384xf32>
    %48 = tpu.matmul %46, %47, %cst_40 {dimension_numbers = #tpu.dot_dimension_numbers<[1], [0], [0], [1], [0, 0, 1, 1], [], []>} : vector<8x8xf32>, vector<8x384xf32>, vector<8x384xf32> -> vector<8x384xf32>
    %49 = arith.addf %44, %48 : vector<8x384xf32>
    %c8 = arith.constant 8 : index
    %c0_41 = arith.constant 0 : index
    %c0_42 = arith.constant 0 : index
    %50 = vector.load %arg3[%c8, %c0_41, %c0_42] : memref<9x8x8xf32, #tpu.memory_space<vmem>>, vector<1x8x8xf32>
    %51 = vector.shape_cast %50 : vector<1x8x8xf32> to vector<8x8xf32>
    %c365_i32 = arith.constant 365 : i32
    %52 = tpu.dynamic_rotate %11 by %c365_i32 dim 1 : vector<8x384xf32>, i32 -> vector<8x384xf32>
    %cst_43 = arith.constant dense<0.000000e+00> : vector<8x384xf32>
    %53 = tpu.matmul %51, %52, %cst_43 {dimension_numbers = #tpu.dot_dimension_numbers<[1], [0], [0], [1], [0, 0, 1, 1], [], []>} : vector<8x8xf32>, vector<8x384xf32>, vector<8x384xf32> -> vector<8x384xf32>
    %54 = arith.addf %49, %53 : vector<8x384xf32>
    %c0_44 = arith.constant 0 : index
    %c0_45 = arith.constant 0 : index
    %55 = vector.load %arg4[%c0_44, %c0_45] : memref<8x1xf32, #tpu.memory_space<vmem>>, vector<8x1xf32>
    %56 = vector.broadcast %55 : vector<8x1xf32> to vector<8x384xf32>
    %57 = arith.addf %54, %56 : vector<8x384xf32>
    %58 = vector.broadcast %1 : vector<1x384xf32> to vector<8x384xf32>
    %59 = arith.mulf %57, %58 : vector<8x384xf32>
    %cst_46 = arith.constant dense<0.000000e+00> : vector<8xf32>
    %60 = vector.multi_reduction <add>, %59, %cst_46 [1] : vector<8x384xf32> to vector<8xf32>
    %61 = vector.shape_cast %60 : vector<8xf32> to vector<8x1xf32>
    %cst_47 = arith.constant 3.906250e-03 : f32
    %62 = vector.broadcast %cst_47 : f32 to vector<8x1xf32>
    %63 = arith.mulf %61, %62 : vector<8x1xf32>
    %64 = arith.mulf %59, %57 : vector<8x384xf32>
    %cst_48 = arith.constant dense<0.000000e+00> : vector<8xf32>
    %65 = vector.multi_reduction <add>, %64, %cst_48 [1] : vector<8x384xf32> to vector<8xf32>
    %66 = vector.shape_cast %65 : vector<8xf32> to vector<8x1xf32>
    %cst_49 = arith.constant 3.906250e-03 : f32
    %67 = vector.broadcast %cst_49 : f32 to vector<8x1xf32>
    %68 = arith.mulf %66, %67 : vector<8x1xf32>
    %69 = arith.mulf %63, %63 : vector<8x1xf32>
    %70 = arith.subf %68, %69 : vector<8x1xf32>
    %71 = vector.broadcast %63 : vector<8x1xf32> to vector<8x384xf32>
    %72 = arith.subf %57, %71 : vector<8x384xf32>
    %73 = vector.broadcast %1 : vector<1x384xf32> to vector<8x384xf32>
    %74 = arith.mulf %72, %73 : vector<8x384xf32>
    %cst_50 = arith.constant 9.99999974E-6 : f32
    %75 = vector.broadcast %cst_50 : f32 to vector<8x1xf32>
    %76 = arith.addf %70, %75 : vector<8x1xf32>
    %77 = math.rsqrt %76 : vector<8x1xf32>
    %78 = vector.broadcast %77 : vector<8x1xf32> to vector<8x384xf32>
    %79 = arith.mulf %74, %78 : vector<8x384xf32>
    %cst_51 = arith.constant 0.000000e+00 : f32
    %80 = vector.broadcast %cst_51 : f32 to vector<8x384xf32>
    %81 = arith.maximumf %79, %80 : vector<8x384xf32>
    %c348_i32 = arith.constant 348 : i32
    %82 = tpu.dynamic_rotate %81 by %c348_i32 dim 1 : vector<8x384xf32>, i32 -> vector<8x384xf32>
    %cst_52 = arith.constant 1.000000e+00 : f32
    %83 = vector.broadcast %cst_52 : f32 to vector<1x384xf32>
    %84 = arith.subf %83, %3 : vector<1x384xf32>
    %85 = vector.broadcast %84 : vector<1x384xf32> to vector<8x384xf32>
    %86 = arith.mulf %81, %85 : vector<8x384xf32>
    %87 = vector.broadcast %3 : vector<1x384xf32> to vector<8x384xf32>
    %88 = arith.mulf %82, %87 : vector<8x384xf32>
    %89 = arith.addf %86, %88 : vector<8x384xf32>
    %c36_i32 = arith.constant 36 : i32
    %90 = tpu.dynamic_rotate %89 by %c36_i32 dim 1 : vector<8x384xf32>, i32 -> vector<8x384xf32>
    %cst_53 = arith.constant 1.000000e+00 : f32
    %91 = vector.broadcast %cst_53 : f32 to vector<1x384xf32>
    %92 = arith.subf %91, %5 : vector<1x384xf32>
    %93 = vector.broadcast %92 : vector<1x384xf32> to vector<8x384xf32>
    %94 = arith.mulf %89, %93 : vector<8x384xf32>
    %95 = vector.broadcast %5 : vector<1x384xf32> to vector<8x384xf32>
    %96 = arith.mulf %90, %95 : vector<8x384xf32>
    %97 = arith.addf %94, %96 : vector<8x384xf32>
    %c382_i32 = arith.constant 382 : i32
    %98 = tpu.dynamic_rotate %97 by %c382_i32 dim 1 : vector<8x384xf32>, i32 -> vector<8x384xf32>
    %cst_54 = arith.constant 1.000000e+00 : f32
    %99 = vector.broadcast %cst_54 : f32 to vector<1x384xf32>
    %100 = arith.subf %99, %7 : vector<1x384xf32>
    %101 = vector.broadcast %100 : vector<1x384xf32> to vector<8x384xf32>
    %102 = arith.mulf %97, %101 : vector<8x384xf32>
    %103 = vector.broadcast %7 : vector<1x384xf32> to vector<8x384xf32>
    %104 = arith.mulf %98, %103 : vector<8x384xf32>
    %105 = arith.addf %102, %104 : vector<8x384xf32>
    %c2_i32 = arith.constant 2 : i32
    %106 = tpu.dynamic_rotate %105 by %c2_i32 dim 1 : vector<8x384xf32>, i32 -> vector<8x384xf32>
    %cst_55 = arith.constant 1.000000e+00 : f32
    %107 = vector.broadcast %cst_55 : f32 to vector<1x384xf32>
    %108 = arith.subf %107, %9 : vector<1x384xf32>
    %109 = vector.broadcast %108 : vector<1x384xf32> to vector<8x384xf32>
    %110 = arith.mulf %105, %109 : vector<8x384xf32>
    %111 = vector.broadcast %9 : vector<1x384xf32> to vector<8x384xf32>
    %112 = arith.mulf %106, %111 : vector<8x384xf32>
    %113 = arith.addf %110, %112 : vector<8x384xf32>
    %c0_56 = arith.constant 0 : index
    %c0_57 = arith.constant 0 : index
    %c0_58 = arith.constant 0 : index
    %114 = vector.load %arg5[%c0_56, %c0_57, %c0_58] : memref<9x8x8xf32, #tpu.memory_space<vmem>>, vector<1x8x8xf32>
    %115 = vector.shape_cast %114 : vector<1x8x8xf32> to vector<8x8xf32>
    %c19_i32_59 = arith.constant 19 : i32
    %116 = tpu.dynamic_rotate %113 by %c19_i32_59 dim 1 : vector<8x384xf32>, i32 -> vector<8x384xf32>
    %cst_60 = arith.constant dense<0.000000e+00> : vector<8x384xf32>
    %117 = tpu.matmul %115, %116, %cst_60 {dimension_numbers = #tpu.dot_dimension_numbers<[1], [0], [0], [1], [0, 0, 1, 1], [], []>} : vector<8x8xf32>, vector<8x384xf32>, vector<8x384xf32> -> vector<8x384xf32>
    %c1_61 = arith.constant 1 : index
    %c0_62 = arith.constant 0 : index
    %c0_63 = arith.constant 0 : index
    %118 = vector.load %arg5[%c1_61, %c0_62, %c0_63] : memref<9x8x8xf32, #tpu.memory_space<vmem>>, vector<1x8x8xf32>
    %119 = vector.shape_cast %118 : vector<1x8x8xf32> to vector<8x8xf32>
    %c18_i32_64 = arith.constant 18 : i32
    %120 = tpu.dynamic_rotate %113 by %c18_i32_64 dim 1 : vector<8x384xf32>, i32 -> vector<8x384xf32>
    %cst_65 = arith.constant dense<0.000000e+00> : vector<8x384xf32>
    %121 = tpu.matmul %119, %120, %cst_65 {dimension_numbers = #tpu.dot_dimension_numbers<[1], [0], [0], [1], [0, 0, 1, 1], [], []>} : vector<8x8xf32>, vector<8x384xf32>, vector<8x384xf32> -> vector<8x384xf32>
    %122 = arith.addf %117, %121 : vector<8x384xf32>
    %c2_66 = arith.constant 2 : index
    %c0_67 = arith.constant 0 : index
    %c0_68 = arith.constant 0 : index
    %123 = vector.load %arg5[%c2_66, %c0_67, %c0_68] : memref<9x8x8xf32, #tpu.memory_space<vmem>>, vector<1x8x8xf32>
    %124 = vector.shape_cast %123 : vector<1x8x8xf32> to vector<8x8xf32>
    %c17_i32_69 = arith.constant 17 : i32
    %125 = tpu.dynamic_rotate %113 by %c17_i32_69 dim 1 : vector<8x384xf32>, i32 -> vector<8x384xf32>
    %cst_70 = arith.constant dense<0.000000e+00> : vector<8x384xf32>
    %126 = tpu.matmul %124, %125, %cst_70 {dimension_numbers = #tpu.dot_dimension_numbers<[1], [0], [0], [1], [0, 0, 1, 1], [], []>} : vector<8x8xf32>, vector<8x384xf32>, vector<8x384xf32> -> vector<8x384xf32>
    %127 = arith.addf %122, %126 : vector<8x384xf32>
    %c3_71 = arith.constant 3 : index
    %c0_72 = arith.constant 0 : index
    %c0_73 = arith.constant 0 : index
    %128 = vector.load %arg5[%c3_71, %c0_72, %c0_73] : memref<9x8x8xf32, #tpu.memory_space<vmem>>, vector<1x8x8xf32>
    %129 = vector.shape_cast %128 : vector<1x8x8xf32> to vector<8x8xf32>
    %c1_i32_74 = arith.constant 1 : i32
    %130 = tpu.dynamic_rotate %113 by %c1_i32_74 dim 1 : vector<8x384xf32>, i32 -> vector<8x384xf32>
    %cst_75 = arith.constant dense<0.000000e+00> : vector<8x384xf32>
    %131 = tpu.matmul %129, %130, %cst_75 {dimension_numbers = #tpu.dot_dimension_numbers<[1], [0], [0], [1], [0, 0, 1, 1], [], []>} : vector<8x8xf32>, vector<8x384xf32>, vector<8x384xf32> -> vector<8x384xf32>
    %132 = arith.addf %127, %131 : vector<8x384xf32>
    %c4_76 = arith.constant 4 : index
    %c0_77 = arith.constant 0 : index
    %c0_78 = arith.constant 0 : index
    %133 = vector.load %arg5[%c4_76, %c0_77, %c0_78] : memref<9x8x8xf32, #tpu.memory_space<vmem>>, vector<1x8x8xf32>
    %134 = vector.shape_cast %133 : vector<1x8x8xf32> to vector<8x8xf32>
    %cst_79 = arith.constant dense<0.000000e+00> : vector<8x384xf32>
    %135 = tpu.matmul %134, %113, %cst_79 {dimension_numbers = #tpu.dot_dimension_numbers<[1], [0], [0], [1], [0, 0, 1, 1], [], []>} : vector<8x8xf32>, vector<8x384xf32>, vector<8x384xf32> -> vector<8x384xf32>
    %136 = arith.addf %132, %135 : vector<8x384xf32>
    %c5_80 = arith.constant 5 : index
    %c0_81 = arith.constant 0 : index
    %c0_82 = arith.constant 0 : index
    %137 = vector.load %arg5[%c5_80, %c0_81, %c0_82] : memref<9x8x8xf32, #tpu.memory_space<vmem>>, vector<1x8x8xf32>
    %138 = vector.shape_cast %137 : vector<1x8x8xf32> to vector<8x8xf32>
    %c383_i32_83 = arith.constant 383 : i32
    %139 = tpu.dynamic_rotate %113 by %c383_i32_83 dim 1 : vector<8x384xf32>, i32 -> vector<8x384xf32>
    %cst_84 = arith.constant dense<0.000000e+00> : vector<8x384xf32>
    %140 = tpu.matmul %138, %139, %cst_84 {dimension_numbers = #tpu.dot_dimension_numbers<[1], [0], [0], [1], [0, 0, 1, 1], [], []>} : vector<8x8xf32>, vector<8x384xf32>, vector<8x384xf32> -> vector<8x384xf32>
    %141 = arith.addf %136, %140 : vector<8x384xf32>
    %c6_85 = arith.constant 6 : index
    %c0_86 = arith.constant 0 : index
    %c0_87 = arith.constant 0 : index
    %142 = vector.load %arg5[%c6_85, %c0_86, %c0_87] : memref<9x8x8xf32, #tpu.memory_space<vmem>>, vector<1x8x8xf32>
    %143 = vector.shape_cast %142 : vector<1x8x8xf32> to vector<8x8xf32>
    %c367_i32_88 = arith.constant 367 : i32
    %144 = tpu.dynamic_rotate %113 by %c367_i32_88 dim 1 : vector<8x384xf32>, i32 -> vector<8x384xf32>
    %cst_89 = arith.constant dense<0.000000e+00> : vector<8x384xf32>
    %145 = tpu.matmul %143, %144, %cst_89 {dimension_numbers = #tpu.dot_dimension_numbers<[1], [0], [0], [1], [0, 0, 1, 1], [], []>} : vector<8x8xf32>, vector<8x384xf32>, vector<8x384xf32> -> vector<8x384xf32>
    %146 = arith.addf %141, %145 : vector<8x384xf32>
    %c7_90 = arith.constant 7 : index
    %c0_91 = arith.constant 0 : index
    %c0_92 = arith.constant 0 : index
    %147 = vector.load %arg5[%c7_90, %c0_91, %c0_92] : memref<9x8x8xf32, #tpu.memory_space<vmem>>, vector<1x8x8xf32>
    %148 = vector.shape_cast %147 : vector<1x8x8xf32> to vector<8x8xf32>
    %c366_i32_93 = arith.constant 366 : i32
    %149 = tpu.dynamic_rotate %113 by %c366_i32_93 dim 1 : vector<8x384xf32>, i32 -> vector<8x384xf32>
    %cst_94 = arith.constant dense<0.000000e+00> : vector<8x384xf32>
    %150 = tpu.matmul %148, %149, %cst_94 {dimension_numbers = #tpu.dot_dimension_numbers<[1], [0], [0], [1], [0, 0, 1, 1], [], []>} : vector<8x8xf32>, vector<8x384xf32>, vector<8x384xf32> -> vector<8x384xf32>
    %151 = arith.addf %146, %150 : vector<8x384xf32>
    %c8_95 = arith.constant 8 : index
    %c0_96 = arith.constant 0 : index
    %c0_97 = arith.constant 0 : index
    %152 = vector.load %arg5[%c8_95, %c0_96, %c0_97] : memref<9x8x8xf32, #tpu.memory_space<vmem>>, vector<1x8x8xf32>
    %153 = vector.shape_cast %152 : vector<1x8x8xf32> to vector<8x8xf32>
    %c365_i32_98 = arith.constant 365 : i32
    %154 = tpu.dynamic_rotate %113 by %c365_i32_98 dim 1 : vector<8x384xf32>, i32 -> vector<8x384xf32>
    %cst_99 = arith.constant dense<0.000000e+00> : vector<8x384xf32>
    %155 = tpu.matmul %153, %154, %cst_99 {dimension_numbers = #tpu.dot_dimension_numbers<[1], [0], [0], [1], [0, 0, 1, 1], [], []>} : vector<8x8xf32>, vector<8x384xf32>, vector<8x384xf32> -> vector<8x384xf32>
    %156 = arith.addf %151, %155 : vector<8x384xf32>
    %c0_100 = arith.constant 0 : index
    %c0_101 = arith.constant 0 : index
    %157 = vector.load %arg6[%c0_100, %c0_101] : memref<8x1xf32, #tpu.memory_space<vmem>>, vector<8x1xf32>
    %158 = vector.broadcast %157 : vector<8x1xf32> to vector<8x384xf32>
    %159 = arith.addf %156, %158 : vector<8x384xf32>
    %160 = vector.broadcast %1 : vector<1x384xf32> to vector<8x384xf32>
    %161 = arith.mulf %159, %160 : vector<8x384xf32>
    %cst_102 = arith.constant dense<0.000000e+00> : vector<8xf32>
    %162 = vector.multi_reduction <add>, %161, %cst_102 [1] : vector<8x384xf32> to vector<8xf32>
    %163 = vector.shape_cast %162 : vector<8xf32> to vector<8x1xf32>
    %cst_103 = arith.constant 3.906250e-03 : f32
    %164 = vector.broadcast %cst_103 : f32 to vector<8x1xf32>
    %165 = arith.mulf %163, %164 : vector<8x1xf32>
    %166 = arith.mulf %161, %159 : vector<8x384xf32>
    %cst_104 = arith.constant dense<0.000000e+00> : vector<8xf32>
    %167 = vector.multi_reduction <add>, %166, %cst_104 [1] : vector<8x384xf32> to vector<8xf32>
    %168 = vector.shape_cast %167 : vector<8xf32> to vector<8x1xf32>
    %cst_105 = arith.constant 3.906250e-03 : f32
    %169 = vector.broadcast %cst_105 : f32 to vector<8x1xf32>
    %170 = arith.mulf %168, %169 : vector<8x1xf32>
    %171 = arith.mulf %165, %165 : vector<8x1xf32>
    %172 = arith.subf %170, %171 : vector<8x1xf32>
    %173 = vector.broadcast %165 : vector<8x1xf32> to vector<8x384xf32>
    %174 = arith.subf %159, %173 : vector<8x384xf32>
    %175 = vector.broadcast %1 : vector<1x384xf32> to vector<8x384xf32>
    %176 = arith.mulf %174, %175 : vector<8x384xf32>
    %cst_106 = arith.constant 9.99999974E-6 : f32
    %177 = vector.broadcast %cst_106 : f32 to vector<8x1xf32>
    %178 = arith.addf %172, %177 : vector<8x1xf32>
    %179 = math.rsqrt %178 : vector<8x1xf32>
    %180 = vector.broadcast %179 : vector<8x1xf32> to vector<8x384xf32>
    %181 = arith.mulf %176, %180 : vector<8x384xf32>
    %182 = arith.addf %11, %181 : vector<8x384xf32>
    %c0_107 = arith.constant 0 : index
    %c0_108 = arith.constant 0 : index
    %c0_109 = arith.constant 0 : index
    %183 = vector.load %arg7[%c0_107, %c0_108, %c0_109] : memref<1x8x384xf32, #tpu.memory_space<vmem>>, vector<1x8x384xf32>
    %184 = vector.shape_cast %183 : vector<1x8x384xf32> to vector<8x384xf32>
    %185 = vector.shape_cast %182 : vector<8x384xf32> to vector<1x8x384xf32>
    tpu.vector_store %arg7[%c0_107, %c0_108, %c0_109], %185 {strides = array<i32>} : memref<1x8x384xf32, #tpu.memory_space<vmem>>, vector<1x8x384xf32>,
    return
  }
  func.func @transform_0(%arg0: i32) -> (i32, i32, i32) {
    %c0_i32 = arith.constant 0 : i32
    %c0_i32_0 = arith.constant 0 : i32
    %c0_i32_1 = arith.constant 0 : i32
    return %arg0, %c0_i32, %c0_i32_0 : i32, i32, i32
  }
  func.func @transform_1(%arg0: i32) -> (i32, i32, i32) {
    %c0_i32 = arith.constant 0 : i32
    %c0_i32_0 = arith.constant 0 : i32
    %c0_i32_1 = arith.constant 0 : i32
    %c0_i32_2 = arith.constant 0 : i32
    return %c0_i32, %c0_i32_0, %c0_i32_1 : i32, i32, i32
  }
  func.func @transform_2(%arg0: i32) -> (i32, i32, i32) {
    %c0_i32 = arith.constant 0 : i32
    %c0_i32_0 = arith.constant 0 : i32
    %c0_i32_1 = arith.constant 0 : i32
    %c0_i32_2 = arith.constant 0 : i32
    return %c0_i32, %c0_i32_0, %c0_i32_1 : i32, i32, i32
  }
  func.func @transform_3(%arg0: i32) -> (i32, i32) {
    %c0_i32 = arith.constant 0 : i32
    %c0_i32_0 = arith.constant 0 : i32
    %c0_i32_1 = arith.constant 0 : i32
    return %c0_i32, %c0_i32_0 : i32, i32
  }
  func.func @transform_4(%arg0: i32) -> (i32, i32, i32) {
    %c0_i32 = arith.constant 0 : i32
    %c0_i32_0 = arith.constant 0 : i32
    %c0_i32_1 = arith.constant 0 : i32
    %c0_i32_2 = arith.constant 0 : i32
    return %c0_i32, %c0_i32_0, %c0_i32_1 : i32, i32, i32
  }
  func.func @transform_5(%arg0: i32) -> (i32, i32) {
    %c0_i32 = arith.constant 0 : i32
    %c0_i32_0 = arith.constant 0 : i32
    %c0_i32_1 = arith.constant 0 : i32
    return %c0_i32, %c0_i32_0 : i32, i32
  }
  func.func @transform_6(%arg0: i32) -> (i32, i32, i32) {
    %c0_i32 = arith.constant 0 : i32
    %c0_i32_0 = arith.constant 0 : i32
    %c0_i32_1 = arith.constant 0 : i32
    return %arg0, %c0_i32, %c0_i32_0 : i32, i32, i32
  }
}

</mosaic_0001>

<llo_original>
// kernel: tpu_custom_call.1
$region0: #{tpu_custom_call.1}
  #allocation0 [shape = 'u32[]', space=smem, size = 0x4, offset = 0x4, fixed_abs, tag = 'smem constant byte address 0x4 - core index']
  #allocation1 [shape = 'u32[144,128]{1,0:T(1,128)}', space=vmem, size = 0x12000, scoped, tag = 'internal scratch']
  %s0 = inlined_call_operand.vmem [shape: f32[2,8,384], index: 0, kind: input, shape index: {}]
  %s1 = inlined_call_operand.vmem [shape: f32[5,1,384], index: 1, kind: input, shape index: {}]
  %s2 = inlined_call_operand.vmem [shape: f32[9,8,8], index: 2, kind: input, shape index: {}]
  %s3 = inlined_call_operand.vmem [shape: f32[8,1], index: 3, kind: input, shape index: {}]
  %s4 = inlined_call_operand.vmem [shape: f32[9,8,8], index: 4, kind: input, shape index: {}]
  %s5 = inlined_call_operand.vmem [shape: f32[8,1], index: 5, kind: input, shape index: {}]
  %s6 = inlined_call_operand.hbm [shape: f32[2,8,384], index: 6, kind: output, shape index: {}]
  %s7 = sld [smem:[#allocation0]]
  $region57: #{tpu_custom_call.1} parent=0
    _
  %s9 = ssub.s32 1, %s7
  %s10 = scalar_select 0, %s9, %s7
  $region1: #{tpu_custom_call.1} parent=0
    #allocation2 [shape = 'u8[24576]{0}', space=vmem, size = 0x6000, scoped, tag = 'output window, operand 0']
    #allocation3 [shape = 's32[2]{0}', space=sflag, size = 0x8, scoped, tag = 'scoped memory for tpu_custom_call.1']
    %11 = vsyncpa [#allocation3], 0
    %s12 = scalar_lea.sflag [#allocation3], 1
    %13 = vsyncpa %s12, 0
    loop: start=0, step=1, limit=4
    $region2: #{tpu_custom_call.1} parent=1 // loop_pre_header
      _
    $region3: #{tpu_custom_call.1} parent=1 // loop_header
      %s15 = sphi 0, %s19
      %p16 = scmp.ge.s32.totalorder %s15, 4
      %s25 = sphi 0, %s27
      %s28 = sphi 0, %s25
      %s29 = sphi 0, %s28
      %s45 = sphi 0, %s29
      %s49 = sphi 0, %s49
      %s51 = sphi 0, %s49
      %s52 = sphi 0, %s51
      %s66 = sphi 0, %s52
      %s70 = sphi 0, %s70
      %s72 = sphi 0, %s70
      %s73 = sphi 0, %s72
      %s87 = sphi 0, %s73
      %s91 = sphi 0, %s91
      %s93 = sphi 0, %s91
      %s94 = sphi 0, %s93
      %s108 = sphi 0, %s94
      %s112 = sphi 0, %s112
      %s114 = sphi 0, %s112
      %s115 = sphi 0, %s114
      %s129 = sphi 0, %s115
      %s133 = sphi 0, %s133
      %s135 = sphi 0, %s133
      %s136 = sphi 0, %s135
      %s150 = sphi 0, %s136
      %s156 = sphi 0, %s158
      %s159 = sphi 0, %s156
      %s160 = sphi 0, %s159
      %s176 = sphi 0, %s160
    $region4: #{tpu_custom_call.1} parent=1 // loop_header_branch
      %18 = sbr.rel (%p16) target = $region8
    $region5: #{tpu_custom_call.1} parent=1 // loop_body
      %s20 = ssub.s32 %s15, 1
      %s21 = ssub.s32 %s15, 2
      %s22 = sadd.s32 %s15, 1
      %s23 = ssub.s32 %s15, %s22
      %p24 = scmp.eq.s32.totalorder %s23, 0
      %s26 = sadd.s32 %s25, 1
      %s27 = scalar_select %p24, %s25, %s26
      %p30 = pneg %p24
      %p31 = scmp.eq.s32.totalorder %s15, 1
      %p32 = por %p30, %p31
      %p33 = scmp.ne.s32.totalorder %s25, %s28
      %p34 = scmp.eq.s32.totalorder %s15, 0
      %p35 = por %p33, %p34
      %p36 = scmp.ne.s32.totalorder %s25, %s28
      %p37 = scmp.eq.s32.totalorder %s20, 1
      %p38 = por %p36, %p37
      %p39 = scmp.ne.s32.totalorder %s28, %s29
      %p40 = scmp.eq.s32.totalorder %s20, 0
      %p41 = por %p39, %p40
      %p42 = scmp.ne.s32.totalorder %s28, %s29
      %p43 = scmp.eq.s32.totalorder %s21, 1
      %p44 = por %p42, %p43
      %p46 = scmp.ne.s32.totalorder %s29, %s45
      %p47 = scmp.eq.s32.totalorder %s21, 0
      %p48 = por %p46, %p47
      %s50 = sadd.s32 %s49, 1
      %p53 = scmp.eq.s32.totalorder %s15, 1
      %p54 = scmp.ne.s32.totalorder %s49, %s51
      %p55 = scmp.eq.s32.totalorder %s15, 0
      %p56 = por %p54, %p55
      %p57 = scmp.ne.s32.totalorder %s49, %s51
      %p58 = scmp.eq.s32.totalorder %s20, 1
      %p59 = por %p57, %p58
      %p60 = scmp.ne.s32.totalorder %s51, %s52
      %p61 = scmp.eq.s32.totalorder %s20, 0
      %p62 = por %p60, %p61
      %p63 = scmp.ne.s32.totalorder %s51, %s52
      %p64 = scmp.eq.s32.totalorder %s21, 1
      %p65 = por %p63, %p64
      %p67 = scmp.ne.s32.totalorder %s52, %s66
      %p68 = scmp.eq.s32.totalorder %s21, 0
      %p69 = por %p67, %p68
      %s71 = sadd.s32 %s70, 1
      %p74 = scmp.eq.s32.totalorder %s15, 1
      %p75 = scmp.ne.s32.totalorder %s70, %s72
      %p76 = scmp.eq.s32.totalorder %s15, 0
      %p77 = por %p75, %p76
      %p78 = scmp.ne.s32.totalorder %s70, %s72
      %p79 = scmp.eq.s32.totalorder %s20, 1
      %p80 = por %p78, %p79
      %p81 = scmp.ne.s32.totalorder %s72, %s73
      %p82 = scmp.eq.s32.totalorder %s20, 0
      %p83 = por %p81, %p82
      %p84 = scmp.ne.s32.totalorder %s72, %s73
      %p85 = scmp.eq.s32.totalorder %s21, 1
      %p86 = por %p84, %p85
      %p88 = scmp.ne.s32.totalorder %s73, %s87
      %p89 = scmp.eq.s32.totalorder %s21, 0
      %p90 = por %p88, %p89
      %s92 = sadd.s32 %s91, 1
      %p95 = scmp.eq.s32.totalorder %s15, 1
      %p96 = scmp.ne.s32.totalorder %s91, %s93
      %p97 = scmp.eq.s32.totalorder %s15, 0
      %p98 = por %p96, %p97
      %p99 = scmp.ne.s32.totalorder %s91, %s93
      %p100 = scmp.eq.s32.totalorder %s20, 1
      %p101 = por %p99, %p100
      %p102 = scmp.ne.s32.totalorder %s93, %s94
      %p103 = scmp.eq.s32.totalorder %s20, 0
      %p104 = por %p102, %p103
      %p105 = scmp.ne.s32.totalorder %s93, %s94
      %p106 = scmp.eq.s32.totalorder %s21, 1
      %p107 = por %p105, %p106
      %p109 = scmp.ne.s32.totalorder %s94, %s108
      %p110 = scmp.eq.s32.totalorder %s21, 0
      %p111 = por %p109, %p110
      %s113 = sadd.s32 %s112, 1
      %p116 = scmp.eq.s32.totalorder %s15, 1
      %p117 = scmp.ne.s32.totalorder %s112, %s114
      %p118 = scmp.eq.s32.totalorder %s15, 0
      %p119 = por %p117, %p118
      %p120 = scmp.ne.s32.totalorder %s112, %s114
      %p121 = scmp.eq.s32.totalorder %s20, 1
      %p122 = por %p120, %p121
      %p123 = scmp.ne.s32.totalorder %s114, %s115
      %p124 = scmp.eq.s32.totalorder %s20, 0
      %p125 = por %p123, %p124
      %p126 = scmp.ne.s32.totalorder %s114, %s115
      %p127 = scmp.eq.s32.totalorder %s21, 1
      %p128 = por %p126, %p127
      %p130 = scmp.ne.s32.totalorder %s115, %s129
      %p131 = scmp.eq.s32.totalorder %s21, 0
      %p132 = por %p130, %p131
      %s134 = sadd.s32 %s133, 1
      %p137 = scmp.eq.s32.totalorder %s15, 1
      %p138 = scmp.ne.s32.totalorder %s133, %s135
      %p139 = scmp.eq.s32.totalorder %s15, 0
      %p140 = por %p138, %p139
      %p141 = scmp.ne.s32.totalorder %s133, %s135
      %p142 = scmp.eq.s32.totalorder %s20, 1
      %p143 = por %p141, %p142
      %p144 = scmp.ne.s32.totalorder %s135, %s136
      %p145 = scmp.eq.s32.totalorder %s20, 0
      %p146 = por %p144, %p145
      %p147 = scmp.ne.s32.totalorder %s135, %s136
      %p148 = scmp.eq.s32.totalorder %s21, 1
      %p149 = por %p147, %p148
      %p151 = scmp.ne.s32.totalorder %s136, %s150
      %p152 = scmp.eq.s32.totalorder %s21, 0
      %p153 = por %p151, %p152
      %s154 = ssub.s32 %s15, %s22
      %p155 = scmp.eq.s32.totalorder %s154, 0
      %s157 = sadd.s32 %s156, 1
      %s158 = scalar_select %p155, %s156, %s157
      %p161 = pneg %p155
      %p162 = scmp.eq.s32.totalorder %s15, 1
      %p163 = por %p161, %p162
      %p164 = scmp.ne.s32.totalorder %s156, %s159
      %p165 = scmp.eq.s32.totalorder %s15, 0
      %p166 = por %p164, %p165
      %p167 = scmp.ne.s32.totalorder %s156, %s159
      %p168 = scmp.eq.s32.totalorder %s20, 1
      %p169 = por %p167, %p168
      %p170 = scmp.ne.s32.totalorder %s159, %s160
      %p171 = scmp.eq.s32.totalorder %s20, 0
      %p172 = por %p170, %p171
      %p173 = scmp.ne.s32.totalorder %s159, %s160
      %p174 = scmp.eq.s32.totalorder %s21, 1
      %p175 = por %p173, %p174
      %p177 = scmp.ne.s32.totalorder %s160, %s176
      %p178 = scmp.eq.s32.totalorder %s21, 0
      %p179 = por %p177, %p178
      %p180 = scmp.le.s32.totalorder 1, %s15
      %p181 = scmp.lt.s32.totalorder %s15, 3
      %p182 = pnand %p180, %p181
      %p183 = pneg %p182
      // Predicated region
      $region9: #{tpu_custom_call.1} parent=5 // pred_check
        _
      $region10: #{tpu_custom_call.1} parent=5 // pred_check_branch
        %185 = sbr.rel (%p182) target = $region12
      $region11: #{tpu_custom_call.1} parent=5 // pred_region
        %s186 = ssub.s32 %s15, 1
        // Predicated region
        $region13: #{tpu_custom_call.1} parent=11 // pred_check
          %p187 = pneg %p62
        $region14: #{tpu_custom_call.1} parent=11 // pred_check_branch
          %189 = sbr.rel (%p187) target = $region16
        $region15: #{tpu_custom_call.1} parent=11 // pred_region
          _
        $region16: #{tpu_custom_call.1} parent=11 // pred_fallthru
          _
        // Predicated region
        $region17: #{tpu_custom_call.1} parent=11 // pred_check
          %p190 = pneg %p83
        $region18: #{tpu_custom_call.1} parent=11 // pred_check_branch
          %192 = sbr.rel (%p190) target = $region20
        $region19: #{tpu_custom_call.1} parent=11 // pred_region
          _
        $region20: #{tpu_custom_call.1} parent=11 // pred_fallthru
          _
        // Predicated region
        $region21: #{tpu_custom_call.1} parent=11 // pred_check
          %p193 = pneg %p104
        $region22: #{tpu_custom_call.1} parent=11 // pred_check_branch
          %195 = sbr.rel (%p193) target = $region24
        $region23: #{tpu_custom_call.1} parent=11 // pred_region
          _
        $region24: #{tpu_custom_call.1} parent=11 // pred_fallthru
          _
        // Predicated region
        $region25: #{tpu_custom_call.1} parent=11 // pred_check
          %p196 = pneg %p125
        $region26: #{tpu_custom_call.1} parent=11 // pred_check_branch
          %198 = sbr.rel (%p196) target = $region28
        $region27: #{tpu_custom_call.1} parent=11 // pred_region
          _
        $region28: #{tpu_custom_call.1} parent=11 // pred_fallthru
          _
        // Predicated region
        $region29: #{tpu_custom_call.1} parent=11 // pred_check
          %p199 = pneg %p146
        $region30: #{tpu_custom_call.1} parent=11 // pred_check_branch
          %201 = sbr.rel (%p199) target = $region32
        $region31: #{tpu_custom_call.1} parent=11 // pred_region
          _
        $region32: #{tpu_custom_call.1} parent=11 // pred_fallthru
          _
      $region12: #{tpu_custom_call.1} parent=5 // pred_fallthru
        _
      %p202 = scmp.lt.s32.totalorder %s15, 2
      // Predicated region
      $region33: #{tpu_custom_call.1} parent=5 // pred_check
        %p203 = pneg %p202
      $region34: #{tpu_custom_call.1} parent=5 // pred_check_branch
        %205 = sbr.rel (%p203) target = $region36
      $region35: #{tpu_custom_call.1} parent=5 // pred_region
        // Predicated region
        $region37: #{tpu_custom_call.1} parent=35 // pred_check
          %p206 = pneg %p35
        $region38: #{tpu_custom_call.1} parent=35 // pred_check_branch
          %208 = sbr.rel (%p206) target = $region40
        $region39: #{tpu_custom_call.1} parent=35 // pred_region
          %p209 = scmp.lt.s32.totalorder %s15, 1
          %s210 = scalar_select %p209, %s15, 1
          %s211 = smul.addr %s210, 3
          %s212 = smul.addr %s211, 8
          %s213 = scalar_lea.vmem %s0, %s212
        $region40: #{tpu_custom_call.1} parent=35 // pred_fallthru
          _
      $region36: #{tpu_custom_call.1} parent=5 // pred_fallthru
        _
      %p214 = scmp.le.s32.totalorder 1, %s15
      %p215 = scmp.lt.s32.totalorder %s15, 3
      %p216 = pnand %p214, %p215
      %p217 = pneg %p216
      // Predicated region
      $region41: #{tpu_custom_call.1} parent=5 // pred_check
        _
      $region42: #{tpu_custom_call.1} parent=5 // pred_check_branch
        %219 = sbr.rel (%p216) target = $region44
      $region43: #{tpu_custom_call.1} parent=5 // pred_region
        %s220 = ssub.s32 %s15, 1
        %p221 = scmp.lt.s32.totalorder %s20, 1
        %s222 = scalar_select %p221, %s20, 1
        %s223 = smul.addr %s222, 3
        %s224 = smul.addr %s223, 8
        %s225 = scalar_lea.vmem %s0, %s224
        %p226 = pneg %p41
        %p227 = pneg %p38
        %p228 = pneg %p62
        %p229 = pneg %p59
        %p230 = pneg %p83
        %p231 = pneg %p80
        %p232 = pneg %p104
        %p233 = pneg %p101
        %p234 = pneg %p125
        %p235 = pneg %p122
        %p236 = pneg %p146
        %p237 = pneg %p143
        %p238 = pneg %p172
        %p239 = pneg %p169
        %s240 = sand.u32 %s159, 1
        %s241 = scalar_lea.sflag [#allocation3], %s240
        %s242 = sand.u32 %s159, 1
        %s243 = smul.addr %s242, 24
        %s244 = scalar_lea.vmem [#allocation2], %s243
        %p245 = scmp.lt.s32.totalorder %s20, 1
        %s246 = scalar_select %p245, %s20, 1
        %s247 = smul.addr %s246, 3
        %s248 = smul.addr %s247, 8
        %s249 = scalar_lea.vmem %s0, %s248
        %v250 = vld [vmem:[%s1] sm:$0x7]
        %s251 = scalar_lea.vmem %s1, 3
        %v252 = vld [vmem:[%s251] sm:$0x7]
        %s253 = scalar_lea.vmem %s1, 6
        %v254 = vld [vmem:[%s253] sm:$0x7]
        %s255 = scalar_lea.vmem %s1, 9
        %v256 = vld [vmem:[%s255] sm:$0x7]
        %s257 = scalar_lea.vmem %s1, 12
        %v258 = vld [vmem:[%s257] sm:$0x7]
        %v259 = vld [vmem:[%s249] sm:$0xff]
        %v260 = vld [vmem:[%s249 + $0x8] sm:$0xff]
        %v261 = vld [vmem:[%s249 + $0x10] sm:$0xff]
        %v262 = vld [vmem:[%s2] sm:$0xff]
        %263 = vrot.lane.b32.xlu0 %v259, 19
        %v264 = vpop.permute.xlu0 %263
        %265 = vrot.lane.b32.xlu0 %v260, 19
        %v266 = vpop.permute.xlu0 %265
        %267 = vrot.lane.b32.xlu0 %v261, 19
        %v268 = vpop.permute.xlu0 %267
        %v269 = vlaneseq
        %v270 = vand.u32 %v269, 127
        %vm271 = vcmp.lt.s32.totalorder %v270, 19
        %v272 = vsel %vm271, %v266, %v268
        %v273 = vsel %vm271, %v264, %v266
        %v274 = vsel %vm271, %v268, %v264
        %s275 = scalar_lea.vmem %s2, 8
        %v276 = vld [vmem:[%s275] sm:$0xff]
        %277 = vrot.lane.b32.xlu0 %v259, 18
        %v278 = vpop.permute.xlu0 %277
        %279 = vrot.lane.b32.xlu0 %v260, 18
        %v280 = vpop.permute.xlu0 %279
        %281 = vrot.lane.b32.xlu0 %v261, 18
        %v282 = vpop.permute.xlu0 %281
        %vm283 = vcmp.lt.s32.totalorder %v270, 18
        %v284 = vsel %vm283, %v280, %v282
        %v285 = vsel %vm283, %v278, %v280
        %v286 = vsel %vm283, %v282, %v278
        %vm287 = vcmask 64512
        %v289 = vsel %vm287, %v276, 0
        %291 = vmatprep.subr.mxu0 %v285
        %292 = vmatpush1.msra.mxu0 %v286
        %293 = vmatprep.subr.mxu0 0.0
        %294 = vmatpush1.msra.mxu0 0.0
        %295 = vmatprep.subr.mxu0 0.0
        %296 = vmatpush1.msra.mxu0 0.0
        %297 = vmatprep.subr.mxu0 0.0
        %298 = vmatpush1.msra.mxu0 0.0
        %299 = vmatprep.subr.mxu0 0.0
        %300 = vmatpush1.msra.mxu0 0.0
        %301 = vmatprep.subr.mxu0 0.0
        %302 = vmatpush1.msra.mxu0 0.0
        %303 = vmatprep.subr.mxu0 0.0
        %304 = vmatpush1.msra.mxu0 0.0
        %305 = vmatprep.subr.mxu0 0.0
        %306 = vmatpush1.msra.mxu0 0.0
        %307 = vmatprep.subr.mxu0 0.0
        %308 = vmatpush1.msra.mxu0 0.0
        %309 = vmatprep.subr.mxu0 0.0
        %310 = vmatpush1.msra.mxu0 0.0
        %311 = vmatprep.subr.mxu0 0.0
        %312 = vmatpush1.msra.mxu0 0.0
        %313 = vmatprep.subr.mxu0 0.0
        %314 = vmatpush1.msra.mxu0 0.0
        %315 = vmatprep.subr.mxu0 0.0
        %316 = vmatpush1.msra.mxu0 0.0
        %317 = vmatprep.subr.mxu0 0.0
        %318 = vmatpush1.msra.mxu0 0.0
        %319 = vmatprep.subr.mxu0 0.0
        %320 = vmatpush1.msra.mxu0 0.0
        %321 = vmatprep.subr.mxu0 0.0
        %322 = vmatpush1.msra.mxu0 0.0
        %323 = vmatprep.subr.mxu0 0.0
        %324 = vmatpush1.msra.mxu0 0.0
        %325 = vmatprep.subr.mxu0 0.0
        %326 = vmatpush1.msra.mxu0 0.0
        %327 = vmatprep.subr.mxu0 0.0
        %328 = vmatpush1.msra.mxu0 0.0
        %329 = vmatprep.subr.mxu0 0.0
        %330 = vmatpush1.msra.mxu0 0.0
        %331 = vmatprep.subr.mxu0 0.0
        %332 = vmatpush1.msra.mxu0 0.0
        %333 = vmatprep.subr.mxu0 0.0
        %334 = vmatpush1.msra.mxu0 0.0
        %335 = vmatprep.subr.mxu0 0.0
        %336 = vmatpush1.msra.mxu0 0.0
        %337 = vmatprep.subr.mxu0 0.0
        %338 = vmatpush1.msra.mxu0 0.0
        %339 = vmatprep.subr.mxu0 0.0
        %340 = vmatpush1.msra.mxu0 0.0
        %341 = vmatprep.subr.mxu0 0.0
        %342 = vmatpush1.msra.mxu0 0.0
        %343 = vmatprep.subr.mxu0 0.0
        %344 = vmatpush1.msra.mxu0 0.0
        %345 = vmatprep.subr.mxu0 0.0
        %346 = vmatpush1.msra.mxu0 0.0
        %347 = vmatprep.subr.mxu0 0.0
        %348 = vmatpush1.msra.mxu0 0.0
        %349 = vmatprep.subr.mxu0 0.0
        %350 = vmatpush1.msra.mxu0 0.0
        %351 = vmatprep.subr.mxu0 0.0
        %352 = vmatpush1.msra.mxu0 0.0
        %353 = vmatprep.subr.mxu0 0.0
        %354 = vmatpush1.msra.mxu0 0.0
        %355 = vmatprep.mubr.f32.mxu0 0.0
        %356 = vmatmul.mubr.f32.gmra.mrb[0].mxu0 %v289
        %v357 = vpop.f32.mrb[0].mxu0
        %v358 = vadd.f32 0.0, %v357
        %v359 = vpop.f32.mrb[0].mxu0
        %v360 = vadd.f32 0.0, %v359
        %361 = vdwg.mxu0
        %362 = vmatprep.subr.mxu0 0.0
        %363 = vmatpush1.msra.mxu0 %v284
        %364 = vmatprep.subr.mxu0 0.0
        %365 = vmatpush1.msra.mxu0 0.0
        %366 = vmatprep.subr.mxu0 0.0
        %367 = vmatpush1.msra.mxu0 0.0
        %368 = vmatprep.subr.mxu0 0.0
        %369 = vmatpush1.msra.mxu0 0.0
        %370 = vmatprep.subr.mxu0 0.0
        %371 = vmatpush1.msra.mxu0 0.0
        %372 = vmatprep.subr.mxu0 0.0
        %373 = vmatpush1.msra.mxu0 0.0
        %374 = vmatprep.subr.mxu0 0.0
        %375 = vmatpush1.msra.mxu0 0.0
        %376 = vmatprep.subr.mxu0 0.0
        %377 = vmatpush1.msra.mxu0 0.0
        %378 = vmatprep.subr.mxu0 0.0
        %379 = vmatpush1.msra.mxu0 0.0
        %380 = vmatprep.subr.mxu0 0.0
        %381 = vmatpush1.msra.mxu0 0.0
        %382 = vmatprep.subr.mxu0 0.0
        %383 = vmatpush1.msra.mxu0 0.0
        %384 = vmatprep.subr.mxu0 0.0
        %385 = vmatpush1.msra.mxu0 0.0
        %386 = vmatprep.subr.mxu0 0.0
        %387 = vmatpush1.msra.mxu0 0.0
        %388 = vmatprep.subr.mxu0 0.0
        %389 = vmatpush1.msra.mxu0 0.0
        %390 = vmatprep.subr.mxu0 0.0
        %391 = vmatpush1.msra.mxu0 0.0
        %392 = vmatprep.subr.mxu0 0.0
        %393 = vmatpush1.msra.mxu0 0.0
        %394 = vmatprep.subr.mxu0 0.0
        %395 = vmatpush1.msra.mxu0 0.0
        %396 = vmatprep.subr.mxu0 0.0
        %397 = vmatpush1.msra.mxu0 0.0
        %398 = vmatprep.subr.mxu0 0.0
        %399 = vmatpush1.msra.mxu0 0.0
        %400 = vmatprep.subr.mxu0 0.0
        %401 = vmatpush1.msra.mxu0 0.0
        %402 = vmatprep.subr.mxu0 0.0
        %403 = vmatpush1.msra.mxu0 0.0
        %404 = vmatprep.subr.mxu0 0.0
        %405 = vmatpush1.msra.mxu0 0.0
        %406 = vmatprep.subr.mxu0 0.0
        %407 = vmatpush1.msra.mxu0 0.0
        %408 = vmatprep.subr.mxu0 0.0
        %409 = vmatpush1.msra.mxu0 0.0
        %410 = vmatprep.subr.mxu0 0.0
        %411 = vmatpush1.msra.mxu0 0.0
        %412 = vmatprep.subr.mxu0 0.0
        %413 = vmatpush1.msra.mxu0 0.0
        %414 = vmatprep.subr.mxu0 0.0
        %415 = vmatpush1.msra.mxu0 0.0
        %416 = vmatprep.subr.mxu0 0.0
        %417 = vmatpush1.msra.mxu0 0.0
        %418 = vmatprep.subr.mxu0 0.0
        %419 = vmatpush1.msra.mxu0 0.0
        %420 = vmatprep.subr.mxu0 0.0
        %421 = vmatpush1.msra.mxu0 0.0
        %422 = vmatprep.subr.mxu0 0.0
        %423 = vmatpush1.msra.mxu0 0.0
        %424 = vmatprep.subr.mxu0 0.0
        %425 = vmatpush1.msra.mxu0 0.0
        %426 = vmatprep.mubr.f32.mxu0 0.0
        %427 = vmatmul.mubr.f32.gmra.mrb[0].mxu0 %v289
        %v428 = vpop.f32.mrb[0].mxu0
        %v429 = vadd.f32 0.0, %v428
        %v430 = vpop.f32.mrb[0].mxu0
        %431 = vdwg.mxu0
        %v433 = vsel %vm287, %v262, 0
        %435 = vmatprep.subr.mxu0 %v273
        %436 = vmatpush1.msra.mxu0 %v274
        %437 = vmatprep.subr.mxu0 0.0
        %438 = vmatpush1.msra.mxu0 0.0
        %439 = vmatprep.subr.mxu0 0.0
        %440 = vmatpush1.msra.mxu0 0.0
        %441 = vmatprep.subr.mxu0 0.0
        %442 = vmatpush1.msra.mxu0 0.0
        %443 = vmatprep.subr.mxu0 0.0
        %444 = vmatpush1.msra.mxu0 0.0
        %445 = vmatprep.subr.mxu0 0.0
        %446 = vmatpush1.msra.mxu0 0.0
        %447 = vmatprep.subr.mxu0 0.0
        %448 = vmatpush1.msra.mxu0 0.0
        %449 = vmatprep.subr.mxu0 0.0
        %450 = vmatpush1.msra.mxu0 0.0
        %451 = vmatprep.subr.mxu0 0.0
        %452 = vmatpush1.msra.mxu0 0.0
        %453 = vmatprep.subr.mxu0 0.0
        %454 = vmatpush1.msra.mxu0 0.0
        %455 = vmatprep.subr.mxu0 0.0
        %456 = vmatpush1.msra.mxu0 0.0
        %457 = vmatprep.subr.mxu0 0.0
        %458 = vmatpush1.msra.mxu0 0.0
        %459 = vmatprep.subr.mxu0 0.0
        %460 = vmatpush1.msra.mxu0 0.0
        %461 = vmatprep.subr.mxu0 0.0
        %462 = vmatpush1.msra.mxu0 0.0
        %463 = vmatprep.subr.mxu0 0.0
        %464 = vmatpush1.msra.mxu0 0.0
        %465 = vmatprep.subr.mxu0 0.0
        %466 = vmatpush1.msra.mxu0 0.0
        %467 = vmatprep.subr.mxu0 0.0
        %468 = vmatpush1.msra.mxu0 0.0
        %469 = vmatprep.subr.mxu0 0.0
        %470 = vmatpush1.msra.mxu0 0.0
        %471 = vmatprep.subr.mxu0 0.0
        %472 = vmatpush1.msra.mxu0 0.0
        %473 = vmatprep.subr.mxu0 0.0
        %474 = vmatpush1.msra.mxu0 0.0
        %475 = vmatprep.subr.mxu0 0.0
        %476 = vmatpush1.msra.mxu0 0.0
        %477 = vmatprep.subr.mxu0 0.0
        %478 = vmatpush1.msra.mxu0 0.0
        %479 = vmatprep.subr.mxu0 0.0
        %480 = vmatpush1.msra.mxu0 0.0
        %481 = vmatprep.subr.mxu0 0.0
        %482 = vmatpush1.msra.mxu0 0.0
        %483 = vmatprep.subr.mxu0 0.0
        %484 = vmatpush1.msra.mxu0 0.0
        %485 = vmatprep.subr.mxu0 0.0
        %486 = vmatpush1.msra.mxu0 0.0
        %487 = vmatprep.subr.mxu0 0.0
        %488 = vmatpush1.msra.mxu0 0.0
        %489 = vmatprep.subr.mxu0 0.0
        %490 = vmatpush1.msra.mxu0 0.0
        %491 = vmatprep.subr.mxu0 0.0
        %492 = vmatpush1.msra.mxu0 0.0
        %493 = vmatprep.subr.mxu0 0.0
        %494 = vmatpush1.msra.mxu0 0.0
        %495 = vmatprep.subr.mxu0 0.0
        %496 = vmatpush1.msra.mxu0 0.0
        %497 = vmatprep.subr.mxu0 0.0
        %498 = vmatpush1.msra.mxu0 0.0
        %499 = vmatprep.mubr.f32.mxu0 0.0
        %500 = vmatmul.mubr.f32.gmra.mrb[0].mxu0 %v433
        %v501 = vpop.f32.mrb[0].mxu0
        %v502 = vadd.f32 %v358, %v501
        %v503 = vpop.f32.mrb[0].mxu0
        %v504 = vadd.f32 %v360, %v503
        %505 = vdwg.mxu0
        %506 = vmatprep.subr.mxu0 0.0
        %507 = vmatpush1.msra.mxu0 %v272
        %508 = vmatprep.subr.mxu0 0.0
        %509 = vmatpush1.msra.mxu0 0.0
        %510 = vmatprep.subr.mxu0 0.0
        %511 = vmatpush1.msra.mxu0 0.0
        %512 = vmatprep.subr.mxu0 0.0
        %513 = vmatpush1.msra.mxu0 0.0
        %514 = vmatprep.subr.mxu0 0.0
        %515 = vmatpush1.msra.mxu0 0.0
        %516 = vmatprep.subr.mxu0 0.0
        %517 = vmatpush1.msra.mxu0 0.0
        %518 = vmatprep.subr.mxu0 0.0
        %519 = vmatpush1.msra.mxu0 0.0
        %520 = vmatprep.subr.mxu0 0.0
        %521 = vmatpush1.msra.mxu0 0.0
        %522 = vmatprep.subr.mxu0 0.0
        %523 = vmatpush1.msra.mxu0 0.0
        %524 = vmatprep.subr.mxu0 0.0
        %525 = vmatpush1.msra.mxu0 0.0
        %526 = vmatprep.subr.mxu0 0.0
        %527 = vmatpush1.msra.mxu0 0.0
        %528 = vmatprep.subr.mxu0 0.0
        %529 = vmatpush1.msra.mxu0 0.0
        %530 = vmatprep.subr.mxu0 0.0
        %531 = vmatpush1.msra.mxu0 0.0
        %532 = vmatprep.subr.mxu0 0.0
        %533 = vmatpush1.msra.mxu0 0.0
        %534 = vmatprep.subr.mxu0 0.0
        %535 = vmatpush1.msra.mxu0 0.0
        %536 = vmatprep.subr.mxu0 0.0
        %537 = vmatpush1.msra.mxu0 0.0
        %538 = vmatprep.subr.mxu0 0.0
        %539 = vmatpush1.msra.mxu0 0.0
        %540 = vmatprep.subr.mxu0 0.0
        %541 = vmatpush1.msra.mxu0 0.0
        %542 = vmatprep.subr.mxu0 0.0
        %543 = vmatpush1.msra.mxu0 0.0
        %544 = vmatprep.subr.mxu0 0.0
        %545 = vmatpush1.msra.mxu0 0.0
        %546 = vmatprep.subr.mxu0 0.0
        %547 = vmatpush1.msra.mxu0 0.0
        %548 = vmatprep.subr.mxu0 0.0
        %549 = vmatpush1.msra.mxu0 0.0
        %550 = vmatprep.subr.mxu0 0.0
        %551 = vmatpush1.msra.mxu0 0.0
        %552 = vmatprep.subr.mxu0 0.0
        %553 = vmatpush1.msra.mxu0 0.0
        %554 = vmatprep.subr.mxu0 0.0
        %555 = vmatpush1.msra.mxu0 0.0
        %556 = vmatprep.subr.mxu0 0.0
        %557 = vmatpush1.msra.mxu0 0.0
        %558 = vmatprep.subr.mxu0 0.0
        %559 = vmatpush1.msra.mxu0 0.0
        %560 = vmatprep.subr.mxu0 0.0
        %561 = vmatpush1.msra.mxu0 0.0
        %562 = vmatprep.subr.mxu0 0.0
        %563 = vmatpush1.msra.mxu0 0.0
        %564 = vmatprep.subr.mxu0 0.0
        %565 = vmatpush1.msra.mxu0 0.0
        %566 = vmatprep.subr.mxu0 0.0
        %567 = vmatpush1.msra.mxu0 0.0
        %568 = vmatprep.subr.mxu0 0.0
        %569 = vmatpush1.msra.mxu0 0.0
        %570 = vmatprep.mubr.f32.mxu0 0.0
        %571 = vmatmul.mubr.f32.gmra.mrb[0].mxu0 %v433
        %v572 = vpop.f32.mrb[0].mxu0
        %v573 = vadd.f32 %v429, %v572
        %v574 = vpop.f32.mrb[0].mxu0
        %575 = vdwg.mxu0
        %s576 = scalar_lea.vmem %s2, 16
        %v577 = vld [vmem:[%s576] sm:$0xff]
        %578 = vrot.lane.b32.xlu0 %v259, 17
        %v579 = vpop.permute.xlu0 %578
        %580 = vrot.lane.b32.xlu0 %v260, 17
        %v581 = vpop.permute.xlu0 %580
        %582 = vrot.lane.b32.xlu0 %v261, 17
        %v583 = vpop.permute.xlu0 %582
        %vm584 = vcmp.lt.s32.totalorder %v270, 17
        %v585 = vsel %vm584, %v581, %v583
        %v586 = vsel %vm584, %v579, %v581
        %v587 = vsel %vm584, %v583, %v579
        %v589 = vsel %vm287, %v577, 0
        %591 = vmatprep.subr.mxu0 %v586
        %592 = vmatpush1.msra.mxu0 %v587
        %593 = vmatprep.subr.mxu0 0.0
        %594 = vmatpush1.msra.mxu0 0.0
        %595 = vmatprep.subr.mxu0 0.0
        %596 = vmatpush1.msra.mxu0 0.0
        %597 = vmatprep.subr.mxu0 0.0
        %598 = vmatpush1.msra.mxu0 0.0
        %599 = vmatprep.subr.mxu0 0.0
        %600 = vmatpush1.msra.mxu0 0.0
        %601 = vmatprep.subr.mxu0 0.0
        %602 = vmatpush1.msra.mxu0 0.0
        %603 = vmatprep.subr.mxu0 0.0
        %604 = vmatpush1.msra.mxu0 0.0
        %605 = vmatprep.subr.mxu0 0.0
        %606 = vmatpush1.msra.mxu0 0.0
        %607 = vmatprep.subr.mxu0 0.0
        %608 = vmatpush1.msra.mxu0 0.0
        %609 = vmatprep.subr.mxu0 0.0
        %610 = vmatpush1.msra.mxu0 0.0
        %611 = vmatprep.subr.mxu0 0.0
        %612 = vmatpush1.msra.mxu0 0.0
        %613 = vmatprep.subr.mxu0 0.0
        %614 = vmatpush1.msra.mxu0 0.0
        %615 = vmatprep.subr.mxu0 0.0
        %616 = vmatpush1.msra.mxu0 0.0
        %617 = vmatprep.subr.mxu0 0.0
        %618 = vmatpush1.msra.mxu0 0.0
        %619 = vmatprep.subr.mxu0 0.0
        %620 = vmatpush1.msra.mxu0 0.0
        %621 = vmatprep.subr.mxu0 0.0
        %622 = vmatpush1.msra.mxu0 0.0
        %623 = vmatprep.subr.mxu0 0.0
        %624 = vmatpush1.msra.mxu0 0.0
        %625 = vmatprep.subr.mxu0 0.0
        %626 = vmatpush1.msra.mxu0 0.0
        %627 = vmatprep.subr.mxu0 0.0
        %628 = vmatpush1.msra.mxu0 0.0
        %629 = vmatprep.subr.mxu0 0.0
        %630 = vmatpush1.msra.mxu0 0.0
        %631 = vmatprep.subr.mxu0 0.0
        %632 = vmatpush1.msra.mxu0 0.0
        %633 = vmatprep.subr.mxu0 0.0
        %634 = vmatpush1.msra.mxu0 0.0
        %635 = vmatprep.subr.mxu0 0.0
        %636 = vmatpush1.msra.mxu0 0.0
        %637 = vmatprep.subr.mxu0 0.0
        %638 = vmatpush1.msra.mxu0 0.0
        %639 = vmatprep.subr.mxu0 0.0
        %640 = vmatpush1.msra.mxu0 0.0
        %641 = vmatprep.subr.mxu0 0.0
        %642 = vmatpush1.msra.mxu0 0.0
        %643 = vmatprep.subr.mxu0 0.0
        %644 = vmatpush1.msra.mxu0 0.0
        %645 = vmatprep.subr.mxu0 0.0
        %646 = vmatpush1.msra.mxu0 0.0
        %647 = vmatprep.subr.mxu0 0.0
        %648 = vmatpush1.msra.mxu0 0.0
        %649 = vmatprep.subr.mxu0 0.0
        %650 = vmatpush1.msra.mxu0 0.0
        %651 = vmatprep.subr.mxu0 0.0
        %652 = vmatpush1.msra.mxu0 0.0
        %653 = vmatprep.subr.mxu0 0.0
        %654 = vmatpush1.msra.mxu0 0.0
        %655 = vmatprep.mubr.f32.mxu0 0.0
        %656 = vmatmul.mubr.f32.gmra.mrb[0].mxu0 %v589
        %v657 = vpop.f32.mrb[0].mxu0
        %v658 = vadd.f32 0.0, %v657
        %v659 = vpop.f32.mrb[0].mxu0
        %v660 = vadd.f32 0.0, %v659
        %661 = vdwg.mxu0
        %662 = vmatprep.subr.mxu0 0.0
        %663 = vmatpush1.msra.mxu0 %v585
        %664 = vmatprep.subr.mxu0 0.0
        %665 = vmatpush1.msra.mxu0 0.0
        %666 = vmatprep.subr.mxu0 0.0
        %667 = vmatpush1.msra.mxu0 0.0
        %668 = vmatprep.subr.mxu0 0.0
        %669 = vmatpush1.msra.mxu0 0.0
        %670 = vmatprep.subr.mxu0 0.0
        %671 = vmatpush1.msra.mxu0 0.0
        %672 = vmatprep.subr.mxu0 0.0
        %673 = vmatpush1.msra.mxu0 0.0
        %674 = vmatprep.subr.mxu0 0.0
        %675 = vmatpush1.msra.mxu0 0.0
        %676 = vmatprep.subr.mxu0 0.0
        %677 = vmatpush1.msra.mxu0 0.0
        %678 = vmatprep.subr.mxu0 0.0
        %679 = vmatpush1.msra.mxu0 0.0
        %680 = vmatprep.subr.mxu0 0.0
        %681 = vmatpush1.msra.mxu0 0.0
        %682 = vmatprep.subr.mxu0 0.0
        %683 = vmatpush1.msra.mxu0 0.0
        %684 = vmatprep.subr.mxu0 0.0
        %685 = vmatpush1.msra.mxu0 0.0
        %686 = vmatprep.subr.mxu0 0.0
        %687 = vmatpush1.msra.mxu0 0.0
        %688 = vmatprep.subr.mxu0 0.0
        %689 = vmatpush1.msra.mxu0 0.0
        %690 = vmatprep.subr.mxu0 0.0
        %691 = vmatpush1.msra.mxu0 0.0
        %692 = vmatprep.subr.mxu0 0.0
        %693 = vmatpush1.msra.mxu0 0.0
        %694 = vmatprep.subr.mxu0 0.0
        %695 = vmatpush1.msra.mxu0 0.0
        %696 = vmatprep.subr.mxu0 0.0
        %697 = vmatpush1.msra.mxu0 0.0
        %698 = vmatprep.subr.mxu0 0.0
        %699 = vmatpush1.msra.mxu0 0.0
        %700 = vmatprep.subr.mxu0 0.0
        %701 = vmatpush1.msra.mxu0 0.0
        %702 = vmatprep.subr.mxu0 0.0
        %703 = vmatpush1.msra.mxu0 0.0
        %704 = vmatprep.subr.mxu0 0.0
        %705 = vmatpush1.msra.mxu0 0.0
        %706 = vmatprep.subr.mxu0 0.0
        %707 = vmatpush1.msra.mxu0 0.0
        %708 = vmatprep.subr.mxu0 0.0
        %709 = vmatpush1.msra.mxu0 0.0
        %710 = vmatprep.subr.mxu0 0.0
        %711 = vmatpush1.msra.mxu0 0.0
        %712 = vmatprep.subr.mxu0 0.0
        %713 = vmatpush1.msra.mxu0 0.0
        %714 = vmatprep.subr.mxu0 0.0
        %715 = vmatpush1.msra.mxu0 0.0
        %716 = vmatprep.subr.mxu0 0.0
        %717 = vmatpush1.msra.mxu0 0.0
        %718 = vmatprep.subr.mxu0 0.0
        %719 = vmatpush1.msra.mxu0 0.0
        %720 = vmatprep.subr.mxu0 0.0
        %721 = vmatpush1.msra.mxu0 0.0
        %722 = vmatprep.subr.mxu0 0.0
        %723 = vmatpush1.msra.mxu0 0.0
        %724 = vmatprep.subr.mxu0 0.0
        %725 = vmatpush1.msra.mxu0 0.0
        %726 = vmatprep.mubr.f32.mxu0 0.0
        %727 = vmatmul.mubr.f32.gmra.mrb[0].mxu0 %v589
        %v728 = vpop.f32.mrb[0].mxu0
        %v729 = vadd.f32 0.0, %v728
        %v730 = vpop.f32.mrb[0].mxu0
        %731 = vdwg.mxu0
        %v732 = vadd.f32 %v502, %v658
        %v733 = vadd.f32 %v504, %v660
        %v734 = vadd.f32 %v573, %v729
        %s735 = scalar_lea.vmem %s2, 24
        %v736 = vld [vmem:[%s735] sm:$0xff]
        %737 = vrot.lane.b32.xlu0 %v259, 1
        %v738 = vpop.permute.xlu0 %737
        %739 = vrot.lane.b32.xlu0 %v260, 1
        %v740 = vpop.permute.xlu0 %739
        %741 = vrot.lane.b32.xlu0 %v261, 1
        %v742 = vpop.permute.xlu0 %741
        %vm743 = vcmp.lt.s32.totalorder %v270, 1
        %v744 = vsel %vm743, %v740, %v742
        %v745 = vsel %vm743, %v738, %v740
        %v746 = vsel %vm743, %v742, %v738
        %v748 = vsel %vm287, %v736, 0
        %750 = vmatprep.subr.mxu0 %v745
        %751 = vmatpush1.msra.mxu0 %v746
        %752 = vmatprep.subr.mxu0 0.0
        %753 = vmatpush1.msra.mxu0 0.0
        %754 = vmatprep.subr.mxu0 0.0
        %755 = vmatpush1.msra.mxu0 0.0
        %756 = vmatprep.subr.mxu0 0.0
        %757 = vmatpush1.msra.mxu0 0.0
        %758 = vmatprep.subr.mxu0 0.0
        %759 = vmatpush1.msra.mxu0 0.0
        %760 = vmatprep.subr.mxu0 0.0
        %761 = vmatpush1.msra.mxu0 0.0
        %762 = vmatprep.subr.mxu0 0.0
        %763 = vmatpush1.msra.mxu0 0.0
        %764 = vmatprep.subr.mxu0 0.0
        %765 = vmatpush1.msra.mxu0 0.0
        %766 = vmatprep.subr.mxu0 0.0
        %767 = vmatpush1.msra.mxu0 0.0
        %768 = vmatprep.subr.mxu0 0.0
        %769 = vmatpush1.msra.mxu0 0.0
        %770 = vmatprep.subr.mxu0 0.0
        %771 = vmatpush1.msra.mxu0 0.0
        %772 = vmatprep.subr.mxu0 0.0
        %773 = vmatpush1.msra.mxu0 0.0
        %774 = vmatprep.subr.mxu0 0.0
        %775 = vmatpush1.msra.mxu0 0.0
        %776 = vmatprep.subr.mxu0 0.0
        %777 = vmatpush1.msra.mxu0 0.0
        %778 = vmatprep.subr.mxu0 0.0
        %779 = vmatpush1.msra.mxu0 0.0
        %780 = vmatprep.subr.mxu0 0.0
        %781 = vmatpush1.msra.mxu0 0.0
        %782 = vmatprep.subr.mxu0 0.0
        %783 = vmatpush1.msra.mxu0 0.0
        %784 = vmatprep.subr.mxu0 0.0
        %785 = vmatpush1.msra.mxu0 0.0
        %786 = vmatprep.subr.mxu0 0.0
        %787 = vmatpush1.msra.mxu0 0.0
        %788 = vmatprep.subr.mxu0 0.0
        %789 = vmatpush1.msra.mxu0 0.0
        %790 = vmatprep.subr.mxu0 0.0
        %791 = vmatpush1.msra.mxu0 0.0
        %792 = vmatprep.subr.mxu0 0.0
        %793 = vmatpush1.msra.mxu0 0.0
        %794 = vmatprep.subr.mxu0 0.0
        %795 = vmatpush1.msra.mxu0 0.0
        %796 = vmatprep.subr.mxu0 0.0
        %797 = vmatpush1.msra.mxu0 0.0
        %798 = vmatprep.subr.mxu0 0.0
        %799 = vmatpush1.msra.mxu0 0.0
        %800 = vmatprep.subr.mxu0 0.0
        %801 = vmatpush1.msra.mxu0 0.0
        %802 = vmatprep.subr.mxu0 0.0
        %803 = vmatpush1.msra.mxu0 0.0
        %804 = vmatprep.subr.mxu0 0.0
        %805 = vmatpush1.msra.mxu0 0.0
        %806 = vmatprep.subr.mxu0 0.0
        %807 = vmatpush1.msra.mxu0 0.0
        %808 = vmatprep.subr.mxu0 0.0
        %809 = vmatpush1.msra.mxu0 0.0
        %810 = vmatprep.subr.mxu0 0.0
        %811 = vmatpush1.msra.mxu0 0.0
        %812 = vmatprep.subr.mxu0 0.0
        %813 = vmatpush1.msra.mxu0 0.0
        %814 = vmatprep.mubr.f32.mxu0 0.0
        %815 = vmatmul.mubr.f32.gmra.mrb[0].mxu0 %v748
        %v816 = vpop.f32.mrb[0].mxu0
        %v817 = vadd.f32 0.0, %v816
        %v818 = vpop.f32.mrb[0].mxu0
        %v819 = vadd.f32 0.0, %v818
        %820 = vdwg.mxu0
        %821 = vmatprep.subr.mxu0 0.0
        %822 = vmatpush1.msra.mxu0 %v744
        %823 = vmatprep.subr.mxu0 0.0
        %824 = vmatpush1.msra.mxu0 0.0
        %825 = vmatprep.subr.mxu0 0.0
        %826 = vmatpush1.msra.mxu0 0.0
        %827 = vmatprep.subr.mxu0 0.0
        %828 = vmatpush1.msra.mxu0 0.0
        %829 = vmatprep.subr.mxu0 0.0
        %830 = vmatpush1.msra.mxu0 0.0
        %831 = vmatprep.subr.mxu0 0.0
        %832 = vmatpush1.msra.mxu0 0.0
        %833 = vmatprep.subr.mxu0 0.0
        %834 = vmatpush1.msra.mxu0 0.0
        %835 = vmatprep.subr.mxu0 0.0
        %836 = vmatpush1.msra.mxu0 0.0
        %837 = vmatprep.subr.mxu0 0.0
        %838 = vmatpush1.msra.mxu0 0.0
        %839 = vmatprep.subr.mxu0 0.0
        %840 = vmatpush1.msra.mxu0 0.0
        %841 = vmatprep.subr.mxu0 0.0
        %842 = vmatpush1.msra.mxu0 0.0
        %843 = vmatprep.subr.mxu0 0.0
        %844 = vmatpush1.msra.mxu0 0.0
        %845 = vmatprep.subr.mxu0 0.0
        %846 = vmatpush1.msra.mxu0 0.0
        %847 = vmatprep.subr.mxu0 0.0
        %848 = vmatpush1.msra.mxu0 0.0
        %849 = vmatprep.subr.mxu0 0.0
        %850 = vmatpush1.msra.mxu0 0.0
        %851 = vmatprep.subr.mxu0 0.0
        %852 = vmatpush1.msra.mxu0 0.0
        %853 = vmatprep.subr.mxu0 0.0
        %854 = vmatpush1.msra.mxu0 0.0
        %855 = vmatprep.subr.mxu0 0.0
        %856 = vmatpush1.msra.mxu0 0.0
        %857 = vmatprep.subr.mxu0 0.0
        %858 = vmatpush1.msra.mxu0 0.0
        %859 = vmatprep.subr.mxu0 0.0
        %860 = vmatpush1.msra.mxu0 0.0
        %861 = vmatprep.subr.mxu0 0.0
        %862 = vmatpush1.msra.mxu0 0.0
        %863 = vmatprep.subr.mxu0 0.0
        %864 = vmatpush1.msra.mxu0 0.0
        %865 = vmatprep.subr.mxu0 0.0
        %866 = vmatpush1.msra.mxu0 0.0
        %867 = vmatprep.subr.mxu0 0.0
        %868 = vmatpush1.msra.mxu0 0.0
        %869 = vmatprep.subr.mxu0 0.0
        %870 = vmatpush1.msra.mxu0 0.0
        %871 = vmatprep.subr.mxu0 0.0
        %872 = vmatpush1.msra.mxu0 0.0
        %873 = vmatprep.subr.mxu0 0.0
        %874 = vmatpush1.msra.mxu0 0.0
        %875 = vmatprep.subr.mxu0 0.0
        %876 = vmatpush1.msra.mxu0 0.0
        %877 = vmatprep.subr.mxu0 0.0
        %878 = vmatpush1.msra.mxu0 0.0
        %879 = vmatprep.subr.mxu0 0.0
        %880 = vmatpush1.msra.mxu0 0.0
        %881 = vmatprep.subr.mxu0 0.0
        %882 = vmatpush1.msra.mxu0 0.0
        %883 = vmatprep.subr.mxu0 0.0
        %884 = vmatpush1.msra.mxu0 0.0
        %885 = vmatprep.mubr.f32.mxu0 0.0
        %886 = vmatmul.mubr.f32.gmra.mrb[0].mxu0 %v748
        %v887 = vpop.f32.mrb[0].mxu0
        %v888 = vadd.f32 0.0, %v887
        %v889 = vpop.f32.mrb[0].mxu0
        %890 = vdwg.mxu0
        %v891 = vadd.f32 %v732, %v817
        %v892 = vadd.f32 %v733, %v819
        %v893 = vadd.f32 %v734, %v888
        %s894 = scalar_lea.vmem %s2, 32
        %v895 = vld [vmem:[%s894] sm:$0xff]
        %v897 = vsel %vm287, %v895, 0
        %899 = vmatprep.subr.mxu0 %v260
        %900 = vmatpush1.msra.mxu0 %v259
        %901 = vmatprep.subr.mxu0 0.0
        %902 = vmatpush1.msra.mxu0 0.0
        %903 = vmatprep.subr.mxu0 0.0
        %904 = vmatpush1.msra.mxu0 0.0
        %905 = vmatprep.subr.mxu0 0.0
        %906 = vmatpush1.msra.mxu0 0.0
        %907 = vmatprep.subr.mxu0 0.0
        %908 = vmatpush1.msra.mxu0 0.0
        %909 = vmatprep.subr.mxu0 0.0
        %910 = vmatpush1.msra.mxu0 0.0
        %911 = vmatprep.subr.mxu0 0.0
        %912 = vmatpush1.msra.mxu0 0.0
        %913 = vmatprep.subr.mxu0 0.0
        %914 = vmatpush1.msra.mxu0 0.0
        %915 = vmatprep.subr.mxu0 0.0
        %916 = vmatpush1.msra.mxu0 0.0
        %917 = vmatprep.subr.mxu0 0.0
        %918 = vmatpush1.msra.mxu0 0.0
        %919 = vmatprep.subr.mxu0 0.0
        %920 = vmatpush1.msra.mxu0 0.0
        %921 = vmatprep.subr.mxu0 0.0
        %922 = vmatpush1.msra.mxu0 0.0
        %923 = vmatprep.subr.mxu0 0.0
        %924 = vmatpush1.msra.mxu0 0.0
        %925 = vmatprep.subr.mxu0 0.0
        %926 = vmatpush1.msra.mxu0 0.0
        %927 = vmatprep.subr.mxu0 0.0
        %928 = vmatpush1.msra.mxu0 0.0
        %929 = vmatprep.subr.mxu0 0.0
        %930 = vmatpush1.msra.mxu0 0.0
        %931 = vmatprep.subr.mxu0 0.0
        %932 = vmatpush1.msra.mxu0 0.0
        %933 = vmatprep.subr.mxu0 0.0
        %934 = vmatpush1.msra.mxu0 0.0
        %935 = vmatprep.subr.mxu0 0.0
        %936 = vmatpush1.msra.mxu0 0.0
        %937 = vmatprep.subr.mxu0 0.0
        %938 = vmatpush1.msra.mxu0 0.0
        %939 = vmatprep.subr.mxu0 0.0
        %940 = vmatpush1.msra.mxu0 0.0
        %941 = vmatprep.subr.mxu0 0.0
        %942 = vmatpush1.msra.mxu0 0.0
        %943 = vmatprep.subr.mxu0 0.0
        %944 = vmatpush1.msra.mxu0 0.0
        %945 = vmatprep.subr.mxu0 0.0
        %946 = vmatpush1.msra.mxu0 0.0
        %947 = vmatprep.subr.mxu0 0.0
        %948 = vmatpush1.msra.mxu0 0.0
        %949 = vmatprep.subr.mxu0 0.0
        %950 = vmatpush1.msra.mxu0 0.0
        %951 = vmatprep.subr.mxu0 0.0
        %952 = vmatpush1.msra.mxu0 0.0
        %953 = vmatprep.subr.mxu0 0.0
        %954 = vmatpush1.msra.mxu0 0.0
        %955 = vmatprep.subr.mxu0 0.0
        %956 = vmatpush1.msra.mxu0 0.0
        %957 = vmatprep.subr.mxu0 0.0
        %958 = vmatpush1.msra.mxu0 0.0
        %959 = vmatprep.subr.mxu0 0.0
        %960 = vmatpush1.msra.mxu0 0.0
        %961 = vmatprep.subr.mxu0 0.0
        %962 = vmatpush1.msra.mxu0 0.0
        %963 = vmatprep.mubr.f32.mxu0 0.0
        %964 = vmatmul.mubr.f32.gmra.mrb[0].mxu0 %v897
        %v965 = vpop.f32.mrb[0].mxu0
        %v966 = vadd.f32 0.0, %v965
        %v967 = vpop.f32.mrb[0].mxu0
        %v968 = vadd.f32 0.0, %v967
        %969 = vdwg.mxu0
        %970 = vmatprep.subr.mxu0 0.0
        %971 = vmatpush1.msra.mxu0 %v261
        %972 = vmatprep.subr.mxu0 0.0
        %973 = vmatpush1.msra.mxu0 0.0
        %974 = vmatprep.subr.mxu0 0.0
        %975 = vmatpush1.msra.mxu0 0.0
        %976 = vmatprep.subr.mxu0 0.0
        %977 = vmatpush1.msra.mxu0 0.0
        %978 = vmatprep.subr.mxu0 0.0
        %979 = vmatpush1.msra.mxu0 0.0
        %980 = vmatprep.subr.mxu0 0.0
        %981 = vmatpush1.msra.mxu0 0.0
        %982 = vmatprep.subr.mxu0 0.0
        %983 = vmatpush1.msra.mxu0 0.0
        %984 = vmatprep.subr.mxu0 0.0
        %985 = vmatpush1.msra.mxu0 0.0
        %986 = vmatprep.subr.mxu0 0.0
        %987 = vmatpush1.msra.mxu0 0.0
        %988 = vmatprep.subr.mxu0 0.0
        %989 = vmatpush1.msra.mxu0 0.0
        %990 = vmatprep.subr.mxu0 0.0
        %991 = vmatpush1.msra.mxu0 0.0
        %992 = vmatprep.subr.mxu0 0.0
        %993 = vmatpush1.msra.mxu0 0.0
        %994 = vmatprep.subr.mxu0 0.0
        %995 = vmatpush1.msra.mxu0 0.0
        %996 = vmatprep.subr.mxu0 0.0
        %997 = vmatpush1.msra.mxu0 0.0
        %998 = vmatprep.subr.mxu0 0.0
        %999 = vmatpush1.msra.mxu0 0.0
        %1000 = vmatprep.subr.mxu0 0.0
        %1001 = vmatpush1.msra.mxu0 0.0
        %1002 = vmatprep.subr.mxu0 0.0
        %1003 = vmatpush1.msra.mxu0 0.0
        %1004 = vmatprep.subr.mxu0 0.0
        %1005 = vmatpush1.msra.mxu0 0.0
        %1006 = vmatprep.subr.mxu0 0.0
        %1007 = vmatpush1.msra.mxu0 0.0
        %1008 = vmatprep.subr.mxu0 0.0
        %1009 = vmatpush1.msra.mxu0 0.0
        %1010 = vmatprep.subr.mxu0 0.0
        %1011 = vmatpush1.msra.mxu0 0.0
        %1012 = vmatprep.subr.mxu0 0.0
        %1013 = vmatpush1.msra.mxu0 0.0
        %1014 = vmatprep.subr.mxu0 0.0
        %1015 = vmatpush1.msra.mxu0 0.0
        %1016 = vmatprep.subr.mxu0 0.0
        %1017 = vmatpush1.msra.mxu0 0.0
        %1018 = vmatprep.subr.mxu0 0.0
        %1019 = vmatpush1.msra.mxu0 0.0
        %1020 = vmatprep.subr.mxu0 0.0
        %1021 = vmatpush1.msra.mxu0 0.0
        %1022 = vmatprep.subr.mxu0 0.0
        %1023 = vmatpush1.msra.mxu0 0.0
        %1024 = vmatprep.subr.mxu0 0.0
        %1025 = vmatpush1.msra.mxu0 0.0
        %1026 = vmatprep.subr.mxu0 0.0
        %1027 = vmatpush1.msra.mxu0 0.0
        %1028 = vmatprep.subr.mxu0 0.0
        %1029 = vmatpush1.msra.mxu0 0.0
        %1030 = vmatprep.subr.mxu0 0.0
        %1031 = vmatpush1.msra.mxu0 0.0
        %1032 = vmatprep.subr.mxu0 0.0
        %1033 = vmatpush1.msra.mxu0 0.0
        %1034 = vmatprep.mubr.f32.mxu0 0.0
        %1035 = vmatmul.mubr.f32.gmra.mrb[0].mxu0 %v897
        %v1036 = vpop.f32.mrb[0].mxu0
        %v1037 = vadd.f32 0.0, %v1036
        %v1038 = vpop.f32.mrb[0].mxu0
        %1039 = vdwg.mxu0
        %v1040 = vadd.f32 %v891, %v966
        %v1041 = vadd.f32 %v892, %v968
        %v1042 = vadd.f32 %v893, %v1037
        %s1043 = scalar_lea.vmem %s2, 40
        %v1044 = vld [vmem:[%s1043] sm:$0xff]
        %1045 = vrot.lane.b32.xlu0 %v259, 127
        %v1046 = vpop.permute.xlu0 %1045
        %1047 = vrot.lane.b32.xlu0 %v260, 127
        %v1048 = vpop.permute.xlu0 %1047
        %1049 = vrot.lane.b32.xlu0 %v261, 127
        %v1050 = vpop.permute.xlu0 %1049
        %vm1051 = vcmp.lt.s32.totalorder %v270, 127
        %v1052 = vsel %vm1051, %v1048, %v1050
        %v1053 = vsel %vm1051, %v1046, %v1048
        %v1054 = vsel %vm1051, %v1050, %v1046
        %v1056 = vsel %vm287, %v1044, 0
        %1058 = vmatprep.subr.mxu0 %v1052
        %1059 = vmatpush1.msra.mxu0 %v1053
        %1060 = vmatprep.subr.mxu0 0.0
        %1061 = vmatpush1.msra.mxu0 0.0
        %1062 = vmatprep.subr.mxu0 0.0
        %1063 = vmatpush1.msra.mxu0 0.0
        %1064 = vmatprep.subr.mxu0 0.0
        %1065 = vmatpush1.msra.mxu0 0.0
        %1066 = vmatprep.subr.mxu0 0.0
        %1067 = vmatpush1.msra.mxu0 0.0
        %1068 = vmatprep.subr.mxu0 0.0
        %1069 = vmatpush1.msra.mxu0 0.0
        %1070 = vmatprep.subr.mxu0 0.0
        %1071 = vmatpush1.msra.mxu0 0.0
        %1072 = vmatprep.subr.mxu0 0.0
        %1073 = vmatpush1.msra.mxu0 0.0
        %1074 = vmatprep.subr.mxu0 0.0
        %1075 = vmatpush1.msra.mxu0 0.0
        %1076 = vmatprep.subr.mxu0 0.0
        %1077 = vmatpush1.msra.mxu0 0.0
        %1078 = vmatprep.subr.mxu0 0.0
        %1079 = vmatpush1.msra.mxu0 0.0
        %1080 = vmatprep.subr.mxu0 0.0
        %1081 = vmatpush1.msra.mxu0 0.0
        %1082 = vmatprep.subr.mxu0 0.0
        %1083 = vmatpush1.msra.mxu0 0.0
        %1084 = vmatprep.subr.mxu0 0.0
        %1085 = vmatpush1.msra.mxu0 0.0
        %1086 = vmatprep.subr.mxu0 0.0
        %1087 = vmatpush1.msra.mxu0 0.0
        %1088 = vmatprep.subr.mxu0 0.0
        %1089 = vmatpush1.msra.mxu0 0.0
        %1090 = vmatprep.subr.mxu0 0.0
        %1091 = vmatpush1.msra.mxu0 0.0
        %1092 = vmatprep.subr.mxu0 0.0
        %1093 = vmatpush1.msra.mxu0 0.0
        %1094 = vmatprep.subr.mxu0 0.0
        %1095 = vmatpush1.msra.mxu0 0.0
        %1096 = vmatprep.subr.mxu0 0.0
        %1097 = vmatpush1.msra.mxu0 0.0
        %1098 = vmatprep.subr.mxu0 0.0
        %1099 = vmatpush1.msra.mxu0 0.0
        %1100 = vmatprep.subr.mxu0 0.0
        %1101 = vmatpush1.msra.mxu0 0.0
        %1102 = vmatprep.subr.mxu0 0.0
        %1103 = vmatpush1.msra.mxu0 0.0
        %1104 = vmatprep.subr.mxu0 0.0
        %1105 = vmatpush1.msra.mxu0 0.0
        %1106 = vmatprep.subr.mxu0 0.0
        %1107 = vmatpush1.msra.mxu0 0.0
        %1108 = vmatprep.subr.mxu0 0.0
        %1109 = vmatpush1.msra.mxu0 0.0
        %1110 = vmatprep.subr.mxu0 0.0
        %1111 = vmatpush1.msra.mxu0 0.0
        %1112 = vmatprep.subr.mxu0 0.0
        %1113 = vmatpush1.msra.mxu0 0.0
        %1114 = vmatprep.subr.mxu0 0.0
        %1115 = vmatpush1.msra.mxu0 0.0
        %1116 = vmatprep.subr.mxu0 0.0
        %1117 = vmatpush1.msra.mxu0 0.0
        %1118 = vmatprep.subr.mxu0 0.0
        %1119 = vmatpush1.msra.mxu0 0.0
        %1120 = vmatprep.subr.mxu0 0.0
        %1121 = vmatpush1.msra.mxu0 0.0
        %1122 = vmatprep.mubr.f32.mxu0 0.0
        %1123 = vmatmul.mubr.f32.gmra.mrb[0].mxu0 %v1056
        %v1124 = vpop.f32.mrb[0].mxu0
        %v1125 = vadd.f32 0.0, %v1124
        %v1126 = vpop.f32.mrb[0].mxu0
        %v1127 = vadd.f32 0.0, %v1126
        %1128 = vdwg.mxu0
        %1129 = vmatprep.subr.mxu0 0.0
        %1130 = vmatpush1.msra.mxu0 %v1054
        %1131 = vmatprep.subr.mxu0 0.0
        %1132 = vmatpush1.msra.mxu0 0.0
        %1133 = vmatprep.subr.mxu0 0.0
        %1134 = vmatpush1.msra.mxu0 0.0
        %1135 = vmatprep.subr.mxu0 0.0
        %1136 = vmatpush1.msra.mxu0 0.0
        %1137 = vmatprep.subr.mxu0 0.0
        %1138 = vmatpush1.msra.mxu0 0.0
        %1139 = vmatprep.subr.mxu0 0.0
        %1140 = vmatpush1.msra.mxu0 0.0
        %1141 = vmatprep.subr.mxu0 0.0
        %1142 = vmatpush1.msra.mxu0 0.0
        %1143 = vmatprep.subr.mxu0 0.0
        %1144 = vmatpush1.msra.mxu0 0.0
        %1145 = vmatprep.subr.mxu0 0.0
        %1146 = vmatpush1.msra.mxu0 0.0
        %1147 = vmatprep.subr.mxu0 0.0
        %1148 = vmatpush1.msra.mxu0 0.0
        %1149 = vmatprep.subr.mxu0 0.0
        %1150 = vmatpush1.msra.mxu0 0.0
        %1151 = vmatprep.subr.mxu0 0.0
        %1152 = vmatpush1.msra.mxu0 0.0
        %1153 = vmatprep.subr.mxu0 0.0
        %1154 = vmatpush1.msra.mxu0 0.0
        %1155 = vmatprep.subr.mxu0 0.0
        %1156 = vmatpush1.msra.mxu0 0.0
        %1157 = vmatprep.subr.mxu0 0.0
        %1158 = vmatpush1.msra.mxu0 0.0
        %1159 = vmatprep.subr.mxu0 0.0
        %1160 = vmatpush1.msra.mxu0 0.0
        %1161 = vmatprep.subr.mxu0 0.0
        %1162 = vmatpush1.msra.mxu0 0.0
        %1163 = vmatprep.subr.mxu0 0.0
        %1164 = vmatpush1.msra.mxu0 0.0
        %1165 = vmatprep.subr.mxu0 0.0
        %1166 = vmatpush1.msra.mxu0 0.0
        %1167 = vmatprep.subr.mxu0 0.0
        %1168 = vmatpush1.msra.mxu0 0.0
        %1169 = vmatprep.subr.mxu0 0.0
        %1170 = vmatpush1.msra.mxu0 0.0
        %1171 = vmatprep.subr.mxu0 0.0
        %1172 = vmatpush1.msra.mxu0 0.0
        %1173 = vmatprep.subr.mxu0 0.0
        %1174 = vmatpush1.msra.mxu0 0.0
        %1175 = vmatprep.subr.mxu0 0.0
        %1176 = vmatpush1.msra.mxu0 0.0
        %1177 = vmatprep.subr.mxu0 0.0
        %1178 = vmatpush1.msra.mxu0 0.0
        %1179 = vmatprep.subr.mxu0 0.0
        %1180 = vmatpush1.msra.mxu0 0.0
        %1181 = vmatprep.subr.mxu0 0.0
        %1182 = vmatpush1.msra.mxu0 0.0
        %1183 = vmatprep.subr.mxu0 0.0
        %1184 = vmatpush1.msra.mxu0 0.0
        %1185 = vmatprep.subr.mxu0 0.0
        %1186 = vmatpush1.msra.mxu0 0.0
        %1187 = vmatprep.subr.mxu0 0.0
        %1188 = vmatpush1.msra.mxu0 0.0
        %1189 = vmatprep.subr.mxu0 0.0
        %1190 = vmatpush1.msra.mxu0 0.0
        %1191 = vmatprep.subr.mxu0 0.0
        %1192 = vmatpush1.msra.mxu0 0.0
        %1193 = vmatprep.mubr.f32.mxu0 0.0
        %1194 = vmatmul.mubr.f32.gmra.mrb[0].mxu0 %v1056
        %v1195 = vpop.f32.mrb[0].mxu0
        %v1196 = vadd.f32 0.0, %v1195
        %v1197 = vpop.f32.mrb[0].mxu0
        %1198 = vdwg.mxu0
        %v1199 = vadd.f32 %v1040, %v1125
        %v1200 = vadd.f32 %v1041, %v1127
        %v1201 = vadd.f32 %v1042, %v1196
        %s1202 = scalar_lea.vmem %s2, 48
        %v1203 = vld [vmem:[%s1202] sm:$0xff]
        %1204 = vrot.lane.b32.xlu0 %v259, 111
        %v1205 = vpop.permute.xlu0 %1204
        %1206 = vrot.lane.b32.xlu0 %v260, 111
        %v1207 = vpop.permute.xlu0 %1206
        %1208 = vrot.lane.b32.xlu0 %v261, 111
        %v1209 = vpop.permute.xlu0 %1208
        %vm1210 = vcmp.lt.s32.totalorder %v270, 111
        %v1211 = vsel %vm1210, %v1207, %v1209
        %v1212 = vsel %vm1210, %v1205, %v1207
        %v1213 = vsel %vm1210, %v1209, %v1205
        %v1215 = vsel %vm287, %v1203, 0
        %1217 = vmatprep.subr.mxu0 %v1211
        %1218 = vmatpush1.msra.mxu0 %v1212
        %1219 = vmatprep.subr.mxu0 0.0
        %1220 = vmatpush1.msra.mxu0 0.0
        %1221 = vmatprep.subr.mxu0 0.0
        %1222 = vmatpush1.msra.mxu0 0.0
        %1223 = vmatprep.subr.mxu0 0.0
        %1224 = vmatpush1.msra.mxu0 0.0
        %1225 = vmatprep.subr.mxu0 0.0
        %1226 = vmatpush1.msra.mxu0 0.0
        %1227 = vmatprep.subr.mxu0 0.0
        %1228 = vmatpush1.msra.mxu0 0.0
        %1229 = vmatprep.subr.mxu0 0.0
        %1230 = vmatpush1.msra.mxu0 0.0
        %1231 = vmatprep.subr.mxu0 0.0
        %1232 = vmatpush1.msra.mxu0 0.0
        %1233 = vmatprep.subr.mxu0 0.0
        %1234 = vmatpush1.msra.mxu0 0.0
        %1235 = vmatprep.subr.mxu0 0.0
        %1236 = vmatpush1.msra.mxu0 0.0
        %1237 = vmatprep.subr.mxu0 0.0
        %1238 = vmatpush1.msra.mxu0 0.0
        %1239 = vmatprep.subr.mxu0 0.0
        %1240 = vmatpush1.msra.mxu0 0.0
        %1241 = vmatprep.subr.mxu0 0.0
        %1242 = vmatpush1.msra.mxu0 0.0
        %1243 = vmatprep.subr.mxu0 0.0
        %1244 = vmatpush1.msra.mxu0 0.0
        %1245 = vmatprep.subr.mxu0 0.0
        %1246 = vmatpush1.msra.mxu0 0.0
        %1247 = vmatprep.subr.mxu0 0.0
        %1248 = vmatpush1.msra.mxu0 0.0
        %1249 = vmatprep.subr.mxu0 0.0
        %1250 = vmatpush1.msra.mxu0 0.0
        %1251 = vmatprep.subr.mxu0 0.0
        %1252 = vmatpush1.msra.mxu0 0.0
        %1253 = vmatprep.subr.mxu0 0.0
        %1254 = vmatpush1.msra.mxu0 0.0
        %1255 = vmatprep.subr.mxu0 0.0
        %1256 = vmatpush1.msra.mxu0 0.0
        %1257 = vmatprep.subr.mxu0 0.0
        %1258 = vmatpush1.msra.mxu0 0.0
        %1259 = vmatprep.subr.mxu0 0.0
        %1260 = vmatpush1.msra.mxu0 0.0
        %1261 = vmatprep.subr.mxu0 0.0
        %1262 = vmatpush1.msra.mxu0 0.0
        %1263 = vmatprep.subr.mxu0 0.0
        %1264 = vmatpush1.msra.mxu0 0.0
        %1265 = vmatprep.subr.mxu0 0.0
        %1266 = vmatpush1.msra.mxu0 0.0
        %1267 = vmatprep.subr.mxu0 0.0
        %1268 = vmatpush1.msra.mxu0 0.0
        %1269 = vmatprep.subr.mxu0 0.0
        %1270 = vmatpush1.msra.mxu0 0.0
        %1271 = vmatprep.subr.mxu0 0.0
        %1272 = vmatpush1.msra.mxu0 0.0
        %1273 = vmatprep.subr.mxu0 0.0
        %1274 = vmatpush1.msra.mxu0 0.0
        %1275 = vmatprep.subr.mxu0 0.0
        %1276 = vmatpush1.msra.mxu0 0.0
        %1277 = vmatprep.subr.mxu0 0.0
        %1278 = vmatpush1.msra.mxu0 0.0
        %1279 = vmatprep.subr.mxu0 0.0
        %1280 = vmatpush1.msra.mxu0 0.0
        %1281 = vmatprep.mubr.f32.mxu0 0.0
        %1282 = vmatmul.mubr.f32.gmra.mrb[0].mxu0 %v1215
        %v1283 = vpop.f32.mrb[0].mxu0
        %v1284 = vadd.f32 0.0, %v1283
        %v1285 = vpop.f32.mrb[0].mxu0
        %v1286 = vadd.f32 0.0, %v1285
        %1287 = vdwg.mxu0
        %1288 = vmatprep.subr.mxu0 0.0
        %1289 = vmatpush1.msra.mxu0 %v1213
        %1290 = vmatprep.subr.mxu0 0.0
        %1291 = vmatpush1.msra.mxu0 0.0
        %1292 = vmatprep.subr.mxu0 0.0
        %1293 = vmatpush1.msra.mxu0 0.0
        %1294 = vmatprep.subr.mxu0 0.0
        %1295 = vmatpush1.msra.mxu0 0.0
        %1296 = vmatprep.subr.mxu0 0.0
        %1297 = vmatpush1.msra.mxu0 0.0
        %1298 = vmatprep.subr.mxu0 0.0
        %1299 = vmatpush1.msra.mxu0 0.0
        %1300 = vmatprep.subr.mxu0 0.0
        %1301 = vmatpush1.msra.mxu0 0.0
        %1302 = vmatprep.subr.mxu0 0.0
        %1303 = vmatpush1.msra.mxu0 0.0
        %1304 = vmatprep.subr.mxu0 0.0
        %1305 = vmatpush1.msra.mxu0 0.0
        %1306 = vmatprep.subr.mxu0 0.0
        %1307 = vmatpush1.msra.mxu0 0.0
        %1308 = vmatprep.subr.mxu0 0.0
        %1309 = vmatpush1.msra.mxu0 0.0
        %1310 = vmatprep.subr.mxu0 0.0
        %1311 = vmatpush1.msra.mxu0 0.0
        %1312 = vmatprep.subr.mxu0 0.0
        %1313 = vmatpush1.msra.mxu0 0.0
        %1314 = vmatprep.subr.mxu0 0.0
        %1315 = vmatpush1.msra.mxu0 0.0
        %1316 = vmatprep.subr.mxu0 0.0
        %1317 = vmatpush1.msra.mxu0 0.0
        %1318 = vmatprep.subr.mxu0 0.0
        %1319 = vmatpush1.msra.mxu0 0.0
        %1320 = vmatprep.subr.mxu0 0.0
        %1321 = vmatpush1.msra.mxu0 0.0
        %1322 = vmatprep.subr.mxu0 0.0
        %1323 = vmatpush1.msra.mxu0 0.0
        %1324 = vmatprep.subr.mxu0 0.0
        %1325 = vmatpush1.msra.mxu0 0.0
        %1326 = vmatprep.subr.mxu0 0.0
        %1327 = vmatpush1.msra.mxu0 0.0
        %1328 = vmatprep.subr.mxu0 0.0
        %1329 = vmatpush1.msra.mxu0 0.0
        %1330 = vmatprep.subr.mxu0 0.0
        %1331 = vmatpush1.msra.mxu0 0.0
        %1332 = vmatprep.subr.mxu0 0.0
        %1333 = vmatpush1.msra.mxu0 0.0
        %1334 = vmatprep.subr.mxu0 0.0
        %1335 = vmatpush1.msra.mxu0 0.0
        %1336 = vmatprep.subr.mxu0 0.0
        %1337 = vmatpush1.msra.mxu0 0.0
        %1338 = vmatprep.subr.mxu0 0.0
        %1339 = vmatpush1.msra.mxu0 0.0
        %1340 = vmatprep.subr.mxu0 0.0
        %1341 = vmatpush1.msra.mxu0 0.0
        %1342 = vmatprep.subr.mxu0 0.0
        %1343 = vmatpush1.msra.mxu0 0.0
        %1344 = vmatprep.subr.mxu0 0.0
        %1345 = vmatpush1.msra.mxu0 0.0
        %1346 = vmatprep.subr.mxu0 0.0
        %1347 = vmatpush1.msra.mxu0 0.0
        %1348 = vmatprep.subr.mxu0 0.0
        %1349 = vmatpush1.msra.mxu0 0.0
        %1350 = vmatprep.subr.mxu0 0.0
        %1351 = vmatpush1.msra.mxu0 0.0
        %1352 = vmatprep.mubr.f32.mxu0 0.0
        %1353 = vmatmul.mubr.f32.gmra.mrb[0].mxu0 %v1215
        %v1354 = vpop.f32.mrb[0].mxu0
        %v1355 = vadd.f32 0.0, %v1354
        %v1356 = vpop.f32.mrb[0].mxu0
        %1357 = vdwg.mxu0
        %v1358 = vadd.f32 %v1199, %v1284
        %v1359 = vadd.f32 %v1200, %v1286
        %v1360 = vadd.f32 %v1201, %v1355
        %s1361 = scalar_lea.vmem %s2, 56
        %v1362 = vld [vmem:[%s1361] sm:$0xff]
        %1363 = vrot.lane.b32.xlu0 %v259, 110
        %v1364 = vpop.permute.xlu0 %1363
        %1365 = vrot.lane.b32.xlu0 %v260, 110
        %v1366 = vpop.permute.xlu0 %1365
        %1367 = vrot.lane.b32.xlu0 %v261, 110
        %v1368 = vpop.permute.xlu0 %1367
        %vm1369 = vcmp.lt.s32.totalorder %v270, 110
        %v1370 = vsel %vm1369, %v1366, %v1368
        %v1371 = vsel %vm1369, %v1364, %v1366
        %v1372 = vsel %vm1369, %v1368, %v1364
        %v1374 = vsel %vm287, %v1362, 0
        %1376 = vmatprep.subr.mxu0 %v1370
        %1377 = vmatpush1.msra.mxu0 %v1371
        %1378 = vmatprep.subr.mxu0 0.0
        %1379 = vmatpush1.msra.mxu0 0.0
        %1380 = vmatprep.subr.mxu0 0.0
        %1381 = vmatpush1.msra.mxu0 0.0
        %1382 = vmatprep.subr.mxu0 0.0
        %1383 = vmatpush1.msra.mxu0 0.0
        %1384 = vmatprep.subr.mxu0 0.0
        %1385 = vmatpush1.msra.mxu0 0.0
        %1386 = vmatprep.subr.mxu0 0.0
        %1387 = vmatpush1.msra.mxu0 0.0
        %1388 = vmatprep.subr.mxu0 0.0
        %1389 = vmatpush1.msra.mxu0 0.0
        %1390 = vmatprep.subr.mxu0 0.0
        %1391 = vmatpush1.msra.mxu0 0.0
        %1392 = vmatprep.subr.mxu0 0.0
        %1393 = vmatpush1.msra.mxu0 0.0
        %1394 = vmatprep.subr.mxu0 0.0
        %1395 = vmatpush1.msra.mxu0 0.0
        %1396 = vmatprep.subr.mxu0 0.0
        %1397 = vmatpush1.msra.mxu0 0.0
        %1398 = vmatprep.subr.mxu0 0.0
        %1399 = vmatpush1.msra.mxu0 0.0
        %1400 = vmatprep.subr.mxu0 0.0
        %1401 = vmatpush1.msra.mxu0 0.0
        %1402 = vmatprep.subr.mxu0 0.0
        %1403 = vmatpush1.msra.mxu0 0.0
        %1404 = vmatprep.subr.mxu0 0.0
        %1405 = vmatpush1.msra.mxu0 0.0
        %1406 = vmatprep.subr.mxu0 0.0
        %1407 = vmatpush1.msra.mxu0 0.0
        %1408 = vmatprep.subr.mxu0 0.0
        %1409 = vmatpush1.msra.mxu0 0.0
        %1410 = vmatprep.subr.mxu0 0.0
        %1411 = vmatpush1.msra.mxu0 0.0
        %1412 = vmatprep.subr.mxu0 0.0
        %1413 = vmatpush1.msra.mxu0 0.0
        %1414 = vmatprep.subr.mxu0 0.0
        %1415 = vmatpush1.msra.mxu0 0.0
        %1416 = vmatprep.subr.mxu0 0.0
        %1417 = vmatpush1.msra.mxu0 0.0
        %1418 = vmatprep.subr.mxu0 0.0
        %1419 = vmatpush1.msra.mxu0 0.0
        %1420 = vmatprep.subr.mxu0 0.0
        %1421 = vmatpush1.msra.mxu0 0.0
        %1422 = vmatprep.subr.mxu0 0.0
        %1423 = vmatpush1.msra.mxu0 0.0
        %1424 = vmatprep.subr.mxu0 0.0
        %1425 = vmatpush1.msra.mxu0 0.0
        %1426 = vmatprep.subr.mxu0 0.0
        %1427 = vmatpush1.msra.mxu0 0.0
        %1428 = vmatprep.subr.mxu0 0.0
        %1429 = vmatpush1.msra.mxu0 0.0
        %1430 = vmatprep.subr.mxu0 0.0
        %1431 = vmatpush1.msra.mxu0 0.0
        %1432 = vmatprep.subr.mxu0 0.0
        %1433 = vmatpush1.msra.mxu0 0.0
        %1434 = vmatprep.subr.mxu0 0.0
        %1435 = vmatpush1.msra.mxu0 0.0
        %1436 = vmatprep.subr.mxu0 0.0
        %1437 = vmatpush1.msra.mxu0 0.0
        %1438 = vmatprep.subr.mxu0 0.0
        %1439 = vmatpush1.msra.mxu0 0.0
        %1440 = vmatprep.mubr.f32.mxu0 0.0
        %1441 = vmatmul.mubr.f32.gmra.mrb[0].mxu0 %v1374
        %v1442 = vpop.f32.mrb[0].mxu0
        %v1443 = vadd.f32 0.0, %v1442
        %v1444 = vpop.f32.mrb[0].mxu0
        %v1445 = vadd.f32 0.0, %v1444
        %1446 = vdwg.mxu0
        %1447 = vmatprep.subr.mxu0 0.0
        %1448 = vmatpush1.msra.mxu0 %v1372
        %1449 = vmatprep.subr.mxu0 0.0
        %1450 = vmatpush1.msra.mxu0 0.0
        %1451 = vmatprep.subr.mxu0 0.0
        %1452 = vmatpush1.msra.mxu0 0.0
        %1453 = vmatprep.subr.mxu0 0.0
        %1454 = vmatpush1.msra.mxu0 0.0
        %1455 = vmatprep.subr.mxu0 0.0
        %1456 = vmatpush1.msra.mxu0 0.0
        %1457 = vmatprep.subr.mxu0 0.0
        %1458 = vmatpush1.msra.mxu0 0.0
        %1459 = vmatprep.subr.mxu0 0.0
        %1460 = vmatpush1.msra.mxu0 0.0
        %1461 = vmatprep.subr.mxu0 0.0
        %1462 = vmatpush1.msra.mxu0 0.0
        %1463 = vmatprep.subr.mxu0 0.0
        %1464 = vmatpush1.msra.mxu0 0.0
        %1465 = vmatprep.subr.mxu0 0.0
        %1466 = vmatpush1.msra.mxu0 0.0
        %1467 = vmatprep.subr.mxu0 0.0
        %1468 = vmatpush1.msra.mxu0 0.0
        %1469 = vmatprep.subr.mxu0 0.0
        %1470 = vmatpush1.msra.mxu0 0.0
        %1471 = vmatprep.subr.mxu0 0.0
        %1472 = vmatpush1.msra.mxu0 0.0
        %1473 = vmatprep.subr.mxu0 0.0
        %1474 = vmatpush1.msra.mxu0 0.0
        %1475 = vmatprep.subr.mxu0 0.0
        %1476 = vmatpush1.msra.mxu0 0.0
        %1477 = vmatprep.subr.mxu0 0.0
        %1478 = vmatpush1.msra.mxu0 0.0
        %1479 = vmatprep.subr.mxu0 0.0
        %1480 = vmatpush1.msra.mxu0 0.0
        %1481 = vmatprep.subr.mxu0 0.0
        %1482 = vmatpush1.msra.mxu0 0.0
        %1483 = vmatprep.subr.mxu0 0.0
        %1484 = vmatpush1.msra.mxu0 0.0
        %1485 = vmatprep.subr.mxu0 0.0
        %1486 = vmatpush1.msra.mxu0 0.0
        %1487 = vmatprep.subr.mxu0 0.0
        %1488 = vmatpush1.msra.mxu0 0.0
        %1489 = vmatprep.subr.mxu0 0.0
        %1490 = vmatpush1.msra.mxu0 0.0
        %1491 = vmatprep.subr.mxu0 0.0
        %1492 = vmatpush1.msra.mxu0 0.0
        %1493 = vmatprep.subr.mxu0 0.0
        %1494 = vmatpush1.msra.mxu0 0.0
        %1495 = vmatprep.subr.mxu0 0.0
        %1496 = vmatpush1.msra.mxu0 0.0
        %1497 = vmatprep.subr.mxu0 0.0
        %1498 = vmatpush1.msra.mxu0 0.0
        %1499 = vmatprep.subr.mxu0 0.0
        %1500 = vmatpush1.msra.mxu0 0.0
        %1501 = vmatprep.subr.mxu0 0.0
        %1502 = vmatpush1.msra.mxu0 0.0
        %1503 = vmatprep.subr.mxu0 0.0
        %1504 = vmatpush1.msra.mxu0 0.0
        %1505 = vmatprep.subr.mxu0 0.0
        %1506 = vmatpush1.msra.mxu0 0.0
        %1507 = vmatprep.subr.mxu0 0.0
        %1508 = vmatpush1.msra.mxu0 0.0
        %1509 = vmatprep.subr.mxu0 0.0
        %1510 = vmatpush1.msra.mxu0 0.0
        %1511 = vmatprep.mubr.f32.mxu0 0.0
        %1512 = vmatmul.mubr.f32.gmra.mrb[0].mxu0 %v1374
        %v1513 = vpop.f32.mrb[0].mxu0
        %v1514 = vadd.f32 0.0, %v1513
        %v1515 = vpop.f32.mrb[0].mxu0
        %1516 = vdwg.mxu0
        %v1517 = vadd.f32 %v1358, %v1443
        %v1518 = vadd.f32 %v1359, %v1445
        %v1519 = vadd.f32 %v1360, %v1514
        %s1520 = scalar_lea.vmem %s2, 64
        %v1521 = vld [vmem:[%s1520] sm:$0xff]
        %1522 = vrot.lane.b32.xlu0 %v259, 109
        %v1523 = vpop.permute.xlu0 %1522
        %1524 = vrot.lane.b32.xlu0 %v260, 109
        %v1525 = vpop.permute.xlu0 %1524
        %1526 = vrot.lane.b32.xlu0 %v261, 109
        %v1527 = vpop.permute.xlu0 %1526
        %vm1528 = vcmp.lt.s32.totalorder %v270, 109
        %v1529 = vsel %vm1528, %v1525, %v1527
        %v1530 = vsel %vm1528, %v1523, %v1525
        %v1531 = vsel %vm1528, %v1527, %v1523
        %v1533 = vsel %vm287, %v1521, 0
        %1535 = vmatprep.subr.mxu0 %v1529
        %1536 = vmatpush1.msra.mxu0 %v1530
        %1537 = vmatprep.subr.mxu0 0.0
        %1538 = vmatpush1.msra.mxu0 0.0
        %1539 = vmatprep.subr.mxu0 0.0
        %1540 = vmatpush1.msra.mxu0 0.0
        %1541 = vmatprep.subr.mxu0 0.0
        %1542 = vmatpush1.msra.mxu0 0.0
        %1543 = vmatprep.subr.mxu0 0.0
        %1544 = vmatpush1.msra.mxu0 0.0
        %1545 = vmatprep.subr.mxu0 0.0
        %1546 = vmatpush1.msra.mxu0 0.0
        %1547 = vmatprep.subr.mxu0 0.0
        %1548 = vmatpush1.msra.mxu0 0.0
        %1549 = vmatprep.subr.mxu0 0.0
        %1550 = vmatpush1.msra.mxu0 0.0
        %1551 = vmatprep.subr.mxu0 0.0
        %1552 = vmatpush1.msra.mxu0 0.0
        %1553 = vmatprep.subr.mxu0 0.0
        %1554 = vmatpush1.msra.mxu0 0.0
        %1555 = vmatprep.subr.mxu0 0.0
        %1556 = vmatpush1.msra.mxu0 0.0
        %1557 = vmatprep.subr.mxu0 0.0
        %1558 = vmatpush1.msra.mxu0 0.0
        %1559 = vmatprep.subr.mxu0 0.0
        %1560 = vmatpush1.msra.mxu0 0.0
        %1561 = vmatprep.subr.mxu0 0.0
        %1562 = vmatpush1.msra.mxu0 0.0
        %1563 = vmatprep.subr.mxu0 0.0
        %1564 = vmatpush1.msra.mxu0 0.0
        %1565 = vmatprep.subr.mxu0 0.0
        %1566 = vmatpush1.msra.mxu0 0.0
        %1567 = vmatprep.subr.mxu0 0.0
        %1568 = vmatpush1.msra.mxu0 0.0
        %1569 = vmatprep.subr.mxu0 0.0
        %1570 = vmatpush1.msra.mxu0 0.0
        %1571 = vmatprep.subr.mxu0 0.0
        %1572 = vmatpush1.msra.mxu0 0.0
        %1573 = vmatprep.subr.mxu0 0.0
        %1574 = vmatpush1.msra.mxu0 0.0
        %1575 = vmatprep.subr.mxu0 0.0
        %1576 = vmatpush1.msra.mxu0 0.0
        %1577 = vmatprep.subr.mxu0 0.0
        %1578 = vmatpush1.msra.mxu0 0.0
        %1579 = vmatprep.subr.mxu0 0.0
        %1580 = vmatpush1.msra.mxu0 0.0
        %1581 = vmatprep.subr.mxu0 0.0
        %1582 = vmatpush1.msra.mxu0 0.0
        %1583 = vmatprep.subr.mxu0 0.0
        %1584 = vmatpush1.msra.mxu0 0.0
        %1585 = vmatprep.subr.mxu0 0.0
        %1586 = vmatpush1.msra.mxu0 0.0
        %1587 = vmatprep.subr.mxu0 0.0
        %1588 = vmatpush1.msra.mxu0 0.0
        %1589 = vmatprep.subr.mxu0 0.0
        %1590 = vmatpush1.msra.mxu0 0.0
        %1591 = vmatprep.subr.mxu0 0.0
        %1592 = vmatpush1.msra.mxu0 0.0
        %1593 = vmatprep.subr.mxu0 0.0
        %1594 = vmatpush1.msra.mxu0 0.0
        %1595 = vmatprep.subr.mxu0 0.0
        %1596 = vmatpush1.msra.mxu0 0.0
        %1597 = vmatprep.subr.mxu0 0.0
        %1598 = vmatpush1.msra.mxu0 0.0
        %1599 = vmatprep.mubr.f32.mxu0 0.0
        %1600 = vmatmul.mubr.f32.gmra.mrb[0].mxu0 %v1533
        %v1601 = vpop.f32.mrb[0].mxu0
        %v1602 = vadd.f32 0.0, %v1601
        %v1603 = vpop.f32.mrb[0].mxu0
        %v1604 = vadd.f32 0.0, %v1603
        %1605 = vdwg.mxu0
        %1606 = vmatprep.subr.mxu0 0.0
        %1607 = vmatpush1.msra.mxu0 %v1531
        %1608 = vmatprep.subr.mxu0 0.0
        %1609 = vmatpush1.msra.mxu0 0.0
        %1610 = vmatprep.subr.mxu0 0.0
        %1611 = vmatpush1.msra.mxu0 0.0
        %1612 = vmatprep.subr.mxu0 0.0
        %1613 = vmatpush1.msra.mxu0 0.0
        %1614 = vmatprep.subr.mxu0 0.0
        %1615 = vmatpush1.msra.mxu0 0.0
        %1616 = vmatprep.subr.mxu0 0.0
        %1617 = vmatpush1.msra.mxu0 0.0
        %1618 = vmatprep.subr.mxu0 0.0
        %1619 = vmatpush1.msra.mxu0 0.0
        %1620 = vmatprep.subr.mxu0 0.0
        %1621 = vmatpush1.msra.mxu0 0.0
        %1622 = vmatprep.subr.mxu0 0.0
        %1623 = vmatpush1.msra.mxu0 0.0
        %1624 = vmatprep.subr.mxu0 0.0
        %1625 = vmatpush1.msra.mxu0 0.0
        %1626 = vmatprep.subr.mxu0 0.0
        %1627 = vmatpush1.msra.mxu0 0.0
        %1628 = vmatprep.subr.mxu0 0.0
        %1629 = vmatpush1.msra.mxu0 0.0
        %1630 = vmatprep.subr.mxu0 0.0
        %1631 = vmatpush1.msra.mxu0 0.0
        %1632 = vmatprep.subr.mxu0 0.0
        %1633 = vmatpush1.msra.mxu0 0.0
        %1634 = vmatprep.subr.mxu0 0.0
        %1635 = vmatpush1.msra.mxu0 0.0
        %1636 = vmatprep.subr.mxu0 0.0
        %1637 = vmatpush1.msra.mxu0 0.0
        %1638 = vmatprep.subr.mxu0 0.0
        %1639 = vmatpush1.msra.mxu0 0.0
        %1640 = vmatprep.subr.mxu0 0.0
        %1641 = vmatpush1.msra.mxu0 0.0
        %1642 = vmatprep.subr.mxu0 0.0
        %1643 = vmatpush1.msra.mxu0 0.0
        %1644 = vmatprep.subr.mxu0 0.0
        %1645 = vmatpush1.msra.mxu0 0.0
        %1646 = vmatprep.subr.mxu0 0.0
        %1647 = vmatpush1.msra.mxu0 0.0
        %1648 = vmatprep.subr.mxu0 0.0
        %1649 = vmatpush1.msra.mxu0 0.0
        %1650 = vmatprep.subr.mxu0 0.0
        %1651 = vmatpush1.msra.mxu0 0.0
        %1652 = vmatprep.subr.mxu0 0.0
        %1653 = vmatpush1.msra.mxu0 0.0
        %1654 = vmatprep.subr.mxu0 0.0
        %1655 = vmatpush1.msra.mxu0 0.0
        %1656 = vmatprep.subr.mxu0 0.0
        %1657 = vmatpush1.msra.mxu0 0.0
        %1658 = vmatprep.subr.mxu0 0.0
        %1659 = vmatpush1.msra.mxu0 0.0
        %1660 = vmatprep.subr.mxu0 0.0
        %1661 = vmatpush1.msra.mxu0 0.0
        %1662 = vmatprep.subr.mxu0 0.0
        %1663 = vmatpush1.msra.mxu0 0.0
        %1664 = vmatprep.subr.mxu0 0.0
        %1665 = vmatpush1.msra.mxu0 0.0
        %1666 = vmatprep.subr.mxu0 0.0
        %1667 = vmatpush1.msra.mxu0 0.0
        %1668 = vmatprep.subr.mxu0 0.0
        %1669 = vmatpush1.msra.mxu0 0.0
        %1670 = vmatprep.mubr.f32.mxu0 0.0
        %1671 = vmatmul.mubr.f32.gmra.mrb[0].mxu0 %v1533
        %v1672 = vpop.f32.mrb[0].mxu0
        %v1673 = vadd.f32 0.0, %v1672
        %v1674 = vpop.f32.mrb[0].mxu0
        %1675 = vdwg.mxu0
        %v1676 = vadd.f32 %v1517, %v1602
        %v1677 = vadd.f32 %v1518, %v1604
        %v1678 = vadd.f32 %v1519, %v1673
        %v1679 = vld [vmem:[%s3] sm:$0xff]
        %1681 = vset.pattern.permute.xlu0 0
        %1682 = vperm.xlu0 %1681, %v1679
        %v1683 = vpop.permute.xlu0 %1682
        %v1685 = vadd.f32 %v1676, %v1683
        %v1686 = vadd.f32 %v1677, %v1683
        %v1687 = vadd.f32 %v1678, %v1683
        %v1689 = vlaneseq
        %v1690 = vshrl.u32 %v1689, 7
        %v1691 = vsub.s32 0, %v1690
        %v1692 = vrot.slane %v250, %v1691
        %v1693 = vlaneseq
        %v1694 = vshrl.u32 %v1693, 7
        %v1695 = vsub.s32 1, %v1694
        %v1696 = vrot.slane %v250, %v1695
        %v1697 = vlaneseq
        %v1698 = vshrl.u32 %v1697, 7
        %v1699 = vsub.s32 2, %v1698
        %v1700 = vrot.slane %v250, %v1699
        %v1704 = vmul.f32 %v1685, %v1692
        %v1705 = vmul.f32 %v1686, %v1696
        %v1706 = vmul.f32 %v1687, %v1700
        %v1707 = vadd.f32 %v1704, %v1705
        %v1708 = vadd.f32 %v1707, %v1706
        %1709 = vadd.xlane.f32.xlu0 %v1708
        %v1710 = vpop.xlane.xlu0 %1709
        %v1711 = vmul.f32 %v1710, 0.00390625
        %v1712 = vmul.f32 %v1704, %v1685
        %v1713 = vmul.f32 %v1705, %v1686
        %v1714 = vmul.f32 %v1706, %v1687
        %v1715 = vadd.f32 %v1712, %v1713
        %v1716 = vadd.f32 %v1715, %v1714
        %1717 = vadd.xlane.f32.xlu0 %v1716
        %v1718 = vpop.xlane.xlu0 %1717
        %v1719 = vmul.f32 %v1718, 0.00390625
        %v1720 = vmul.f32 %v1711, %v1711
        %v1721 = vsub.f32 %v1719, %v1720
        %v1722 = vsub.f32 %v1685, %v1711
        %v1723 = vsub.f32 %v1686, %v1711
        %v1724 = vsub.f32 %v1687, %v1711
        %v1725 = vmul.f32 %v1722, %v1692
        %v1726 = vmul.f32 %v1723, %v1696
        %v1727 = vmul.f32 %v1724, %v1700
        %v1728 = vadd.f32 %v1721, 1e-05
        %v1729 = vrsqrt.pop %v1728
        %v1730 = vmul.f32 %v1725, %v1729
        %v1731 = vmul.f32 %v1726, %v1729
        %v1732 = vmul.f32 %v1727, %v1729
        %v1733 = vmax.f32 %v1730, 0.0
        %v1734 = vmax.f32 %v1731, 0.0
        %v1735 = vmax.f32 %v1732, 0.0
        %1736 = vrot.lane.b32.xlu0 %v1733, 92
        %v1737 = vpop.permute.xlu0 %1736
        %1738 = vrot.lane.b32.xlu0 %v1734, 92
        %v1739 = vpop.permute.xlu0 %1738
        %1740 = vrot.lane.b32.xlu0 %v1735, 92
        %v1741 = vpop.permute.xlu0 %1740
        %vm1742 = vcmp.lt.s32.totalorder %v270, 92
        %v1743 = vsel %vm1742, %v1739, %v1741
        %v1744 = vsel %vm1742, %v1737, %v1739
        %v1745 = vsel %vm1742, %v1741, %v1737
        %v1746 = vsub.f32 1.0, %v252
        %v1748 = vlaneseq
        %v1749 = vshrl.u32 %v1748, 7
        %v1750 = vsub.s32 0, %v1749
        %v1751 = vrot.slane %v1746, %v1750
        %v1752 = vlaneseq
        %v1753 = vshrl.u32 %v1752, 7
        %v1754 = vsub.s32 1, %v1753
        %v1755 = vrot.slane %v1746, %v1754
        %v1756 = vlaneseq
        %v1757 = vshrl.u32 %v1756, 7
        %v1758 = vsub.s32 2, %v1757
        %v1759 = vrot.slane %v1746, %v1758
        %v1763 = vmul.f32 %v1733, %v1751
        %v1764 = vmul.f32 %v1734, %v1755
        %v1765 = vmul.f32 %v1735, %v1759
        %v1767 = vlaneseq
        %v1768 = vshrl.u32 %v1767, 7
        %v1769 = vsub.s32 0, %v1768
        %v1770 = vrot.slane %v252, %v1769
        %v1771 = vlaneseq
        %v1772 = vshrl.u32 %v1771, 7
        %v1773 = vsub.s32 1, %v1772
        %v1774 = vrot.slane %v252, %v1773
        %v1775 = vlaneseq
        %v1776 = vshrl.u32 %v1775, 7
        %v1777 = vsub.s32 2, %v1776
        %v1778 = vrot.slane %v252, %v1777
        %v1782 = vmul.f32 %v1744, %v1770
        %v1783 = vmul.f32 %v1743, %v1774
        %v1784 = vmul.f32 %v1745, %v1778
        %v1785 = vadd.f32 %v1763, %v1782
        %v1786 = vadd.f32 %v1764, %v1783
        %v1787 = vadd.f32 %v1765, %v1784
        %1788 = vrot.lane.b32.xlu0 %v1785, 36
        %v1789 = vpop.permute.xlu0 %1788
        %1790 = vrot.lane.b32.xlu0 %v1786, 36
        %v1791 = vpop.permute.xlu0 %1790
        %1792 = vrot.lane.b32.xlu0 %v1787, 36
        %v1793 = vpop.permute.xlu0 %1792
        %vm1794 = vcmp.lt.s32.totalorder %v270, 36
        %v1795 = vsel %vm1794, %v1791, %v1793
        %v1796 = vsel %vm1794, %v1789, %v1791
        %v1797 = vsel %vm1794, %v1793, %v1789
        %v1798 = vsub.f32 1.0, %v254
        %v1800 = vlaneseq
        %v1801 = vshrl.u32 %v1800, 7
        %v1802 = vsub.s32 0, %v1801
        %v1803 = vrot.slane %v1798, %v1802
        %v1804 = vlaneseq
        %v1805 = vshrl.u32 %v1804, 7
        %v1806 = vsub.s32 1, %v1805
        %v1807 = vrot.slane %v1798, %v1806
        %v1808 = vlaneseq
        %v1809 = vshrl.u32 %v1808, 7
        %v1810 = vsub.s32 2, %v1809
        %v1811 = vrot.slane %v1798, %v1810
        %v1815 = vmul.f32 %v1785, %v1803
        %v1816 = vmul.f32 %v1786, %v1807
        %v1817 = vmul.f32 %v1787, %v1811
        %v1819 = vlaneseq
        %v1820 = vshrl.u32 %v1819, 7
        %v1821 = vsub.s32 0, %v1820
        %v1822 = vrot.slane %v254, %v1821
        %v1823 = vlaneseq
        %v1824 = vshrl.u32 %v1823, 7
        %v1825 = vsub.s32 1, %v1824
        %v1826 = vrot.slane %v254, %v1825
        %v1827 = vlaneseq
        %v1828 = vshrl.u32 %v1827, 7
        %v1829 = vsub.s32 2, %v1828
        %v1830 = vrot.slane %v254, %v1829
        %v1834 = vmul.f32 %v1797, %v1822
        %v1835 = vmul.f32 %v1796, %v1826
        %v1836 = vmul.f32 %v1795, %v1830
        %v1837 = vadd.f32 %v1815, %v1834
        %v1838 = vadd.f32 %v1816, %v1835
        %v1839 = vadd.f32 %v1817, %v1836
        %1840 = vrot.lane.b32.xlu0 %v1837, 126
        %v1841 = vpop.permute.xlu0 %1840
        %1842 = vrot.lane.b32.xlu0 %v1838, 126
        %v1843 = vpop.permute.xlu0 %1842
        %1844 = vrot.lane.b32.xlu0 %v1839, 126
        %v1845 = vpop.permute.xlu0 %1844
        %vm1846 = vcmp.lt.s32.totalorder %v270, 126
        %v1847 = vsel %vm1846, %v1843, %v1845
        %v1848 = vsel %vm1846, %v1841, %v1843
        %v1849 = vsel %vm1846, %v1845, %v1841
        %v1850 = vsub.f32 1.0, %v256
        %v1852 = vlaneseq
        %v1853 = vshrl.u32 %v1852, 7
        %v1854 = vsub.s32 0, %v1853
        %v1855 = vrot.slane %v1850, %v1854
        %v1856 = vlaneseq
        %v1857 = vshrl.u32 %v1856, 7
        %v1858 = vsub.s32 1, %v1857
        %v1859 = vrot.slane %v1850, %v1858
        %v1860 = vlaneseq
        %v1861 = vshrl.u32 %v1860, 7
        %v1862 = vsub.s32 2, %v1861
        %v1863 = vrot.slane %v1850, %v1862
        %v1867 = vmul.f32 %v1837, %v1855
        %v1868 = vmul.f32 %v1838, %v1859
        %v1869 = vmul.f32 %v1839, %v1863
        %v1871 = vlaneseq
        %v1872 = vshrl.u32 %v1871, 7
        %v1873 = vsub.s32 0, %v1872
        %v1874 = vrot.slane %v256, %v1873
        %v1875 = vlaneseq
        %v1876 = vshrl.u32 %v1875, 7
        %v1877 = vsub.s32 1, %v1876
        %v1878 = vrot.slane %v256, %v1877
        %v1879 = vlaneseq
        %v1880 = vshrl.u32 %v1879, 7
        %v1881 = vsub.s32 2, %v1880
        %v1882 = vrot.slane %v256, %v1881
        %v1886 = vmul.f32 %v1848, %v1874
        %v1887 = vmul.f32 %v1847, %v1878
        %v1888 = vmul.f32 %v1849, %v1882
        %v1889 = vadd.f32 %v1867, %v1886
        %v1890 = vadd.f32 %v1868, %v1887
        %v1891 = vadd.f32 %v1869, %v1888
        %1892 = vrot.lane.b32.xlu0 %v1889, 2
        %v1893 = vpop.permute.xlu0 %1892
        %1894 = vrot.lane.b32.xlu0 %v1890, 2
        %v1895 = vpop.permute.xlu0 %1894
        %1896 = vrot.lane.b32.xlu0 %v1891, 2
        %v1897 = vpop.permute.xlu0 %1896
        %vm1898 = vcmp.lt.s32.totalorder %v270, 2
        %v1899 = vsel %vm1898, %v1895, %v1897
        %v1900 = vsel %vm1898, %v1893, %v1895
        %v1901 = vsel %vm1898, %v1897, %v1893
        %v1902 = vsub.f32 1.0, %v258
        %v1904 = vlaneseq
        %v1905 = vshrl.u32 %v1904, 7
        %v1906 = vsub.s32 0, %v1905
        %v1907 = vrot.slane %v1902, %v1906
        %v1908 = vlaneseq
        %v1909 = vshrl.u32 %v1908, 7
        %v1910 = vsub.s32 1, %v1909
        %v1911 = vrot.slane %v1902, %v1910
        %v1912 = vlaneseq
        %v1913 = vshrl.u32 %v1912, 7
        %v1914 = vsub.s32 2, %v1913
        %v1915 = vrot.slane %v1902, %v1914
        %v1919 = vmul.f32 %v1889, %v1907
        %v1920 = vmul.f32 %v1890, %v1911
        %v1921 = vmul.f32 %v1891, %v1915
        %v1923 = vlaneseq
        %v1924 = vshrl.u32 %v1923, 7
        %v1925 = vsub.s32 0, %v1924
        %v1926 = vrot.slane %v258, %v1925
        %v1927 = vlaneseq
        %v1928 = vshrl.u32 %v1927, 7
        %v1929 = vsub.s32 1, %v1928
        %v1930 = vrot.slane %v258, %v1929
        %v1931 = vlaneseq
        %v1932 = vshrl.u32 %v1931, 7
        %v1933 = vsub.s32 2, %v1932
        %v1934 = vrot.slane %v258, %v1933
        %v1938 = vmul.f32 %v1901, %v1926
        %v1939 = vmul.f32 %v1900, %v1930
        %v1940 = vmul.f32 %v1899, %v1934
        %v1941 = vadd.f32 %v1919, %v1938
        %v1942 = vadd.f32 %v1920, %v1939
        %v1943 = vadd.f32 %v1921, %v1940
        %v1944 = vld [vmem:[%s4] sm:$0xff]
        %1945 = vrot.lane.b32.xlu0 %v1941, 19
        %v1946 = vpop.permute.xlu0 %1945
        %1947 = vrot.lane.b32.xlu0 %v1942, 19
        %v1948 = vpop.permute.xlu0 %1947
        %1949 = vrot.lane.b32.xlu0 %v1943, 19
        %v1950 = vpop.permute.xlu0 %1949
        %v1951 = vsel %vm271, %v1948, %v1950
        %v1952 = vsel %vm271, %v1946, %v1948
        %v1953 = vsel %vm271, %v1950, %v1946
        %s1954 = scalar_lea.vmem %s4, 8
        %v1955 = vld [vmem:[%s1954] sm:$0xff]
        %1956 = vrot.lane.b32.xlu0 %v1941, 18
        %v1957 = vpop.permute.xlu0 %1956
        %1958 = vrot.lane.b32.xlu0 %v1942, 18
        %v1959 = vpop.permute.xlu0 %1958
        %1960 = vrot.lane.b32.xlu0 %v1943, 18
        %v1961 = vpop.permute.xlu0 %1960
        %v1962 = vsel %vm283, %v1959, %v1961
        %v1963 = vsel %vm283, %v1957, %v1959
        %v1964 = vsel %vm283, %v1961, %v1957
        %v1966 = vsel %vm287, %v1955, 0
        %1968 = vmatprep.subr.mxu0 %v1963
        %1969 = vmatpush1.msra.mxu0 %v1964
        %1970 = vmatprep.subr.mxu0 0.0
        %1971 = vmatpush1.msra.mxu0 0.0
        %1972 = vmatprep.subr.mxu0 0.0
        %1973 = vmatpush1.msra.mxu0 0.0
        %1974 = vmatprep.subr.mxu0 0.0
        %1975 = vmatpush1.msra.mxu0 0.0
        %1976 = vmatprep.subr.mxu0 0.0
        %1977 = vmatpush1.msra.mxu0 0.0
        %1978 = vmatprep.subr.mxu0 0.0
        %1979 = vmatpush1.msra.mxu0 0.0
        %1980 = vmatprep.subr.mxu0 0.0
        %1981 = vmatpush1.msra.mxu0 0.0
        %1982 = vmatprep.subr.mxu0 0.0
        %1983 = vmatpush1.msra.mxu0 0.0
        %1984 = vmatprep.subr.mxu0 0.0
        %1985 = vmatpush1.msra.mxu0 0.0
        %1986 = vmatprep.subr.mxu0 0.0
        %1987 = vmatpush1.msra.mxu0 0.0
        %1988 = vmatprep.subr.mxu0 0.0
        %1989 = vmatpush1.msra.mxu0 0.0
        %1990 = vmatprep.subr.mxu0 0.0
        %1991 = vmatpush1.msra.mxu0 0.0
        %1992 = vmatprep.subr.mxu0 0.0
        %1993 = vmatpush1.msra.mxu0 0.0
        %1994 = vmatprep.subr.mxu0 0.0
        %1995 = vmatpush1.msra.mxu0 0.0
        %1996 = vmatprep.subr.mxu0 0.0
        %1997 = vmatpush1.msra.mxu0 0.0
        %1998 = vmatprep.subr.mxu0 0.0
        %1999 = vmatpush1.msra.mxu0 0.0
        %2000 = vmatprep.subr.mxu0 0.0
        %2001 = vmatpush1.msra.mxu0 0.0
        %2002 = vmatprep.subr.mxu0 0.0
        %2003 = vmatpush1.msra.mxu0 0.0
        %2004 = vmatprep.subr.mxu0 0.0
        %2005 = vmatpush1.msra.mxu0 0.0
        %2006 = vmatprep.subr.mxu0 0.0
        %2007 = vmatpush1.msra.mxu0 0.0
        %2008 = vmatprep.subr.mxu0 0.0
        %2009 = vmatpush1.msra.mxu0 0.0
        %2010 = vmatprep.subr.mxu0 0.0
        %2011 = vmatpush1.msra.mxu0 0.0
        %2012 = vmatprep.subr.mxu0 0.0
        %2013 = vmatpush1.msra.mxu0 0.0
        %2014 = vmatprep.subr.mxu0 0.0
        %2015 = vmatpush1.msra.mxu0 0.0
        %2016 = vmatprep.subr.mxu0 0.0
        %2017 = vmatpush1.msra.mxu0 0.0
        %2018 = vmatprep.subr.mxu0 0.0
        %2019 = vmatpush1.msra.mxu0 0.0
        %2020 = vmatprep.subr.mxu0 0.0
        %2021 = vmatpush1.msra.mxu0 0.0
        %2022 = vmatprep.subr.mxu0 0.0
        %2023 = vmatpush1.msra.mxu0 0.0
        %2024 = vmatprep.subr.mxu0 0.0
        %2025 = vmatpush1.msra.mxu0 0.0
        %2026 = vmatprep.subr.mxu0 0.0
        %2027 = vmatpush1.msra.mxu0 0.0
        %2028 = vmatprep.subr.mxu0 0.0
        %2029 = vmatpush1.msra.mxu0 0.0
        %2030 = vmatprep.subr.mxu0 0.0
        %2031 = vmatpush1.msra.mxu0 0.0
        %2032 = vmatprep.mubr.f32.mxu0 0.0
        %2033 = vmatmul.mubr.f32.gmra.mrb[0].mxu0 %v1966
        %v2034 = vpop.f32.mrb[0].mxu0
        %v2035 = vadd.f32 0.0, %v2034
        %v2036 = vpop.f32.mrb[0].mxu0
        %v2037 = vadd.f32 0.0, %v2036
        %2038 = vdwg.mxu0
        %2039 = vmatprep.subr.mxu0 0.0
        %2040 = vmatpush1.msra.mxu0 %v1962
        %2041 = vmatprep.subr.mxu0 0.0
        %2042 = vmatpush1.msra.mxu0 0.0
        %2043 = vmatprep.subr.mxu0 0.0
        %2044 = vmatpush1.msra.mxu0 0.0
        %2045 = vmatprep.subr.mxu0 0.0
        %2046 = vmatpush1.msra.mxu0 0.0
        %2047 = vmatprep.subr.mxu0 0.0
        %2048 = vmatpush1.msra.mxu0 0.0
        %2049 = vmatprep.subr.mxu0 0.0
        %2050 = vmatpush1.msra.mxu0 0.0
        %2051 = vmatprep.subr.mxu0 0.0
        %2052 = vmatpush1.msra.mxu0 0.0
        %2053 = vmatprep.subr.mxu0 0.0
        %2054 = vmatpush1.msra.mxu0 0.0
        %2055 = vmatprep.subr.mxu0 0.0
        %2056 = vmatpush1.msra.mxu0 0.0
        %2057 = vmatprep.subr.mxu0 0.0
        %2058 = vmatpush1.msra.mxu0 0.0
        %2059 = vmatprep.subr.mxu0 0.0
        %2060 = vmatpush1.msra.mxu0 0.0
        %2061 = vmatprep.subr.mxu0 0.0
        %2062 = vmatpush1.msra.mxu0 0.0
        %2063 = vmatprep.subr.mxu0 0.0
        %2064 = vmatpush1.msra.mxu0 0.0
        %2065 = vmatprep.subr.mxu0 0.0
        %2066 = vmatpush1.msra.mxu0 0.0
        %2067 = vmatprep.subr.mxu0 0.0
        %2068 = vmatpush1.msra.mxu0 0.0
        %2069 = vmatprep.subr.mxu0 0.0
        %2070 = vmatpush1.msra.mxu0 0.0
        %2071 = vmatprep.subr.mxu0 0.0
        %2072 = vmatpush1.msra.mxu0 0.0
        %2073 = vmatprep.subr.mxu0 0.0
        %2074 = vmatpush1.msra.mxu0 0.0
        %2075 = vmatprep.subr.mxu0 0.0
        %2076 = vmatpush1.msra.mxu0 0.0
        %2077 = vmatprep.subr.mxu0 0.0
        %2078 = vmatpush1.msra.mxu0 0.0
        %2079 = vmatprep.subr.mxu0 0.0
        %2080 = vmatpush1.msra.mxu0 0.0
        %2081 = vmatprep.subr.mxu0 0.0
        %2082 = vmatpush1.msra.mxu0 0.0
        %2083 = vmatprep.subr.mxu0 0.0
        %2084 = vmatpush1.msra.mxu0 0.0
        %2085 = vmatprep.subr.mxu0 0.0
        %2086 = vmatpush1.msra.mxu0 0.0
        %2087 = vmatprep.subr.mxu0 0.0
        %2088 = vmatpush1.msra.mxu0 0.0
        %2089 = vmatprep.subr.mxu0 0.0
        %2090 = vmatpush1.msra.mxu0 0.0
        %2091 = vmatprep.subr.mxu0 0.0
        %2092 = vmatpush1.msra.mxu0 0.0
        %2093 = vmatprep.subr.mxu0 0.0
        %2094 = vmatpush1.msra.mxu0 0.0
        %2095 = vmatprep.subr.mxu0 0.0
        %2096 = vmatpush1.msra.mxu0 0.0
        %2097 = vmatprep.subr.mxu0 0.0
        %2098 = vmatpush1.msra.mxu0 0.0
        %2099 = vmatprep.subr.mxu0 0.0
        %2100 = vmatpush1.msra.mxu0 0.0
        %2101 = vmatprep.subr.mxu0 0.0
        %2102 = vmatpush1.msra.mxu0 0.0
        %2103 = vmatprep.mubr.f32.mxu0 0.0
        %2104 = vmatmul.mubr.f32.gmra.mrb[0].mxu0 %v1966
        %v2105 = vpop.f32.mrb[0].mxu0
        %v2106 = vadd.f32 0.0, %v2105
        %v2107 = vpop.f32.mrb[0].mxu0
        %2108 = vdwg.mxu0
        %v2110 = vsel %vm287, %v1944, 0
        %2112 = vmatprep.subr.mxu0 %v1952
        %2113 = vmatpush1.msra.mxu0 %v1953
        %2114 = vmatprep.subr.mxu0 0.0
        %2115 = vmatpush1.msra.mxu0 0.0
        %2116 = vmatprep.subr.mxu0 0.0
        %2117 = vmatpush1.msra.mxu0 0.0
        %2118 = vmatprep.subr.mxu0 0.0
        %2119 = vmatpush1.msra.mxu0 0.0
        %2120 = vmatprep.subr.mxu0 0.0
        %2121 = vmatpush1.msra.mxu0 0.0
        %2122 = vmatprep.subr.mxu0 0.0
        %2123 = vmatpush1.msra.mxu0 0.0
        %2124 = vmatprep.subr.mxu0 0.0
        %2125 = vmatpush1.msra.mxu0 0.0
        %2126 = vmatprep.subr.mxu0 0.0
        %2127 = vmatpush1.msra.mxu0 0.0
        %2128 = vmatprep.subr.mxu0 0.0
        %2129 = vmatpush1.msra.mxu0 0.0
        %2130 = vmatprep.subr.mxu0 0.0
        %2131 = vmatpush1.msra.mxu0 0.0
        %2132 = vmatprep.subr.mxu0 0.0
        %2133 = vmatpush1.msra.mxu0 0.0
        %2134 = vmatprep.subr.mxu0 0.0
        %2135 = vmatpush1.msra.mxu0 0.0
        %2136 = vmatprep.subr.mxu0 0.0
        %2137 = vmatpush1.msra.mxu0 0.0
        %2138 = vmatprep.subr.mxu0 0.0
        %2139 = vmatpush1.msra.mxu0 0.0
        %2140 = vmatprep.subr.mxu0 0.0
        %2141 = vmatpush1.msra.mxu0 0.0
        %2142 = vmatprep.subr.mxu0 0.0
        %2143 = vmatpush1.msra.mxu0 0.0
        %2144 = vmatprep.subr.mxu0 0.0
        %2145 = vmatpush1.msra.mxu0 0.0
        %2146 = vmatprep.subr.mxu0 0.0
        %2147 = vmatpush1.msra.mxu0 0.0
        %2148 = vmatprep.subr.mxu0 0.0
        %2149 = vmatpush1.msra.mxu0 0.0
        %2150 = vmatprep.subr.mxu0 0.0
        %2151 = vmatpush1.msra.mxu0 0.0
        %2152 = vmatprep.subr.mxu0 0.0
        %2153 = vmatpush1.msra.mxu0 0.0
        %2154 = vmatprep.subr.mxu0 0.0
        %2155 = vmatpush1.msra.mxu0 0.0
        %2156 = vmatprep.subr.mxu0 0.0
        %2157 = vmatpush1.msra.mxu0 0.0
        %2158 = vmatprep.subr.mxu0 0.0
        %2159 = vmatpush1.msra.mxu0 0.0
        %2160 = vmatprep.subr.mxu0 0.0
        %2161 = vmatpush1.msra.mxu0 0.0
        %2162 = vmatprep.subr.mxu0 0.0
        %2163 = vmatpush1.msra.mxu0 0.0
        %2164 = vmatprep.subr.mxu0 0.0
        %2165 = vmatpush1.msra.mxu0 0.0
        %2166 = vmatprep.subr.mxu0 0.0
        %2167 = vmatpush1.msra.mxu0 0.0
        %2168 = vmatprep.subr.mxu0 0.0
        %2169 = vmatpush1.msra.mxu0 0.0
        %2170 = vmatprep.subr.mxu0 0.0
        %2171 = vmatpush1.msra.mxu0 0.0
        %2172 = vmatprep.subr.mxu0 0.0
        %2173 = vmatpush1.msra.mxu0 0.0
        %2174 = vmatprep.subr.mxu0 0.0
        %2175 = vmatpush1.msra.mxu0 0.0
        %2176 = vmatprep.mubr.f32.mxu0 0.0
        %2177 = vmatmul.mubr.f32.gmra.mrb[0].mxu0 %v2110
        %v2178 = vpop.f32.mrb[0].mxu0
        %v2179 = vadd.f32 %v2035, %v2178
        %v2180 = vpop.f32.mrb[0].mxu0
        %v2181 = vadd.f32 %v2037, %v2180
        %2182 = vdwg.mxu0
        %2183 = vmatprep.subr.mxu0 0.0
        %2184 = vmatpush1.msra.mxu0 %v1951
        %2185 = vmatprep.subr.mxu0 0.0
        %2186 = vmatpush1.msra.mxu0 0.0
        %2187 = vmatprep.subr.mxu0 0.0
        %2188 = vmatpush1.msra.mxu0 0.0
        %2189 = vmatprep.subr.mxu0 0.0
        %2190 = vmatpush1.msra.mxu0 0.0
        %2191 = vmatprep.subr.mxu0 0.0
        %2192 = vmatpush1.msra.mxu0 0.0
        %2193 = vmatprep.subr.mxu0 0.0
        %2194 = vmatpush1.msra.mxu0 0.0
        %2195 = vmatprep.subr.mxu0 0.0
        %2196 = vmatpush1.msra.mxu0 0.0
        %2197 = vmatprep.subr.mxu0 0.0
        %2198 = vmatpush1.msra.mxu0 0.0
        %2199 = vmatprep.subr.mxu0 0.0
        %2200 = vmatpush1.msra.mxu0 0.0
        %2201 = vmatprep.subr.mxu0 0.0
        %2202 = vmatpush1.msra.mxu0 0.0
        %2203 = vmatprep.subr.mxu0 0.0
        %2204 = vmatpush1.msra.mxu0 0.0
        %2205 = vmatprep.subr.mxu0 0.0
        %2206 = vmatpush1.msra.mxu0 0.0
        %2207 = vmatprep.subr.mxu0 0.0
        %2208 = vmatpush1.msra.mxu0 0.0
        %2209 = vmatprep.subr.mxu0 0.0
        %2210 = vmatpush1.msra.mxu0 0.0
        %2211 = vmatprep.subr.mxu0 0.0
        %2212 = vmatpush1.msra.mxu0 0.0
        %2213 = vmatprep.subr.mxu0 0.0
        %2214 = vmatpush1.msra.mxu0 0.0
        %2215 = vmatprep.subr.mxu0 0.0
        %2216 = vmatpush1.msra.mxu0 0.0
        %2217 = vmatprep.subr.mxu0 0.0
        %2218 = vmatpush1.msra.mxu0 0.0
        %2219 = vmatprep.subr.mxu0 0.0
        %2220 = vmatpush1.msra.mxu0 0.0
        %2221 = vmatprep.subr.mxu0 0.0
        %2222 = vmatpush1.msra.mxu0 0.0
        %2223 = vmatprep.subr.mxu0 0.0
        %2224 = vmatpush1.msra.mxu0 0.0
        %2225 = vmatprep.subr.mxu0 0.0
        %2226 = vmatpush1.msra.mxu0 0.0
        %2227 = vmatprep.subr.mxu0 0.0
        %2228 = vmatpush1.msra.mxu0 0.0
        %2229 = vmatprep.subr.mxu0 0.0
        %2230 = vmatpush1.msra.mxu0 0.0
        %2231 = vmatprep.subr.mxu0 0.0
        %2232 = vmatpush1.msra.mxu0 0.0
        %2233 = vmatprep.subr.mxu0 0.0
        %2234 = vmatpush1.msra.mxu0 0.0
        %2235 = vmatprep.subr.mxu0 0.0
        %2236 = vmatpush1.msra.mxu0 0.0
        %2237 = vmatprep.subr.mxu0 0.0
        %2238 = vmatpush1.msra.mxu0 0.0
        %2239 = vmatprep.subr.mxu0 0.0
        %2240 = vmatpush1.msra.mxu0 0.0
        %2241 = vmatprep.subr.mxu0 0.0
        %2242 = vmatpush1.msra.mxu0 0.0
        %2243 = vmatprep.subr.mxu0 0.0
        %2244 = vmatpush1.msra.mxu0 0.0
        %2245 = vmatprep.subr.mxu0 0.0
        %2246 = vmatpush1.msra.mxu0 0.0
        %2247 = vmatprep.mubr.f32.mxu0 0.0
        %2248 = vmatmul.mubr.f32.gmra.mrb[0].mxu0 %v2110
        %v2249 = vpop.f32.mrb[0].mxu0
        %v2250 = vadd.f32 %v2106, %v2249
        %v2251 = vpop.f32.mrb[0].mxu0
        %2252 = vdwg.mxu0
        %s2253 = scalar_lea.vmem %s4, 16
        %v2254 = vld [vmem:[%s2253] sm:$0xff]
        %2255 = vrot.lane.b32.xlu0 %v1941, 17
        %v2256 = vpop.permute.xlu0 %2255
        %2257 = vrot.lane.b32.xlu0 %v1942, 17
        %v2258 = vpop.permute.xlu0 %2257
        %2259 = vrot.lane.b32.xlu0 %v1943, 17
        %v2260 = vpop.permute.xlu0 %2259
        %v2261 = vsel %vm584, %v2258, %v2260
        %v2262 = vsel %vm584, %v2256, %v2258
        %v2263 = vsel %vm584, %v2260, %v2256
        %v2265 = vsel %vm287, %v2254, 0
        %2267 = vmatprep.subr.mxu0 %v2262
        %2268 = vmatpush1.msra.mxu0 %v2263
        %2269 = vmatprep.subr.mxu0 0.0
        %2270 = vmatpush1.msra.mxu0 0.0
        %2271 = vmatprep.subr.mxu0 0.0
        %2272 = vmatpush1.msra.mxu0 0.0
        %2273 = vmatprep.subr.mxu0 0.0
        %2274 = vmatpush1.msra.mxu0 0.0
        %2275 = vmatprep.subr.mxu0 0.0
        %2276 = vmatpush1.msra.mxu0 0.0
        %2277 = vmatprep.subr.mxu0 0.0
        %2278 = vmatpush1.msra.mxu0 0.0
        %2279 = vmatprep.subr.mxu0 0.0
        %2280 = vmatpush1.msra.mxu0 0.0
        %2281 = vmatprep.subr.mxu0 0.0
        %2282 = vmatpush1.msra.mxu0 0.0
        %2283 = vmatprep.subr.mxu0 0.0
        %2284 = vmatpush1.msra.mxu0 0.0
        %2285 = vmatprep.subr.mxu0 0.0
        %2286 = vmatpush1.msra.mxu0 0.0
        %2287 = vmatprep.subr.mxu0 0.0
        %2288 = vmatpush1.msra.mxu0 0.0
        %2289 = vmatprep.subr.mxu0 0.0
        %2290 = vmatpush1.msra.mxu0 0.0
        %2291 = vmatprep.subr.mxu0 0.0
        %2292 = vmatpush1.msra.mxu0 0.0
        %2293 = vmatprep.subr.mxu0 0.0
        %2294 = vmatpush1.msra.mxu0 0.0
        %2295 = vmatprep.subr.mxu0 0.0
        %2296 = vmatpush1.msra.mxu0 0.0
        %2297 = vmatprep.subr.mxu0 0.0
        %2298 = vmatpush1.msra.mxu0 0.0
        %2299 = vmatprep.subr.mxu0 0.0
        %2300 = vmatpush1.msra.mxu0 0.0
        %2301 = vmatprep.subr.mxu0 0.0
        %2302 = vmatpush1.msra.mxu0 0.0
        %2303 = vmatprep.subr.mxu0 0.0
        %2304 = vmatpush1.msra.mxu0 0.0
        %2305 = vmatprep.subr.mxu0 0.0
        %2306 = vmatpush1.msra.mxu0 0.0
        %2307 = vmatprep.subr.mxu0 0.0
        %2308 = vmatpush1.msra.mxu0 0.0
        %2309 = vmatprep.subr.mxu0 0.0
        %2310 = vmatpush1.msra.mxu0 0.0
        %2311 = vmatprep.subr.mxu0 0.0
        %2312 = vmatpush1.msra.mxu0 0.0
        %2313 = vmatprep.subr.mxu0 0.0
        %2314 = vmatpush1.msra.mxu0 0.0
        %2315 = vmatprep.subr.mxu0 0.0
        %2316 = vmatpush1.msra.mxu0 0.0
        %2317 = vmatprep.subr.mxu0 0.0
        %2318 = vmatpush1.msra.mxu0 0.0
        %2319 = vmatprep.subr.mxu0 0.0
        %2320 = vmatpush1.msra.mxu0 0.0
        %2321 = vmatprep.subr.mxu0 0.0
        %2322 = vmatpush1.msra.mxu0 0.0
        %2323 = vmatprep.subr.mxu0 0.0
        %2324 = vmatpush1.msra.mxu0 0.0
        %2325 = vmatprep.subr.mxu0 0.0
        %2326 = vmatpush1.msra.mxu0 0.0
        %2327 = vmatprep.subr.mxu0 0.0
        %2328 = vmatpush1.msra.mxu0 0.0
        %2329 = vmatprep.subr.mxu0 0.0
        %2330 = vmatpush1.msra.mxu0 0.0
        %2331 = vmatprep.mubr.f32.mxu0 0.0
        %2332 = vmatmul.mubr.f32.gmra.mrb[0].mxu0 %v2265
        %v2333 = vpop.f32.mrb[0].mxu0
        %v2334 = vadd.f32 0.0, %v2333
        %v2335 = vpop.f32.mrb[0].mxu0
        %v2336 = vadd.f32 0.0, %v2335
        %2337 = vdwg.mxu0
        %2338 = vmatprep.subr.mxu0 0.0
        %2339 = vmatpush1.msra.mxu0 %v2261
        %2340 = vmatprep.subr.mxu0 0.0
        %2341 = vmatpush1.msra.mxu0 0.0
        %2342 = vmatprep.subr.mxu0 0.0
        %2343 = vmatpush1.msra.mxu0 0.0
        %2344 = vmatprep.subr.mxu0 0.0
        %2345 = vmatpush1.msra.mxu0 0.0
        %2346 = vmatprep.subr.mxu0 0.0
        %2347 = vmatpush1.msra.mxu0 0.0
        %2348 = vmatprep.subr.mxu0 0.0
        %2349 = vmatpush1.msra.mxu0 0.0
        %2350 = vmatprep.subr.mxu0 0.0
        %2351 = vmatpush1.msra.mxu0 0.0
        %2352 = vmatprep.subr.mxu0 0.0
        %2353 = vmatpush1.msra.mxu0 0.0
        %2354 = vmatprep.subr.mxu0 0.0
        %2355 = vmatpush1.msra.mxu0 0.0
        %2356 = vmatprep.subr.mxu0 0.0
        %2357 = vmatpush1.msra.mxu0 0.0
        %2358 = vmatprep.subr.mxu0 0.0
        %2359 = vmatpush1.msra.mxu0 0.0
        %2360 = vmatprep.subr.mxu0 0.0
        %2361 = vmatpush1.msra.mxu0 0.0
        %2362 = vmatprep.subr.mxu0 0.0
        %2363 = vmatpush1.msra.mxu0 0.0
        %2364 = vmatprep.subr.mxu0 0.0
        %2365 = vmatpush1.msra.mxu0 0.0
        %2366 = vmatprep.subr.mxu0 0.0
        %2367 = vmatpush1.msra.mxu0 0.0
        %2368 = vmatprep.subr.mxu0 0.0
        %2369 = vmatpush1.msra.mxu0 0.0
        %2370 = vmatprep.subr.mxu0 0.0
        %2371 = vmatpush1.msra.mxu0 0.0
        %2372 = vmatprep.subr.mxu0 0.0
        %2373 = vmatpush1.msra.mxu0 0.0
        %2374 = vmatprep.subr.mxu0 0.0
        %2375 = vmatpush1.msra.mxu0 0.0
        %2376 = vmatprep.subr.mxu0 0.0
        %2377 = vmatpush1.msra.mxu0 0.0
        %2378 = vmatprep.subr.mxu0 0.0
        %2379 = vmatpush1.msra.mxu0 0.0
        %2380 = vmatprep.subr.mxu0 0.0
        %2381 = vmatpush1.msra.mxu0 0.0
        %2382 = vmatprep.subr.mxu0 0.0
        %2383 = vmatpush1.msra.mxu0 0.0
        %2384 = vmatprep.subr.mxu0 0.0
        %2385 = vmatpush1.msra.mxu0 0.0
        %2386 = vmatprep.subr.mxu0 0.0
        %2387 = vmatpush1.msra.mxu0 0.0
        %2388 = vmatprep.subr.mxu0 0.0
        %2389 = vmatpush1.msra.mxu0 0.0
        %2390 = vmatprep.subr.mxu0 0.0
        %2391 = vmatpush1.msra.mxu0 0.0
        %2392 = vmatprep.subr.mxu0 0.0
        %2393 = vmatpush1.msra.mxu0 0.0
        %2394 = vmatprep.subr.mxu0 0.0
        %2395 = vmatpush1.msra.mxu0 0.0
        %2396 = vmatprep.subr.mxu0 0.0
        %2397 = vmatpush1.msra.mxu0 0.0
        %2398 = vmatprep.subr.mxu0 0.0
        %2399 = vmatpush1.msra.mxu0 0.0
        %2400 = vmatprep.subr.mxu0 0.0
        %2401 = vmatpush1.msra.mxu0 0.0
        %2402 = vmatprep.mubr.f32.mxu0 0.0
        %2403 = vmatmul.mubr.f32.gmra.mrb[0].mxu0 %v2265
        %v2404 = vpop.f32.mrb[0].mxu0
        %v2405 = vadd.f32 0.0, %v2404
        %v2406 = vpop.f32.mrb[0].mxu0
        %2407 = vdwg.mxu0
        %v2408 = vadd.f32 %v2179, %v2334
        %v2409 = vadd.f32 %v2181, %v2336
        %v2410 = vadd.f32 %v2250, %v2405
        %s2411 = scalar_lea.vmem %s4, 24
        %v2412 = vld [vmem:[%s2411] sm:$0xff]
        %2413 = vrot.lane.b32.xlu0 %v1941, 1
        %v2414 = vpop.permute.xlu0 %2413
        %2415 = vrot.lane.b32.xlu0 %v1942, 1
        %v2416 = vpop.permute.xlu0 %2415
        %2417 = vrot.lane.b32.xlu0 %v1943, 1
        %v2418 = vpop.permute.xlu0 %2417
        %v2419 = vsel %vm743, %v2416, %v2418
        %v2420 = vsel %vm743, %v2414, %v2416
        %v2421 = vsel %vm743, %v2418, %v2414
        %v2423 = vsel %vm287, %v2412, 0
        %2425 = vmatprep.subr.mxu0 %v2420
        %2426 = vmatpush1.msra.mxu0 %v2421
        %2427 = vmatprep.subr.mxu0 0.0
        %2428 = vmatpush1.msra.mxu0 0.0
        %2429 = vmatprep.subr.mxu0 0.0
        %2430 = vmatpush1.msra.mxu0 0.0
        %2431 = vmatprep.subr.mxu0 0.0
        %2432 = vmatpush1.msra.mxu0 0.0
        %2433 = vmatprep.subr.mxu0 0.0
        %2434 = vmatpush1.msra.mxu0 0.0
        %2435 = vmatprep.subr.mxu0 0.0
        %2436 = vmatpush1.msra.mxu0 0.0
        %2437 = vmatprep.subr.mxu0 0.0
        %2438 = vmatpush1.msra.mxu0 0.0
        %2439 = vmatprep.subr.mxu0 0.0
        %2440 = vmatpush1.msra.mxu0 0.0
        %2441 = vmatprep.subr.mxu0 0.0
        %2442 = vmatpush1.msra.mxu0 0.0
        %2443 = vmatprep.subr.mxu0 0.0
        %2444 = vmatpush1.msra.mxu0 0.0
        %2445 = vmatprep.subr.mxu0 0.0
        %2446 = vmatpush1.msra.mxu0 0.0
        %2447 = vmatprep.subr.mxu0 0.0
        %2448 = vmatpush1.msra.mxu0 0.0
        %2449 = vmatprep.subr.mxu0 0.0
        %2450 = vmatpush1.msra.mxu0 0.0
        %2451 = vmatprep.subr.mxu0 0.0
        %2452 = vmatpush1.msra.mxu0 0.0
        %2453 = vmatprep.subr.mxu0 0.0
        %2454 = vmatpush1.msra.mxu0 0.0
        %2455 = vmatprep.subr.mxu0 0.0
        %2456 = vmatpush1.msra.mxu0 0.0
        %2457 = vmatprep.subr.mxu0 0.0
        %2458 = vmatpush1.msra.mxu0 0.0
        %2459 = vmatprep.subr.mxu0 0.0
        %2460 = vmatpush1.msra.mxu0 0.0
        %2461 = vmatprep.subr.mxu0 0.0
        %2462 = vmatpush1.msra.mxu0 0.0
        %2463 = vmatprep.subr.mxu0 0.0
        %2464 = vmatpush1.msra.mxu0 0.0
        %2465 = vmatprep.subr.mxu0 0.0
        %2466 = vmatpush1.msra.mxu0 0.0
        %2467 = vmatprep.subr.mxu0 0.0
        %2468 = vmatpush1.msra.mxu0 0.0
        %2469 = vmatprep.subr.mxu0 0.0
        %2470 = vmatpush1.msra.mxu0 0.0
        %2471 = vmatprep.subr.mxu0 0.0
        %2472 = vmatpush1.msra.mxu0 0.0
        %2473 = vmatprep.subr.mxu0 0.0
        %2474 = vmatpush1.msra.mxu0 0.0
        %2475 = vmatprep.subr.mxu0 0.0
        %2476 = vmatpush1.msra.mxu0 0.0
        %2477 = vmatprep.subr.mxu0 0.0
        %2478 = vmatpush1.msra.mxu0 0.0
        %2479 = vmatprep.subr.mxu0 0.0
        %2480 = vmatpush1.msra.mxu0 0.0
        %2481 = vmatprep.subr.mxu0 0.0
        %2482 = vmatpush1.msra.mxu0 0.0
        %2483 = vmatprep.subr.mxu0 0.0
        %2484 = vmatpush1.msra.mxu0 0.0
        %2485 = vmatprep.subr.mxu0 0.0
        %2486 = vmatpush1.msra.mxu0 0.0
        %2487 = vmatprep.subr.mxu0 0.0
        %2488 = vmatpush1.msra.mxu0 0.0
        %2489 = vmatprep.mubr.f32.mxu0 0.0
        %2490 = vmatmul.mubr.f32.gmra.mrb[0].mxu0 %v2423
        %v2491 = vpop.f32.mrb[0].mxu0
        %v2492 = vadd.f32 0.0, %v2491
        %v2493 = vpop.f32.mrb[0].mxu0
        %v2494 = vadd.f32 0.0, %v2493
        %2495 = vdwg.mxu0
        %2496 = vmatprep.subr.mxu0 0.0
        %2497 = vmatpush1.msra.mxu0 %v2419
        %2498 = vmatprep.subr.mxu0 0.0
        %2499 = vmatpush1.msra.mxu0 0.0
        %2500 = vmatprep.subr.mxu0 0.0
        %2501 = vmatpush1.msra.mxu0 0.0
        %2502 = vmatprep.subr.mxu0 0.0
        %2503 = vmatpush1.msra.mxu0 0.0
        %2504 = vmatprep.subr.mxu0 0.0
        %2505 = vmatpush1.msra.mxu0 0.0
        %2506 = vmatprep.subr.mxu0 0.0
        %2507 = vmatpush1.msra.mxu0 0.0
        %2508 = vmatprep.subr.mxu0 0.0
        %2509 = vmatpush1.msra.mxu0 0.0
        %2510 = vmatprep.subr.mxu0 0.0
        %2511 = vmatpush1.msra.mxu0 0.0
        %2512 = vmatprep.subr.mxu0 0.0
        %2513 = vmatpush1.msra.mxu0 0.0
        %2514 = vmatprep.subr.mxu0 0.0
        %2515 = vmatpush1.msra.mxu0 0.0
        %2516 = vmatprep.subr.mxu0 0.0
        %2517 = vmatpush1.msra.mxu0 0.0
        %2518 = vmatprep.subr.mxu0 0.0
        %2519 = vmatpush1.msra.mxu0 0.0
        %2520 = vmatprep.subr.mxu0 0.0
        %2521 = vmatpush1.msra.mxu0 0.0
        %2522 = vmatprep.subr.mxu0 0.0
        %2523 = vmatpush1.msra.mxu0 0.0
        %2524 = vmatprep.subr.mxu0 0.0
        %2525 = vmatpush1.msra.mxu0 0.0
        %2526 = vmatprep.subr.mxu0 0.0
        %2527 = vmatpush1.msra.mxu0 0.0
        %2528 = vmatprep.subr.mxu0 0.0
        %2529 = vmatpush1.msra.mxu0 0.0
        %2530 = vmatprep.subr.mxu0 0.0
        %2531 = vmatpush1.msra.mxu0 0.0
        %2532 = vmatprep.subr.mxu0 0.0
        %2533 = vmatpush1.msra.mxu0 0.0
        %2534 = vmatprep.subr.mxu0 0.0
        %2535 = vmatpush1.msra.mxu0 0.0
        %2536 = vmatprep.subr.mxu0 0.0
        %2537 = vmatpush1.msra.mxu0 0.0
        %2538 = vmatprep.subr.mxu0 0.0
        %2539 = vmatpush1.msra.mxu0 0.0
        %2540 = vmatprep.subr.mxu0 0.0
        %2541 = vmatpush1.msra.mxu0 0.0
        %2542 = vmatprep.subr.mxu0 0.0
        %2543 = vmatpush1.msra.mxu0 0.0
        %2544 = vmatprep.subr.mxu0 0.0
        %2545 = vmatpush1.msra.mxu0 0.0
        %2546 = vmatprep.subr.mxu0 0.0
        %2547 = vmatpush1.msra.mxu0 0.0
        %2548 = vmatprep.subr.mxu0 0.0
        %2549 = vmatpush1.msra.mxu0 0.0
        %2550 = vmatprep.subr.mxu0 0.0
        %2551 = vmatpush1.msra.mxu0 0.0
        %2552 = vmatprep.subr.mxu0 0.0
        %2553 = vmatpush1.msra.mxu0 0.0
        %2554 = vmatprep.subr.mxu0 0.0
        %2555 = vmatpush1.msra.mxu0 0.0
        %2556 = vmatprep.subr.mxu0 0.0
        %2557 = vmatpush1.msra.mxu0 0.0
        %2558 = vmatprep.subr.mxu0 0.0
        %2559 = vmatpush1.msra.mxu0 0.0
        %2560 = vmatprep.mubr.f32.mxu0 0.0
        %2561 = vmatmul.mubr.f32.gmra.mrb[0].mxu0 %v2423
        %v2562 = vpop.f32.mrb[0].mxu0
        %v2563 = vadd.f32 0.0, %v2562
        %v2564 = vpop.f32.mrb[0].mxu0
        %2565 = vdwg.mxu0
        %v2566 = vadd.f32 %v2408, %v2492
        %v2567 = vadd.f32 %v2409, %v2494
        %v2568 = vadd.f32 %v2410, %v2563
        %s2569 = scalar_lea.vmem %s4, 32
        %v2570 = vld [vmem:[%s2569] sm:$0xff]
        %v2572 = vsel %vm287, %v2570, 0
        %2574 = vmatprep.subr.mxu0 %v1942
        %2575 = vmatpush1.msra.mxu0 %v1941
        %2576 = vmatprep.subr.mxu0 0.0
        %2577 = vmatpush1.msra.mxu0 0.0
        %2578 = vmatprep.subr.mxu0 0.0
        %2579 = vmatpush1.msra.mxu0 0.0
        %2580 = vmatprep.subr.mxu0 0.0
        %2581 = vmatpush1.msra.mxu0 0.0
        %2582 = vmatprep.subr.mxu0 0.0
        %2583 = vmatpush1.msra.mxu0 0.0
        %2584 = vmatprep.subr.mxu0 0.0
        %2585 = vmatpush1.msra.mxu0 0.0
        %2586 = vmatprep.subr.mxu0 0.0
        %2587 = vmatpush1.msra.mxu0 0.0
        %2588 = vmatprep.subr.mxu0 0.0
        %2589 = vmatpush1.msra.mxu0 0.0
        %2590 = vmatprep.subr.mxu0 0.0
        %2591 = vmatpush1.msra.mxu0 0.0
        %2592 = vmatprep.subr.mxu0 0.0
        %2593 = vmatpush1.msra.mxu0 0.0
        %2594 = vmatprep.subr.mxu0 0.0
        %2595 = vmatpush1.msra.mxu0 0.0
        %2596 = vmatprep.subr.mxu0 0.0
        %2597 = vmatpush1.msra.mxu0 0.0
        %2598 = vmatprep.subr.mxu0 0.0
        %2599 = vmatpush1.msra.mxu0 0.0
        %2600 = vmatprep.subr.mxu0 0.0
        %2601 = vmatpush1.msra.mxu0 0.0
        %2602 = vmatprep.subr.mxu0 0.0
        %2603 = vmatpush1.msra.mxu0 0.0
        %2604 = vmatprep.subr.mxu0 0.0
        %2605 = vmatpush1.msra.mxu0 0.0
        %2606 = vmatprep.subr.mxu0 0.0
        %2607 = vmatpush1.msra.mxu0 0.0
        %2608 = vmatprep.subr.mxu0 0.0
        %2609 = vmatpush1.msra.mxu0 0.0
        %2610 = vmatprep.subr.mxu0 0.0
        %2611 = vmatpush1.msra.mxu0 0.0
        %2612 = vmatprep.subr.mxu0 0.0
        %2613 = vmatpush1.msra.mxu0 0.0
        %2614 = vmatprep.subr.mxu0 0.0
        %2615 = vmatpush1.msra.mxu0 0.0
        %2616 = vmatprep.subr.mxu0 0.0
        %2617 = vmatpush1.msra.mxu0 0.0
        %2618 = vmatprep.subr.mxu0 0.0
        %2619 = vmatpush1.msra.mxu0 0.0
        %2620 = vmatprep.subr.mxu0 0.0
        %2621 = vmatpush1.msra.mxu0 0.0
        %2622 = vmatprep.subr.mxu0 0.0
        %2623 = vmatpush1.msra.mxu0 0.0
        %2624 = vmatprep.subr.mxu0 0.0
        %2625 = vmatpush1.msra.mxu0 0.0
        %2626 = vmatprep.subr.mxu0 0.0
        %2627 = vmatpush1.msra.mxu0 0.0
        %2628 = vmatprep.subr.mxu0 0.0
        %2629 = vmatpush1.msra.mxu0 0.0
        %2630 = vmatprep.subr.mxu0 0.0
        %2631 = vmatpush1.msra.mxu0 0.0
        %2632 = vmatprep.subr.mxu0 0.0
        %2633 = vmatpush1.msra.mxu0 0.0
        %2634 = vmatprep.subr.mxu0 0.0
        %2635 = vmatpush1.msra.mxu0 0.0
        %2636 = vmatprep.subr.mxu0 0.0
        %2637 = vmatpush1.msra.mxu0 0.0
        %2638 = vmatprep.mubr.f32.mxu0 0.0
        %2639 = vmatmul.mubr.f32.gmra.mrb[0].mxu0 %v2572
        %v2640 = vpop.f32.mrb[0].mxu0
        %v2641 = vadd.f32 0.0, %v2640
        %v2642 = vpop.f32.mrb[0].mxu0
        %v2643 = vadd.f32 0.0, %v2642
        %2644 = vdwg.mxu0
        %2645 = vmatprep.subr.mxu0 0.0
        %2646 = vmatpush1.msra.mxu0 %v1943
        %2647 = vmatprep.subr.mxu0 0.0
        %2648 = vmatpush1.msra.mxu0 0.0
        %2649 = vmatprep.subr.mxu0 0.0
        %2650 = vmatpush1.msra.mxu0 0.0
        %2651 = vmatprep.subr.mxu0 0.0
        %2652 = vmatpush1.msra.mxu0 0.0
        %2653 = vmatprep.subr.mxu0 0.0
        %2654 = vmatpush1.msra.mxu0 0.0
        %2655 = vmatprep.subr.mxu0 0.0
        %2656 = vmatpush1.msra.mxu0 0.0
        %2657 = vmatprep.subr.mxu0 0.0
        %2658 = vmatpush1.msra.mxu0 0.0
        %2659 = vmatprep.subr.mxu0 0.0
        %2660 = vmatpush1.msra.mxu0 0.0
        %2661 = vmatprep.subr.mxu0 0.0
        %2662 = vmatpush1.msra.mxu0 0.0
        %2663 = vmatprep.subr.mxu0 0.0
        %2664 = vmatpush1.msra.mxu0 0.0
        %2665 = vmatprep.subr.mxu0 0.0
        %2666 = vmatpush1.msra.mxu0 0.0
        %2667 = vmatprep.subr.mxu0 0.0
        %2668 = vmatpush1.msra.mxu0 0.0
        %2669 = vmatprep.subr.mxu0 0.0
        %2670 = vmatpush1.msra.mxu0 0.0
        %2671 = vmatprep.subr.mxu0 0.0
        %2672 = vmatpush1.msra.mxu0 0.0
        %2673 = vmatprep.subr.mxu0 0.0
        %2674 = vmatpush1.msra.mxu0 0.0
        %2675 = vmatprep.subr.mxu0 0.0
        %2676 = vmatpush1.msra.mxu0 0.0
        %2677 = vmatprep.subr.mxu0 0.0
        %2678 = vmatpush1.msra.mxu0 0.0
        %2679 = vmatprep.subr.mxu0 0.0
        %2680 = vmatpush1.msra.mxu0 0.0
        %2681 = vmatprep.subr.mxu0 0.0
        %2682 = vmatpush1.msra.mxu0 0.0
        %2683 = vmatprep.subr.mxu0 0.0
        %2684 = vmatpush1.msra.mxu0 0.0
        %2685 = vmatprep.subr.mxu0 0.0
        %2686 = vmatpush1.msra.mxu0 0.0
        %2687 = vmatprep.subr.mxu0 0.0
        %2688 = vmatpush1.msra.mxu0 0.0
        %2689 = vmatprep.subr.mxu0 0.0
        %2690 = vmatpush1.msra.mxu0 0.0
        %2691 = vmatprep.subr.mxu0 0.0
        %2692 = vmatpush1.msra.mxu0 0.0
        %2693 = vmatprep.subr.mxu0 0.0
        %2694 = vmatpush1.msra.mxu0 0.0
        %2695 = vmatprep.subr.mxu0 0.0
        %2696 = vmatpush1.msra.mxu0 0.0
        %2697 = vmatprep.subr.mxu0 0.0
        %2698 = vmatpush1.msra.mxu0 0.0
        %2699 = vmatprep.subr.mxu0 0.0
        %2700 = vmatpush1.msra.mxu0 0.0
        %2701 = vmatprep.subr.mxu0 0.0
        %2702 = vmatpush1.msra.mxu0 0.0
        %2703 = vmatprep.subr.mxu0 0.0
        %2704 = vmatpush1.msra.mxu0 0.0
        %2705 = vmatprep.subr.mxu0 0.0
        %2706 = vmatpush1.msra.mxu0 0.0
        %2707 = vmatprep.subr.mxu0 0.0
        %2708 = vmatpush1.msra.mxu0 0.0
        %2709 = vmatprep.mubr.f32.mxu0 0.0
        %2710 = vmatmul.mubr.f32.gmra.mrb[0].mxu0 %v2572
        %v2711 = vpop.f32.mrb[0].mxu0
        %v2712 = vadd.f32 0.0, %v2711
        %v2713 = vpop.f32.mrb[0].mxu0
        %2714 = vdwg.mxu0
        %v2715 = vadd.f32 %v2566, %v2641
        %v2716 = vadd.f32 %v2567, %v2643
        %v2717 = vadd.f32 %v2568, %v2712
        %s2718 = scalar_lea.vmem %s4, 40
        %v2719 = vld [vmem:[%s2718] sm:$0xff]
        %2720 = vrot.lane.b32.xlu0 %v1941, 127
        %v2721 = vpop.permute.xlu0 %2720
        %2722 = vrot.lane.b32.xlu0 %v1942, 127
        %v2723 = vpop.permute.xlu0 %2722
        %2724 = vrot.lane.b32.xlu0 %v1943, 127
        %v2725 = vpop.permute.xlu0 %2724
        %v2726 = vsel %vm1051, %v2723, %v2725
        %v2727 = vsel %vm1051, %v2721, %v2723
        %v2728 = vsel %vm1051, %v2725, %v2721
        %v2730 = vsel %vm287, %v2719, 0
        %2732 = vmatprep.subr.mxu0 %v2726
        %2733 = vmatpush1.msra.mxu0 %v2727
        %2734 = vmatprep.subr.mxu0 0.0
        %2735 = vmatpush1.msra.mxu0 0.0
        %2736 = vmatprep.subr.mxu0 0.0
        %2737 = vmatpush1.msra.mxu0 0.0
        %2738 = vmatprep.subr.mxu0 0.0
        %2739 = vmatpush1.msra.mxu0 0.0
        %2740 = vmatprep.subr.mxu0 0.0
        %2741 = vmatpush1.msra.mxu0 0.0
        %2742 = vmatprep.subr.mxu0 0.0
        %2743 = vmatpush1.msra.mxu0 0.0
        %2744 = vmatprep.subr.mxu0 0.0
        %2745 = vmatpush1.msra.mxu0 0.0
        %2746 = vmatprep.subr.mxu0 0.0
        %2747 = vmatpush1.msra.mxu0 0.0
        %2748 = vmatprep.subr.mxu0 0.0
        %2749 = vmatpush1.msra.mxu0 0.0
        %2750 = vmatprep.subr.mxu0 0.0
        %2751 = vmatpush1.msra.mxu0 0.0
        %2752 = vmatprep.subr.mxu0 0.0
        %2753 = vmatpush1.msra.mxu0 0.0
        %2754 = vmatprep.subr.mxu0 0.0
        %2755 = vmatpush1.msra.mxu0 0.0
        %2756 = vmatprep.subr.mxu0 0.0
        %2757 = vmatpush1.msra.mxu0 0.0
        %2758 = vmatprep.subr.mxu0 0.0
        %2759 = vmatpush1.msra.mxu0 0.0
        %2760 = vmatprep.subr.mxu0 0.0
        %2761 = vmatpush1.msra.mxu0 0.0
        %2762 = vmatprep.subr.mxu0 0.0
        %2763 = vmatpush1.msra.mxu0 0.0
        %2764 = vmatprep.subr.mxu0 0.0
        %2765 = vmatpush1.msra.mxu0 0.0
        %2766 = vmatprep.subr.mxu0 0.0
        %2767 = vmatpush1.msra.mxu0 0.0
        %2768 = vmatprep.subr.mxu0 0.0
        %2769 = vmatpush1.msra.mxu0 0.0
        %2770 = vmatprep.subr.mxu0 0.0
        %2771 = vmatpush1.msra.mxu0 0.0
        %2772 = vmatprep.subr.mxu0 0.0
        %2773 = vmatpush1.msra.mxu0 0.0
        %2774 = vmatprep.subr.mxu0 0.0
        %2775 = vmatpush1.msra.mxu0 0.0
        %2776 = vmatprep.subr.mxu0 0.0
        %2777 = vmatpush1.msra.mxu0 0.0
        %2778 = vmatprep.subr.mxu0 0.0
        %2779 = vmatpush1.msra.mxu0 0.0
        %2780 = vmatprep.subr.mxu0 0.0
        %2781 = vmatpush1.msra.mxu0 0.0
        %2782 = vmatprep.subr.mxu0 0.0
        %2783 = vmatpush1.msra.mxu0 0.0
        %2784 = vmatprep.subr.mxu0 0.0
        %2785 = vmatpush1.msra.mxu0 0.0
        %2786 = vmatprep.subr.mxu0 0.0
        %2787 = vmatpush1.msra.mxu0 0.0
        %2788 = vmatprep.subr.mxu0 0.0
        %2789 = vmatpush1.msra.mxu0 0.0
        %2790 = vmatprep.subr.mxu0 0.0
        %2791 = vmatpush1.msra.mxu0 0.0
        %2792 = vmatprep.subr.mxu0 0.0
        %2793 = vmatpush1.msra.mxu0 0.0
        %2794 = vmatprep.subr.mxu0 0.0
        %2795 = vmatpush1.msra.mxu0 0.0
        %2796 = vmatprep.mubr.f32.mxu0 0.0
        %2797 = vmatmul.mubr.f32.gmra.mrb[0].mxu0 %v2730
        %v2798 = vpop.f32.mrb[0].mxu0
        %v2799 = vadd.f32 0.0, %v2798
        %v2800 = vpop.f32.mrb[0].mxu0
        %v2801 = vadd.f32 0.0, %v2800
        %2802 = vdwg.mxu0
        %2803 = vmatprep.subr.mxu0 0.0
        %2804 = vmatpush1.msra.mxu0 %v2728
        %2805 = vmatprep.subr.mxu0 0.0
        %2806 = vmatpush1.msra.mxu0 0.0
        %2807 = vmatprep.subr.mxu0 0.0
        %2808 = vmatpush1.msra.mxu0 0.0
        %2809 = vmatprep.subr.mxu0 0.0
        %2810 = vmatpush1.msra.mxu0 0.0
        %2811 = vmatprep.subr.mxu0 0.0
        %2812 = vmatpush1.msra.mxu0 0.0
        %2813 = vmatprep.subr.mxu0 0.0
        %2814 = vmatpush1.msra.mxu0 0.0
        %2815 = vmatprep.subr.mxu0 0.0
        %2816 = vmatpush1.msra.mxu0 0.0
        %2817 = vmatprep.subr.mxu0 0.0
        %2818 = vmatpush1.msra.mxu0 0.0
        %2819 = vmatprep.subr.mxu0 0.0
        %2820 = vmatpush1.msra.mxu0 0.0
        %2821 = vmatprep.subr.mxu0 0.0
        %2822 = vmatpush1.msra.mxu0 0.0
        %2823 = vmatprep.subr.mxu0 0.0
        %2824 = vmatpush1.msra.mxu0 0.0
        %2825 = vmatprep.subr.mxu0 0.0
        %2826 = vmatpush1.msra.mxu0 0.0
        %2827 = vmatprep.subr.mxu0 0.0
        %2828 = vmatpush1.msra.mxu0 0.0
        %2829 = vmatprep.subr.mxu0 0.0
        %2830 = vmatpush1.msra.mxu0 0.0
        %2831 = vmatprep.subr.mxu0 0.0
        %2832 = vmatpush1.msra.mxu0 0.0
        %2833 = vmatprep.subr.mxu0 0.0
        %2834 = vmatpush1.msra.mxu0 0.0
        %2835 = vmatprep.subr.mxu0 0.0
        %2836 = vmatpush1.msra.mxu0 0.0
        %2837 = vmatprep.subr.mxu0 0.0
        %2838 = vmatpush1.msra.mxu0 0.0
        %2839 = vmatprep.subr.mxu0 0.0
        %2840 = vmatpush1.msra.mxu0 0.0
        %2841 = vmatprep.subr.mxu0 0.0
        %2842 = vmatpush1.msra.mxu0 0.0
        %2843 = vmatprep.subr.mxu0 0.0
        %2844 = vmatpush1.msra.mxu0 0.0
        %2845 = vmatprep.subr.mxu0 0.0
        %2846 = vmatpush1.msra.mxu0 0.0
        %2847 = vmatprep.subr.mxu0 0.0
        %2848 = vmatpush1.msra.mxu0 0.0
        %2849 = vmatprep.subr.mxu0 0.0
        %2850 = vmatpush1.msra.mxu0 0.0
        %2851 = vmatprep.subr.mxu0 0.0
        %2852 = vmatpush1.msra.mxu0 0.0
        %2853 = vmatprep.subr.mxu0 0.0
        %2854 = vmatpush1.msra.mxu0 0.0
        %2855 = vmatprep.subr.mxu0 0.0
        %2856 = vmatpush1.msra.mxu0 0.0
        %2857 = vmatprep.subr.mxu0 0.0
        %2858 = vmatpush1.msra.mxu0 0.0
        %2859 = vmatprep.subr.mxu0 0.0
        %2860 = vmatpush1.msra.mxu0 0.0
        %2861 = vmatprep.subr.mxu0 0.0
        %2862 = vmatpush1.msra.mxu0 0.0
        %2863 = vmatprep.subr.mxu0 0.0
        %2864 = vmatpush1.msra.mxu0 0.0
        %2865 = vmatprep.subr.mxu0 0.0
        %2866 = vmatpush1.msra.mxu0 0.0
        %2867 = vmatprep.mubr.f32.mxu0 0.0
        %2868 = vmatmul.mubr.f32.gmra.mrb[0].mxu0 %v2730
        %v2869 = vpop.f32.mrb[0].mxu0
        %v2870 = vadd.f32 0.0, %v2869
        %v2871 = vpop.f32.mrb[0].mxu0
        %2872 = vdwg.mxu0
        %v2873 = vadd.f32 %v2715, %v2799
        %v2874 = vadd.f32 %v2716, %v2801
        %v2875 = vadd.f32 %v2717, %v2870
        %s2876 = scalar_lea.vmem %s4, 48
        %v2877 = vld [vmem:[%s2876] sm:$0xff]
        %2878 = vrot.lane.b32.xlu0 %v1941, 111
        %v2879 = vpop.permute.xlu0 %2878
        %2880 = vrot.lane.b32.xlu0 %v1942, 111
        %v2881 = vpop.permute.xlu0 %2880
        %2882 = vrot.lane.b32.xlu0 %v1943, 111
        %v2883 = vpop.permute.xlu0 %2882
        %v2884 = vsel %vm1210, %v2881, %v2883
        %v2885 = vsel %vm1210, %v2879, %v2881
        %v2886 = vsel %vm1210, %v2883, %v2879
        %v2888 = vsel %vm287, %v2877, 0
        %2890 = vmatprep.subr.mxu0 %v2884
        %2891 = vmatpush1.msra.mxu0 %v2885
        %2892 = vmatprep.subr.mxu0 0.0
        %2893 = vmatpush1.msra.mxu0 0.0
        %2894 = vmatprep.subr.mxu0 0.0
        %2895 = vmatpush1.msra.mxu0 0.0
        %2896 = vmatprep.subr.mxu0 0.0
        %2897 = vmatpush1.msra.mxu0 0.0
        %2898 = vmatprep.subr.mxu0 0.0
        %2899 = vmatpush1.msra.mxu0 0.0
        %2900 = vmatprep.subr.mxu0 0.0
        %2901 = vmatpush1.msra.mxu0 0.0
        %2902 = vmatprep.subr.mxu0 0.0
        %2903 = vmatpush1.msra.mxu0 0.0
        %2904 = vmatprep.subr.mxu0 0.0
        %2905 = vmatpush1.msra.mxu0 0.0
        %2906 = vmatprep.subr.mxu0 0.0
        %2907 = vmatpush1.msra.mxu0 0.0
        %2908 = vmatprep.subr.mxu0 0.0
        %2909 = vmatpush1.msra.mxu0 0.0
        %2910 = vmatprep.subr.mxu0 0.0
        %2911 = vmatpush1.msra.mxu0 0.0
        %2912 = vmatprep.subr.mxu0 0.0
        %2913 = vmatpush1.msra.mxu0 0.0
        %2914 = vmatprep.subr.mxu0 0.0
        %2915 = vmatpush1.msra.mxu0 0.0
        %2916 = vmatprep.subr.mxu0 0.0
        %2917 = vmatpush1.msra.mxu0 0.0
        %2918 = vmatprep.subr.mxu0 0.0
        %2919 = vmatpush1.msra.mxu0 0.0
        %2920 = vmatprep.subr.mxu0 0.0
        %2921 = vmatpush1.msra.mxu0 0.0
        %2922 = vmatprep.subr.mxu0 0.0
        %2923 = vmatpush1.msra.mxu0 0.0
        %2924 = vmatprep.subr.mxu0 0.0
        %2925 = vmatpush1.msra.mxu0 0.0
        %2926 = vmatprep.subr.mxu0 0.0
        %2927 = vmatpush1.msra.mxu0 0.0
        %2928 = vmatprep.subr.mxu0 0.0
        %2929 = vmatpush1.msra.mxu0 0.0
        %2930 = vmatprep.subr.mxu0 0.0
        %2931 = vmatpush1.msra.mxu0 0.0
        %2932 = vmatprep.subr.mxu0 0.0
        %2933 = vmatpush1.msra.mxu0 0.0
        %2934 = vmatprep.subr.mxu0 0.0
        %2935 = vmatpush1.msra.mxu0 0.0
        %2936 = vmatprep.subr.mxu0 0.0
        %2937 = vmatpush1.msra.mxu0 0.0
        %2938 = vmatprep.subr.mxu0 0.0
        %2939 = vmatpush1.msra.mxu0 0.0
        %2940 = vmatprep.subr.mxu0 0.0
        %2941 = vmatpush1.msra.mxu0 0.0
        %2942 = vmatprep.subr.mxu0 0.0
        %2943 = vmatpush1.msra.mxu0 0.0
        %2944 = vmatprep.subr.mxu0 0.0
        %2945 = vmatpush1.msra.mxu0 0.0
        %2946 = vmatprep.subr.mxu0 0.0
        %2947 = vmatpush1.msra.mxu0 0.0
        %2948 = vmatprep.subr.mxu0 0.0
        %2949 = vmatpush1.msra.mxu0 0.0
        %2950 = vmatprep.subr.mxu0 0.0
        %2951 = vmatpush1.msra.mxu0 0.0
        %2952 = vmatprep.subr.mxu0 0.0
        %2953 = vmatpush1.msra.mxu0 0.0
        %2954 = vmatprep.mubr.f32.mxu0 0.0
        %2955 = vmatmul.mubr.f32.gmra.mrb[0].mxu0 %v2888
        %v2956 = vpop.f32.mrb[0].mxu0
        %v2957 = vadd.f32 0.0, %v2956
        %v2958 = vpop.f32.mrb[0].mxu0
        %v2959 = vadd.f32 0.0, %v2958
        %2960 = vdwg.mxu0
        %2961 = vmatprep.subr.mxu0 0.0
        %2962 = vmatpush1.msra.mxu0 %v2886
        %2963 = vmatprep.subr.mxu0 0.0
        %2964 = vmatpush1.msra.mxu0 0.0
        %2965 = vmatprep.subr.mxu0 0.0
        %2966 = vmatpush1.msra.mxu0 0.0
        %2967 = vmatprep.subr.mxu0 0.0
        %2968 = vmatpush1.msra.mxu0 0.0
        %2969 = vmatprep.subr.mxu0 0.0
        %2970 = vmatpush1.msra.mxu0 0.0
        %2971 = vmatprep.subr.mxu0 0.0
        %2972 = vmatpush1.msra.mxu0 0.0
        %2973 = vmatprep.subr.mxu0 0.0
        %2974 = vmatpush1.msra.mxu0 0.0
        %2975 = vmatprep.subr.mxu0 0.0
        %2976 = vmatpush1.msra.mxu0 0.0
        %2977 = vmatprep.subr.mxu0 0.0
        %2978 = vmatpush1.msra.mxu0 0.0
        %2979 = vmatprep.subr.mxu0 0.0
        %2980 = vmatpush1.msra.mxu0 0.0
        %2981 = vmatprep.subr.mxu0 0.0
        %2982 = vmatpush1.msra.mxu0 0.0
        %2983 = vmatprep.subr.mxu0 0.0
        %2984 = vmatpush1.msra.mxu0 0.0
        %2985 = vmatprep.subr.mxu0 0.0
        %2986 = vmatpush1.msra.mxu0 0.0
        %2987 = vmatprep.subr.mxu0 0.0
        %2988 = vmatpush1.msra.mxu0 0.0
        %2989 = vmatprep.subr.mxu0 0.0
        %2990 = vmatpush1.msra.mxu0 0.0
        %2991 = vmatprep.subr.mxu0 0.0
        %2992 = vmatpush1.msra.mxu0 0.0
        %2993 = vmatprep.subr.mxu0 0.0
        %2994 = vmatpush1.msra.mxu0 0.0
        %2995 = vmatprep.subr.mxu0 0.0
        %2996 = vmatpush1.msra.mxu0 0.0
        %2997 = vmatprep.subr.mxu0 0.0
        %2998 = vmatpush1.msra.mxu0 0.0
        %2999 = vmatprep.subr.mxu0 0.0
        %3000 = vmatpush1.msra.mxu0 0.0
        %3001 = vmatprep.subr.mxu0 0.0
        %3002 = vmatpush1.msra.mxu0 0.0
        %3003 = vmatprep.subr.mxu0 0.0
        %3004 = vmatpush1.msra.mxu0 0.0
        %3005 = vmatprep.subr.mxu0 0.0
        %3006 = vmatpush1.msra.mxu0 0.0
        %3007 = vmatprep.subr.mxu0 0.0
        %3008 = vmatpush1.msra.mxu0 0.0
        %3009 = vmatprep.subr.mxu0 0.0
        %3010 = vmatpush1.msra.mxu0 0.0
        %3011 = vmatprep.subr.mxu0 0.0
        %3012 = vmatpush1.msra.mxu0 0.0
        %3013 = vmatprep.subr.mxu0 0.0
        %3014 = vmatpush1.msra.mxu0 0.0
        %3015 = vmatprep.subr.mxu0 0.0
        %3016 = vmatpush1.msra.mxu0 0.0
        %3017 = vmatprep.subr.mxu0 0.0
        %3018 = vmatpush1.msra.mxu0 0.0
        %3019 = vmatprep.subr.mxu0 0.0
        %3020 = vmatpush1.msra.mxu0 0.0
        %3021 = vmatprep.subr.mxu0 0.0
        %3022 = vmatpush1.msra.mxu0 0.0
        %3023 = vmatprep.subr.mxu0 0.0
        %3024 = vmatpush1.msra.mxu0 0.0
        %3025 = vmatprep.mubr.f32.mxu0 0.0
        %3026 = vmatmul.mubr.f32.gmra.mrb[0].mxu0 %v2888
        %v3027 = vpop.f32.mrb[0].mxu0
        %v3028 = vadd.f32 0.0, %v3027
        %v3029 = vpop.f32.mrb[0].mxu0
        %3030 = vdwg.mxu0
        %v3031 = vadd.f32 %v2873, %v2957
        %v3032 = vadd.f32 %v2874, %v2959
        %v3033 = vadd.f32 %v2875, %v3028
        %s3034 = scalar_lea.vmem %s4, 56
        %v3035 = vld [vmem:[%s3034] sm:$0xff]
        %3036 = vrot.lane.b32.xlu0 %v1941, 110
        %v3037 = vpop.permute.xlu0 %3036
        %3038 = vrot.lane.b32.xlu0 %v1942, 110
        %v3039 = vpop.permute.xlu0 %3038
        %3040 = vrot.lane.b32.xlu0 %v1943, 110
        %v3041 = vpop.permute.xlu0 %3040
        %v3042 = vsel %vm1369, %v3039, %v3041
        %v3043 = vsel %vm1369, %v3037, %v3039
        %v3044 = vsel %vm1369, %v3041, %v3037
        %v3046 = vsel %vm287, %v3035, 0
        %3048 = vmatprep.subr.mxu0 %v3042
        %3049 = vmatpush1.msra.mxu0 %v3043
        %3050 = vmatprep.subr.mxu0 0.0
        %3051 = vmatpush1.msra.mxu0 0.0
        %3052 = vmatprep.subr.mxu0 0.0
        %3053 = vmatpush1.msra.mxu0 0.0
        %3054 = vmatprep.subr.mxu0 0.0
        %3055 = vmatpush1.msra.mxu0 0.0
        %3056 = vmatprep.subr.mxu0 0.0
        %3057 = vmatpush1.msra.mxu0 0.0
        %3058 = vmatprep.subr.mxu0 0.0
        %3059 = vmatpush1.msra.mxu0 0.0
        %3060 = vmatprep.subr.mxu0 0.0
        %3061 = vmatpush1.msra.mxu0 0.0
        %3062 = vmatprep.subr.mxu0 0.0
        %3063 = vmatpush1.msra.mxu0 0.0
        %3064 = vmatprep.subr.mxu0 0.0
        %3065 = vmatpush1.msra.mxu0 0.0
        %3066 = vmatprep.subr.mxu0 0.0
        %3067 = vmatpush1.msra.mxu0 0.0
        %3068 = vmatprep.subr.mxu0 0.0
        %3069 = vmatpush1.msra.mxu0 0.0
        %3070 = vmatprep.subr.mxu0 0.0
        %3071 = vmatpush1.msra.mxu0 0.0
        %3072 = vmatprep.subr.mxu0 0.0
        %3073 = vmatpush1.msra.mxu0 0.0
        %3074 = vmatprep.subr.mxu0 0.0
        %3075 = vmatpush1.msra.mxu0 0.0
        %3076 = vmatprep.subr.mxu0 0.0
        %3077 = vmatpush1.msra.mxu0 0.0
        %3078 = vmatprep.subr.mxu0 0.0
        %3079 = vmatpush1.msra.mxu0 0.0
        %3080 = vmatprep.subr.mxu0 0.0
        %3081 = vmatpush1.msra.mxu0 0.0
        %3082 = vmatprep.subr.mxu0 0.0
        %3083 = vmatpush1.msra.mxu0 0.0
        %3084 = vmatprep.subr.mxu0 0.0
        %3085 = vmatpush1.msra.mxu0 0.0
        %3086 = vmatprep.subr.mxu0 0.0
        %3087 = vmatpush1.msra.mxu0 0.0
        %3088 = vmatprep.subr.mxu0 0.0
        %3089 = vmatpush1.msra.mxu0 0.0
        %3090 = vmatprep.subr.mxu0 0.0
        %3091 = vmatpush1.msra.mxu0 0.0
        %3092 = vmatprep.subr.mxu0 0.0
        %3093 = vmatpush1.msra.mxu0 0.0
        %3094 = vmatprep.subr.mxu0 0.0
        %3095 = vmatpush1.msra.mxu0 0.0
        %3096 = vmatprep.subr.mxu0 0.0
        %3097 = vmatpush1.msra.mxu0 0.0
        %3098 = vmatprep.subr.mxu0 0.0
        %3099 = vmatpush1.msra.mxu0 0.0
        %3100 = vmatprep.subr.mxu0 0.0
        %3101 = vmatpush1.msra.mxu0 0.0
        %3102 = vmatprep.subr.mxu0 0.0
        %3103 = vmatpush1.msra.mxu0 0.0
        %3104 = vmatprep.subr.mxu0 0.0
        %3105 = vmatpush1.msra.mxu0 0.0
        %3106 = vmatprep.subr.mxu0 0.0
        %3107 = vmatpush1.msra.mxu0 0.0
        %3108 = vmatprep.subr.mxu0 0.0
        %3109 = vmatpush1.msra.mxu0 0.0
        %3110 = vmatprep.subr.mxu0 0.0
        %3111 = vmatpush1.msra.mxu0 0.0
        %3112 = vmatprep.mubr.f32.mxu0 0.0
        %3113 = vmatmul.mubr.f32.gmra.mrb[0].mxu0 %v3046
        %v3114 = vpop.f32.mrb[0].mxu0
        %v3115 = vadd.f32 0.0, %v3114
        %v3116 = vpop.f32.mrb[0].mxu0
        %v3117 = vadd.f32 0.0, %v3116
        %3118 = vdwg.mxu0
        %3119 = vmatprep.subr.mxu0 0.0
        %3120 = vmatpush1.msra.mxu0 %v3044
        %3121 = vmatprep.subr.mxu0 0.0
        %3122 = vmatpush1.msra.mxu0 0.0
        %3123 = vmatprep.subr.mxu0 0.0
        %3124 = vmatpush1.msra.mxu0 0.0
        %3125 = vmatprep.subr.mxu0 0.0
        %3126 = vmatpush1.msra.mxu0 0.0
        %3127 = vmatprep.subr.mxu0 0.0
        %3128 = vmatpush1.msra.mxu0 0.0
        %3129 = vmatprep.subr.mxu0 0.0
        %3130 = vmatpush1.msra.mxu0 0.0
        %3131 = vmatprep.subr.mxu0 0.0
        %3132 = vmatpush1.msra.mxu0 0.0
        %3133 = vmatprep.subr.mxu0 0.0
        %3134 = vmatpush1.msra.mxu0 0.0
        %3135 = vmatprep.subr.mxu0 0.0
        %3136 = vmatpush1.msra.mxu0 0.0
        %3137 = vmatprep.subr.mxu0 0.0
        %3138 = vmatpush1.msra.mxu0 0.0
        %3139 = vmatprep.subr.mxu0 0.0
        %3140 = vmatpush1.msra.mxu0 0.0
        %3141 = vmatprep.subr.mxu0 0.0
        %3142 = vmatpush1.msra.mxu0 0.0
        %3143 = vmatprep.subr.mxu0 0.0
        %3144 = vmatpush1.msra.mxu0 0.0
        %3145 = vmatprep.subr.mxu0 0.0
        %3146 = vmatpush1.msra.mxu0 0.0
        %3147 = vmatprep.subr.mxu0 0.0
        %3148 = vmatpush1.msra.mxu0 0.0
        %3149 = vmatprep.subr.mxu0 0.0
        %3150 = vmatpush1.msra.mxu0 0.0
        %3151 = vmatprep.subr.mxu0 0.0
        %3152 = vmatpush1.msra.mxu0 0.0
        %3153 = vmatprep.subr.mxu0 0.0
        %3154 = vmatpush1.msra.mxu0 0.0
        %3155 = vmatprep.subr.mxu0 0.0
        %3156 = vmatpush1.msra.mxu0 0.0
        %3157 = vmatprep.subr.mxu0 0.0
        %3158 = vmatpush1.msra.mxu0 0.0
        %3159 = vmatprep.subr.mxu0 0.0
        %3160 = vmatpush1.msra.mxu0 0.0
        %3161 = vmatprep.subr.mxu0 0.0
        %3162 = vmatpush1.msra.mxu0 0.0
        %3163 = vmatprep.subr.mxu0 0.0
        %3164 = vmatpush1.msra.mxu0 0.0
        %3165 = vmatprep.subr.mxu0 0.0
        %3166 = vmatpush1.msra.mxu0 0.0
        %3167 = vmatprep.subr.mxu0 0.0
        %3168 = vmatpush1.msra.mxu0 0.0
        %3169 = vmatprep.subr.mxu0 0.0
        %3170 = vmatpush1.msra.mxu0 0.0
        %3171 = vmatprep.subr.mxu0 0.0
        %3172 = vmatpush1.msra.mxu0 0.0
        %3173 = vmatprep.subr.mxu0 0.0
        %3174 = vmatpush1.msra.mxu0 0.0
        %3175 = vmatprep.subr.mxu0 0.0
        %3176 = vmatpush1.msra.mxu0 0.0
        %3177 = vmatprep.subr.mxu0 0.0
        %3178 = vmatpush1.msra.mxu0 0.0
        %3179 = vmatprep.subr.mxu0 0.0
        %3180 = vmatpush1.msra.mxu0 0.0
        %3181 = vmatprep.subr.mxu0 0.0
        %3182 = vmatpush1.msra.mxu0 0.0
        %3183 = vmatprep.mubr.f32.mxu0 0.0
        %3184 = vmatmul.mubr.f32.gmra.mrb[0].mxu0 %v3046
        %v3185 = vpop.f32.mrb[0].mxu0
        %v3186 = vadd.f32 0.0, %v3185
        %v3187 = vpop.f32.mrb[0].mxu0
        %3188 = vdwg.mxu0
        %v3189 = vadd.f32 %v3031, %v3115
        %v3190 = vadd.f32 %v3032, %v3117
        %v3191 = vadd.f32 %v3033, %v3186
        %s3192 = scalar_lea.vmem %s4, 64
        %v3193 = vld [vmem:[%s3192] sm:$0xff]
        %3194 = vrot.lane.b32.xlu0 %v1941, 109
        %v3195 = vpop.permute.xlu0 %3194
        %3196 = vrot.lane.b32.xlu0 %v1942, 109
        %v3197 = vpop.permute.xlu0 %3196
        %3198 = vrot.lane.b32.xlu0 %v1943, 109
        %v3199 = vpop.permute.xlu0 %3198
        %v3200 = vsel %vm1528, %v3197, %v3199
        %v3201 = vsel %vm1528, %v3195, %v3197
        %v3202 = vsel %vm1528, %v3199, %v3195
        %v3204 = vsel %vm287, %v3193, 0
        %3206 = vmatprep.subr.mxu0 %v3200
        %3207 = vmatpush1.msra.mxu0 %v3201
        %3208 = vmatprep.subr.mxu0 0.0
        %3209 = vmatpush1.msra.mxu0 0.0
        %3210 = vmatprep.subr.mxu0 0.0
        %3211 = vmatpush1.msra.mxu0 0.0
        %3212 = vmatprep.subr.mxu0 0.0
        %3213 = vmatpush1.msra.mxu0 0.0
        %3214 = vmatprep.subr.mxu0 0.0
        %3215 = vmatpush1.msra.mxu0 0.0
        %3216 = vmatprep.subr.mxu0 0.0
        %3217 = vmatpush1.msra.mxu0 0.0
        %3218 = vmatprep.subr.mxu0 0.0
        %3219 = vmatpush1.msra.mxu0 0.0
        %3220 = vmatprep.subr.mxu0 0.0
        %3221 = vmatpush1.msra.mxu0 0.0
        %3222 = vmatprep.subr.mxu0 0.0
        %3223 = vmatpush1.msra.mxu0 0.0
        %3224 = vmatprep.subr.mxu0 0.0
        %3225 = vmatpush1.msra.mxu0 0.0
        %3226 = vmatprep.subr.mxu0 0.0
        %3227 = vmatpush1.msra.mxu0 0.0
        %3228 = vmatprep.subr.mxu0 0.0
        %3229 = vmatpush1.msra.mxu0 0.0
        %3230 = vmatprep.subr.mxu0 0.0
        %3231 = vmatpush1.msra.mxu0 0.0
        %3232 = vmatprep.subr.mxu0 0.0
        %3233 = vmatpush1.msra.mxu0 0.0
        %3234 = vmatprep.subr.mxu0 0.0
        %3235 = vmatpush1.msra.mxu0 0.0
        %3236 = vmatprep.subr.mxu0 0.0
        %3237 = vmatpush1.msra.mxu0 0.0
        %3238 = vmatprep.subr.mxu0 0.0
        %3239 = vmatpush1.msra.mxu0 0.0
        %3240 = vmatprep.subr.mxu0 0.0
        %3241 = vmatpush1.msra.mxu0 0.0
        %3242 = vmatprep.subr.mxu0 0.0
        %3243 = vmatpush1.msra.mxu0 0.0
        %3244 = vmatprep.subr.mxu0 0.0
        %3245 = vmatpush1.msra.mxu0 0.0
        %3246 = vmatprep.subr.mxu0 0.0
        %3247 = vmatpush1.msra.mxu0 0.0
        %3248 = vmatprep.subr.mxu0 0.0
        %3249 = vmatpush1.msra.mxu0 0.0
        %3250 = vmatprep.subr.mxu0 0.0
        %3251 = vmatpush1.msra.mxu0 0.0
        %3252 = vmatprep.subr.mxu0 0.0
        %3253 = vmatpush1.msra.mxu0 0.0
        %3254 = vmatprep.subr.mxu0 0.0
        %3255 = vmatpush1.msra.mxu0 0.0
        %3256 = vmatprep.subr.mxu0 0.0
        %3257 = vmatpush1.msra.mxu0 0.0
        %3258 = vmatprep.subr.mxu0 0.0
        %3259 = vmatpush1.msra.mxu0 0.0
        %3260 = vmatprep.subr.mxu0 0.0
        %3261 = vmatpush1.msra.mxu0 0.0
        %3262 = vmatprep.subr.mxu0 0.0
        %3263 = vmatpush1.msra.mxu0 0.0
        %3264 = vmatprep.subr.mxu0 0.0
        %3265 = vmatpush1.msra.mxu0 0.0
        %3266 = vmatprep.subr.mxu0 0.0
        %3267 = vmatpush1.msra.mxu0 0.0
        %3268 = vmatprep.subr.mxu0 0.0
        %3269 = vmatpush1.msra.mxu0 0.0
        %3270 = vmatprep.mubr.f32.mxu0 0.0
        %3271 = vmatmul.mubr.f32.gmra.mrb[0].mxu0 %v3204
        %v3272 = vpop.f32.mrb[0].mxu0
        %v3273 = vadd.f32 0.0, %v3272
        %v3274 = vpop.f32.mrb[0].mxu0
        %v3275 = vadd.f32 0.0, %v3274
        %3276 = vdwg.mxu0
        %3277 = vmatprep.subr.mxu0 0.0
        %3278 = vmatpush1.msra.mxu0 %v3202
        %3279 = vmatprep.subr.mxu0 0.0
        %3280 = vmatpush1.msra.mxu0 0.0
        %3281 = vmatprep.subr.mxu0 0.0
        %3282 = vmatpush1.msra.mxu0 0.0
        %3283 = vmatprep.subr.mxu0 0.0
        %3284 = vmatpush1.msra.mxu0 0.0
        %3285 = vmatprep.subr.mxu0 0.0
        %3286 = vmatpush1.msra.mxu0 0.0
        %3287 = vmatprep.subr.mxu0 0.0
        %3288 = vmatpush1.msra.mxu0 0.0
        %3289 = vmatprep.subr.mxu0 0.0
        %3290 = vmatpush1.msra.mxu0 0.0
        %3291 = vmatprep.subr.mxu0 0.0
        %3292 = vmatpush1.msra.mxu0 0.0
        %3293 = vmatprep.subr.mxu0 0.0
        %3294 = vmatpush1.msra.mxu0 0.0
        %3295 = vmatprep.subr.mxu0 0.0
        %3296 = vmatpush1.msra.mxu0 0.0
        %3297 = vmatprep.subr.mxu0 0.0
        %3298 = vmatpush1.msra.mxu0 0.0
        %3299 = vmatprep.subr.mxu0 0.0
        %3300 = vmatpush1.msra.mxu0 0.0
        %3301 = vmatprep.subr.mxu0 0.0
        %3302 = vmatpush1.msra.mxu0 0.0
        %3303 = vmatprep.subr.mxu0 0.0
        %3304 = vmatpush1.msra.mxu0 0.0
        %3305 = vmatprep.subr.mxu0 0.0
        %3306 = vmatpush1.msra.mxu0 0.0
        %3307 = vmatprep.subr.mxu0 0.0
        %3308 = vmatpush1.msra.mxu0 0.0
        %3309 = vmatprep.subr.mxu0 0.0
        %3310 = vmatpush1.msra.mxu0 0.0
        %3311 = vmatprep.subr.mxu0 0.0
        %3312 = vmatpush1.msra.mxu0 0.0
        %3313 = vmatprep.subr.mxu0 0.0
        %3314 = vmatpush1.msra.mxu0 0.0
        %3315 = vmatprep.subr.mxu0 0.0
        %3316 = vmatpush1.msra.mxu0 0.0
        %3317 = vmatprep.subr.mxu0 0.0
        %3318 = vmatpush1.msra.mxu0 0.0
        %3319 = vmatprep.subr.mxu0 0.0
        %3320 = vmatpush1.msra.mxu0 0.0
        %3321 = vmatprep.subr.mxu0 0.0
        %3322 = vmatpush1.msra.mxu0 0.0
        %3323 = vmatprep.subr.mxu0 0.0
        %3324 = vmatpush1.msra.mxu0 0.0
        %3325 = vmatprep.subr.mxu0 0.0
        %3326 = vmatpush1.msra.mxu0 0.0
        %3327 = vmatprep.subr.mxu0 0.0
        %3328 = vmatpush1.msra.mxu0 0.0
        %3329 = vmatprep.subr.mxu0 0.0
        %3330 = vmatpush1.msra.mxu0 0.0
        %3331 = vmatprep.subr.mxu0 0.0
        %3332 = vmatpush1.msra.mxu0 0.0
        %3333 = vmatprep.subr.mxu0 0.0
        %3334 = vmatpush1.msra.mxu0 0.0
        %3335 = vmatprep.subr.mxu0 0.0
        %3336 = vmatpush1.msra.mxu0 0.0
        %3337 = vmatprep.subr.mxu0 0.0
        %3338 = vmatpush1.msra.mxu0 0.0
        %3339 = vmatprep.subr.mxu0 0.0
        %3340 = vmatpush1.msra.mxu0 0.0
        %3341 = vmatprep.mubr.f32.mxu0 0.0
        %3342 = vmatmul.mubr.f32.gmra.mrb[0].mxu0 %v3204
        %v3343 = vpop.f32.mrb[0].mxu0
        %v3344 = vadd.f32 0.0, %v3343
        %v3345 = vpop.f32.mrb[0].mxu0
        %3346 = vdwg.mxu0
        %v3347 = vadd.f32 %v3189, %v3273
        %v3348 = vadd.f32 %v3190, %v3275
        %v3349 = vadd.f32 %v3191, %v3344
        %v3350 = vld [vmem:[%s5] sm:$0xff]
        %3352 = vset.pattern.permute.xlu0 0
        %3353 = vperm.xlu0 %3352, %v3350
        %v3354 = vpop.permute.xlu0 %3353
        %v3356 = vadd.f32 %v3347, %v3354
        %v3357 = vadd.f32 %v3348, %v3354
        %v3358 = vadd.f32 %v3349, %v3354
        %v3359 = vmul.f32 %v3356, %v1692
        %v3360 = vmul.f32 %v3357, %v1696
        %v3361 = vmul.f32 %v3358, %v1700
        %v3362 = vadd.f32 %v3359, %v3360
        %v3363 = vadd.f32 %v3362, %v3361
        %3364 = vadd.xlane.f32.xlu0 %v3363
        %v3365 = vpop.xlane.xlu0 %3364
        %v3366 = vmul.f32 %v3365, 0.00390625
        %v3367 = vmul.f32 %v3359, %v3356
        %v3368 = vmul.f32 %v3360, %v3357
        %v3369 = vmul.f32 %v3361, %v3358
        %v3370 = vadd.f32 %v3367, %v3368
        %v3371 = vadd.f32 %v3370, %v3369
        %3372 = vadd.xlane.f32.xlu0 %v3371
        %v3373 = vpop.xlane.xlu0 %3372
        %v3374 = vmul.f32 %v3373, 0.00390625
        %v3375 = vmul.f32 %v3366, %v3366
        %v3376 = vsub.f32 %v3374, %v3375
        %v3377 = vsub.f32 %v3356, %v3366
        %v3378 = vsub.f32 %v3357, %v3366
        %v3379 = vsub.f32 %v3358, %v3366
        %v3380 = vmul.f32 %v3377, %v1692
        %v3381 = vmul.f32 %v3378, %v1696
        %v3382 = vmul.f32 %v3379, %v1700
        %v3383 = vadd.f32 %v3376, 1e-05
        %v3384 = vrsqrt.pop %v3383
        %v3385 = vmul.f32 %v3380, %v3384
        %v3386 = vmul.f32 %v3381, %v3384
        %v3387 = vmul.f32 %v3382, %v3384
        %v3388 = vadd.f32 %v259, %v3385
        %v3389 = vadd.f32 %v260, %v3386
        %v3390 = vadd.f32 %v261, %v3387
        %3391 = vst [vmem:[%s244] sm:$0xff] %v3388
        %3392 = vst [vmem:[%s244 + $0x8] sm:$0xff] %v3389
        %3393 = vst [vmem:[%s244 + $0x10] sm:$0xff] %v3390
        %s3394 = sand.u32 %s159, 1
        %s3395 = scalar_lea.sflag [#allocation3], %s3394
        %s3396 = sand.u32 %s159, 1
        %s3397 = smul.addr %s3396, 24
        %s3398 = scalar_lea.vmem [#allocation2], %s3397
        // Predicated region
        $region45: #{tpu_custom_call.1} parent=43 // pred_check
          %p3399 = pneg %p169
        $region46: #{tpu_custom_call.1} parent=43 // pred_check_branch
          %3401 = sbr.rel (%p3399) target = $region48
        $region47: #{tpu_custom_call.1} parent=43 // pred_region
          %s3403 = ssub.s32 384, 384
          %3404 = vsyncadd %s3395, %s3403
          %s3405 = smul.addr %s20, 3
          %s3406 = smul.addr %s3405, 128
          %s3407 = scalar_lea.hbm %s6, %s3406
          %s3409 = sshll.u32 %s3398, 4
          %s3410 = int_to_ptr.vmem [resolvable:$true] %s3409
          %3412 = dma.vmem_to_hbm [thread:$0]  %s3410, 384, %s3407, %s3395
        $region48: #{tpu_custom_call.1} parent=43 // pred_fallthru
          _
      $region44: #{tpu_custom_call.1} parent=5 // pred_fallthru
        _
      %p3413 = scmp.le.s32.totalorder 2, %s15
      // Predicated region
      $region49: #{tpu_custom_call.1} parent=5 // pred_check
        %p3414 = pneg %p3413
      $region50: #{tpu_custom_call.1} parent=5 // pred_check_branch
        %3416 = sbr.rel (%p3414) target = $region52
      $region51: #{tpu_custom_call.1} parent=5 // pred_region
        %s3417 = ssub.s32 %s15, 2
        // Predicated region
        $region53: #{tpu_custom_call.1} parent=51 // pred_check
          %p3418 = pneg %p175
        $region54: #{tpu_custom_call.1} parent=51 // pred_check_branch
          %3420 = sbr.rel (%p3418) target = $region56
        $region55: #{tpu_custom_call.1} parent=51 // pred_region
          %s3421 = sand.u32 %s160, 1
          %s3422 = scalar_lea.sflag [#allocation3], %s3421
          %s3423 = sand.u32 %s160, 1
          %s3424 = smul.addr %s3423, 24
          %s3425 = scalar_lea.vmem [#allocation2], %s3424
          %3426 = dma.done %s3422, 384
        $region56: #{tpu_custom_call.1} parent=51 // pred_fallthru
          _
      $region52: #{tpu_custom_call.1} parent=5 // pred_fallthru
        _
    $region6: #{tpu_custom_call.1} parent=1 // loop_footer
      %s19 = sadd.s32 1, %s15
    $region7: #{tpu_custom_call.1} parent=1 // loop_footer_branch
      %14 = sbr.rel target = $region3
    $region8: #{tpu_custom_call.1} parent=1 // loop_exit
      _
    %3427 = vsyncpa [#allocation3], 1
    %s3428 = scalar_lea.sflag [#allocation3], 1
    %3429 = vsyncpa %s3428, 1

// kernel: tpu_custom_call.1
$region0: #{tpu_custom_call.1}
  #allocation0 [shape = 'u32[]', space=smem, size = 0x4, offset = 0x4, fixed_abs, tag = 'smem constant byte address 0x4 - core index']
  #allocation1 [shape = 'u32[144,128]{1,0:T(1,128)}', space=vmem, size = 0x12000, scoped, tag = 'internal scratch']
  %s0 = inlined_call_operand.vmem [shape: f32[2,8,384], index: 0, kind: input, shape index: {}]
  %s1 = inlined_call_operand.vmem [shape: f32[5,1,384], index: 1, kind: input, shape index: {}]
  %s2 = inlined_call_operand.vmem [shape: f32[9,8,8], index: 2, kind: input, shape index: {}]
  %s3 = inlined_call_operand.vmem [shape: f32[8,1], index: 3, kind: input, shape index: {}]
  %s4 = inlined_call_operand.vmem [shape: f32[9,8,8], index: 4, kind: input, shape index: {}]
  %s5 = inlined_call_operand.vmem [shape: f32[8,1], index: 5, kind: input, shape index: {}]
  %s6 = inlined_call_operand.hbm [shape: f32[2,8,384], index: 6, kind: output, shape index: {}]
  %s7 = sld [smem:[#allocation0]]
  $region57: #{tpu_custom_call.1} parent=0
    _
  %s9 = ssub.s32 1, %s7
  %s10 = scalar_select 0, %s9, %s7
  $region1: #{tpu_custom_call.1} parent=0
    #allocation2 [shape = 'u8[24576]{0}', space=vmem, size = 0x6000, scoped, tag = 'output window, operand 0']
    #allocation3 [shape = 's32[2]{0}', space=sflag, size = 0x8, scoped, tag = 'scoped memory for tpu_custom_call.1']
    %11 = vsyncpa [#allocation3], 0
    %s12 = scalar_lea.sflag [#allocation3], 1
    %13 = vsyncpa %s12, 0
    loop: start=0, step=1, limit=4
    $region2: #{tpu_custom_call.1} parent=1 // loop_pre_header
      _
    $region3: #{tpu_custom_call.1} parent=1 // loop_header
      %s15 = sphi 0, %s19
      %p16 = scmp.ge.s32.totalorder %s15, 4
      %s25 = sphi 0, %s27
      %s28 = sphi 0, %s25
      %s29 = sphi 0, %s28
      %s45 = sphi 0, %s29
      %s49 = sphi 0, %s49
      %s51 = sphi 0, %s49
      %s52 = sphi 0, %s51
      %s66 = sphi 0, %s52
      %s70 = sphi 0, %s70
      %s72 = sphi 0, %s70
      %s73 = sphi 0, %s72
      %s87 = sphi 0, %s73
      %s91 = sphi 0, %s91
      %s93 = sphi 0, %s91
      %s94 = sphi 0, %s93
      %s108 = sphi 0, %s94
      %s112 = sphi 0, %s112
      %s114 = sphi 0, %s112
      %s115 = sphi 0, %s114
      %s129 = sphi 0, %s115
      %s133 = sphi 0, %s133
      %s135 = sphi 0, %s133
      %s136 = sphi 0, %s135
      %s150 = sphi 0, %s136
      %s156 = sphi 0, %s158
      %s159 = sphi 0, %s156
      %s160 = sphi 0, %s159
      %s176 = sphi 0, %s160
    $region4: #{tpu_custom_call.1} parent=1 // loop_header_branch
      %18 = sbr.rel (%p16) target = $region8
    $region5: #{tpu_custom_call.1} parent=1 // loop_body
      %s20 = ssub.s32 %s15, 1
      %s21 = ssub.s32 %s15, 2
      %s22 = sadd.s32 %s15, 1
      %s23 = ssub.s32 %s15, %s22
      %p24 = scmp.eq.s32.totalorder %s23, 0
      %s26 = sadd.s32 %s25, 1
      %s27 = scalar_select %p24, %s25, %s26
      %p30 = pneg %p24
      %p31 = scmp.eq.s32.totalorder %s15, 1
      %p32 = por %p30, %p31
      %p33 = scmp.ne.s32.totalorder %s25, %s28
      %p34 = scmp.eq.s32.totalorder %s15, 0
      %p35 = por %p33, %p34
      %p36 = scmp.ne.s32.totalorder %s25, %s28
      %p37 = scmp.eq.s32.totalorder %s20, 1
      %p38 = por %p36, %p37
      %p39 = scmp.ne.s32.totalorder %s28, %s29
      %p40 = scmp.eq.s32.totalorder %s20, 0
      %p41 = por %p39, %p40
      %p42 = scmp.ne.s32.totalorder %s28, %s29
      %p43 = scmp.eq.s32.totalorder %s21, 1
      %p44 = por %p42, %p43
      %p46 = scmp.ne.s32.totalorder %s29, %s45
      %p47 = scmp.eq.s32.totalorder %s21, 0
      %p48 = por %p46, %p47
      %s50 = sadd.s32 %s49, 1
      %p53 = scmp.eq.s32.totalorder %s15, 1
      %p54 = scmp.ne.s32.totalorder %s49, %s51
      %p55 = scmp.eq.s32.totalorder %s15, 0
      %p56 = por %p54, %p55
      %p57 = scmp.ne.s32.totalorder %s49, %s51
      %p58 = scmp.eq.s32.totalorder %s20, 1
      %p59 = por %p57, %p58
      %p60 = scmp.ne.s32.totalorder %s51, %s52
      %p61 = scmp.eq.s32.totalorder %s20, 0
      %p62 = por %p60, %p61
      %p63 = scmp.ne.s32.totalorder %s51, %s52
      %p64 = scmp.eq.s32.totalorder %s21, 1
      %p65 = por %p63, %p64
      %p67 = scmp.ne.s32.totalorder %s52, %s66
      %p68 = scmp.eq.s32.totalorder %s21, 0
      %p69 = por %p67, %p68
      %s71 = sadd.s32 %s70, 1
      %p74 = scmp.eq.s32.totalorder %s15, 1
      %p75 = scmp.ne.s32.totalorder %s70, %s72
      %p76 = scmp.eq.s32.totalorder %s15, 0
      %p77 = por %p75, %p76
      %p78 = scmp.ne.s32.totalorder %s70, %s72
      %p79 = scmp.eq.s32.totalorder %s20, 1
      %p80 = por %p78, %p79
      %p81 = scmp.ne.s32.totalorder %s72, %s73
      %p82 = scmp.eq.s32.totalorder %s20, 0
      %p83 = por %p81, %p82
      %p84 = scmp.ne.s32.totalorder %s72, %s73
      %p85 = scmp.eq.s32.totalorder %s21, 1
      %p86 = por %p84, %p85
      %p88 = scmp.ne.s32.totalorder %s73, %s87
      %p89 = scmp.eq.s32.totalorder %s21, 0
      %p90 = por %p88, %p89
      %s92 = sadd.s32 %s91, 1
      %p95 = scmp.eq.s32.totalorder %s15, 1
      %p96 = scmp.ne.s32.totalorder %s91, %s93
      %p97 = scmp.eq.s32.totalorder %s15, 0
      %p98 = por %p96, %p97
      %p99 = scmp.ne.s32.totalorder %s91, %s93
      %p100 = scmp.eq.s32.totalorder %s20, 1
      %p101 = por %p99, %p100
      %p102 = scmp.ne.s32.totalorder %s93, %s94
      %p103 = scmp.eq.s32.totalorder %s20, 0
      %p104 = por %p102, %p103
      %p105 = scmp.ne.s32.totalorder %s93, %s94
      %p106 = scmp.eq.s32.totalorder %s21, 1
      %p107 = por %p105, %p106
      %p109 = scmp.ne.s32.totalorder %s94, %s108
      %p110 = scmp.eq.s32.totalorder %s21, 0
      %p111 = por %p109, %p110
      %s113 = sadd.s32 %s112, 1
      %p116 = scmp.eq.s32.totalorder %s15, 1
      %p117 = scmp.ne.s32.totalorder %s112, %s114
      %p118 = scmp.eq.s32.totalorder %s15, 0
      %p119 = por %p117, %p118
      %p120 = scmp.ne.s32.totalorder %s112, %s114
      %p121 = scmp.eq.s32.totalorder %s20, 1
      %p122 = por %p120, %p121
      %p123 = scmp.ne.s32.totalorder %s114, %s115
      %p124 = scmp.eq.s32.totalorder %s20, 0
      %p125 = por %p123, %p124
      %p126 = scmp.ne.s32.totalorder %s114, %s115
      %p127 = scmp.eq.s32.totalorder %s21, 1
      %p128 = por %p126, %p127
      %p130 = scmp.ne.s32.totalorder %s115, %s129
      %p131 = scmp.eq.s32.totalorder %s21, 0
      %p132 = por %p130, %p131
      %s134 = sadd.s32 %s133, 1
      %p137 = scmp.eq.s32.totalorder %s15, 1
      %p138 = scmp.ne.s32.totalorder %s133, %s135
      %p139 = scmp.eq.s32.totalorder %s15, 0
      %p140 = por %p138, %p139
      %p141 = scmp.ne.s32.totalorder %s133, %s135
      %p142 = scmp.eq.s32.totalorder %s20, 1
      %p143 = por %p141, %p142
      %p144 = scmp.ne.s32.totalorder %s135, %s136
      %p145 = scmp.eq.s32.totalorder %s20, 0
      %p146 = por %p144, %p145
      %p147 = scmp.ne.s32.totalorder %s135, %s136
      %p148 = scmp.eq.s32.totalorder %s21, 1
      %p149 = por %p147, %p148
      %p151 = scmp.ne.s32.totalorder %s136, %s150
      %p152 = scmp.eq.s32.totalorder %s21, 0
      %p153 = por %p151, %p152
      %s154 = ssub.s32 %s15, %s22
      %p155 = scmp.eq.s32.totalorder %s154, 0
      %s157 = sadd.s32 %s156, 1
      %s158 = scalar_select %p155, %s156, %s157
      %p161 = pneg %p155
      %p162 = scmp.eq.s32.totalorder %s15, 1
      %p163 = por %p161, %p162
      %p164 = scmp.ne.s32.totalorder %s156, %s159
      %p165 = scmp.eq.s32.totalorder %s15, 0
      %p166 = por %p164, %p165
      %p167 = scmp.ne.s32.totalorder %s156, %s159
      %p168 = scmp.eq.s32.totalorder %s20, 1
      %p169 = por %p167, %p168
      %p170 = scmp.ne.s32.totalorder %s159, %s160
      %p171 = scmp.eq.s32.totalorder %s20, 0
      %p172 = por %p170, %p171
      %p173 = scmp.ne.s32.totalorder %s159, %s160
      %p174 = scmp.eq.s32.totalorder %s21, 1
      %p175 = por %p173, %p174
      %p177 = scmp.ne.s32.totalorder %s160, %s176
      %p178 = scmp.eq.s32.totalorder %s21, 0
      %p179 = por %p177, %p178
      %p180 = scmp.le.s32.totalorder 1, %s15
      %p181 = scmp.lt.s32.totalorder %s15, 3
      %p182 = pnand %p180, %p181
      %p183 = pneg %p182
      // Predicated region
      $region9: #{tpu_custom_call.1} parent=5 // pred_check
        _
      $region10: #{tpu_custom_call.1} parent=5 // pred_check_branch
        %185 = sbr.rel (%p182) target = $region12
      $region11: #{tpu_custom_call.1} parent=5 // pred_region
        %s186 = ssub.s32 %s15, 1
        // Predicated region
        $region13: #{tpu_custom_call.1} parent=11 // pred_check
          %p187 = pneg %p62
        $region14: #{tpu_custom_call.1} parent=11 // pred_check_branch
          %189 = sbr.rel (%p187) target = $region16
        $region15: #{tpu_custom_call.1} parent=11 // pred_region
          _
        $region16: #{tpu_custom_call.1} parent=11 // pred_fallthru
          _
        // Predicated region
        $region17: #{tpu_custom_call.1} parent=11 // pred_check
          %p190 = pneg %p83
        $region18: #{tpu_custom_call.1} parent=11 // pred_check_branch
          %192 = sbr.rel (%p190) target = $region20
        $region19: #{tpu_custom_call.1} parent=11 // pred_region
          _
        $region20: #{tpu_custom_call.1} parent=11 // pred_fallthru
          _
        // Predicated region
        $region21: #{tpu_custom_call.1} parent=11 // pred_check
          %p193 = pneg %p104
        $region22: #{tpu_custom_call.1} parent=11 // pred_check_branch
          %195 = sbr.rel (%p193) target = $region24
        $region23: #{tpu_custom_call.1} parent=11 // pred_region
          _
        $region24: #{tpu_custom_call.1} parent=11 // pred_fallthru
          _
        // Predicated region
        $region25: #{tpu_custom_call.1} parent=11 // pred_check
          %p196 = pneg %p125
        $region26: #{tpu_custom_call.1} parent=11 // pred_check_branch
          %198 = sbr.rel (%p196) target = $region28
        $region27: #{tpu_custom_call.1} parent=11 // pred_region
          _
        $region28: #{tpu_custom_call.1} parent=11 // pred_fallthru
          _
        // Predicated region
        $region29: #{tpu_custom_call.1} parent=11 // pred_check
          %p199 = pneg %p146
        $region30: #{tpu_custom_call.1} parent=11 // pred_check_branch
          %201 = sbr.rel (%p199) target = $region32
        $region31: #{tpu_custom_call.1} parent=11 // pred_region
          _
        $region32: #{tpu_custom_call.1} parent=11 // pred_fallthru
          _
      $region12: #{tpu_custom_call.1} parent=5 // pred_fallthru
        _
      %p202 = scmp.lt.s32.totalorder %s15, 2
      // Predicated region
      $region33: #{tpu_custom_call.1} parent=5 // pred_check
        %p203 = pneg %p202
      $region34: #{tpu_custom_call.1} parent=5 // pred_check_branch
        %205 = sbr.rel (%p203) target = $region36
      $region35: #{tpu_custom_call.1} parent=5 // pred_region
        // Predicated region
        $region37: #{tpu_custom_call.1} parent=35 // pred_check
          %p206 = pneg %p35
        $region38: #{tpu_custom_call.1} parent=35 // pred_check_branch
          %208 = sbr.rel (%p206) target = $region40
        $region39: #{tpu_custom_call.1} parent=35 // pred_region
          %p209 = scmp.lt.s32.totalorder %s15, 1
          %s210 = scalar_select %p209, %s15, 1
          %s211 = smul.addr %s210, 3
          %s212 = smul.addr %s211, 8
          %s213 = scalar_lea.vmem %s0, %s212
        $region40: #{tpu_custom_call.1} parent=35 // pred_fallthru
          _
      $region36: #{tpu_custom_call.1} parent=5 // pred_fallthru
        _
      %p214 = scmp.le.s32.totalorder 1, %s15
      %p215 = scmp.lt.s32.totalorder %s15, 3
      %p216 = pnand %p214, %p215
      %p217 = pneg %p216
      // Predicated region
      $region41: #{tpu_custom_call.1} parent=5 // pred_check
        _
      $region42: #{tpu_custom_call.1} parent=5 // pred_check_branch
        %219 = sbr.rel (%p216) target = $region44
      $region43: #{tpu_custom_call.1} parent=5 // pred_region
        %s220 = ssub.s32 %s15, 1
        %p221 = scmp.lt.s32.totalorder %s20, 1
        %s222 = scalar_select %p221, %s20, 1
        %s223 = smul.addr %s222, 3
        %s224 = smul.addr %s223, 8
        %s225 = scalar_lea.vmem %s0, %s224
        %p226 = pneg %p41
        %p227 = pneg %p38
        %p228 = pneg %p62
        %p229 = pneg %p59
        %p230 = pneg %p83
        %p231 = pneg %p80
        %p232 = pneg %p104
        %p233 = pneg %p101
        %p234 = pneg %p125
        %p235 = pneg %p122
        %p236 = pneg %p146
        %p237 = pneg %p143
        %p238 = pneg %p172
        %p239 = pneg %p169
        %s240 = sand.u32 %s159, 1
        %s241 = scalar_lea.sflag [#allocation3], %s240
        %s242 = sand.u32 %s159, 1
        %s243 = smul.addr %s242, 24
        %s244 = scalar_lea.vmem [#allocation2], %s243
        %p245 = scmp.lt.s32.totalorder %s20, 1
        %s246 = scalar_select %p245, %s20, 1
        %s247 = smul.addr %s246, 3
        %s248 = smul.addr %s247, 8
        %s249 = scalar_lea.vmem %s0, %s248
        %v250 = vld [vmem:[%s1] sm:$0x7]
        %s251 = scalar_lea.vmem %s1, 3
        %v252 = vld [vmem:[%s251] sm:$0x7]
        %s253 = scalar_lea.vmem %s1, 6
        %v254 = vld [vmem:[%s253] sm:$0x7]
        %s255 = scalar_lea.vmem %s1, 9
        %v256 = vld [vmem:[%s255] sm:$0x7]
        %s257 = scalar_lea.vmem %s1, 12
        %v258 = vld [vmem:[%s257] sm:$0x7]
        %v259 = vld [vmem:[%s249] sm:$0xff]
        %v260 = vld [vmem:[%s249 + $0x8] sm:$0xff]
        %v261 = vld [vmem:[%s249 + $0x10] sm:$0xff]
        %v262 = vld [vmem:[%s2] sm:$0xff]
        %263 = vrot.lane.b32.xlu0 %v259, 19
        %v264 = vpop.permute.xlu0 %263
        %265 = vrot.lane.b32.xlu0 %v260, 19
        %v266 = vpop.permute.xlu0 %265
        %267 = vrot.lane.b32.xlu0 %v261, 19
        %v268 = vpop.permute.xlu0 %267
        %v269 = vlaneseq
        %v270 = vand.u32 %v269, 127
        %vm271 = vcmp.lt.s32.totalorder %v270, 19
        %v272 = vsel %vm271, %v266, %v268
        %v273 = vsel %vm271, %v264, %v266
        %v274 = vsel %vm271, %v268, %v264
        %s275 = scalar_lea.vmem %s2, 8
        %v276 = vld [vmem:[%s275] sm:$0xff]
        %277 = vrot.lane.b32.xlu0 %v259, 18
        %v278 = vpop.permute.xlu0 %277
        %279 = vrot.lane.b32.xlu0 %v260, 18
        %v280 = vpop.permute.xlu0 %279
        %281 = vrot.lane.b32.xlu0 %v261, 18
        %v282 = vpop.permute.xlu0 %281
        %vm283 = vcmp.lt.s32.totalorder %v270, 18
        %v284 = vsel %vm283, %v280, %v282
        %v285 = vsel %vm283, %v278, %v280
        %v286 = vsel %vm283, %v282, %v278
        %vm287 = vcmask 64512
        %v289 = vsel %vm287, %v276, 0
        %291 = vmatprep.subr.mxu0 %v285
        %292 = vmatpush1.msra.mxu0 %v286
        %293 = vmatprep.subr.mxu0 0.0
        %294 = vmatpush1.msra.mxu0 0.0
        %295 = vmatprep.subr.mxu0 0.0
        %296 = vmatpush1.msra.mxu0 0.0
        %297 = vmatprep.subr.mxu0 0.0
        %298 = vmatpush1.msra.mxu0 0.0
        %299 = vmatprep.subr.mxu0 0.0
        %300 = vmatpush1.msra.mxu0 0.0
        %301 = vmatprep.subr.mxu0 0.0
        %302 = vmatpush1.msra.mxu0 0.0
        %303 = vmatprep.subr.mxu0 0.0
        %304 = vmatpush1.msra.mxu0 0.0
        %305 = vmatprep.subr.mxu0 0.0
        %306 = vmatpush1.msra.mxu0 0.0
        %307 = vmatprep.subr.mxu0 0.0
        %308 = vmatpush1.msra.mxu0 0.0
        %309 = vmatprep.subr.mxu0 0.0
        %310 = vmatpush1.msra.mxu0 0.0
        %311 = vmatprep.subr.mxu0 0.0
        %312 = vmatpush1.msra.mxu0 0.0
        %313 = vmatprep.subr.mxu0 0.0
        %314 = vmatpush1.msra.mxu0 0.0
        %315 = vmatprep.subr.mxu0 0.0
        %316 = vmatpush1.msra.mxu0 0.0
        %317 = vmatprep.subr.mxu0 0.0
        %318 = vmatpush1.msra.mxu0 0.0
        %319 = vmatprep.subr.mxu0 0.0
        %320 = vmatpush1.msra.mxu0 0.0
        %321 = vmatprep.subr.mxu0 0.0
        %322 = vmatpush1.msra.mxu0 0.0
        %323 = vmatprep.subr.mxu0 0.0
        %324 = vmatpush1.msra.mxu0 0.0
        %325 = vmatprep.subr.mxu0 0.0
        %326 = vmatpush1.msra.mxu0 0.0
        %327 = vmatprep.subr.mxu0 0.0
        %328 = vmatpush1.msra.mxu0 0.0
        %329 = vmatprep.subr.mxu0 0.0
        %330 = vmatpush1.msra.mxu0 0.0
        %331 = vmatprep.subr.mxu0 0.0
        %332 = vmatpush1.msra.mxu0 0.0
        %333 = vmatprep.subr.mxu0 0.0
        %334 = vmatpush1.msra.mxu0 0.0
        %335 = vmatprep.subr.mxu0 0.0
        %336 = vmatpush1.msra.mxu0 0.0
        %337 = vmatprep.subr.mxu0 0.0
        %338 = vmatpush1.msra.mxu0 0.0
        %339 = vmatprep.subr.mxu0 0.0
        %340 = vmatpush1.msra.mxu0 0.0
        %341 = vmatprep.subr.mxu0 0.0
        %342 = vmatpush1.msra.mxu0 0.0
        %343 = vmatprep.subr.mxu0 0.0
        %344 = vmatpush1.msra.mxu0 0.0
        %345 = vmatprep.subr.mxu0 0.0
        %346 = vmatpush1.msra.mxu0 0.0
        %347 = vmatprep.subr.mxu0 0.0
        %348 = vmatpush1.msra.mxu0 0.0
        %349 = vmatprep.subr.mxu0 0.0
        %350 = vmatpush1.msra.mxu0 0.0
        %351 = vmatprep.subr.mxu0 0.0
        %352 = vmatpush1.msra.mxu0 0.0
        %353 = vmatprep.subr.mxu0 0.0
        %354 = vmatpush1.msra.mxu0 0.0
        %355 = vmatprep.mubr.f32.mxu0 0.0
        %356 = vmatmul.mubr.f32.gmra.mrb[0].mxu0 %v289
        %v357 = vpop.f32.mrb[0].mxu0
        %v358 = vadd.f32 0.0, %v357
        %v359 = vpop.f32.mrb[0].mxu0
        %v360 = vadd.f32 0.0, %v359
        %361 = vdwg.mxu0
        %362 = vmatprep.subr.mxu0 0.0
        %363 = vmatpush1.msra.mxu0 %v284
        %364 = vmatprep.subr.mxu0 0.0
        %365 = vmatpush1.msra.mxu0 0.0
        %366 = vmatprep.subr.mxu0 0.0
        %367 = vmatpush1.msra.mxu0 0.0
        %368 = vmatprep.subr.mxu0 0.0
        %369 = vmatpush1.msra.mxu0 0.0
        %370 = vmatprep.subr.mxu0 0.0
        %371 = vmatpush1.msra.mxu0 0.0
        %372 = vmatprep.subr.mxu0 0.0
        %373 = vmatpush1.msra.mxu0 0.0
        %374 = vmatprep.subr.mxu0 0.0
        %375 = vmatpush1.msra.mxu0 0.0
        %376 = vmatprep.subr.mxu0 0.0
        %377 = vmatpush1.msra.mxu0 0.0
        %378 = vmatprep.subr.mxu0 0.0
        %379 = vmatpush1.msra.mxu0 0.0
        %380 = vmatprep.subr.mxu0 0.0
        %381 = vmatpush1.msra.mxu0 0.0
        %382 = vmatprep.subr.mxu0 0.0
        %383 = vmatpush1.msra.mxu0 0.0
        %384 = vmatprep.subr.mxu0 0.0
        %385 = vmatpush1.msra.mxu0 0.0
        %386 = vmatprep.subr.mxu0 0.0
        %387 = vmatpush1.msra.mxu0 0.0
        %388 = vmatprep.subr.mxu0 0.0
        %389 = vmatpush1.msra.mxu0 0.0
        %390 = vmatprep.subr.mxu0 0.0
        %391 = vmatpush1.msra.mxu0 0.0
        %392 = vmatprep.subr.mxu0 0.0
        %393 = vmatpush1.msra.mxu0 0.0
        %394 = vmatprep.subr.mxu0 0.0
        %395 = vmatpush1.msra.mxu0 0.0
        %396 = vmatprep.subr.mxu0 0.0
        %397 = vmatpush1.msra.mxu0 0.0
        %398 = vmatprep.subr.mxu0 0.0
        %399 = vmatpush1.msra.mxu0 0.0
        %400 = vmatprep.subr.mxu0 0.0
        %401 = vmatpush1.msra.mxu0 0.0
        %402 = vmatprep.subr.mxu0 0.0
        %403 = vmatpush1.msra.mxu0 0.0
        %404 = vmatprep.subr.mxu0 0.0
        %405 = vmatpush1.msra.mxu0 0.0
        %406 = vmatprep.subr.mxu0 0.0
        %407 = vmatpush1.msra.mxu0 0.0
        %408 = vmatprep.subr.mxu0 0.0
        %409 = vmatpush1.msra.mxu0 0.0
        %410 = vmatprep.subr.mxu0 0.0
        %411 = vmatpush1.msra.mxu0 0.0
        %412 = vmatprep.subr.mxu0 0.0
        %413 = vmatpush1.msra.mxu0 0.0
        %414 = vmatprep.subr.mxu0 0.0
        %415 = vmatpush1.msra.mxu0 0.0
        %416 = vmatprep.subr.mxu0 0.0
        %417 = vmatpush1.msra.mxu0 0.0
        %418 = vmatprep.subr.mxu0 0.0
        %419 = vmatpush1.msra.mxu0 0.0
        %420 = vmatprep.subr.mxu0 0.0
        %421 = vmatpush1.msra.mxu0 0.0
        %422 = vmatprep.subr.mxu0 0.0
        %423 = vmatpush1.msra.mxu0 0.0
        %424 = vmatprep.subr.mxu0 0.0
        %425 = vmatpush1.msra.mxu0 0.0
        %426 = vmatprep.mubr.f32.mxu0 0.0
        %427 = vmatmul.mubr.f32.gmra.mrb[0].mxu0 %v289
        %v428 = vpop.f32.mrb[0].mxu0
        %v429 = vadd.f32 0.0, %v428
        %v430 = vpop.f32.mrb[0].mxu0
        %431 = vdwg.mxu0
        %v433 = vsel %vm287, %v262, 0
        %435 = vmatprep.subr.mxu0 %v273
        %436 = vmatpush1.msra.mxu0 %v274
        %437 = vmatprep.subr.mxu0 0.0
        %438 = vmatpush1.msra.mxu0 0.0
        %439 = vmatprep.subr.mxu0 0.0
        %440 = vmatpush1.msra.mxu0 0.0
        %441 = vmatprep.subr.mxu0 0.0
        %442 = vmatpush1.msra.mxu0 0.0
        %443 = vmatprep.subr.mxu0 0.0
        %444 = vmatpush1.msra.mxu0 0.0
        %445 = vmatprep.subr.mxu0 0.0
        %446 = vmatpush1.msra.mxu0 0.0
        %447 = vmatprep.subr.mxu0 0.0
        %448 = vmatpush1.msra.mxu0 0.0
        %449 = vmatprep.subr.mxu0 0.0
        %450 = vmatpush1.msra.mxu0 0.0
        %451 = vmatprep.subr.mxu0 0.0
        %452 = vmatpush1.msra.mxu0 0.0
        %453 = vmatprep.subr.mxu0 0.0
        %454 = vmatpush1.msra.mxu0 0.0
        %455 = vmatprep.subr.mxu0 0.0
        %456 = vmatpush1.msra.mxu0 0.0
        %457 = vmatprep.subr.mxu0 0.0
        %458 = vmatpush1.msra.mxu0 0.0
        %459 = vmatprep.subr.mxu0 0.0
        %460 = vmatpush1.msra.mxu0 0.0
        %461 = vmatprep.subr.mxu0 0.0
        %462 = vmatpush1.msra.mxu0 0.0
        %463 = vmatprep.subr.mxu0 0.0
        %464 = vmatpush1.msra.mxu0 0.0
        %465 = vmatprep.subr.mxu0 0.0
        %466 = vmatpush1.msra.mxu0 0.0
        %467 = vmatprep.subr.mxu0 0.0
        %468 = vmatpush1.msra.mxu0 0.0
        %469 = vmatprep.subr.mxu0 0.0
        %470 = vmatpush1.msra.mxu0 0.0
        %471 = vmatprep.subr.mxu0 0.0
        %472 = vmatpush1.msra.mxu0 0.0
        %473 = vmatprep.subr.mxu0 0.0
        %474 = vmatpush1.msra.mxu0 0.0
        %475 = vmatprep.subr.mxu0 0.0
        %476 = vmatpush1.msra.mxu0 0.0
        %477 = vmatprep.subr.mxu0 0.0
        %478 = vmatpush1.msra.mxu0 0.0
        %479 = vmatprep.subr.mxu0 0.0
        %480 = vmatpush1.msra.mxu0 0.0
        %481 = vmatprep.subr.mxu0 0.0
        %482 = vmatpush1.msra.mxu0 0.0
        %483 = vmatprep.subr.mxu0 0.0
        %484 = vmatpush1.msra.mxu0 0.0
        %485 = vmatprep.subr.mxu0 0.0
        %486 = vmatpush1.msra.mxu0 0.0
        %487 = vmatprep.subr.mxu0 0.0
        %488 = vmatpush1.msra.mxu0 0.0
        %489 = vmatprep.subr.mxu0 0.0
        %490 = vmatpush1.msra.mxu0 0.0
        %491 = vmatprep.subr.mxu0 0.0
        %492 = vmatpush1.msra.mxu0 0.0
        %493 = vmatprep.subr.mxu0 0.0
        %494 = vmatpush1.msra.mxu0 0.0
        %495 = vmatprep.subr.mxu0 0.0
        %496 = vmatpush1.msra.mxu0 0.0
        %497 = vmatprep.subr.mxu0 0.0
        %498 = vmatpush1.msra.mxu0 0.0
        %499 = vmatprep.mubr.f32.mxu0 0.0
        %500 = vmatmul.mubr.f32.gmra.mrb[0].mxu0 %v433
        %v501 = vpop.f32.mrb[0].mxu0
        %v502 = vadd.f32 %v358, %v501
        %v503 = vpop.f32.mrb[0].mxu0
        %v504 = vadd.f32 %v360, %v503
        %505 = vdwg.mxu0
        %506 = vmatprep.subr.mxu0 0.0
        %507 = vmatpush1.msra.mxu0 %v272
        %508 = vmatprep.subr.mxu0 0.0
        %509 = vmatpush1.msra.mxu0 0.0
        %510 = vmatprep.subr.mxu0 0.0
        %511 = vmatpush1.msra.mxu0 0.0
        %512 = vmatprep.subr.mxu0 0.0
        %513 = vmatpush1.msra.mxu0 0.0
        %514 = vmatprep.subr.mxu0 0.0
        %515 = vmatpush1.msra.mxu0 0.0
        %516 = vmatprep.subr.mxu0 0.0
        %517 = vmatpush1.msra.mxu0 0.0
        %518 = vmatprep.subr.mxu0 0.0
        %519 = vmatpush1.msra.mxu0 0.0
        %520 = vmatprep.subr.mxu0 0.0
        %521 = vmatpush1.msra.mxu0 0.0
        %522 = vmatprep.subr.mxu0 0.0
        %523 = vmatpush1.msra.mxu0 0.0
        %524 = vmatprep.subr.mxu0 0.0
        %525 = vmatpush1.msra.mxu0 0.0
        %526 = vmatprep.subr.mxu0 0.0
        %527 = vmatpush1.msra.mxu0 0.0
        %528 = vmatprep.subr.mxu0 0.0
        %529 = vmatpush1.msra.mxu0 0.0
        %530 = vmatprep.subr.mxu0 0.0
        %531 = vmatpush1.msra.mxu0 0.0
        %532 = vmatprep.subr.mxu0 0.0
        %533 = vmatpush1.msra.mxu0 0.0
        %534 = vmatprep.subr.mxu0 0.0
        %535 = vmatpush1.msra.mxu0 0.0
        %536 = vmatprep.subr.mxu0 0.0
        %537 = vmatpush1.msra.mxu0 0.0
        %538 = vmatprep.subr.mxu0 0.0
        %539 = vmatpush1.msra.mxu0 0.0
        %540 = vmatprep.subr.mxu0 0.0
        %541 = vmatpush1.msra.mxu0 0.0
        %542 = vmatprep.subr.mxu0 0.0
        %543 = vmatpush1.msra.mxu0 0.0
        %544 = vmatprep.subr.mxu0 0.0
        %545 = vmatpush1.msra.mxu0 0.0
        %546 = vmatprep.subr.mxu0 0.0
        %547 = vmatpush1.msra.mxu0 0.0
        %548 = vmatprep.subr.mxu0 0.0
        %549 = vmatpush1.msra.mxu0 0.0
        %550 = vmatprep.subr.mxu0 0.0
        %551 = vmatpush1.msra.mxu0 0.0
        %552 = vmatprep.subr.mxu0 0.0
        %553 = vmatpush1.msra.mxu0 0.0
        %554 = vmatprep.subr.mxu0 0.0
        %555 = vmatpush1.msra.mxu0 0.0
        %556 = vmatprep.subr.mxu0 0.0
        %557 = vmatpush1.msra.mxu0 0.0
        %558 = vmatprep.subr.mxu0 0.0
        %559 = vmatpush1.msra.mxu0 0.0
        %560 = vmatprep.subr.mxu0 0.0
        %561 = vmatpush1.msra.mxu0 0.0
        %562 = vmatprep.subr.mxu0 0.0
        %563 = vmatpush1.msra.mxu0 0.0
        %564 = vmatprep.subr.mxu0 0.0
        %565 = vmatpush1.msra.mxu0 0.0
        %566 = vmatprep.subr.mxu0 0.0
        %567 = vmatpush1.msra.mxu0 0.0
        %568 = vmatprep.subr.mxu0 0.0
        %569 = vmatpush1.msra.mxu0 0.0
        %570 = vmatprep.mubr.f32.mxu0 0.0
        %571 = vmatmul.mubr.f32.gmra.mrb[0].mxu0 %v433
        %v572 = vpop.f32.mrb[0].mxu0
        %v573 = vadd.f32 %v429, %v572
        %v574 = vpop.f32.mrb[0].mxu0
        %575 = vdwg.mxu0
        %s576 = scalar_lea.vmem %s2, 16
        %v577 = vld [vmem:[%s576] sm:$0xff]
        %578 = vrot.lane.b32.xlu0 %v259, 17
        %v579 = vpop.permute.xlu0 %578
        %580 = vrot.lane.b32.xlu0 %v260, 17
        %v581 = vpop.permute.xlu0 %580
        %582 = vrot.lane.b32.xlu0 %v261, 17
        %v583 = vpop.permute.xlu0 %582
        %vm584 = vcmp.lt.s32.totalorder %v270, 17
        %v585 = vsel %vm584, %v581, %v583
        %v586 = vsel %vm584, %v579, %v581
        %v587 = vsel %vm584, %v583, %v579
        %v589 = vsel %vm287, %v577, 0
        %591 = vmatprep.subr.mxu0 %v586
        %592 = vmatpush1.msra.mxu0 %v587
        %593 = vmatprep.subr.mxu0 0.0
        %594 = vmatpush1.msra.mxu0 0.0
        %595 = vmatprep.subr.mxu0 0.0
        %596 = vmatpush1.msra.mxu0 0.0
        %597 = vmatprep.subr.mxu0 0.0
        %598 = vmatpush1.msra.mxu0 0.0
        %599 = vmatprep.subr.mxu0 0.0
        %600 = vmatpush1.msra.mxu0 0.0
        %601 = vmatprep.subr.mxu0 0.0
        %602 = vmatpush1.msra.mxu0 0.0
        %603 = vmatprep.subr.mxu0 0.0
        %604 = vmatpush1.msra.mxu0 0.0
        %605 = vmatprep.subr.mxu0 0.0
        %606 = vmatpush1.msra.mxu0 0.0
        %607 = vmatprep.subr.mxu0 0.0
        %608 = vmatpush1.msra.mxu0 0.0
        %609 = vmatprep.subr.mxu0 0.0
        %610 = vmatpush1.msra.mxu0 0.0
        %611 = vmatprep.subr.mxu0 0.0
        %612 = vmatpush1.msra.mxu0 0.0
        %613 = vmatprep.subr.mxu0 0.0
        %614 = vmatpush1.msra.mxu0 0.0
        %615 = vmatprep.subr.mxu0 0.0
        %616 = vmatpush1.msra.mxu0 0.0
        %617 = vmatprep.subr.mxu0 0.0
        %618 = vmatpush1.msra.mxu0 0.0
        %619 = vmatprep.subr.mxu0 0.0
        %620 = vmatpush1.msra.mxu0 0.0
        %621 = vmatprep.subr.mxu0 0.0
        %622 = vmatpush1.msra.mxu0 0.0
        %623 = vmatprep.subr.mxu0 0.0
        %624 = vmatpush1.msra.mxu0 0.0
        %625 = vmatprep.subr.mxu0 0.0
        %626 = vmatpush1.msra.mxu0 0.0
        %627 = vmatprep.subr.mxu0 0.0
        %628 = vmatpush1.msra.mxu0 0.0
        %629 = vmatprep.subr.mxu0 0.0
        %630 = vmatpush1.msra.mxu0 0.0
        %631 = vmatprep.subr.mxu0 0.0
        %632 = vmatpush1.msra.mxu0 0.0
        %633 = vmatprep.subr.mxu0 0.0
        %634 = vmatpush1.msra.mxu0 0.0
        %635 = vmatprep.subr.mxu0 0.0
        %636 = vmatpush1.msra.mxu0 0.0
        %637 = vmatprep.subr.mxu0 0.0
        %638 = vmatpush1.msra.mxu0 0.0
        %639 = vmatprep.subr.mxu0 0.0
        %640 = vmatpush1.msra.mxu0 0.0
        %641 = vmatprep.subr.mxu0 0.0
        %642 = vmatpush1.msra.mxu0 0.0
        %643 = vmatprep.subr.mxu0 0.0
        %644 = vmatpush1.msra.mxu0 0.0
        %645 = vmatprep.subr.mxu0 0.0
        %646 = vmatpush1.msra.mxu0 0.0
        %647 = vmatprep.subr.mxu0 0.0
        %648 = vmatpush1.msra.mxu0 0.0
        %649 = vmatprep.subr.mxu0 0.0
        %650 = vmatpush1.msra.mxu0 0.0
        %651 = vmatprep.subr.mxu0 0.0
        %652 = vmatpush1.msra.mxu0 0.0
        %653 = vmatprep.subr.mxu0 0.0
        %654 = vmatpush1.msra.mxu0 0.0
        %655 = vmatprep.mubr.f32.mxu0 0.0
        %656 = vmatmul.mubr.f32.gmra.mrb[0].mxu0 %v589
        %v657 = vpop.f32.mrb[0].mxu0
        %v658 = vadd.f32 0.0, %v657
        %v659 = vpop.f32.mrb[0].mxu0
        %v660 = vadd.f32 0.0, %v659
        %661 = vdwg.mxu0
        %662 = vmatprep.subr.mxu0 0.0
        %663 = vmatpush1.msra.mxu0 %v585
        %664 = vmatprep.subr.mxu0 0.0
        %665 = vmatpush1.msra.mxu0 0.0
        %666 = vmatprep.subr.mxu0 0.0
        %667 = vmatpush1.msra.mxu0 0.0
        %668 = vmatprep.subr.mxu0 0.0
        %669 = vmatpush1.msra.mxu0 0.0
        %670 = vmatprep.subr.mxu0 0.0
        %671 = vmatpush1.msra.mxu0 0.0
        %672 = vmatprep.subr.mxu0 0.0
        %673 = vmatpush1.msra.mxu0 0.0
        %674 = vmatprep.subr.mxu0 0.0
        %675 = vmatpush1.msra.mxu0 0.0
        %676 = vmatprep.subr.mxu0 0.0
        %677 = vmatpush1.msra.mxu0 0.0
        %678 = vmatprep.subr.mxu0 0.0
        %679 = vmatpush1.msra.mxu0 0.0
        %680 = vmatprep.subr.mxu0 0.0
        %681 = vmatpush1.msra.mxu0 0.0
        %682 = vmatprep.subr.mxu0 0.0
        %683 = vmatpush1.msra.mxu0 0.0
        %684 = vmatprep.subr.mxu0 0.0
        %685 = vmatpush1.msra.mxu0 0.0
        %686 = vmatprep.subr.mxu0 0.0
        %687 = vmatpush1.msra.mxu0 0.0
        %688 = vmatprep.subr.mxu0 0.0
        %689 = vmatpush1.msra.mxu0 0.0
        %690 = vmatprep.subr.mxu0 0.0
        %691 = vmatpush1.msra.mxu0 0.0
        %692 = vmatprep.subr.mxu0 0.0
        %693 = vmatpush1.msra.mxu0 0.0
        %694 = vmatprep.subr.mxu0 0.0
        %695 = vmatpush1.msra.mxu0 0.0
        %696 = vmatprep.subr.mxu0 0.0
        %697 = vmatpush1.msra.mxu0 0.0
        %698 = vmatprep.subr.mxu0 0.0
        %699 = vmatpush1.msra.mxu0 0.0
        %700 = vmatprep.subr.mxu0 0.0
        %701 = vmatpush1.msra.mxu0 0.0
        %702 = vmatprep.subr.mxu0 0.0
        %703 = vmatpush1.msra.mxu0 0.0
        %704 = vmatprep.subr.mxu0 0.0
        %705 = vmatpush1.msra.mxu0 0.0
        %706 = vmatprep.subr.mxu0 0.0
        %707 = vmatpush1.msra.mxu0 0.0
        %708 = vmatprep.subr.mxu0 0.0
        %709 = vmatpush1.msra.mxu0 0.0
        %710 = vmatprep.subr.mxu0 0.0
        %711 = vmatpush1.msra.mxu0 0.0
        %712 = vmatprep.subr.mxu0 0.0
        %713 = vmatpush1.msra.mxu0 0.0
        %714 = vmatprep.subr.mxu0 0.0
        %715 = vmatpush1.msra.mxu0 0.0
        %716 = vmatprep.subr.mxu0 0.0
        %717 = vmatpush1.msra.mxu0 0.0
        %718 = vmatprep.subr.mxu0 0.0
        %719 = vmatpush1.msra.mxu0 0.0
        %720 = vmatprep.subr.mxu0 0.0
        %721 = vmatpush1.msra.mxu0 0.0
        %722 = vmatprep.subr.mxu0 0.0
        %723 = vmatpush1.msra.mxu0 0.0
        %724 = vmatprep.subr.mxu0 0.0
        %725 = vmatpush1.msra.mxu0 0.0
        %726 = vmatprep.mubr.f32.mxu0 0.0
        %727 = vmatmul.mubr.f32.gmra.mrb[0].mxu0 %v589
        %v728 = vpop.f32.mrb[0].mxu0
        %v729 = vadd.f32 0.0, %v728
        %v730 = vpop.f32.mrb[0].mxu0
        %731 = vdwg.mxu0
        %v732 = vadd.f32 %v502, %v658
        %v733 = vadd.f32 %v504, %v660
        %v734 = vadd.f32 %v573, %v729
        %s735 = scalar_lea.vmem %s2, 24
        %v736 = vld [vmem:[%s735] sm:$0xff]
        %737 = vrot.lane.b32.xlu0 %v259, 1
        %v738 = vpop.permute.xlu0 %737
        %739 = vrot.lane.b32.xlu0 %v260, 1
        %v740 = vpop.permute.xlu0 %739
        %741 = vrot.lane.b32.xlu0 %v261, 1
        %v742 = vpop.permute.xlu0 %741
        %vm743 = vcmp.lt.s32.totalorder %v270, 1
        %v744 = vsel %vm743, %v740, %v742
        %v745 = vsel %vm743, %v738, %v740
        %v746 = vsel %vm743, %v742, %v738
        %v748 = vsel %vm287, %v736, 0
        %750 = vmatprep.subr.mxu0 %v745
        %751 = vmatpush1.msra.mxu0 %v746
        %752 = vmatprep.subr.mxu0 0.0
        %753 = vmatpush1.msra.mxu0 0.0
        %754 = vmatprep.subr.mxu0 0.0
        %755 = vmatpush1.msra.mxu0 0.0
        %756 = vmatprep.subr.mxu0 0.0
        %757 = vmatpush1.msra.mxu0 0.0
        %758 = vmatprep.subr.mxu0 0.0
        %759 = vmatpush1.msra.mxu0 0.0
        %760 = vmatprep.subr.mxu0 0.0
        %761 = vmatpush1.msra.mxu0 0.0
        %762 = vmatprep.subr.mxu0 0.0
        %763 = vmatpush1.msra.mxu0 0.0
        %764 = vmatprep.subr.mxu0 0.0
        %765 = vmatpush1.msra.mxu0 0.0
        %766 = vmatprep.subr.mxu0 0.0
        %767 = vmatpush1.msra.mxu0 0.0
        %768 = vmatprep.subr.mxu0 0.0
        %769 = vmatpush1.msra.mxu0 0.0
        %770 = vmatprep.subr.mxu0 0.0
        %771 = vmatpush1.msra.mxu0 0.0
        %772 = vmatprep.subr.mxu0 0.0
        %773 = vmatpush1.msra.mxu0 0.0
        %774 = vmatprep.subr.mxu0 0.0
        %775 = vmatpush1.msra.mxu0 0.0
        %776 = vmatprep.subr.mxu0 0.0
        %777 = vmatpush1.msra.mxu0 0.0
        %778 = vmatprep.subr.mxu0 0.0
        %779 = vmatpush1.msra.mxu0 0.0
        %780 = vmatprep.subr.mxu0 0.0
        %781 = vmatpush1.msra.mxu0 0.0
        %782 = vmatprep.subr.mxu0 0.0
        %783 = vmatpush1.msra.mxu0 0.0
        %784 = vmatprep.subr.mxu0 0.0
        %785 = vmatpush1.msra.mxu0 0.0
        %786 = vmatprep.subr.mxu0 0.0
        %787 = vmatpush1.msra.mxu0 0.0
        %788 = vmatprep.subr.mxu0 0.0
        %789 = vmatpush1.msra.mxu0 0.0
        %790 = vmatprep.subr.mxu0 0.0
        %791 = vmatpush1.msra.mxu0 0.0
        %792 = vmatprep.subr.mxu0 0.0
        %793 = vmatpush1.msra.mxu0 0.0
        %794 = vmatprep.subr.mxu0 0.0
        %795 = vmatpush1.msra.mxu0 0.0
        %796 = vmatprep.subr.mxu0 0.0
        %797 = vmatpush1.msra.mxu0 0.0
        %798 = vmatprep.subr.mxu0 0.0
        %799 = vmatpush1.msra.mxu0 0.0
        %800 = vmatprep.subr.mxu0 0.0
        %801 = vmatpush1.msra.mxu0 0.0
        %802 = vmatprep.subr.mxu0 0.0
        %803 = vmatpush1.msra.mxu0 0.0
        %804 = vmatprep.subr.mxu0 0.0
        %805 = vmatpush1.msra.mxu0 0.0
        %806 = vmatprep.subr.mxu0 0.0
        %807 = vmatpush1.msra.mxu0 0.0
        %808 = vmatprep.subr.mxu0 0.0
        %809 = vmatpush1.msra.mxu0 0.0
        %810 = vmatprep.subr.mxu0 0.0
        %811 = vmatpush1.msra.mxu0 0.0
        %812 = vmatprep.subr.mxu0 0.0
        %813 = vmatpush1.msra.mxu0 0.0
        %814 = vmatprep.mubr.f32.mxu0 0.0
        %815 = vmatmul.mubr.f32.gmra.mrb[0].mxu0 %v748
        %v816 = vpop.f32.mrb[0].mxu0
        %v817 = vadd.f32 0.0, %v816
        %v818 = vpop.f32.mrb[0].mxu0
        %v819 = vadd.f32 0.0, %v818
        %820 = vdwg.mxu0
        %821 = vmatprep.subr.mxu0 0.0
        %822 = vmatpush1.msra.mxu0 %v744
        %823 = vmatprep.subr.mxu0 0.0
        %824 = vmatpush1.msra.mxu0 0.0
        %825 = vmatprep.subr.mxu0 0.0
        %826 = vmatpush1.msra.mxu0 0.0
        %827 = vmatprep.subr.mxu0 0.0
        %828 = vmatpush1.msra.mxu0 0.0
        %829 = vmatprep.subr.mxu0 0.0
        %830 = vmatpush1.msra.mxu0 0.0
        %831 = vmatprep.subr.mxu0 0.0
        %832 = vmatpush1.msra.mxu0 0.0
        %833 = vmatprep.subr.mxu0 0.0
        %834 = vmatpush1.msra.mxu0 0.0
        %835 = vmatprep.subr.mxu0 0.0
        %836 = vmatpush1.msra.mxu0 0.0
        %837 = vmatprep.subr.mxu0 0.0
        %838 = vmatpush1.msra.mxu0 0.0
        %839 = vmatprep.subr.mxu0 0.0
        %840 = vmatpush1.msra.mxu0 0.0
        %841 = vmatprep.subr.mxu0 0.0
        %842 = vmatpush1.msra.mxu0 0.0
        %843 = vmatprep.subr.mxu0 0.0
        %844 = vmatpush1.msra.mxu0 0.0
        %845 = vmatprep.subr.mxu0 0.0
        %846 = vmatpush1.msra.mxu0 0.0
        %847 = vmatprep.subr.mxu0 0.0
        %848 = vmatpush1.msra.mxu0 0.0
        %849 = vmatprep.subr.mxu0 0.0
        %850 = vmatpush1.msra.mxu0 0.0
        %851 = vmatprep.subr.mxu0 0.0
        %852 = vmatpush1.msra.mxu0 0.0
        %853 = vmatprep.subr.mxu0 0.0
        %854 = vmatpush1.msra.mxu0 0.0
        %855 = vmatprep.subr.mxu0 0.0
        %856 = vmatpush1.msra.mxu0 0.0
        %857 = vmatprep.subr.mxu0 0.0
        %858 = vmatpush1.msra.mxu0 0.0
        %859 = vmatprep.subr.mxu0 0.0
        %860 = vmatpush1.msra.mxu0 0.0
        %861 = vmatprep.subr.mxu0 0.0
        %862 = vmatpush1.msra.mxu0 0.0
        %863 = vmatprep.subr.mxu0 0.0
        %864 = vmatpush1.msra.mxu0 0.0
        %865 = vmatprep.subr.mxu0 0.0
        %866 = vmatpush1.msra.mxu0 0.0
        %867 = vmatprep.subr.mxu0 0.0
        %868 = vmatpush1.msra.mxu0 0.0
        %869 = vmatprep.subr.mxu0 0.0
        %870 = vmatpush1.msra.mxu0 0.0
        %871 = vmatprep.subr.mxu0 0.0
        %872 = vmatpush1.msra.mxu0 0.0
        %873 = vmatprep.subr.mxu0 0.0
        %874 = vmatpush1.msra.mxu0 0.0
        %875 = vmatprep.subr.mxu0 0.0
        %876 = vmatpush1.msra.mxu0 0.0
        %877 = vmatprep.subr.mxu0 0.0
        %878 = vmatpush1.msra.mxu0 0.0
        %879 = vmatprep.subr.mxu0 0.0
        %880 = vmatpush1.msra.mxu0 0.0
        %881 = vmatprep.subr.mxu0 0.0
        %882 = vmatpush1.msra.mxu0 0.0
        %883 = vmatprep.subr.mxu0 0.0
        %884 = vmatpush1.msra.mxu0 0.0
        %885 = vmatprep.mubr.f32.mxu0 0.0
        %886 = vmatmul.mubr.f32.gmra.mrb[0].mxu0 %v748
        %v887 = vpop.f32.mrb[0].mxu0
        %v888 = vadd.f32 0.0, %v887
        %v889 = vpop.f32.mrb[0].mxu0
        %890 = vdwg.mxu0
        %v891 = vadd.f32 %v732, %v817
        %v892 = vadd.f32 %v733, %v819
        %v893 = vadd.f32 %v734, %v888
        %s894 = scalar_lea.vmem %s2, 32
        %v895 = vld [vmem:[%s894] sm:$0xff]
        %v897 = vsel %vm287, %v895, 0
        %899 = vmatprep.subr.mxu0 %v260
        %900 = vmatpush1.msra.mxu0 %v259
        %901 = vmatprep.subr.mxu0 0.0
        %902 = vmatpush1.msra.mxu0 0.0
        %903 = vmatprep.subr.mxu0 0.0
        %904 = vmatpush1.msra.mxu0 0.0
        %905 = vmatprep.subr.mxu0 0.0
        %906 = vmatpush1.msra.mxu0 0.0
        %907 = vmatprep.subr.mxu0 0.0
        %908 = vmatpush1.msra.mxu0 0.0
        %909 = vmatprep.subr.mxu0 0.0
        %910 = vmatpush1.msra.mxu0 0.0
        %911 = vmatprep.subr.mxu0 0.0
        %912 = vmatpush1.msra.mxu0 0.0
        %913 = vmatprep.subr.mxu0 0.0
        %914 = vmatpush1.msra.mxu0 0.0
        %915 = vmatprep.subr.mxu0 0.0
        %916 = vmatpush1.msra.mxu0 0.0
        %917 = vmatprep.subr.mxu0 0.0
        %918 = vmatpush1.msra.mxu0 0.0
        %919 = vmatprep.subr.mxu0 0.0
        %920 = vmatpush1.msra.mxu0 0.0
        %921 = vmatprep.subr.mxu0 0.0
        %922 = vmatpush1.msra.mxu0 0.0
        %923 = vmatprep.subr.mxu0 0.0
        %924 = vmatpush1.msra.mxu0 0.0
        %925 = vmatprep.subr.mxu0 0.0
        %926 = vmatpush1.msra.mxu0 0.0
        %927 = vmatprep.subr.mxu0 0.0
        %928 = vmatpush1.msra.mxu0 0.0
        %929 = vmatprep.subr.mxu0 0.0
        %930 = vmatpush1.msra.mxu0 0.0
        %931 = vmatprep.subr.mxu0 0.0
        %932 = vmatpush1.msra.mxu0 0.0
        %933 = vmatprep.subr.mxu0 0.0
        %934 = vmatpush1.msra.mxu0 0.0
        %935 = vmatprep.subr.mxu0 0.0
        %936 = vmatpush1.msra.mxu0 0.0
        %937 = vmatprep.subr.mxu0 0.0
        %938 = vmatpush1.msra.mxu0 0.0
        %939 = vmatprep.subr.mxu0 0.0
        %940 = vmatpush1.msra.mxu0 0.0
        %941 = vmatprep.subr.mxu0 0.0
        %942 = vmatpush1.msra.mxu0 0.0
        %943 = vmatprep.subr.mxu0 0.0
        %944 = vmatpush1.msra.mxu0 0.0
        %945 = vmatprep.subr.mxu0 0.0
        %946 = vmatpush1.msra.mxu0 0.0
        %947 = vmatprep.subr.mxu0 0.0
        %948 = vmatpush1.msra.mxu0 0.0
        %949 = vmatprep.subr.mxu0 0.0
        %950 = vmatpush1.msra.mxu0 0.0
        %951 = vmatprep.subr.mxu0 0.0
        %952 = vmatpush1.msra.mxu0 0.0
        %953 = vmatprep.subr.mxu0 0.0
        %954 = vmatpush1.msra.mxu0 0.0
        %955 = vmatprep.subr.mxu0 0.0
        %956 = vmatpush1.msra.mxu0 0.0
        %957 = vmatprep.subr.mxu0 0.0
        %958 = vmatpush1.msra.mxu0 0.0
        %959 = vmatprep.subr.mxu0 0.0
        %960 = vmatpush1.msra.mxu0 0.0
        %961 = vmatprep.subr.mxu0 0.0
        %962 = vmatpush1.msra.mxu0 0.0
        %963 = vmatprep.mubr.f32.mxu0 0.0
        %964 = vmatmul.mubr.f32.gmra.mrb[0].mxu0 %v897
        %v965 = vpop.f32.mrb[0].mxu0
        %v966 = vadd.f32 0.0, %v965
        %v967 = vpop.f32.mrb[0].mxu0
        %v968 = vadd.f32 0.0, %v967
        %969 = vdwg.mxu0
        %970 = vmatprep.subr.mxu0 0.0
        %971 = vmatpush1.msra.mxu0 %v261
        %972 = vmatprep.subr.mxu0 0.0
        %973 = vmatpush1.msra.mxu0 0.0
        %974 = vmatprep.subr.mxu0 0.0
        %975 = vmatpush1.msra.mxu0 0.0
        %976 = vmatprep.subr.mxu0 0.0
        %977 = vmatpush1.msra.mxu0 0.0
        %978 = vmatprep.subr.mxu0 0.0
        %979 = vmatpush1.msra.mxu0 0.0
        %980 = vmatprep.subr.mxu0 0.0
        %981 = vmatpush1.msra.mxu0 0.0
        %982 = vmatprep.subr.mxu0 0.0
        %983 = vmatpush1.msra.mxu0 0.0
        %984 = vmatprep.subr.mxu0 0.0
        %985 = vmatpush1.msra.mxu0 0.0
        %986 = vmatprep.subr.mxu0 0.0
        %987 = vmatpush1.msra.mxu0 0.0
        %988 = vmatprep.subr.mxu0 0.0
        %989 = vmatpush1.msra.mxu0 0.0
        %990 = vmatprep.subr.mxu0 0.0
        %991 = vmatpush1.msra.mxu0 0.0
        %992 = vmatprep.subr.mxu0 0.0
        %993 = vmatpush1.msra.mxu0 0.0
        %994 = vmatprep.subr.mxu0 0.0
        %995 = vmatpush1.msra.mxu0 0.0
        %996 = vmatprep.subr.mxu0 0.0
        %997 = vmatpush1.msra.mxu0 0.0
        %998 = vmatprep.subr.mxu0 0.0
        %999 = vmatpush1.msra.mxu0 0.0
        %1000 = vmatprep.subr.mxu0 0.0
        %1001 = vmatpush1.msra.mxu0 0.0
        %1002 = vmatprep.subr.mxu0 0.0
        %1003 = vmatpush1.msra.mxu0 0.0
        %1004 = vmatprep.subr.mxu0 0.0
        %1005 = vmatpush1.msra.mxu0 0.0
        %1006 = vmatprep.subr.mxu0 0.0
        %1007 = vmatpush1.msra.mxu0 0.0
        %1008 = vmatprep.subr.mxu0 0.0
        %1009 = vmatpush1.msra.mxu0 0.0
        %1010 = vmatprep.subr.mxu0 0.0
        %1011 = vmatpush1.msra.mxu0 0.0
        %1012 = vmatprep.subr.mxu0 0.0
        %1013 = vmatpush1.msra.mxu0 0.0
        %1014 = vmatprep.subr.mxu0 0.0
        %1015 = vmatpush1.msra.mxu0 0.0
        %1016 = vmatprep.subr.mxu0 0.0
        %1017 = vmatpush1.msra.mxu0 0.0
        %1018 = vmatprep.subr.mxu0 0.0
        %1019 = vmatpush1.msra.mxu0 0.0
        %1020 = vmatprep.subr.mxu0 0.0
        %1021 = vmatpush1.msra.mxu0 0.0
        %1022 = vmatprep.subr.mxu0 0.0
        %1023 = vmatpush1.msra.mxu0 0.0
        %1024 = vmatprep.subr.mxu0 0.0
        %1025 = vmatpush1.msra.mxu0 0.0
        %1026 = vmatprep.subr.mxu0 0.0
        %1027 = vmatpush1.msra.mxu0 0.0
        %1028 = vmatprep.subr.mxu0 0.0
        %1029 = vmatpush1.msra.mxu0 0.0
        %1030 = vmatprep.subr.mxu0 0.0
        %1031 = vmatpush1.msra.mxu0 0.0
        %1032 = vmatprep.subr.mxu0 0.0
        %1033 = vmatpush1.msra.mxu0 0.0
        %1034 = vmatprep.mubr.f32.mxu0 0.0
        %1035 = vmatmul.mubr.f32.gmra.mrb[0].mxu0 %v897
        %v1036 = vpop.f32.mrb[0].mxu0
        %v1037 = vadd.f32 0.0, %v1036
        %v1038 = vpop.f32.mrb[0].mxu0
        %1039 = vdwg.mxu0
        %v1040 = vadd.f32 %v891, %v966
        %v1041 = vadd.f32 %v892, %v968
        %v1042 = vadd.f32 %v893, %v1037
        %s1043 = scalar_lea.vmem %s2, 40
        %v1044 = vld [vmem:[%s1043] sm:$0xff]
        %1045 = vrot.lane.b32.xlu0 %v259, 127
        %v1046 = vpop.permute.xlu0 %1045
        %1047 = vrot.lane.b32.xlu0 %v260, 127
        %v1048 = vpop.permute.xlu0 %1047
        %1049 = vrot.lane.b32.xlu0 %v261, 127
        %v1050 = vpop.permute.xlu0 %1049
        %vm1051 = vcmp.lt.s32.totalorder %v270, 127
        %v1052 = vsel %vm1051, %v1048, %v1050
        %v1053 = vsel %vm1051, %v1046, %v1048
        %v1054 = vsel %vm1051, %v1050, %v1046
        %v1056 = vsel %vm287, %v1044, 0
        %1058 = vmatprep.subr.mxu0 %v1052
        %1059 = vmatpush1.msra.mxu0 %v1053
        %1060 = vmatprep.subr.mxu0 0.0
        %1061 = vmatpush1.msra.mxu0 0.0
        %1062 = vmatprep.subr.mxu0 0.0
        %1063 = vmatpush1.msra.mxu0 0.0
        %1064 = vmatprep.subr.mxu0 0.0
        %1065 = vmatpush1.msra.mxu0 0.0
        %1066 = vmatprep.subr.mxu0 0.0
        %1067 = vmatpush1.msra.mxu0 0.0
        %1068 = vmatprep.subr.mxu0 0.0
        %1069 = vmatpush1.msra.mxu0 0.0
        %1070 = vmatprep.subr.mxu0 0.0
        %1071 = vmatpush1.msra.mxu0 0.0
        %1072 = vmatprep.subr.mxu0 0.0
        %1073 = vmatpush1.msra.mxu0 0.0
        %1074 = vmatprep.subr.mxu0 0.0
        %1075 = vmatpush1.msra.mxu0 0.0
        %1076 = vmatprep.subr.mxu0 0.0
        %1077 = vmatpush1.msra.mxu0 0.0
        %1078 = vmatprep.subr.mxu0 0.0
        %1079 = vmatpush1.msra.mxu0 0.0
        %1080 = vmatprep.subr.mxu0 0.0
        %1081 = vmatpush1.msra.mxu0 0.0
        %1082 = vmatprep.subr.mxu0 0.0
        %1083 = vmatpush1.msra.mxu0 0.0
        %1084 = vmatprep.subr.mxu0 0.0
        %1085 = vmatpush1.msra.mxu0 0.0
        %1086 = vmatprep.subr.mxu0 0.0
        %1087 = vmatpush1.msra.mxu0 0.0
        %1088 = vmatprep.subr.mxu0 0.0
        %1089 = vmatpush1.msra.mxu0 0.0
        %1090 = vmatprep.subr.mxu0 0.0
        %1091 = vmatpush1.msra.mxu0 0.0
        %1092 = vmatprep.subr.mxu0 0.0
        %1093 = vmatpush1.msra.mxu0 0.0
        %1094 = vmatprep.subr.mxu0 0.0
        %1095 = vmatpush1.msra.mxu0 0.0
        %1096 = vmatprep.subr.mxu0 0.0
        %1097 = vmatpush1.msra.mxu0 0.0
        %1098 = vmatprep.subr.mxu0 0.0
        %1099 = vmatpush1.msra.mxu0 0.0
        %1100 = vmatprep.subr.mxu0 0.0
        %1101 = vmatpush1.msra.mxu0 0.0
        %1102 = vmatprep.subr.mxu0 0.0
        %1103 = vmatpush1.msra.mxu0 0.0
        %1104 = vmatprep.subr.mxu0 0.0
        %1105 = vmatpush1.msra.mxu0 0.0
        %1106 = vmatprep.subr.mxu0 0.0
        %1107 = vmatpush1.msra.mxu0 0.0
        %1108 = vmatprep.subr.mxu0 0.0
        %1109 = vmatpush1.msra.mxu0 0.0
        %1110 = vmatprep.subr.mxu0 0.0
        %1111 = vmatpush1.msra.mxu0 0.0
        %1112 = vmatprep.subr.mxu0 0.0
        %1113 = vmatpush1.msra.mxu0 0.0
        %1114 = vmatprep.subr.mxu0 0.0
        %1115 = vmatpush1.msra.mxu0 0.0
        %1116 = vmatprep.subr.mxu0 0.0
        %1117 = vmatpush1.msra.mxu0 0.0
        %1118 = vmatprep.subr.mxu0 0.0
        %1119 = vmatpush1.msra.mxu0 0.0
        %1120 = vmatprep.subr.mxu0 0.0
        %1121 = vmatpush1.msra.mxu0 0.0
        %1122 = vmatprep.mubr.f32.mxu0 0.0
        %1123 = vmatmul.mubr.f32.gmra.mrb[0].mxu0 %v1056
        %v1124 = vpop.f32.mrb[0].mxu0
        %v1125 = vadd.f32 0.0, %v1124
        %v1126 = vpop.f32.mrb[0].mxu0
        %v1127 = vadd.f32 0.0, %v1126
        %1128 = vdwg.mxu0
        %1129 = vmatprep.subr.mxu0 0.0
        %1130 = vmatpush1.msra.mxu0 %v1054
        %1131 = vmatprep.subr.mxu0 0.0
        %1132 = vmatpush1.msra.mxu0 0.0
        %1133 = vmatprep.subr.mxu0 0.0
        %1134 = vmatpush1.msra.mxu0 0.0
        %1135 = vmatprep.subr.mxu0 0.0
        %1136 = vmatpush1.msra.mxu0 0.0
        %1137 = vmatprep.subr.mxu0 0.0
        %1138 = vmatpush1.msra.mxu0 0.0
        %1139 = vmatprep.subr.mxu0 0.0
        %1140 = vmatpush1.msra.mxu0 0.0
        %1141 = vmatprep.subr.mxu0 0.0
        %1142 = vmatpush1.msra.mxu0 0.0
        %1143 = vmatprep.subr.mxu0 0.0
        %1144 = vmatpush1.msra.mxu0 0.0
        %1145 = vmatprep.subr.mxu0 0.0
        %1146 = vmatpush1.msra.mxu0 0.0
        %1147 = vmatprep.subr.mxu0 0.0
        %1148 = vmatpush1.msra.mxu0 0.0
        %1149 = vmatprep.subr.mxu0 0.0
        %1150 = vmatpush1.msra.mxu0 0.0
        %1151 = vmatprep.subr.mxu0 0.0
        %1152 = vmatpush1.msra.mxu0 0.0
        %1153 = vmatprep.subr.mxu0 0.0
        %1154 = vmatpush1.msra.mxu0 0.0
        %1155 = vmatprep.subr.mxu0 0.0
        %1156 = vmatpush1.msra.mxu0 0.0
        %1157 = vmatprep.subr.mxu0 0.0
        %1158 = vmatpush1.msra.mxu0 0.0
        %1159 = vmatprep.subr.mxu0 0.0
        %1160 = vmatpush1.msra.mxu0 0.0
        %1161 = vmatprep.subr.mxu0 0.0
        %1162 = vmatpush1.msra.mxu0 0.0
        %1163 = vmatprep.subr.mxu0 0.0
        %1164 = vmatpush1.msra.mxu0 0.0
        %1165 = vmatprep.subr.mxu0 0.0
        %1166 = vmatpush1.msra.mxu0 0.0
        %1167 = vmatprep.subr.mxu0 0.0
        %1168 = vmatpush1.msra.mxu0 0.0
        %1169 = vmatprep.subr.mxu0 0.0
        %1170 = vmatpush1.msra.mxu0 0.0
        %1171 = vmatprep.subr.mxu0 0.0
        %1172 = vmatpush1.msra.mxu0 0.0
        %1173 = vmatprep.subr.mxu0 0.0
        %1174 = vmatpush1.msra.mxu0 0.0
        %1175 = vmatprep.subr.mxu0 0.0
        %1176 = vmatpush1.msra.mxu0 0.0
        %1177 = vmatprep.subr.mxu0 0.0
        %1178 = vmatpush1.msra.mxu0 0.0
        %1179 = vmatprep.subr.mxu0 0.0
        %1180 = vmatpush1.msra.mxu0 0.0
        %1181 = vmatprep.subr.mxu0 0.0
        %1182 = vmatpush1.msra.mxu0 0.0
        %1183 = vmatprep.subr.mxu0 0.0
        %1184 = vmatpush1.msra.mxu0 0.0
        %1185 = vmatprep.subr.mxu0 0.0
        %1186 = vmatpush1.msra.mxu0 0.0
        %1187 = vmatprep.subr.mxu0 0.0
        %1188 = vmatpush1.msra.mxu0 0.0
        %1189 = vmatprep.subr.mxu0 0.0
        %1190 = vmatpush1.msra.mxu0 0.0
        %1191 = vmatprep.subr.mxu0 0.0
        %1192 = vmatpush1.msra.mxu0 0.0
        %1193 = vmatprep.mubr.f32.mxu0 0.0
        %1194 = vmatmul.mubr.f32.gmra.mrb[0].mxu0 %v1056
        %v1195 = vpop.f32.mrb[0].mxu0
        %v1196 = vadd.f32 0.0, %v1195
        %v1197 = vpop.f32.mrb[0].mxu0
        %1198 = vdwg.mxu0
        %v1199 = vadd.f32 %v1040, %v1125
        %v1200 = vadd.f32 %v1041, %v1127
        %v1201 = vadd.f32 %v1042, %v1196
        %s1202 = scalar_lea.vmem %s2, 48
        %v1203 = vld [vmem:[%s1202] sm:$0xff]
        %1204 = vrot.lane.b32.xlu0 %v259, 111
        %v1205 = vpop.permute.xlu0 %1204
        %1206 = vrot.lane.b32.xlu0 %v260, 111
        %v1207 = vpop.permute.xlu0 %1206
        %1208 = vrot.lane.b32.xlu0 %v261, 111
        %v1209 = vpop.permute.xlu0 %1208
        %vm1210 = vcmp.lt.s32.totalorder %v270, 111
        %v1211 = vsel %vm1210, %v1207, %v1209
        %v1212 = vsel %vm1210, %v1205, %v1207
        %v1213 = vsel %vm1210, %v1209, %v1205
        %v1215 = vsel %vm287, %v1203, 0
        %1217 = vmatprep.subr.mxu0 %v1211
        %1218 = vmatpush1.msra.mxu0 %v1212
        %1219 = vmatprep.subr.mxu0 0.0
        %1220 = vmatpush1.msra.mxu0 0.0
        %1221 = vmatprep.subr.mxu0 0.0
        %1222 = vmatpush1.msra.mxu0 0.0
        %1223 = vmatprep.subr.mxu0 0.0
        %1224 = vmatpush1.msra.mxu0 0.0
        %1225 = vmatprep.subr.mxu0 0.0
        %1226 = vmatpush1.msra.mxu0 0.0
        %1227 = vmatprep.subr.mxu0 0.0
        %1228 = vmatpush1.msra.mxu0 0.0
        %1229 = vmatprep.subr.mxu0 0.0
        %1230 = vmatpush1.msra.mxu0 0.0
        %1231 = vmatprep.subr.mxu0 0.0
        %1232 = vmatpush1.msra.mxu0 0.0
        %1233 = vmatprep.subr.mxu0 0.0
        %1234 = vmatpush1.msra.mxu0 0.0
        %1235 = vmatprep.subr.mxu0 0.0
        %1236 = vmatpush1.msra.mxu0 0.0
        %1237 = vmatprep.subr.mxu0 0.0
        %1238 = vmatpush1.msra.mxu0 0.0
        %1239 = vmatprep.subr.mxu0 0.0
        %1240 = vmatpush1.msra.mxu0 0.0
        %1241 = vmatprep.subr.mxu0 0.0
        %1242 = vmatpush1.msra.mxu0 0.0
        %1243 = vmatprep.subr.mxu0 0.0
        %1244 = vmatpush1.msra.mxu0 0.0
        %1245 = vmatprep.subr.mxu0 0.0
        %1246 = vmatpush1.msra.mxu0 0.0
        %1247 = vmatprep.subr.mxu0 0.0
        %1248 = vmatpush1.msra.mxu0 0.0
        %1249 = vmatprep.subr.mxu0 0.0
        %1250 = vmatpush1.msra.mxu0 0.0
        %1251 = vmatprep.subr.mxu0 0.0
        %1252 = vmatpush1.msra.mxu0 0.0
        %1253 = vmatprep.subr.mxu0 0.0
        %1254 = vmatpush1.msra.mxu0 0.0
        %1255 = vmatprep.subr.mxu0 0.0
        %1256 = vmatpush1.msra.mxu0 0.0
        %1257 = vmatprep.subr.mxu0 0.0
        %1258 = vmatpush1.msra.mxu0 0.0
        %1259 = vmatprep.subr.mxu0 0.0
        %1260 = vmatpush1.msra.mxu0 0.0
        %1261 = vmatprep.subr.mxu0 0.0
        %1262 = vmatpush1.msra.mxu0 0.0
        %1263 = vmatprep.subr.mxu0 0.0
        %1264 = vmatpush1.msra.mxu0 0.0
        %1265 = vmatprep.subr.mxu0 0.0
        %1266 = vmatpush1.msra.mxu0 0.0
        %1267 = vmatprep.subr.mxu0 0.0
        %1268 = vmatpush1.msra.mxu0 0.0
        %1269 = vmatprep.subr.mxu0 0.0
        %1270 = vmatpush1.msra.mxu0 0.0
        %1271 = vmatprep.subr.mxu0 0.0
        %1272 = vmatpush1.msra.mxu0 0.0
        %1273 = vmatprep.subr.mxu0 0.0
        %1274 = vmatpush1.msra.mxu0 0.0
        %1275 = vmatprep.subr.mxu0 0.0
        %1276 = vmatpush1.msra.mxu0 0.0
        %1277 = vmatprep.subr.mxu0 0.0
        %1278 = vmatpush1.msra.mxu0 0.0
        %1279 = vmatprep.subr.mxu0 0.0
        %1280 = vmatpush1.msra.mxu0 0.0
        %1281 = vmatprep.mubr.f32.mxu0 0.0
        %1282 = vmatmul.mubr.f32.gmra.mrb[0].mxu0 %v1215
        %v1283 = vpop.f32.mrb[0].mxu0
        %v1284 = vadd.f32 0.0, %v1283
        %v1285 = vpop.f32.mrb[0].mxu0
        %v1286 = vadd.f32 0.0, %v1285
        %1287 = vdwg.mxu0
        %1288 = vmatprep.subr.mxu0 0.0
        %1289 = vmatpush1.msra.mxu0 %v1213
        %1290 = vmatprep.subr.mxu0 0.0
        %1291 = vmatpush1.msra.mxu0 0.0
        %1292 = vmatprep.subr.mxu0 0.0
        %1293 = vmatpush1.msra.mxu0 0.0
        %1294 = vmatprep.subr.mxu0 0.0
        %1295 = vmatpush1.msra.mxu0 0.0
        %1296 = vmatprep.subr.mxu0 0.0
        %1297 = vmatpush1.msra.mxu0 0.0
        %1298 = vmatprep.subr.mxu0 0.0
        %1299 = vmatpush1.msra.mxu0 0.0
        %1300 = vmatprep.subr.mxu0 0.0
        %1301 = vmatpush1.msra.mxu0 0.0
        %1302 = vmatprep.subr.mxu0 0.0
        %1303 = vmatpush1.msra.mxu0 0.0
        %1304 = vmatprep.subr.mxu0 0.0
        %1305 = vmatpush1.msra.mxu0 0.0
        %1306 = vmatprep.subr.mxu0 0.0
        %1307 = vmatpush1.msra.mxu0 0.0
        %1308 = vmatprep.subr.mxu0 0.0
        %1309 = vmatpush1.msra.mxu0 0.0
        %1310 = vmatprep.subr.mxu0 0.0
        %1311 = vmatpush1.msra.mxu0 0.0
        %1312 = vmatprep.subr.mxu0 0.0
        %1313 = vmatpush1.msra.mxu0 0.0
        %1314 = vmatprep.subr.mxu0 0.0
        %1315 = vmatpush1.msra.mxu0 0.0
        %1316 = vmatprep.subr.mxu0 0.0
        %1317 = vmatpush1.msra.mxu0 0.0
        %1318 = vmatprep.subr.mxu0 0.0
        %1319 = vmatpush1.msra.mxu0 0.0
        %1320 = vmatprep.subr.mxu0 0.0
        %1321 = vmatpush1.msra.mxu0 0.0
        %1322 = vmatprep.subr.mxu0 0.0
        %1323 = vmatpush1.msra.mxu0 0.0
        %1324 = vmatprep.subr.mxu0 0.0
        %1325 = vmatpush1.msra.mxu0 0.0
        %1326 = vmatprep.subr.mxu0 0.0
        %1327 = vmatpush1.msra.mxu0 0.0
        %1328 = vmatprep.subr.mxu0 0.0
        %1329 = vmatpush1.msra.mxu0 0.0
        %1330 = vmatprep.subr.mxu0 0.0
        %1331 = vmatpush1.msra.mxu0 0.0
        %1332 = vmatprep.subr.mxu0 0.0
        %1333 = vmatpush1.msra.mxu0 0.0
        %1334 = vmatprep.subr.mxu0 0.0
        %1335 = vmatpush1.msra.mxu0 0.0
        %1336 = vmatprep.subr.mxu0 0.0
        %1337 = vmatpush1.msra.mxu0 0.0
        %1338 = vmatprep.subr.mxu0 0.0
        %1339 = vmatpush1.msra.mxu0 0.0
        %1340 = vmatprep.subr.mxu0 0.0
        %1341 = vmatpush1.msra.mxu0 0.0
        %1342 = vmatprep.subr.mxu0 0.0
        %1343 = vmatpush1.msra.mxu0 0.0
        %1344 = vmatprep.subr.mxu0 0.0
        %1345 = vmatpush1.msra.mxu0 0.0
        %1346 = vmatprep.subr.mxu0 0.0
        %1347 = vmatpush1.msra.mxu0 0.0
        %1348 = vmatprep.subr.mxu0 0.0
        %1349 = vmatpush1.msra.mxu0 0.0
        %1350 = vmatprep.subr.mxu0 0.0
        %1351 = vmatpush1.msra.mxu0 0.0
        %1352 = vmatprep.mubr.f32.mxu0 0.0
        %1353 = vmatmul.mubr.f32.gmra.mrb[0].mxu0 %v1215
        %v1354 = vpop.f32.mrb[0].mxu0
        %v1355 = vadd.f32 0.0, %v1354
        %v1356 = vpop.f32.mrb[0].mxu0
        %1357 = vdwg.mxu0
        %v1358 = vadd.f32 %v1199, %v1284
        %v1359 = vadd.f32 %v1200, %v1286
        %v1360 = vadd.f32 %v1201, %v1355
        %s1361 = scalar_lea.vmem %s2, 56
        %v1362 = vld [vmem:[%s1361] sm:$0xff]
        %1363 = vrot.lane.b32.xlu0 %v259, 110
        %v1364 = vpop.permute.xlu0 %1363
        %1365 = vrot.lane.b32.xlu0 %v260, 110
        %v1366 = vpop.permute.xlu0 %1365
        %1367 = vrot.lane.b32.xlu0 %v261, 110
        %v1368 = vpop.permute.xlu0 %1367
        %vm1369 = vcmp.lt.s32.totalorder %v270, 110
        %v1370 = vsel %vm1369, %v1366, %v1368
        %v1371 = vsel %vm1369, %v1364, %v1366
        %v1372 = vsel %vm1369, %v1368, %v1364
        %v1374 = vsel %vm287, %v1362, 0
        %1376 = vmatprep.subr.mxu0 %v1370
        %1377 = vmatpush1.msra.mxu0 %v1371
        %1378 = vmatprep.subr.mxu0 0.0
        %1379 = vmatpush1.msra.mxu0 0.0
        %1380 = vmatprep.subr.mxu0 0.0
        %1381 = vmatpush1.msra.mxu0 0.0
        %1382 = vmatprep.subr.mxu0 0.0
        %1383 = vmatpush1.msra.mxu0 0.0
        %1384 = vmatprep.subr.mxu0 0.0
        %1385 = vmatpush1.msra.mxu0 0.0
        %1386 = vmatprep.subr.mxu0 0.0
        %1387 = vmatpush1.msra.mxu0 0.0
        %1388 = vmatprep.subr.mxu0 0.0
        %1389 = vmatpush1.msra.mxu0 0.0
        %1390 = vmatprep.subr.mxu0 0.0
        %1391 = vmatpush1.msra.mxu0 0.0
        %1392 = vmatprep.subr.mxu0 0.0
        %1393 = vmatpush1.msra.mxu0 0.0
        %1394 = vmatprep.subr.mxu0 0.0
        %1395 = vmatpush1.msra.mxu0 0.0
        %1396 = vmatprep.subr.mxu0 0.0
        %1397 = vmatpush1.msra.mxu0 0.0
        %1398 = vmatprep.subr.mxu0 0.0
        %1399 = vmatpush1.msra.mxu0 0.0
        %1400 = vmatprep.subr.mxu0 0.0
        %1401 = vmatpush1.msra.mxu0 0.0
        %1402 = vmatprep.subr.mxu0 0.0
        %1403 = vmatpush1.msra.mxu0 0.0
        %1404 = vmatprep.subr.mxu0 0.0
        %1405 = vmatpush1.msra.mxu0 0.0
        %1406 = vmatprep.subr.mxu0 0.0
        %1407 = vmatpush1.msra.mxu0 0.0
        %1408 = vmatprep.subr.mxu0 0.0
        %1409 = vmatpush1.msra.mxu0 0.0
        %1410 = vmatprep.subr.mxu0 0.0
        %1411 = vmatpush1.msra.mxu0 0.0
        %1412 = vmatprep.subr.mxu0 0.0
        %1413 = vmatpush1.msra.mxu0 0.0
        %1414 = vmatprep.subr.mxu0 0.0
        %1415 = vmatpush1.msra.mxu0 0.0
        %1416 = vmatprep.subr.mxu0 0.0
        %1417 = vmatpush1.msra.mxu0 0.0
        %1418 = vmatprep.subr.mxu0 0.0
        %1419 = vmatpush1.msra.mxu0 0.0
        %1420 = vmatprep.subr.mxu0 0.0
        %1421 = vmatpush1.msra.mxu0 0.0
        %1422 = vmatprep.subr.mxu0 0.0
        %1423 = vmatpush1.msra.mxu0 0.0
        %1424 = vmatprep.subr.mxu0 0.0
        %1425 = vmatpush1.msra.mxu0 0.0
        %1426 = vmatprep.subr.mxu0 0.0
        %1427 = vmatpush1.msra.mxu0 0.0
        %1428 = vmatprep.subr.mxu0 0.0
        %1429 = vmatpush1.msra.mxu0 0.0
        %1430 = vmatprep.subr.mxu0 0.0
        %1431 = vmatpush1.msra.mxu0 0.0
        %1432 = vmatprep.subr.mxu0 0.0
        %1433 = vmatpush1.msra.mxu0 0.0
        %1434 = vmatprep.subr.mxu0 0.0
        %1435 = vmatpush1.msra.mxu0 0.0
        %1436 = vmatprep.subr.mxu0 0.0
        %1437 = vmatpush1.msra.mxu0 0.0
        %1438 = vmatprep.subr.mxu0 0.0
        %1439 = vmatpush1.msra.mxu0 0.0
        %1440 = vmatprep.mubr.f32.mxu0 0.0
        %1441 = vmatmul.mubr.f32.gmra.mrb[0].mxu0 %v1374
        %v1442 = vpop.f32.mrb[0].mxu0
        %v1443 = vadd.f32 0.0, %v1442
        %v1444 = vpop.f32.mrb[0].mxu0
        %v1445 = vadd.f32 0.0, %v1444
        %1446 = vdwg.mxu0
        %1447 = vmatprep.subr.mxu0 0.0
        %1448 = vmatpush1.msra.mxu0 %v1372
        %1449 = vmatprep.subr.mxu0 0.0
        %1450 = vmatpush1.msra.mxu0 0.0
        %1451 = vmatprep.subr.mxu0 0.0
        %1452 = vmatpush1.msra.mxu0 0.0
        %1453 = vmatprep.subr.mxu0 0.0
        %1454 = vmatpush1.msra.mxu0 0.0
        %1455 = vmatprep.subr.mxu0 0.0
        %1456 = vmatpush1.msra.mxu0 0.0
        %1457 = vmatprep.subr.mxu0 0.0
        %1458 = vmatpush1.msra.mxu0 0.0
        %1459 = vmatprep.subr.mxu0 0.0
        %1460 = vmatpush1.msra.mxu0 0.0
        %1461 = vmatprep.subr.mxu0 0.0
        %1462 = vmatpush1.msra.mxu0 0.0
        %1463 = vmatprep.subr.mxu0 0.0
        %1464 = vmatpush1.msra.mxu0 0.0
        %1465 = vmatprep.subr.mxu0 0.0
        %1466 = vmatpush1.msra.mxu0 0.0
        %1467 = vmatprep.subr.mxu0 0.0
        %1468 = vmatpush1.msra.mxu0 0.0
        %1469 = vmatprep.subr.mxu0 0.0
        %1470 = vmatpush1.msra.mxu0 0.0
        %1471 = vmatprep.subr.mxu0 0.0
        %1472 = vmatpush1.msra.mxu0 0.0
        %1473 = vmatprep.subr.mxu0 0.0
        %1474 = vmatpush1.msra.mxu0 0.0
        %1475 = vmatprep.subr.mxu0 0.0
        %1476 = vmatpush1.msra.mxu0 0.0
        %1477 = vmatprep.subr.mxu0 0.0
        %1478 = vmatpush1.msra.mxu0 0.0
        %1479 = vmatprep.subr.mxu0 0.0
        %1480 = vmatpush1.msra.mxu0 0.0
        %1481 = vmatprep.subr.mxu0 0.0
        %1482 = vmatpush1.msra.mxu0 0.0
        %1483 = vmatprep.subr.mxu0 0.0
        %1484 = vmatpush1.msra.mxu0 0.0
        %1485 = vmatprep.subr.mxu0 0.0
        %1486 = vmatpush1.msra.mxu0 0.0
        %1487 = vmatprep.subr.mxu0 0.0
        %1488 = vmatpush1.msra.mxu0 0.0
        %1489 = vmatprep.subr.mxu0 0.0
        %1490 = vmatpush1.msra.mxu0 0.0
        %1491 = vmatprep.subr.mxu0 0.0
        %1492 = vmatpush1.msra.mxu0 0.0
        %1493 = vmatprep.subr.mxu0 0.0
        %1494 = vmatpush1.msra.mxu0 0.0
        %1495 = vmatprep.subr.mxu0 0.0
        %1496 = vmatpush1.msra.mxu0 0.0
        %1497 = vmatprep.subr.mxu0 0.0
        %1498 = vmatpush1.msra.mxu0 0.0
        %1499 = vmatprep.subr.mxu0 0.0
        %1500 = vmatpush1.msra.mxu0 0.0
        %1501 = vmatprep.subr.mxu0 0.0
        %1502 = vmatpush1.msra.mxu0 0.0
        %1503 = vmatprep.subr.mxu0 0.0
        %1504 = vmatpush1.msra.mxu0 0.0
        %1505 = vmatprep.subr.mxu0 0.0
        %1506 = vmatpush1.msra.mxu0 0.0
        %1507 = vmatprep.subr.mxu0 0.0
        %1508 = vmatpush1.msra.mxu0 0.0
        %1509 = vmatprep.subr.mxu0 0.0
        %1510 = vmatpush1.msra.mxu0 0.0
        %1511 = vmatprep.mubr.f32.mxu0 0.0
        %1512 = vmatmul.mubr.f32.gmra.mrb[0].mxu0 %v1374
        %v1513 = vpop.f32.mrb[0].mxu0
        %v1514 = vadd.f32 0.0, %v1513
        %v1515 = vpop.f32.mrb[0].mxu0
        %1516 = vdwg.mxu0
        %v1517 = vadd.f32 %v1358, %v1443
        %v1518 = vadd.f32 %v1359, %v1445
        %v1519 = vadd.f32 %v1360, %v1514
        %s1520 = scalar_lea.vmem %s2, 64
        %v1521 = vld [vmem:[%s1520] sm:$0xff]
        %1522 = vrot.lane.b32.xlu0 %v259, 109
        %v1523 = vpop.permute.xlu0 %1522
        %1524 = vrot.lane.b32.xlu0 %v260, 109
        %v1525 = vpop.permute.xlu0 %1524
        %1526 = vrot.lane.b32.xlu0 %v261, 109
        %v1527 = vpop.permute.xlu0 %1526
        %vm1528 = vcmp.lt.s32.totalorder %v270, 109
        %v1529 = vsel %vm1528, %v1525, %v1527
        %v1530 = vsel %vm1528, %v1523, %v1525
        %v1531 = vsel %vm1528, %v1527, %v1523
        %v1533 = vsel %vm287, %v1521, 0
        %1535 = vmatprep.subr.mxu0 %v1529
        %1536 = vmatpush1.msra.mxu0 %v1530
        %1537 = vmatprep.subr.mxu0 0.0
        %1538 = vmatpush1.msra.mxu0 0.0
        %1539 = vmatprep.subr.mxu0 0.0
        %1540 = vmatpush1.msra.mxu0 0.0
        %1541 = vmatprep.subr.mxu0 0.0
        %1542 = vmatpush1.msra.mxu0 0.0
        %1543 = vmatprep.subr.mxu0 0.0
        %1544 = vmatpush1.msra.mxu0 0.0
        %1545 = vmatprep.subr.mxu0 0.0
        %1546 = vmatpush1.msra.mxu0 0.0
        %1547 = vmatprep.subr.mxu0 0.0
        %1548 = vmatpush1.msra.mxu0 0.0
        %1549 = vmatprep.subr.mxu0 0.0
        %1550 = vmatpush1.msra.mxu0 0.0
        %1551 = vmatprep.subr.mxu0 0.0
        %1552 = vmatpush1.msra.mxu0 0.0
        %1553 = vmatprep.subr.mxu0 0.0
        %1554 = vmatpush1.msra.mxu0 0.0
        %1555 = vmatprep.subr.mxu0 0.0
        %1556 = vmatpush1.msra.mxu0 0.0
        %1557 = vmatprep.subr.mxu0 0.0
        %1558 = vmatpush1.msra.mxu0 0.0
        %1559 = vmatprep.subr.mxu0 0.0
        %1560 = vmatpush1.msra.mxu0 0.0
        %1561 = vmatprep.subr.mxu0 0.0
        %1562 = vmatpush1.msra.mxu0 0.0
        %1563 = vmatprep.subr.mxu0 0.0
        %1564 = vmatpush1.msra.mxu0 0.0
        %1565 = vmatprep.subr.mxu0 0.0
        %1566 = vmatpush1.msra.mxu0 0.0
        %1567 = vmatprep.subr.mxu0 0.0
        %1568 = vmatpush1.msra.mxu0 0.0
        %1569 = vmatprep.subr.mxu0 0.0
        %1570 = vmatpush1.msra.mxu0 0.0
        %1571 = vmatprep.subr.mxu0 0.0
        %1572 = vmatpush1.msra.mxu0 0.0
        %1573 = vmatprep.subr.mxu0 0.0
        %1574 = vmatpush1.msra.mxu0 0.0
        %1575 = vmatprep.subr.mxu0 0.0
        %1576 = vmatpush1.msra.mxu0 0.0
        %1577 = vmatprep.subr.mxu0 0.0
        %1578 = vmatpush1.msra.mxu0 0.0
        %1579 = vmatprep.subr.mxu0 0.0
        %1580 = vmatpush1.msra.mxu0 0.0
        %1581 = vmatprep.subr.mxu0 0.0
        %1582 = vmatpush1.msra.mxu0 0.0
        %1583 = vmatprep.subr.mxu0 0.0
        %1584 = vmatpush1.msra.mxu0 0.0
        %1585 = vmatprep.subr.mxu0 0.0
        %1586 = vmatpush1.msra.mxu0 0.0
        %1587 = vmatprep.subr.mxu0 0.0
        %1588 = vmatpush1.msra.mxu0 0.0
        %1589 = vmatprep.subr.mxu0 0.0
        %1590 = vmatpush1.msra.mxu0 0.0
        %1591 = vmatprep.subr.mxu0 0.0
        %1592 = vmatpush1.msra.mxu0 0.0
        %1593 = vmatprep.subr.mxu0 0.0
        %1594 = vmatpush1.msra.mxu0 0.0
        %1595 = vmatprep.subr.mxu0 0.0
        %1596 = vmatpush1.msra.mxu0 0.0
        %1597 = vmatprep.subr.mxu0 0.0
        %1598 = vmatpush1.msra.mxu0 0.0
        %1599 = vmatprep.mubr.f32.mxu0 0.0
        %1600 = vmatmul.mubr.f32.gmra.mrb[0].mxu0 %v1533
        %v1601 = vpop.f32.mrb[0].mxu0
        %v1602 = vadd.f32 0.0, %v1601
        %v1603 = vpop.f32.mrb[0].mxu0
        %v1604 = vadd.f32 0.0, %v1603
        %1605 = vdwg.mxu0
        %1606 = vmatprep.subr.mxu0 0.0
        %1607 = vmatpush1.msra.mxu0 %v1531
        %1608 = vmatprep.subr.mxu0 0.0
        %1609 = vmatpush1.msra.mxu0 0.0
        %1610 = vmatprep.subr.mxu0 0.0
        %1611 = vmatpush1.msra.mxu0 0.0
        %1612 = vmatprep.subr.mxu0 0.0
        %1613 = vmatpush1.msra.mxu0 0.0
        %1614 = vmatprep.subr.mxu0 0.0
        %1615 = vmatpush1.msra.mxu0 0.0
        %1616 = vmatprep.subr.mxu0 0.0
        %1617 = vmatpush1.msra.mxu0 0.0
        %1618 = vmatprep.subr.mxu0 0.0
        %1619 = vmatpush1.msra.mxu0 0.0
        %1620 = vmatprep.subr.mxu0 0.0
        %1621 = vmatpush1.msra.mxu0 0.0
        %1622 = vmatprep.subr.mxu0 0.0
        %1623 = vmatpush1.msra.mxu0 0.0
        %1624 = vmatprep.subr.mxu0 0.0
        %1625 = vmatpush1.msra.mxu0 0.0
        %1626 = vmatprep.subr.mxu0 0.0
        %1627 = vmatpush1.msra.mxu0 0.0
        %1628 = vmatprep.subr.mxu0 0.0
        %1629 = vmatpush1.msra.mxu0 0.0
        %1630 = vmatprep.subr.mxu0 0.0
        %1631 = vmatpush1.msra.mxu0 0.0
        %1632 = vmatprep.subr.mxu0 0.0
        %1633 = vmatpush1.msra.mxu0 0.0
        %1634 = vmatprep.subr.mxu0 0.0
        %1635 = vmatpush1.msra.mxu0 0.0
        %1636 = vmatprep.subr.mxu0 0.0
        %1637 = vmatpush1.msra.mxu0 0.0
        %1638 = vmatprep.subr.mxu0 0.0
        %1639 = vmatpush1.msra.mxu0 0.0
        %1640 = vmatprep.subr.mxu0 0.0
        %1641 = vmatpush1.msra.mxu0 0.0
        %1642 = vmatprep.subr.mxu0 0.0
        %1643 = vmatpush1.msra.mxu0 0.0
        %1644 = vmatprep.subr.mxu0 0.0
        %1645 = vmatpush1.msra.mxu0 0.0
        %1646 = vmatprep.subr.mxu0 0.0
        %1647 = vmatpush1.msra.mxu0 0.0
        %1648 = vmatprep.subr.mxu0 0.0
        %1649 = vmatpush1.msra.mxu0 0.0
        %1650 = vmatprep.subr.mxu0 0.0
        %1651 = vmatpush1.msra.mxu0 0.0
        %1652 = vmatprep.subr.mxu0 0.0
        %1653 = vmatpush1.msra.mxu0 0.0
        %1654 = vmatprep.subr.mxu0 0.0
        %1655 = vmatpush1.msra.mxu0 0.0
        %1656 = vmatprep.subr.mxu0 0.0
        %1657 = vmatpush1.msra.mxu0 0.0
        %1658 = vmatprep.subr.mxu0 0.0
        %1659 = vmatpush1.msra.mxu0 0.0
        %1660 = vmatprep.subr.mxu0 0.0
        %1661 = vmatpush1.msra.mxu0 0.0
        %1662 = vmatprep.subr.mxu0 0.0
        %1663 = vmatpush1.msra.mxu0 0.0
        %1664 = vmatprep.subr.mxu0 0.0
        %1665 = vmatpush1.msra.mxu0 0.0
        %1666 = vmatprep.subr.mxu0 0.0
        %1667 = vmatpush1.msra.mxu0 0.0
        %1668 = vmatprep.subr.mxu0 0.0
        %1669 = vmatpush1.msra.mxu0 0.0
        %1670 = vmatprep.mubr.f32.mxu0 0.0
        %1671 = vmatmul.mubr.f32.gmra.mrb[0].mxu0 %v1533
        %v1672 = vpop.f32.mrb[0].mxu0
        %v1673 = vadd.f32 0.0, %v1672
        %v1674 = vpop.f32.mrb[0].mxu0
        %1675 = vdwg.mxu0
        %v1676 = vadd.f32 %v1517, %v1602
        %v1677 = vadd.f32 %v1518, %v1604
        %v1678 = vadd.f32 %v1519, %v1673
        %v1679 = vld [vmem:[%s3] sm:$0xff]
        %1681 = vset.pattern.permute.xlu0 0
        %1682 = vperm.xlu0 %1681, %v1679
        %v1683 = vpop.permute.xlu0 %1682
        %v1685 = vadd.f32 %v1676, %v1683
        %v1686 = vadd.f32 %v1677, %v1683
        %v1687 = vadd.f32 %v1678, %v1683
        %v1689 = vlaneseq
        %v1690 = vshrl.u32 %v1689, 7
        %v1691 = vsub.s32 0, %v1690
        %v1692 = vrot.slane %v250, %v1691
        %v1693 = vlaneseq
        %v1694 = vshrl.u32 %v1693, 7
        %v1695 = vsub.s32 1, %v1694
        %v1696 = vrot.slane %v250, %v1695
        %v1697 = vlaneseq
        %v1698 = vshrl.u32 %v1697, 7
        %v1699 = vsub.s32 2, %v1698
        %v1700 = vrot.slane %v250, %v1699
        %v1704 = vmul.f32 %v1685, %v1692
        %v1705 = vmul.f32 %v1686, %v1696
        %v1706 = vmul.f32 %v1687, %v1700
        %v1707 = vadd.f32 %v1704, %v1705
        %v1708 = vadd.f32 %v1707, %v1706
        %1709 = vadd.xlane.f32.xlu0 %v1708
        %v1710 = vpop.xlane.xlu0 %1709
        %v1711 = vmul.f32 %v1710, 0.00390625
        %v1712 = vmul.f32 %v1704, %v1685
        %v1713 = vmul.f32 %v1705, %v1686
        %v1714 = vmul.f32 %v1706, %v1687
        %v1715 = vadd.f32 %v1712, %v1713
        %v1716 = vadd.f32 %v1715, %v1714
        %1717 = vadd.xlane.f32.xlu0 %v1716
        %v1718 = vpop.xlane.xlu0 %1717
        %v1719 = vmul.f32 %v1718, 0.00390625
        %v1720 = vmul.f32 %v1711, %v1711
        %v1721 = vsub.f32 %v1719, %v1720
        %v1722 = vsub.f32 %v1685, %v1711
        %v1723 = vsub.f32 %v1686, %v1711
        %v1724 = vsub.f32 %v1687, %v1711
        %v1725 = vmul.f32 %v1722, %v1692
        %v1726 = vmul.f32 %v1723, %v1696
        %v1727 = vmul.f32 %v1724, %v1700
        %v1728 = vadd.f32 %v1721, 1e-05
        %v1729 = vrsqrt.pop %v1728
        %v1730 = vmul.f32 %v1725, %v1729
        %v1731 = vmul.f32 %v1726, %v1729
        %v1732 = vmul.f32 %v1727, %v1729
        %v1733 = vmax.f32 %v1730, 0.0
        %v1734 = vmax.f32 %v1731, 0.0
        %v1735 = vmax.f32 %v1732, 0.0
        %1736 = vrot.lane.b32.xlu0 %v1733, 92
        %v1737 = vpop.permute.xlu0 %1736
        %1738 = vrot.lane.b32.xlu0 %v1734, 92
        %v1739 = vpop.permute.xlu0 %1738
        %1740 = vrot.lane.b32.xlu0 %v1735, 92
        %v1741 = vpop.permute.xlu0 %1740
        %vm1742 = vcmp.lt.s32.totalorder %v270, 92
        %v1743 = vsel %vm1742, %v1739, %v1741
        %v1744 = vsel %vm1742, %v1737, %v1739
        %v1745 = vsel %vm1742, %v1741, %v1737
        %v1746 = vsub.f32 1.0, %v252
        %v1748 = vlaneseq
        %v1749 = vshrl.u32 %v1748, 7
        %v1750 = vsub.s32 0, %v1749
        %v1751 = vrot.slane %v1746, %v1750
        %v1752 = vlaneseq
        %v1753 = vshrl.u32 %v1752, 7
        %v1754 = vsub.s32 1, %v1753
        %v1755 = vrot.slane %v1746, %v1754
        %v1756 = vlaneseq
        %v1757 = vshrl.u32 %v1756, 7
        %v1758 = vsub.s32 2, %v1757
        %v1759 = vrot.slane %v1746, %v1758
        %v1763 = vmul.f32 %v1733, %v1751
        %v1764 = vmul.f32 %v1734, %v1755
        %v1765 = vmul.f32 %v1735, %v1759
        %v1767 = vlaneseq
        %v1768 = vshrl.u32 %v1767, 7
        %v1769 = vsub.s32 0, %v1768
        %v1770 = vrot.slane %v252, %v1769
        %v1771 = vlaneseq
        %v1772 = vshrl.u32 %v1771, 7
        %v1773 = vsub.s32 1, %v1772
        %v1774 = vrot.slane %v252, %v1773
        %v1775 = vlaneseq
        %v1776 = vshrl.u32 %v1775, 7
        %v1777 = vsub.s32 2, %v1776
        %v1778 = vrot.slane %v252, %v1777
        %v1782 = vmul.f32 %v1744, %v1770
        %v1783 = vmul.f32 %v1743, %v1774
        %v1784 = vmul.f32 %v1745, %v1778
        %v1785 = vadd.f32 %v1763, %v1782
        %v1786 = vadd.f32 %v1764, %v1783
        %v1787 = vadd.f32 %v1765, %v1784
        %1788 = vrot.lane.b32.xlu0 %v1785, 36
        %v1789 = vpop.permute.xlu0 %1788
        %1790 = vrot.lane.b32.xlu0 %v1786, 36
        %v1791 = vpop.permute.xlu0 %1790
        %1792 = vrot.lane.b32.xlu0 %v1787, 36
        %v1793 = vpop.permute.xlu0 %1792
        %vm1794 = vcmp.lt.s32.totalorder %v270, 36
        %v1795 = vsel %vm1794, %v1791, %v1793
        %v1796 = vsel %vm1794, %v1789, %v1791
        %v1797 = vsel %vm1794, %v1793, %v1789
        %v1798 = vsub.f32 1.0, %v254
        %v1800 = vlaneseq
        %v1801 = vshrl.u32 %v1800, 7
        %v1802 = vsub.s32 0, %v1801
        %v1803 = vrot.slane %v1798, %v1802
        %v1804 = vlaneseq
        %v1805 = vshrl.u32 %v1804, 7
        %v1806 = vsub.s32 1, %v1805
        %v1807 = vrot.slane %v1798, %v1806
        %v1808 = vlaneseq
        %v1809 = vshrl.u32 %v1808, 7
        %v1810 = vsub.s32 2, %v1809
        %v1811 = vrot.slane %v1798, %v1810
        %v1815 = vmul.f32 %v1785, %v1803
        %v1816 = vmul.f32 %v1786, %v1807
        %v1817 = vmul.f32 %v1787, %v1811
        %v1819 = vlaneseq
        %v1820 = vshrl.u32 %v1819, 7
        %v1821 = vsub.s32 0, %v1820
        %v1822 = vrot.slane %v254, %v1821
        %v1823 = vlaneseq
        %v1824 = vshrl.u32 %v1823, 7
        %v1825 = vsub.s32 1, %v1824
        %v1826 = vrot.slane %v254, %v1825
        %v1827 = vlaneseq
        %v1828 = vshrl.u32 %v1827, 7
        %v1829 = vsub.s32 2, %v1828
        %v1830 = vrot.slane %v254, %v1829
        %v1834 = vmul.f32 %v1797, %v1822
        %v1835 = vmul.f32 %v1796, %v1826
        %v1836 = vmul.f32 %v1795, %v1830
        %v1837 = vadd.f32 %v1815, %v1834
        %v1838 = vadd.f32 %v1816, %v1835
        %v1839 = vadd.f32 %v1817, %v1836
        %1840 = vrot.lane.b32.xlu0 %v1837, 126
        %v1841 = vpop.permute.xlu0 %1840
        %1842 = vrot.lane.b32.xlu0 %v1838, 126
        %v1843 = vpop.permute.xlu0 %1842
        %1844 = vrot.lane.b32.xlu0 %v1839, 126
        %v1845 = vpop.permute.xlu0 %1844
        %vm1846 = vcmp.lt.s32.totalorder %v270, 126
        %v1847 = vsel %vm1846, %v1843, %v1845
        %v1848 = vsel %vm1846, %v1841, %v1843
        %v1849 = vsel %vm1846, %v1845, %v1841
        %v1850 = vsub.f32 1.0, %v256
        %v1852 = vlaneseq
        %v1853 = vshrl.u32 %v1852, 7
        %v1854 = vsub.s32 0, %v1853
        %v1855 = vrot.slane %v1850, %v1854
        %v1856 = vlaneseq
        %v1857 = vshrl.u32 %v1856, 7
        %v1858 = vsub.s32 1, %v1857
        %v1859 = vrot.slane %v1850, %v1858
        %v1860 = vlaneseq
        %v1861 = vshrl.u32 %v1860, 7
        %v1862 = vsub.s32 2, %v1861
        %v1863 = vrot.slane %v1850, %v1862
        %v1867 = vmul.f32 %v1837, %v1855
        %v1868 = vmul.f32 %v1838, %v1859
        %v1869 = vmul.f32 %v1839, %v1863
        %v1871 = vlaneseq
        %v1872 = vshrl.u32 %v1871, 7
        %v1873 = vsub.s32 0, %v1872
        %v1874 = vrot.slane %v256, %v1873
        %v1875 = vlaneseq
        %v1876 = vshrl.u32 %v1875, 7
        %v1877 = vsub.s32 1, %v1876
        %v1878 = vrot.slane %v256, %v1877
        %v1879 = vlaneseq
        %v1880 = vshrl.u32 %v1879, 7
        %v1881 = vsub.s32 2, %v1880
        %v1882 = vrot.slane %v256, %v1881
        %v1886 = vmul.f32 %v1848, %v1874
        %v1887 = vmul.f32 %v1847, %v1878
        %v1888 = vmul.f32 %v1849, %v1882
        %v1889 = vadd.f32 %v1867, %v1886
        %v1890 = vadd.f32 %v1868, %v1887
        %v1891 = vadd.f32 %v1869, %v1888
        %1892 = vrot.lane.b32.xlu0 %v1889, 2
        %v1893 = vpop.permute.xlu0 %1892
        %1894 = vrot.lane.b32.xlu0 %v1890, 2
        %v1895 = vpop.permute.xlu0 %1894
        %1896 = vrot.lane.b32.xlu0 %v1891, 2
        %v1897 = vpop.permute.xlu0 %1896
        %vm1898 = vcmp.lt.s32.totalorder %v270, 2
        %v1899 = vsel %vm1898, %v1895, %v1897
        %v1900 = vsel %vm1898, %v1893, %v1895
        %v1901 = vsel %vm1898, %v1897, %v1893
        %v1902 = vsub.f32 1.0, %v258
        %v1904 = vlaneseq
        %v1905 = vshrl.u32 %v1904, 7
        %v1906 = vsub.s32 0, %v1905
        %v1907 = vrot.slane %v1902, %v1906
        %v1908 = vlaneseq
        %v1909 = vshrl.u32 %v1908, 7
        %v1910 = vsub.s32 1, %v1909
        %v1911 = vrot.slane %v1902, %v1910
        %v1912 = vlaneseq
        %v1913 = vshrl.u32 %v1912, 7
        %v1914 = vsub.s32 2, %v1913
        %v1915 = vrot.slane %v1902, %v1914
        %v1919 = vmul.f32 %v1889, %v1907
        %v1920 = vmul.f32 %v1890, %v1911
        %v1921 = vmul.f32 %v1891, %v1915
        %v1923 = vlaneseq
        %v1924 = vshrl.u32 %v1923, 7
        %v1925 = vsub.s32 0, %v1924
        %v1926 = vrot.slane %v258, %v1925
        %v1927 = vlaneseq
        %v1928 = vshrl.u32 %v1927, 7
        %v1929 = vsub.s32 1, %v1928
        %v1930 = vrot.slane %v258, %v1929
        %v1931 = vlaneseq
        %v1932 = vshrl.u32 %v1931, 7
        %v1933 = vsub.s32 2, %v1932
        %v1934 = vrot.slane %v258, %v1933
        %v1938 = vmul.f32 %v1901, %v1926
        %v1939 = vmul.f32 %v1900, %v1930
        %v1940 = vmul.f32 %v1899, %v1934
        %v1941 = vadd.f32 %v1919, %v1938
        %v1942 = vadd.f32 %v1920, %v1939
        %v1943 = vadd.f32 %v1921, %v1940
        %v1944 = vld [vmem:[%s4] sm:$0xff]
        %1945 = vrot.lane.b32.xlu0 %v1941, 19
        %v1946 = vpop.permute.xlu0 %1945
        %1947 = vrot.lane.b32.xlu0 %v1942, 19
        %v1948 = vpop.permute.xlu0 %1947
        %1949 = vrot.lane.b32.xlu0 %v1943, 19
        %v1950 = vpop.permute.xlu0 %1949
        %v1951 = vsel %vm271, %v1948, %v1950
        %v1952 = vsel %vm271, %v1946, %v1948
        %v1953 = vsel %vm271, %v1950, %v1946
        %s1954 = scalar_lea.vmem %s4, 8
        %v1955 = vld [vmem:[%s1954] sm:$0xff]
        %1956 = vrot.lane.b32.xlu0 %v1941, 18
        %v1957 = vpop.permute.xlu0 %1956
        %1958 = vrot.lane.b32.xlu0 %v1942, 18
        %v1959 = vpop.permute.xlu0 %1958
        %1960 = vrot.lane.b32.xlu0 %v1943, 18
        %v1961 = vpop.permute.xlu0 %1960
        %v1962 = vsel %vm283, %v1959, %v1961
        %v1963 = vsel %vm283, %v1957, %v1959
        %v1964 = vsel %vm283, %v1961, %v1957
        %v1966 = vsel %vm287, %v1955, 0
        %1968 = vmatprep.subr.mxu0 %v1963
        %1969 = vmatpush1.msra.mxu0 %v1964
        %1970 = vmatprep.subr.mxu0 0.0
        %1971 = vmatpush1.msra.mxu0 0.0
        %1972 = vmatprep.subr.mxu0 0.0
        %1973 = vmatpush1.msra.mxu0 0.0
        %1974 = vmatprep.subr.mxu0 0.0
        %1975 = vmatpush1.msra.mxu0 0.0
        %1976 = vmatprep.subr.mxu0 0.0
        %1977 = vmatpush1.msra.mxu0 0.0
        %1978 = vmatprep.subr.mxu0 0.0
        %1979 = vmatpush1.msra.mxu0 0.0
        %1980 = vmatprep.subr.mxu0 0.0
        %1981 = vmatpush1.msra.mxu0 0.0
        %1982 = vmatprep.subr.mxu0 0.0
        %1983 = vmatpush1.msra.mxu0 0.0
        %1984 = vmatprep.subr.mxu0 0.0
        %1985 = vmatpush1.msra.mxu0 0.0
        %1986 = vmatprep.subr.mxu0 0.0
        %1987 = vmatpush1.msra.mxu0 0.0
        %1988 = vmatprep.subr.mxu0 0.0
        %1989 = vmatpush1.msra.mxu0 0.0
        %1990 = vmatprep.subr.mxu0 0.0
        %1991 = vmatpush1.msra.mxu0 0.0
        %1992 = vmatprep.subr.mxu0 0.0
        %1993 = vmatpush1.msra.mxu0 0.0
        %1994 = vmatprep.subr.mxu0 0.0
        %1995 = vmatpush1.msra.mxu0 0.0
        %1996 = vmatprep.subr.mxu0 0.0
        %1997 = vmatpush1.msra.mxu0 0.0
        %1998 = vmatprep.subr.mxu0 0.0
        %1999 = vmatpush1.msra.mxu0 0.0
        %2000 = vmatprep.subr.mxu0 0.0
        %2001 = vmatpush1.msra.mxu0 0.0
        %2002 = vmatprep.subr.mxu0 0.0
        %2003 = vmatpush1.msra.mxu0 0.0
        %2004 = vmatprep.subr.mxu0 0.0
        %2005 = vmatpush1.msra.mxu0 0.0
        %2006 = vmatprep.subr.mxu0 0.0
        %2007 = vmatpush1.msra.mxu0 0.0
        %2008 = vmatprep.subr.mxu0 0.0
        %2009 = vmatpush1.msra.mxu0 0.0
        %2010 = vmatprep.subr.mxu0 0.0
        %2011 = vmatpush1.msra.mxu0 0.0
        %2012 = vmatprep.subr.mxu0 0.0
        %2013 = vmatpush1.msra.mxu0 0.0
        %2014 = vmatprep.subr.mxu0 0.0
        %2015 = vmatpush1.msra.mxu0 0.0
        %2016 = vmatprep.subr.mxu0 0.0
        %2017 = vmatpush1.msra.mxu0 0.0
        %2018 = vmatprep.subr.mxu0 0.0
        %2019 = vmatpush1.msra.mxu0 0.0
        %2020 = vmatprep.subr.mxu0 0.0
        %2021 = vmatpush1.msra.mxu0 0.0
        %2022 = vmatprep.subr.mxu0 0.0
        %2023 = vmatpush1.msra.mxu0 0.0
        %2024 = vmatprep.subr.mxu0 0.0
        %2025 = vmatpush1.msra.mxu0 0.0
        %2026 = vmatprep.subr.mxu0 0.0
        %2027 = vmatpush1.msra.mxu0 0.0
        %2028 = vmatprep.subr.mxu0 0.0
        %2029 = vmatpush1.msra.mxu0 0.0
        %2030 = vmatprep.subr.mxu0 0.0
        %2031 = vmatpush1.msra.mxu0 0.0
        %2032 = vmatprep.mubr.f32.mxu0 0.0
        %2033 = vmatmul.mubr.f32.gmra.mrb[0].mxu0 %v1966
        %v2034 = vpop.f32.mrb[0].mxu0
        %v2035 = vadd.f32 0.0, %v2034
        %v2036 = vpop.f32.mrb[0].mxu0
        %v2037 = vadd.f32 0.0, %v2036
        %2038 = vdwg.mxu0
        %2039 = vmatprep.subr.mxu0 0.0
        %2040 = vmatpush1.msra.mxu0 %v1962
        %2041 = vmatprep.subr.mxu0 0.0
        %2042 = vmatpush1.msra.mxu0 0.0
        %2043 = vmatprep.subr.mxu0 0.0
        %2044 = vmatpush1.msra.mxu0 0.0
        %2045 = vmatprep.subr.mxu0 0.0
        %2046 = vmatpush1.msra.mxu0 0.0
        %2047 = vmatprep.subr.mxu0 0.0
        %2048 = vmatpush1.msra.mxu0 0.0
        %2049 = vmatprep.subr.mxu0 0.0
        %2050 = vmatpush1.msra.mxu0 0.0
        %2051 = vmatprep.subr.mxu0 0.0
        %2052 = vmatpush1.msra.mxu0 0.0
        %2053 = vmatprep.subr.mxu0 0.0
        %2054 = vmatpush1.msra.mxu0 0.0
        %2055 = vmatprep.subr.mxu0 0.0
        %2056 = vmatpush1.msra.mxu0 0.0
        %2057 = vmatprep.subr.mxu0 0.0
        %2058 = vmatpush1.msra.mxu0 0.0
        %2059 = vmatprep.subr.mxu0 0.0
        %2060 = vmatpush1.msra.mxu0 0.0
        %2061 = vmatprep.subr.mxu0 0.0
        %2062 = vmatpush1.msra.mxu0 0.0
        %2063 = vmatprep.subr.mxu0 0.0
        %2064 = vmatpush1.msra.mxu0 0.0
        %2065 = vmatprep.subr.mxu0 0.0
        %2066 = vmatpush1.msra.mxu0 0.0
        %2067 = vmatprep.subr.mxu0 0.0
        %2068 = vmatpush1.msra.mxu0 0.0
        %2069 = vmatprep.subr.mxu0 0.0
        %2070 = vmatpush1.msra.mxu0 0.0
        %2071 = vmatprep.subr.mxu0 0.0
        %2072 = vmatpush1.msra.mxu0 0.0
        %2073 = vmatprep.subr.mxu0 0.0
        %2074 = vmatpush1.msra.mxu0 0.0
        %2075 = vmatprep.subr.mxu0 0.0
        %2076 = vmatpush1.msra.mxu0 0.0
        %2077 = vmatprep.subr.mxu0 0.0
        %2078 = vmatpush1.msra.mxu0 0.0
        %2079 = vmatprep.subr.mxu0 0.0
        %2080 = vmatpush1.msra.mxu0 0.0
        %2081 = vmatprep.subr.mxu0 0.0
        %2082 = vmatpush1.msra.mxu0 0.0
        %2083 = vmatprep.subr.mxu0 0.0
        %2084 = vmatpush1.msra.mxu0 0.0
        %2085 = vmatprep.subr.mxu0 0.0
        %2086 = vmatpush1.msra.mxu0 0.0
        %2087 = vmatprep.subr.mxu0 0.0
        %2088 = vmatpush1.msra.mxu0 0.0
        %2089 = vmatprep.subr.mxu0 0.0
        %2090 = vmatpush1.msra.mxu0 0.0
        %2091 = vmatprep.subr.mxu0 0.0
        %2092 = vmatpush1.msra.mxu0 0.0
        %2093 = vmatprep.subr.mxu0 0.0
        %2094 = vmatpush1.msra.mxu0 0.0
        %2095 = vmatprep.subr.mxu0 0.0
        %2096 = vmatpush1.msra.mxu0 0.0
        %2097 = vmatprep.subr.mxu0 0.0
        %2098 = vmatpush1.msra.mxu0 0.0
        %2099 = vmatprep.subr.mxu0 0.0
        %2100 = vmatpush1.msra.mxu0 0.0
        %2101 = vmatprep.subr.mxu0 0.0
        %2102 = vmatpush1.msra.mxu0 0.0
        %2103 = vmatprep.mubr.f32.mxu0 0.0
        %2104 = vmatmul.mubr.f32.gmra.mrb[0].mxu0 %v1966
        %v2105 = vpop.f32.mrb[0].mxu0
        %v2106 = vadd.f32 0.0, %v2105
        %v2107 = vpop.f32.mrb[0].mxu0
        %2108 = vdwg.mxu0
        %v2110 = vsel %vm287, %v1944, 0
        %2112 = vmatprep.subr.mxu0 %v1952
        %2113 = vmatpush1.msra.mxu0 %v1953
        %2114 = vmatprep.subr.mxu0 0.0
        %2115 = vmatpush1.msra.mxu0 0.0
        %2116 = vmatprep.subr.mxu0 0.0
        %2117 = vmatpush1.msra.mxu0 0.0
        %2118 = vmatprep.subr.mxu0 0.0
        %2119 = vmatpush1.msra.mxu0 0.0
        %2120 = vmatprep.subr.mxu0 0.0
        %2121 = vmatpush1.msra.mxu0 0.0
        %2122 = vmatprep.subr.mxu0 0.0
        %2123 = vmatpush1.msra.mxu0 0.0
        %2124 = vmatprep.subr.mxu0 0.0
        %2125 = vmatpush1.msra.mxu0 0.0
        %2126 = vmatprep.subr.mxu0 0.0
        %2127 = vmatpush1.msra.mxu0 0.0
        %2128 = vmatprep.subr.mxu0 0.0
        %2129 = vmatpush1.msra.mxu0 0.0
        %2130 = vmatprep.subr.mxu0 0.0
        %2131 = vmatpush1.msra.mxu0 0.0
        %2132 = vmatprep.subr.mxu0 0.0
        %2133 = vmatpush1.msra.mxu0 0.0
        %2134 = vmatprep.subr.mxu0 0.0
        %2135 = vmatpush1.msra.mxu0 0.0
        %2136 = vmatprep.subr.mxu0 0.0
        %2137 = vmatpush1.msra.mxu0 0.0
        %2138 = vmatprep.subr.mxu0 0.0
        %2139 = vmatpush1.msra.mxu0 0.0
        %2140 = vmatprep.subr.mxu0 0.0
        %2141 = vmatpush1.msra.mxu0 0.0
        %2142 = vmatprep.subr.mxu0 0.0
        %2143 = vmatpush1.msra.mxu0 0.0
        %2144 = vmatprep.subr.mxu0 0.0
        %2145 = vmatpush1.msra.mxu0 0.0
        %2146 = vmatprep.subr.mxu0 0.0
        %2147 = vmatpush1.msra.mxu0 0.0
        %2148 = vmatprep.subr.mxu0 0.0
        %2149 = vmatpush1.msra.mxu0 0.0
        %2150 = vmatprep.subr.mxu0 0.0
        %2151 = vmatpush1.msra.mxu0 0.0
        %2152 = vmatprep.subr.mxu0 0.0
        %2153 = vmatpush1.msra.mxu0 0.0
        %2154 = vmatprep.subr.mxu0 0.0
        %2155 = vmatpush1.msra.mxu0 0.0
        %2156 = vmatprep.subr.mxu0 0.0
        %2157 = vmatpush1.msra.mxu0 0.0
        %2158 = vmatprep.subr.mxu0 0.0
        %2159 = vmatpush1.msra.mxu0 0.0
        %2160 = vmatprep.subr.mxu0 0.0
        %2161 = vmatpush1.msra.mxu0 0.0
        %2162 = vmatprep.subr.mxu0 0.0
        %2163 = vmatpush1.msra.mxu0 0.0
        %2164 = vmatprep.subr.mxu0 0.0
        %2165 = vmatpush1.msra.mxu0 0.0
        %2166 = vmatprep.subr.mxu0 0.0
        %2167 = vmatpush1.msra.mxu0 0.0
        %2168 = vmatprep.subr.mxu0 0.0
        %2169 = vmatpush1.msra.mxu0 0.0
        %2170 = vmatprep.subr.mxu0 0.0
        %2171 = vmatpush1.msra.mxu0 0.0
        %2172 = vmatprep.subr.mxu0 0.0
        %2173 = vmatpush1.msra.mxu0 0.0
        %2174 = vmatprep.subr.mxu0 0.0
        %2175 = vmatpush1.msra.mxu0 0.0
        %2176 = vmatprep.mubr.f32.mxu0 0.0
        %2177 = vmatmul.mubr.f32.gmra.mrb[0].mxu0 %v2110
        %v2178 = vpop.f32.mrb[0].mxu0
        %v2179 = vadd.f32 %v2035, %v2178
        %v2180 = vpop.f32.mrb[0].mxu0
        %v2181 = vadd.f32 %v2037, %v2180
        %2182 = vdwg.mxu0
        %2183 = vmatprep.subr.mxu0 0.0
        %2184 = vmatpush1.msra.mxu0 %v1951
        %2185 = vmatprep.subr.mxu0 0.0
        %2186 = vmatpush1.msra.mxu0 0.0
        %2187 = vmatprep.subr.mxu0 0.0
        %2188 = vmatpush1.msra.mxu0 0.0
        %2189 = vmatprep.subr.mxu0 0.0
        %2190 = vmatpush1.msra.mxu0 0.0
        %2191 = vmatprep.subr.mxu0 0.0
        %2192 = vmatpush1.msra.mxu0 0.0
        %2193 = vmatprep.subr.mxu0 0.0
        %2194 = vmatpush1.msra.mxu0 0.0
        %2195 = vmatprep.subr.mxu0 0.0
        %2196 = vmatpush1.msra.mxu0 0.0
        %2197 = vmatprep.subr.mxu0 0.0
        %2198 = vmatpush1.msra.mxu0 0.0
        %2199 = vmatprep.subr.mxu0 0.0
        %2200 = vmatpush1.msra.mxu0 0.0
        %2201 = vmatprep.subr.mxu0 0.0
        %2202 = vmatpush1.msra.mxu0 0.0
        %2203 = vmatprep.subr.mxu0 0.0
        %2204 = vmatpush1.msra.mxu0 0.0
        %2205 = vmatprep.subr.mxu0 0.0
        %2206 = vmatpush1.msra.mxu0 0.0
        %2207 = vmatprep.subr.mxu0 0.0
        %2208 = vmatpush1.msra.mxu0 0.0
        %2209 = vmatprep.subr.mxu0 0.0
        %2210 = vmatpush1.msra.mxu0 0.0
        %2211 = vmatprep.subr.mxu0 0.0
        %2212 = vmatpush1.msra.mxu0 0.0
        %2213 = vmatprep.subr.mxu0 0.0
        %2214 = vmatpush1.msra.mxu0 0.0
        %2215 = vmatprep.subr.mxu0 0.0
        %2216 = vmatpush1.msra.mxu0 0.0
        %2217 = vmatprep.subr.mxu0 0.0
        %2218 = vmatpush1.msra.mxu0 0.0
        %2219 = vmatprep.subr.mxu0 0.0
        %2220 = vmatpush1.msra.mxu0 0.0
        %2221 = vmatprep.subr.mxu0 0.0
        %2222 = vmatpush1.msra.mxu0 0.0
        %2223 = vmatprep.subr.mxu0 0.0
        %2224 = vmatpush1.msra.mxu0 0.0
        %2225 = vmatprep.subr.mxu0 0.0
        %2226 = vmatpush1.msra.mxu0 0.0
        %2227 = vmatprep.subr.mxu0 0.0
        %2228 = vmatpush1.msra.mxu0 0.0
        %2229 = vmatprep.subr.mxu0 0.0
        %2230 = vmatpush1.msra.mxu0 0.0
        %2231 = vmatprep.subr.mxu0 0.0
        %2232 = vmatpush1.msra.mxu0 0.0
        %2233 = vmatprep.subr.mxu0 0.0
        %2234 = vmatpush1.msra.mxu0 0.0
        %2235 = vmatprep.subr.mxu0 0.0
        %2236 = vmatpush1.msra.mxu0 0.0
        %2237 = vmatprep.subr.mxu0 0.0
        %2238 = vmatpush1.msra.mxu0 0.0
        %2239 = vmatprep.subr.mxu0 0.0
        %2240 = vmatpush1.msra.mxu0 0.0
        %2241 = vmatprep.subr.mxu0 0.0
        %2242 = vmatpush1.msra.mxu0 0.0
        %2243 = vmatprep.subr.mxu0 0.0
        %2244 = vmatpush1.msra.mxu0 0.0
        %2245 = vmatprep.subr.mxu0 0.0
        %2246 = vmatpush1.msra.mxu0 0.0
        %2247 = vmatprep.mubr.f32.mxu0 0.0
        %2248 = vmatmul.mubr.f32.gmra.mrb[0].mxu0 %v2110
        %v2249 = vpop.f32.mrb[0].mxu0
        %v2250 = vadd.f32 %v2106, %v2249
        %v2251 = vpop.f32.mrb[0].mxu0
        %2252 = vdwg.mxu0
        %s2253 = scalar_lea.vmem %s4, 16
        %v2254 = vld [vmem:[%s2253] sm:$0xff]
        %2255 = vrot.lane.b32.xlu0 %v1941, 17
        %v2256 = vpop.permute.xlu0 %2255
        %2257 = vrot.lane.b32.xlu0 %v1942, 17
        %v2258 = vpop.permute.xlu0 %2257
        %2259 = vrot.lane.b32.xlu0 %v1943, 17
        %v2260 = vpop.permute.xlu0 %2259
        %v2261 = vsel %vm584, %v2258, %v2260
        %v2262 = vsel %vm584, %v2256, %v2258
        %v2263 = vsel %vm584, %v2260, %v2256
        %v2265 = vsel %vm287, %v2254, 0
        %2267 = vmatprep.subr.mxu0 %v2262
        %2268 = vmatpush1.msra.mxu0 %v2263
        %2269 = vmatprep.subr.mxu0 0.0
        %2270 = vmatpush1.msra.mxu0 0.0
        %2271 = vmatprep.subr.mxu0 0.0
        %2272 = vmatpush1.msra.mxu0 0.0
        %2273 = vmatprep.subr.mxu0 0.0
        %2274 = vmatpush1.msra.mxu0 0.0
        %2275 = vmatprep.subr.mxu0 0.0
        %2276 = vmatpush1.msra.mxu0 0.0
        %2277 = vmatprep.subr.mxu0 0.0
        %2278 = vmatpush1.msra.mxu0 0.0
        %2279 = vmatprep.subr.mxu0 0.0
        %2280 = vmatpush1.msra.mxu0 0.0
        %2281 = vmatprep.subr.mxu0 0.0
        %2282 = vmatpush1.msra.mxu0 0.0
        %2283 = vmatprep.subr.mxu0 0.0
        %2284 = vmatpush1.msra.mxu0 0.0
        %2285 = vmatprep.subr.mxu0 0.0
        %2286 = vmatpush1.msra.mxu0 0.0
        %2287 = vmatprep.subr.mxu0 0.0
        %2288 = vmatpush1.msra.mxu0 0.0
        %2289 = vmatprep.subr.mxu0 0.0
        %2290 = vmatpush1.msra.mxu0 0.0
        %2291 = vmatprep.subr.mxu0 0.0
        %2292 = vmatpush1.msra.mxu0 0.0
        %2293 = vmatprep.subr.mxu0 0.0
        %2294 = vmatpush1.msra.mxu0 0.0
        %2295 = vmatprep.subr.mxu0 0.0
        %2296 = vmatpush1.msra.mxu0 0.0
        %2297 = vmatprep.subr.mxu0 0.0
        %2298 = vmatpush1.msra.mxu0 0.0
        %2299 = vmatprep.subr.mxu0 0.0
        %2300 = vmatpush1.msra.mxu0 0.0
        %2301 = vmatprep.subr.mxu0 0.0
        %2302 = vmatpush1.msra.mxu0 0.0
        %2303 = vmatprep.subr.mxu0 0.0
        %2304 = vmatpush1.msra.mxu0 0.0
        %2305 = vmatprep.subr.mxu0 0.0
        %2306 = vmatpush1.msra.mxu0 0.0
        %2307 = vmatprep.subr.mxu0 0.0
        %2308 = vmatpush1.msra.mxu0 0.0
        %2309 = vmatprep.subr.mxu0 0.0
        %2310 = vmatpush1.msra.mxu0 0.0
        %2311 = vmatprep.subr.mxu0 0.0
        %2312 = vmatpush1.msra.mxu0 0.0
        %2313 = vmatprep.subr.mxu0 0.0
        %2314 = vmatpush1.msra.mxu0 0.0
        %2315 = vmatprep.subr.mxu0 0.0
        %2316 = vmatpush1.msra.mxu0 0.0
        %2317 = vmatprep.subr.mxu0 0.0
        %2318 = vmatpush1.msra.mxu0 0.0
        %2319 = vmatprep.subr.mxu0 0.0
        %2320 = vmatpush1.msra.mxu0 0.0
        %2321 = vmatprep.subr.mxu0 0.0
        %2322 = vmatpush1.msra.mxu0 0.0
        %2323 = vmatprep.subr.mxu0 0.0
        %2324 = vmatpush1.msra.mxu0 0.0
        %2325 = vmatprep.subr.mxu0 0.0
        %2326 = vmatpush1.msra.mxu0 0.0
        %2327 = vmatprep.subr.mxu0 0.0
        %2328 = vmatpush1.msra.mxu0 0.0
        %2329 = vmatprep.subr.mxu0 0.0
        %2330 = vmatpush1.msra.mxu0 0.0
        %2331 = vmatprep.mubr.f32.mxu0 0.0
        %2332 = vmatmul.mubr.f32.gmra.mrb[0].mxu0 %v2265
        %v2333 = vpop.f32.mrb[0].mxu0
        %v2334 = vadd.f32 0.0, %v2333
        %v2335 = vpop.f32.mrb[0].mxu0
        %v2336 = vadd.f32 0.0, %v2335
        %2337 = vdwg.mxu0
        %2338 = vmatprep.subr.mxu0 0.0
        %2339 = vmatpush1.msra.mxu0 %v2261
        %2340 = vmatprep.subr.mxu0 0.0
        %2341 = vmatpush1.msra.mxu0 0.0
        %2342 = vmatprep.subr.mxu0 0.0
        %2343 = vmatpush1.msra.mxu0 0.0
        %2344 = vmatprep.subr.mxu0 0.0
        %2345 = vmatpush1.msra.mxu0 0.0
        %2346 = vmatprep.subr.mxu0 0.0
        %2347 = vmatpush1.msra.mxu0 0.0
        %2348 = vmatprep.subr.mxu0 0.0
        %2349 = vmatpush1.msra.mxu0 0.0
        %2350 = vmatprep.subr.mxu0 0.0
        %2351 = vmatpush1.msra.mxu0 0.0
        %2352 = vmatprep.subr.mxu0 0.0
        %2353 = vmatpush1.msra.mxu0 0.0
        %2354 = vmatprep.subr.mxu0 0.0
        %2355 = vmatpush1.msra.mxu0 0.0
        %2356 = vmatprep.subr.mxu0 0.0
        %2357 = vmatpush1.msra.mxu0 0.0
        %2358 = vmatprep.subr.mxu0 0.0
        %2359 = vmatpush1.msra.mxu0 0.0
        %2360 = vmatprep.subr.mxu0 0.0
        %2361 = vmatpush1.msra.mxu0 0.0
        %2362 = vmatprep.subr.mxu0 0.0
        %2363 = vmatpush1.msra.mxu0 0.0
        %2364 = vmatprep.subr.mxu0 0.0
        %2365 = vmatpush1.msra.mxu0 0.0
        %2366 = vmatprep.subr.mxu0 0.0
        %2367 = vmatpush1.msra.mxu0 0.0
        %2368 = vmatprep.subr.mxu0 0.0
        %2369 = vmatpush1.msra.mxu0 0.0
        %2370 = vmatprep.subr.mxu0 0.0
        %2371 = vmatpush1.msra.mxu0 0.0
        %2372 = vmatprep.subr.mxu0 0.0
        %2373 = vmatpush1.msra.mxu0 0.0
        %2374 = vmatprep.subr.mxu0 0.0
        %2375 = vmatpush1.msra.mxu0 0.0
        %2376 = vmatprep.subr.mxu0 0.0
        %2377 = vmatpush1.msra.mxu0 0.0
        %2378 = vmatprep.subr.mxu0 0.0
        %2379 = vmatpush1.msra.mxu0 0.0
        %2380 = vmatprep.subr.mxu0 0.0
        %2381 = vmatpush1.msra.mxu0 0.0
        %2382 = vmatprep.subr.mxu0 0.0
        %2383 = vmatpush1.msra.mxu0 0.0
        %2384 = vmatprep.subr.mxu0 0.0
        %2385 = vmatpush1.msra.mxu0 0.0
        %2386 = vmatprep.subr.mxu0 0.0
        %2387 = vmatpush1.msra.mxu0 0.0
        %2388 = vmatprep.subr.mxu0 0.0
        %2389 = vmatpush1.msra.mxu0 0.0
        %2390 = vmatprep.subr.mxu0 0.0
        %2391 = vmatpush1.msra.mxu0 0.0
        %2392 = vmatprep.subr.mxu0 0.0
        %2393 = vmatpush1.msra.mxu0 0.0
        %2394 = vmatprep.subr.mxu0 0.0
        %2395 = vmatpush1.msra.mxu0 0.0
        %2396 = vmatprep.subr.mxu0 0.0
        %2397 = vmatpush1.msra.mxu0 0.0
        %2398 = vmatprep.subr.mxu0 0.0
        %2399 = vmatpush1.msra.mxu0 0.0
        %2400 = vmatprep.subr.mxu0 0.0
        %2401 = vmatpush1.msra.mxu0 0.0
        %2402 = vmatprep.mubr.f32.mxu0 0.0
        %2403 = vmatmul.mubr.f32.gmra.mrb[0].mxu0 %v2265
        %v2404 = vpop.f32.mrb[0].mxu0
        %v2405 = vadd.f32 0.0, %v2404
        %v2406 = vpop.f32.mrb[0].mxu0
        %2407 = vdwg.mxu0
        %v2408 = vadd.f32 %v2179, %v2334
        %v2409 = vadd.f32 %v2181, %v2336
        %v2410 = vadd.f32 %v2250, %v2405
        %s2411 = scalar_lea.vmem %s4, 24
        %v2412 = vld [vmem:[%s2411] sm:$0xff]
        %2413 = vrot.lane.b32.xlu0 %v1941, 1
        %v2414 = vpop.permute.xlu0 %2413
        %2415 = vrot.lane.b32.xlu0 %v1942, 1
        %v2416 = vpop.permute.xlu0 %2415
        %2417 = vrot.lane.b32.xlu0 %v1943, 1
        %v2418 = vpop.permute.xlu0 %2417
        %v2419 = vsel %vm743, %v2416, %v2418
        %v2420 = vsel %vm743, %v2414, %v2416
        %v2421 = vsel %vm743, %v2418, %v2414
        %v2423 = vsel %vm287, %v2412, 0
        %2425 = vmatprep.subr.mxu0 %v2420
        %2426 = vmatpush1.msra.mxu0 %v2421
        %2427 = vmatprep.subr.mxu0 0.0
        %2428 = vmatpush1.msra.mxu0 0.0
        %2429 = vmatprep.subr.mxu0 0.0
        %2430 = vmatpush1.msra.mxu0 0.0
        %2431 = vmatprep.subr.mxu0 0.0
        %2432 = vmatpush1.msra.mxu0 0.0
        %2433 = vmatprep.subr.mxu0 0.0
        %2434 = vmatpush1.msra.mxu0 0.0
        %2435 = vmatprep.subr.mxu0 0.0
        %2436 = vmatpush1.msra.mxu0 0.0
        %2437 = vmatprep.subr.mxu0 0.0
        %2438 = vmatpush1.msra.mxu0 0.0
        %2439 = vmatprep.subr.mxu0 0.0
        %2440 = vmatpush1.msra.mxu0 0.0
        %2441 = vmatprep.subr.mxu0 0.0
        %2442 = vmatpush1.msra.mxu0 0.0
        %2443 = vmatprep.subr.mxu0 0.0
        %2444 = vmatpush1.msra.mxu0 0.0
        %2445 = vmatprep.subr.mxu0 0.0
        %2446 = vmatpush1.msra.mxu0 0.0
        %2447 = vmatprep.subr.mxu0 0.0
        %2448 = vmatpush1.msra.mxu0 0.0
        %2449 = vmatprep.subr.mxu0 0.0
        %2450 = vmatpush1.msra.mxu0 0.0
        %2451 = vmatprep.subr.mxu0 0.0
        %2452 = vmatpush1.msra.mxu0 0.0
        %2453 = vmatprep.subr.mxu0 0.0
        %2454 = vmatpush1.msra.mxu0 0.0
        %2455 = vmatprep.subr.mxu0 0.0
        %2456 = vmatpush1.msra.mxu0 0.0
        %2457 = vmatprep.subr.mxu0 0.0
        %2458 = vmatpush1.msra.mxu0 0.0
        %2459 = vmatprep.subr.mxu0 0.0
        %2460 = vmatpush1.msra.mxu0 0.0
        %2461 = vmatprep.subr.mxu0 0.0
        %2462 = vmatpush1.msra.mxu0 0.0
        %2463 = vmatprep.subr.mxu0 0.0
        %2464 = vmatpush1.msra.mxu0 0.0
        %2465 = vmatprep.subr.mxu0 0.0
        %2466 = vmatpush1.msra.mxu0 0.0
        %2467 = vmatprep.subr.mxu0 0.0
        %2468 = vmatpush1.msra.mxu0 0.0
        %2469 = vmatprep.subr.mxu0 0.0
        %2470 = vmatpush1.msra.mxu0 0.0
        %2471 = vmatprep.subr.mxu0 0.0
        %2472 = vmatpush1.msra.mxu0 0.0
        %2473 = vmatprep.subr.mxu0 0.0
        %2474 = vmatpush1.msra.mxu0 0.0
        %2475 = vmatprep.subr.mxu0 0.0
        %2476 = vmatpush1.msra.mxu0 0.0
        %2477 = vmatprep.subr.mxu0 0.0
        %2478 = vmatpush1.msra.mxu0 0.0
        %2479 = vmatprep.subr.mxu0 0.0
        %2480 = vmatpush1.msra.mxu0 0.0
        %2481 = vmatprep.subr.mxu0 0.0
        %2482 = vmatpush1.msra.mxu0 0.0
        %2483 = vmatprep.subr.mxu0 0.0
        %2484 = vmatpush1.msra.mxu0 0.0
        %2485 = vmatprep.subr.mxu0 0.0
        %2486 = vmatpush1.msra.mxu0 0.0
        %2487 = vmatprep.subr.mxu0 0.0
        %2488 = vmatpush1.msra.mxu0 0.0
        %2489 = vmatprep.mubr.f32.mxu0 0.0
        %2490 = vmatmul.mubr.f32.gmra.mrb[0].mxu0 %v2423
        %v2491 = vpop.f32.mrb[0].mxu0
        %v2492 = vadd.f32 0.0, %v2491
        %v2493 = vpop.f32.mrb[0].mxu0
        %v2494 = vadd.f32 0.0, %v2493
        %2495 = vdwg.mxu0
        %2496 = vmatprep.subr.mxu0 0.0
        %2497 = vmatpush1.msra.mxu0 %v2419
        %2498 = vmatprep.subr.mxu0 0.0
        %2499 = vmatpush1.msra.mxu0 0.0
        %2500 = vmatprep.subr.mxu0 0.0
        %2501 = vmatpush1.msra.mxu0 0.0
        %2502 = vmatprep.subr.mxu0 0.0
        %2503 = vmatpush1.msra.mxu0 0.0
        %2504 = vmatprep.subr.mxu0 0.0
        %2505 = vmatpush1.msra.mxu0 0.0
        %2506 = vmatprep.subr.mxu0 0.0
        %2507 = vmatpush1.msra.mxu0 0.0
        %2508 = vmatprep.subr.mxu0 0.0
        %2509 = vmatpush1.msra.mxu0 0.0
        %2510 = vmatprep.subr.mxu0 0.0
        %2511 = vmatpush1.msra.mxu0 0.0
        %2512 = vmatprep.subr.mxu0 0.0
        %2513 = vmatpush1.msra.mxu0 0.0
        %2514 = vmatprep.subr.mxu0 0.0
        %2515 = vmatpush1.msra.mxu0 0.0
        %2516 = vmatprep.subr.mxu0 0.0
        %2517 = vmatpush1.msra.mxu0 0.0
        %2518 = vmatprep.subr.mxu0 0.0
        %2519 = vmatpush1.msra.mxu0 0.0
        %2520 = vmatprep.subr.mxu0 0.0
        %2521 = vmatpush1.msra.mxu0 0.0
        %2522 = vmatprep.subr.mxu0 0.0
        %2523 = vmatpush1.msra.mxu0 0.0
        %2524 = vmatprep.subr.mxu0 0.0
        %2525 = vmatpush1.msra.mxu0 0.0
        %2526 = vmatprep.subr.mxu0 0.0
        %2527 = vmatpush1.msra.mxu0 0.0
        %2528 = vmatprep.subr.mxu0 0.0
        %2529 = vmatpush1.msra.mxu0 0.0
        %2530 = vmatprep.subr.mxu0 0.0
        %2531 = vmatpush1.msra.mxu0 0.0
        %2532 = vmatprep.subr.mxu0 0.0
        %2533 = vmatpush1.msra.mxu0 0.0
        %2534 = vmatprep.subr.mxu0 0.0
        %2535 = vmatpush1.msra.mxu0 0.0
        %2536 = vmatprep.subr.mxu0 0.0
        %2537 = vmatpush1.msra.mxu0 0.0
        %2538 = vmatprep.subr.mxu0 0.0
        %2539 = vmatpush1.msra.mxu0 0.0
        %2540 = vmatprep.subr.mxu0 0.0
        %2541 = vmatpush1.msra.mxu0 0.0
        %2542 = vmatprep.subr.mxu0 0.0
        %2543 = vmatpush1.msra.mxu0 0.0
        %2544 = vmatprep.subr.mxu0 0.0
        %2545 = vmatpush1.msra.mxu0 0.0
        %2546 = vmatprep.subr.mxu0 0.0
        %2547 = vmatpush1.msra.mxu0 0.0
        %2548 = vmatprep.subr.mxu0 0.0
        %2549 = vmatpush1.msra.mxu0 0.0
        %2550 = vmatprep.subr.mxu0 0.0
        %2551 = vmatpush1.msra.mxu0 0.0
        %2552 = vmatprep.subr.mxu0 0.0
        %2553 = vmatpush1.msra.mxu0 0.0
        %2554 = vmatprep.subr.mxu0 0.0
        %2555 = vmatpush1.msra.mxu0 0.0
        %2556 = vmatprep.subr.mxu0 0.0
        %2557 = vmatpush1.msra.mxu0 0.0
        %2558 = vmatprep.subr.mxu0 0.0
        %2559 = vmatpush1.msra.mxu0 0.0
        %2560 = vmatprep.mubr.f32.mxu0 0.0
        %2561 = vmatmul.mubr.f32.gmra.mrb[0].mxu0 %v2423
        %v2562 = vpop.f32.mrb[0].mxu0
        %v2563 = vadd.f32 0.0, %v2562
        %v2564 = vpop.f32.mrb[0].mxu0
        %2565 = vdwg.mxu0
        %v2566 = vadd.f32 %v2408, %v2492
        %v2567 = vadd.f32 %v2409, %v2494
        %v2568 = vadd.f32 %v2410, %v2563
        %s2569 = scalar_lea.vmem %s4, 32
        %v2570 = vld [vmem:[%s2569] sm:$0xff]
        %v2572 = vsel %vm287, %v2570, 0
        %2574 = vmatprep.subr.mxu0 %v1942
        %2575 = vmatpush1.msra.mxu0 %v1941
        %2576 = vmatprep.subr.mxu0 0.0
        %2577 = vmatpush1.msra.mxu0 0.0
        %2578 = vmatprep.subr.mxu0 0.0
        %2579 = vmatpush1.msra.mxu0 0.0
        %2580 = vmatprep.subr.mxu0 0.0
        %2581 = vmatpush1.msra.mxu0 0.0
        %2582 = vmatprep.subr.mxu0 0.0
        %2583 = vmatpush1.msra.mxu0 0.0
        %2584 = vmatprep.subr.mxu0 0.0
        %2585 = vmatpush1.msra.mxu0 0.0
        %2586 = vmatprep.subr.mxu0 0.0
        %2587 = vmatpush1.msra.mxu0 0.0
        %2588 = vmatprep.subr.mxu0 0.0
        %2589 = vmatpush1.msra.mxu0 0.0
        %2590 = vmatprep.subr.mxu0 0.0
        %2591 = vmatpush1.msra.mxu0 0.0
        %2592 = vmatprep.subr.mxu0 0.0
        %2593 = vmatpush1.msra.mxu0 0.0
        %2594 = vmatprep.subr.mxu0 0.0
        %2595 = vmatpush1.msra.mxu0 0.0
        %2596 = vmatprep.subr.mxu0 0.0
        %2597 = vmatpush1.msra.mxu0 0.0
        %2598 = vmatprep.subr.mxu0 0.0
        %2599 = vmatpush1.msra.mxu0 0.0
        %2600 = vmatprep.subr.mxu0 0.0
        %2601 = vmatpush1.msra.mxu0 0.0
        %2602 = vmatprep.subr.mxu0 0.0
        %2603 = vmatpush1.msra.mxu0 0.0
        %2604 = vmatprep.subr.mxu0 0.0
        %2605 = vmatpush1.msra.mxu0 0.0
        %2606 = vmatprep.subr.mxu0 0.0
        %2607 = vmatpush1.msra.mxu0 0.0
        %2608 = vmatprep.subr.mxu0 0.0
        %2609 = vmatpush1.msra.mxu0 0.0
        %2610 = vmatprep.subr.mxu0 0.0
        %2611 = vmatpush1.msra.mxu0 0.0
        %2612 = vmatprep.subr.mxu0 0.0
        %2613 = vmatpush1.msra.mxu0 0.0
        %2614 = vmatprep.subr.mxu0 0.0
        %2615 = vmatpush1.msra.mxu0 0.0
        %2616 = vmatprep.subr.mxu0 0.0
        %2617 = vmatpush1.msra.mxu0 0.0
        %2618 = vmatprep.subr.mxu0 0.0
        %2619 = vmatpush1.msra.mxu0 0.0
        %2620 = vmatprep.subr.mxu0 0.0
        %2621 = vmatpush1.msra.mxu0 0.0
        %2622 = vmatprep.subr.mxu0 0.0
        %2623 = vmatpush1.msra.mxu0 0.0
        %2624 = vmatprep.subr.mxu0 0.0
        %2625 = vmatpush1.msra.mxu0 0.0
        %2626 = vmatprep.subr.mxu0 0.0
        %2627 = vmatpush1.msra.mxu0 0.0
        %2628 = vmatprep.subr.mxu0 0.0
        %2629 = vmatpush1.msra.mxu0 0.0
        %2630 = vmatprep.subr.mxu0 0.0
        %2631 = vmatpush1.msra.mxu0 0.0
        %2632 = vmatprep.subr.mxu0 0.0
        %2633 = vmatpush1.msra.mxu0 0.0
        %2634 = vmatprep.subr.mxu0 0.0
        %2635 = vmatpush1.msra.mxu0 0.0
        %2636 = vmatprep.subr.mxu0 0.0
        %2637 = vmatpush1.msra.mxu0 0.0
        %2638 = vmatprep.mubr.f32.mxu0 0.0
        %2639 = vmatmul.mubr.f32.gmra.mrb[0].mxu0 %v2572
        %v2640 = vpop.f32.mrb[0].mxu0
        %v2641 = vadd.f32 0.0, %v2640
        %v2642 = vpop.f32.mrb[0].mxu0
        %v2643 = vadd.f32 0.0, %v2642
        %2644 = vdwg.mxu0
        %2645 = vmatprep.subr.mxu0 0.0
        %2646 = vmatpush1.msra.mxu0 %v1943
        %2647 = vmatprep.subr.mxu0 0.0
        %2648 = vmatpush1.msra.mxu0 0.0
        %2649 = vmatprep.subr.mxu0 0.0
        %2650 = vmatpush1.msra.mxu0 0.0
        %2651 = vmatprep.subr.mxu0 0.0
        %2652 = vmatpush1.msra.mxu0 0.0
        %2653 = vmatprep.subr.mxu0 0.0
        %2654 = vmatpush1.msra.mxu0 0.0
        %2655 = vmatprep.subr.mxu0 0.0
        %2656 = vmatpush1.msra.mxu0 0.0
        %2657 = vmatprep.subr.mxu0 0.0
        %2658 = vmatpush1.msra.mxu0 0.0
        %2659 = vmatprep.subr.mxu0 0.0
        %2660 = vmatpush1.msra.mxu0 0.0
        %2661 = vmatprep.subr.mxu0 0.0
        %2662 = vmatpush1.msra.mxu0 0.0
        %2663 = vmatprep.subr.mxu0 0.0
        %2664 = vmatpush1.msra.mxu0 0.0
        %2665 = vmatprep.subr.mxu0 0.0
        %2666 = vmatpush1.msra.mxu0 0.0
        %2667 = vmatprep.subr.mxu0 0.0
        %2668 = vmatpush1.msra.mxu0 0.0
        %2669 = vmatprep.subr.mxu0 0.0
        %2670 = vmatpush1.msra.mxu0 0.0
        %2671 = vmatprep.subr.mxu0 0.0
        %2672 = vmatpush1.msra.mxu0 0.0
        %2673 = vmatprep.subr.mxu0 0.0
        %2674 = vmatpush1.msra.mxu0 0.0
        %2675 = vmatprep.subr.mxu0 0.0
        %2676 = vmatpush1.msra.mxu0 0.0
        %2677 = vmatprep.subr.mxu0 0.0
        %2678 = vmatpush1.msra.mxu0 0.0
        %2679 = vmatprep.subr.mxu0 0.0
        %2680 = vmatpush1.msra.mxu0 0.0
        %2681 = vmatprep.subr.mxu0 0.0
        %2682 = vmatpush1.msra.mxu0 0.0
        %2683 = vmatprep.subr.mxu0 0.0
        %2684 = vmatpush1.msra.mxu0 0.0
        %2685 = vmatprep.subr.mxu0 0.0
        %2686 = vmatpush1.msra.mxu0 0.0
        %2687 = vmatprep.subr.mxu0 0.0
        %2688 = vmatpush1.msra.mxu0 0.0
        %2689 = vmatprep.subr.mxu0 0.0
        %2690 = vmatpush1.msra.mxu0 0.0
        %2691 = vmatprep.subr.mxu0 0.0
        %2692 = vmatpush1.msra.mxu0 0.0
        %2693 = vmatprep.subr.mxu0 0.0
        %2694 = vmatpush1.msra.mxu0 0.0
        %2695 = vmatprep.subr.mxu0 0.0
        %2696 = vmatpush1.msra.mxu0 0.0
        %2697 = vmatprep.subr.mxu0 0.0
        %2698 = vmatpush1.msra.mxu0 0.0
        %2699 = vmatprep.subr.mxu0 0.0
        %2700 = vmatpush1.msra.mxu0 0.0
        %2701 = vmatprep.subr.mxu0 0.0
        %2702 = vmatpush1.msra.mxu0 0.0
        %2703 = vmatprep.subr.mxu0 0.0
        %2704 = vmatpush1.msra.mxu0 0.0
        %2705 = vmatprep.subr.mxu0 0.0
        %2706 = vmatpush1.msra.mxu0 0.0
        %2707 = vmatprep.subr.mxu0 0.0
        %2708 = vmatpush1.msra.mxu0 0.0
        %2709 = vmatprep.mubr.f32.mxu0 0.0
        %2710 = vmatmul.mubr.f32.gmra.mrb[0].mxu0 %v2572
        %v2711 = vpop.f32.mrb[0].mxu0
        %v2712 = vadd.f32 0.0, %v2711
        %v2713 = vpop.f32.mrb[0].mxu0
        %2714 = vdwg.mxu0
        %v2715 = vadd.f32 %v2566, %v2641
        %v2716 = vadd.f32 %v2567, %v2643
        %v2717 = vadd.f32 %v2568, %v2712
        %s2718 = scalar_lea.vmem %s4, 40
        %v2719 = vld [vmem:[%s2718] sm:$0xff]
        %2720 = vrot.lane.b32.xlu0 %v1941, 127
        %v2721 = vpop.permute.xlu0 %2720
        %2722 = vrot.lane.b32.xlu0 %v1942, 127
        %v2723 = vpop.permute.xlu0 %2722
        %2724 = vrot.lane.b32.xlu0 %v1943, 127
        %v2725 = vpop.permute.xlu0 %2724
        %v2726 = vsel %vm1051, %v2723, %v2725
        %v2727 = vsel %vm1051, %v2721, %v2723
        %v2728 = vsel %vm1051, %v2725, %v2721
        %v2730 = vsel %vm287, %v2719, 0
        %2732 = vmatprep.subr.mxu0 %v2726
        %2733 = vmatpush1.msra.mxu0 %v2727
        %2734 = vmatprep.subr.mxu0 0.0
        %2735 = vmatpush1.msra.mxu0 0.0
        %2736 = vmatprep.subr.mxu0 0.0
        %2737 = vmatpush1.msra.mxu0 0.0
        %2738 = vmatprep.subr.mxu0 0.0
        %2739 = vmatpush1.msra.mxu0 0.0
        %2740 = vmatprep.subr.mxu0 0.0
        %2741 = vmatpush1.msra.mxu0 0.0
        %2742 = vmatprep.subr.mxu0 0.0
        %2743 = vmatpush1.msra.mxu0 0.0
        %2744 = vmatprep.subr.mxu0 0.0
        %2745 = vmatpush1.msra.mxu0 0.0
        %2746 = vmatprep.subr.mxu0 0.0
        %2747 = vmatpush1.msra.mxu0 0.0
        %2748 = vmatprep.subr.mxu0 0.0
        %2749 = vmatpush1.msra.mxu0 0.0
        %2750 = vmatprep.subr.mxu0 0.0
        %2751 = vmatpush1.msra.mxu0 0.0
        %2752 = vmatprep.subr.mxu0 0.0
        %2753 = vmatpush1.msra.mxu0 0.0
        %2754 = vmatprep.subr.mxu0 0.0
        %2755 = vmatpush1.msra.mxu0 0.0
        %2756 = vmatprep.subr.mxu0 0.0
        %2757 = vmatpush1.msra.mxu0 0.0
        %2758 = vmatprep.subr.mxu0 0.0
        %2759 = vmatpush1.msra.mxu0 0.0
        %2760 = vmatprep.subr.mxu0 0.0
        %2761 = vmatpush1.msra.mxu0 0.0
        %2762 = vmatprep.subr.mxu0 0.0
        %2763 = vmatpush1.msra.mxu0 0.0
        %2764 = vmatprep.subr.mxu0 0.0
        %2765 = vmatpush1.msra.mxu0 0.0
        %2766 = vmatprep.subr.mxu0 0.0
        %2767 = vmatpush1.msra.mxu0 0.0
        %2768 = vmatprep.subr.mxu0 0.0
        %2769 = vmatpush1.msra.mxu0 0.0
        %2770 = vmatprep.subr.mxu0 0.0
        %2771 = vmatpush1.msra.mxu0 0.0
        %2772 = vmatprep.subr.mxu0 0.0
        %2773 = vmatpush1.msra.mxu0 0.0
        %2774 = vmatprep.subr.mxu0 0.0
        %2775 = vmatpush1.msra.mxu0 0.0
        %2776 = vmatprep.subr.mxu0 0.0
        %2777 = vmatpush1.msra.mxu0 0.0
        %2778 = vmatprep.subr.mxu0 0.0
        %2779 = vmatpush1.msra.mxu0 0.0
        %2780 = vmatprep.subr.mxu0 0.0
        %2781 = vmatpush1.msra.mxu0 0.0
        %2782 = vmatprep.subr.mxu0 0.0
        %2783 = vmatpush1.msra.mxu0 0.0
        %2784 = vmatprep.subr.mxu0 0.0
        %2785 = vmatpush1.msra.mxu0 0.0
        %2786 = vmatprep.subr.mxu0 0.0
        %2787 = vmatpush1.msra.mxu0 0.0
        %2788 = vmatprep.subr.mxu0 0.0
        %2789 = vmatpush1.msra.mxu0 0.0
        %2790 = vmatprep.subr.mxu0 0.0
        %2791 = vmatpush1.msra.mxu0 0.0
        %2792 = vmatprep.subr.mxu0 0.0
        %2793 = vmatpush1.msra.mxu0 0.0
        %2794 = vmatprep.subr.mxu0 0.0
        %2795 = vmatpush1.msra.mxu0 0.0
        %2796 = vmatprep.mubr.f32.mxu0 0.0
        %2797 = vmatmul.mubr.f32.gmra.mrb[0].mxu0 %v2730
        %v2798 = vpop.f32.mrb[0].mxu0
        %v2799 = vadd.f32 0.0, %v2798
        %v2800 = vpop.f32.mrb[0].mxu0
        %v2801 = vadd.f32 0.0, %v2800
        %2802 = vdwg.mxu0
        %2803 = vmatprep.subr.mxu0 0.0
        %2804 = vmatpush1.msra.mxu0 %v2728
        %2805 = vmatprep.subr.mxu0 0.0
        %2806 = vmatpush1.msra.mxu0 0.0
        %2807 = vmatprep.subr.mxu0 0.0
        %2808 = vmatpush1.msra.mxu0 0.0
        %2809 = vmatprep.subr.mxu0 0.0
        %2810 = vmatpush1.msra.mxu0 0.0
        %2811 = vmatprep.subr.mxu0 0.0
        %2812 = vmatpush1.msra.mxu0 0.0
        %2813 = vmatprep.subr.mxu0 0.0
        %2814 = vmatpush1.msra.mxu0 0.0
        %2815 = vmatprep.subr.mxu0 0.0
        %2816 = vmatpush1.msra.mxu0 0.0
        %2817 = vmatprep.subr.mxu0 0.0
        %2818 = vmatpush1.msra.mxu0 0.0
        %2819 = vmatprep.subr.mxu0 0.0
        %2820 = vmatpush1.msra.mxu0 0.0
        %2821 = vmatprep.subr.mxu0 0.0
        %2822 = vmatpush1.msra.mxu0 0.0
        %2823 = vmatprep.subr.mxu0 0.0
        %2824 = vmatpush1.msra.mxu0 0.0
        %2825 = vmatprep.subr.mxu0 0.0
        %2826 = vmatpush1.msra.mxu0 0.0
        %2827 = vmatprep.subr.mxu0 0.0
        %2828 = vmatpush1.msra.mxu0 0.0
        %2829 = vmatprep.subr.mxu0 0.0
        %2830 = vmatpush1.msra.mxu0 0.0
        %2831 = vmatprep.subr.mxu0 0.0
        %2832 = vmatpush1.msra.mxu0 0.0
        %2833 = vmatprep.subr.mxu0 0.0
        %2834 = vmatpush1.msra.mxu0 0.0
        %2835 = vmatprep.subr.mxu0 0.0
        %2836 = vmatpush1.msra.mxu0 0.0
        %2837 = vmatprep.subr.mxu0 0.0
        %2838 = vmatpush1.msra.mxu0 0.0
        %2839 = vmatprep.subr.mxu0 0.0
        %2840 = vmatpush1.msra.mxu0 0.0
        %2841 = vmatprep.subr.mxu0 0.0
        %2842 = vmatpush1.msra.mxu0 0.0
        %2843 = vmatprep.subr.mxu0 0.0
        %2844 = vmatpush1.msra.mxu0 0.0
        %2845 = vmatprep.subr.mxu0 0.0
        %2846 = vmatpush1.msra.mxu0 0.0
        %2847 = vmatprep.subr.mxu0 0.0
        %2848 = vmatpush1.msra.mxu0 0.0
        %2849 = vmatprep.subr.mxu0 0.0
        %2850 = vmatpush1.msra.mxu0 0.0
        %2851 = vmatprep.subr.mxu0 0.0
        %2852 = vmatpush1.msra.mxu0 0.0
        %2853 = vmatprep.subr.mxu0 0.0
        %2854 = vmatpush1.msra.mxu0 0.0
        %2855 = vmatprep.subr.mxu0 0.0
        %2856 = vmatpush1.msra.mxu0 0.0
        %2857 = vmatprep.subr.mxu0 0.0
        %2858 = vmatpush1.msra.mxu0 0.0
        %2859 = vmatprep.subr.mxu0 0.0
        %2860 = vmatpush1.msra.mxu0 0.0
        %2861 = vmatprep.subr.mxu0 0.0
        %2862 = vmatpush1.msra.mxu0 0.0
        %2863 = vmatprep.subr.mxu0 0.0
        %2864 = vmatpush1.msra.mxu0 0.0
        %2865 = vmatprep.subr.mxu0 0.0
        %2866 = vmatpush1.msra.mxu0 0.0
        %2867 = vmatprep.mubr.f32.mxu0 0.0
        %2868 = vmatmul.mubr.f32.gmra.mrb[0].mxu0 %v2730
        %v2869 = vpop.f32.mrb[0].mxu0
        %v2870 = vadd.f32 0.0, %v2869
        %v2871 = vpop.f32.mrb[0].mxu0
        %2872 = vdwg.mxu0
        %v2873 = vadd.f32 %v2715, %v2799
        %v2874 = vadd.f32 %v2716, %v2801
        %v2875 = vadd.f32 %v2717, %v2870
        %s2876 = scalar_lea.vmem %s4, 48
        %v2877 = vld [vmem:[%s2876] sm:$0xff]
        %2878 = vrot.lane.b32.xlu0 %v1941, 111
        %v2879 = vpop.permute.xlu0 %2878
        %2880 = vrot.lane.b32.xlu0 %v1942, 111
        %v2881 = vpop.permute.xlu0 %2880
        %2882 = vrot.lane.b32.xlu0 %v1943, 111
        %v2883 = vpop.permute.xlu0 %2882
        %v2884 = vsel %vm1210, %v2881, %v2883
        %v2885 = vsel %vm1210, %v2879, %v2881
        %v2886 = vsel %vm1210, %v2883, %v2879
        %v2888 = vsel %vm287, %v2877, 0
        %2890 = vmatprep.subr.mxu0 %v2884
        %2891 = vmatpush1.msra.mxu0 %v2885
        %2892 = vmatprep.subr.mxu0 0.0
        %2893 = vmatpush1.msra.mxu0 0.0
        %2894 = vmatprep.subr.mxu0 0.0
        %2895 = vmatpush1.msra.mxu0 0.0
        %2896 = vmatprep.subr.mxu0 0.0
        %2897 = vmatpush1.msra.mxu0 0.0
        %2898 = vmatprep.subr.mxu0 0.0
        %2899 = vmatpush1.msra.mxu0 0.0
        %2900 = vmatprep.subr.mxu0 0.0
        %2901 = vmatpush1.msra.mxu0 0.0
        %2902 = vmatprep.subr.mxu0 0.0
        %2903 = vmatpush1.msra.mxu0 0.0
        %2904 = vmatprep.subr.mxu0 0.0
        %2905 = vmatpush1.msra.mxu0 0.0
        %2906 = vmatprep.subr.mxu0 0.0
        %2907 = vmatpush1.msra.mxu0 0.0
        %2908 = vmatprep.subr.mxu0 0.0
        %2909 = vmatpush1.msra.mxu0 0.0
        %2910 = vmatprep.subr.mxu0 0.0
        %2911 = vmatpush1.msra.mxu0 0.0
        %2912 = vmatprep.subr.mxu0 0.0
        %2913 = vmatpush1.msra.mxu0 0.0
        %2914 = vmatprep.subr.mxu0 0.0
        %2915 = vmatpush1.msra.mxu0 0.0
        %2916 = vmatprep.subr.mxu0 0.0
        %2917 = vmatpush1.msra.mxu0 0.0
        %2918 = vmatprep.subr.mxu0 0.0
        %2919 = vmatpush1.msra.mxu0 0.0
        %2920 = vmatprep.subr.mxu0 0.0
        %2921 = vmatpush1.msra.mxu0 0.0
        %2922 = vmatprep.subr.mxu0 0.0
        %2923 = vmatpush1.msra.mxu0 0.0
        %2924 = vmatprep.subr.mxu0 0.0
        %2925 = vmatpush1.msra.mxu0 0.0
        %2926 = vmatprep.subr.mxu0 0.0
        %2927 = vmatpush1.msra.mxu0 0.0
        %2928 = vmatprep.subr.mxu0 0.0
        %2929 = vmatpush1.msra.mxu0 0.0
        %2930 = vmatprep.subr.mxu0 0.0
        %2931 = vmatpush1.msra.mxu0 0.0
        %2932 = vmatprep.subr.mxu0 0.0
        %2933 = vmatpush1.msra.mxu0 0.0
        %2934 = vmatprep.subr.mxu0 0.0
        %2935 = vmatpush1.msra.mxu0 0.0
        %2936 = vmatprep.subr.mxu0 0.0
        %2937 = vmatpush1.msra.mxu0 0.0
        %2938 = vmatprep.subr.mxu0 0.0
        %2939 = vmatpush1.msra.mxu0 0.0
        %2940 = vmatprep.subr.mxu0 0.0
        %2941 = vmatpush1.msra.mxu0 0.0
        %2942 = vmatprep.subr.mxu0 0.0
        %2943 = vmatpush1.msra.mxu0 0.0
        %2944 = vmatprep.subr.mxu0 0.0
        %2945 = vmatpush1.msra.mxu0 0.0
        %2946 = vmatprep.subr.mxu0 0.0
        %2947 = vmatpush1.msra.mxu0 0.0
        %2948 = vmatprep.subr.mxu0 0.0
        %2949 = vmatpush1.msra.mxu0 0.0
        %2950 = vmatprep.subr.mxu0 0.0
        %2951 = vmatpush1.msra.mxu0 0.0
        %2952 = vmatprep.subr.mxu0 0.0
        %2953 = vmatpush1.msra.mxu0 0.0
        %2954 = vmatprep.mubr.f32.mxu0 0.0
        %2955 = vmatmul.mubr.f32.gmra.mrb[0].mxu0 %v2888
        %v2956 = vpop.f32.mrb[0].mxu0
        %v2957 = vadd.f32 0.0, %v2956
        %v2958 = vpop.f32.mrb[0].mxu0
        %v2959 = vadd.f32 0.0, %v2958
        %2960 = vdwg.mxu0
        %2961 = vmatprep.subr.mxu0 0.0
        %2962 = vmatpush1.msra.mxu0 %v2886
        %2963 = vmatprep.subr.mxu0 0.0
        %2964 = vmatpush1.msra.mxu0 0.0
        %2965 = vmatprep.subr.mxu0 0.0
        %2966 = vmatpush1.msra.mxu0 0.0
        %2967 = vmatprep.subr.mxu0 0.0
        %2968 = vmatpush1.msra.mxu0 0.0
        %2969 = vmatprep.subr.mxu0 0.0
        %2970 = vmatpush1.msra.mxu0 0.0
        %2971 = vmatprep.subr.mxu0 0.0
        %2972 = vmatpush1.msra.mxu0 0.0
        %2973 = vmatprep.subr.mxu0 0.0
        %2974 = vmatpush1.msra.mxu0 0.0
        %2975 = vmatprep.subr.mxu0 0.0
        %2976 = vmatpush1.msra.mxu0 0.0
        %2977 = vmatprep.subr.mxu0 0.0
        %2978 = vmatpush1.msra.mxu0 0.0
        %2979 = vmatprep.subr.mxu0 0.0
        %2980 = vmatpush1.msra.mxu0 0.0
        %2981 = vmatprep.subr.mxu0 0.0
        %2982 = vmatpush1.msra.mxu0 0.0
        %2983 = vmatprep.subr.mxu0 0.0
        %2984 = vmatpush1.msra.mxu0 0.0
        %2985 = vmatprep.subr.mxu0 0.0
        %2986 = vmatpush1.msra.mxu0 0.0
        %2987 = vmatprep.subr.mxu0 0.0
        %2988 = vmatpush1.msra.mxu0 0.0
        %2989 = vmatprep.subr.mxu0 0.0
        %2990 = vmatpush1.msra.mxu0 0.0
        %2991 = vmatprep.subr.mxu0 0.0
        %2992 = vmatpush1.msra.mxu0 0.0
        %2993 = vmatprep.subr.mxu0 0.0
        %2994 = vmatpush1.msra.mxu0 0.0
        %2995 = vmatprep.subr.mxu0 0.0
        %2996 = vmatpush1.msra.mxu0 0.0
        %2997 = vmatprep.subr.mxu0 0.0
        %2998 = vmatpush1.msra.mxu0 0.0
        %2999 = vmatprep.subr.mxu0 0.0
        %3000 = vmatpush1.msra.mxu0 0.0
        %3001 = vmatprep.subr.mxu0 0.0
        %3002 = vmatpush1.msra.mxu0 0.0
        %3003 = vmatprep.subr.mxu0 0.0
        %3004 = vmatpush1.msra.mxu0 0.0
        %3005 = vmatprep.subr.mxu0 0.0
        %3006 = vmatpush1.msra.mxu0 0.0
        %3007 = vmatprep.subr.mxu0 0.0
        %3008 = vmatpush1.msra.mxu0 0.0
        %3009 = vmatprep.subr.mxu0 0.0
        %3010 = vmatpush1.msra.mxu0 0.0
        %3011 = vmatprep.subr.mxu0 0.0
        %3012 = vmatpush1.msra.mxu0 0.0
        %3013 = vmatprep.subr.mxu0 0.0
        %3014 = vmatpush1.msra.mxu0 0.0
        %3015 = vmatprep.subr.mxu0 0.0
        %3016 = vmatpush1.msra.mxu0 0.0
        %3017 = vmatprep.subr.mxu0 0.0
        %3018 = vmatpush1.msra.mxu0 0.0
        %3019 = vmatprep.subr.mxu0 0.0
        %3020 = vmatpush1.msra.mxu0 0.0
        %3021 = vmatprep.subr.mxu0 0.0
        %3022 = vmatpush1.msra.mxu0 0.0
        %3023 = vmatprep.subr.mxu0 0.0
        %3024 = vmatpush1.msra.mxu0 0.0
        %3025 = vmatprep.mubr.f32.mxu0 0.0
        %3026 = vmatmul.mubr.f32.gmra.mrb[0].mxu0 %v2888
        %v3027 = vpop.f32.mrb[0].mxu0
        %v3028 = vadd.f32 0.0, %v3027
        %v3029 = vpop.f32.mrb[0].mxu0
        %3030 = vdwg.mxu0
        %v3031 = vadd.f32 %v2873, %v2957
        %v3032 = vadd.f32 %v2874, %v2959
        %v3033 = vadd.f32 %v2875, %v3028
        %s3034 = scalar_lea.vmem %s4, 56
        %v3035 = vld [vmem:[%s3034] sm:$0xff]
        %3036 = vrot.lane.b32.xlu0 %v1941, 110
        %v3037 = vpop.permute.xlu0 %3036
        %3038 = vrot.lane.b32.xlu0 %v1942, 110
        %v3039 = vpop.permute.xlu0 %3038
        %3040 = vrot.lane.b32.xlu0 %v1943, 110
        %v3041 = vpop.permute.xlu0 %3040
        %v3042 = vsel %vm1369, %v3039, %v3041
        %v3043 = vsel %vm1369, %v3037, %v3039
        %v3044 = vsel %vm1369, %v3041, %v3037
        %v3046 = vsel %vm287, %v3035, 0
        %3048 = vmatprep.subr.mxu0 %v3042
        %3049 = vmatpush1.msra.mxu0 %v3043
        %3050 = vmatprep.subr.mxu0 0.0
        %3051 = vmatpush1.msra.mxu0 0.0
        %3052 = vmatprep.subr.mxu0 0.0
        %3053 = vmatpush1.msra.mxu0 0.0
        %3054 = vmatprep.subr.mxu0 0.0
        %3055 = vmatpush1.msra.mxu0 0.0
        %3056 = vmatprep.subr.mxu0 0.0
        %3057 = vmatpush1.msra.mxu0 0.0
        %3058 = vmatprep.subr.mxu0 0.0
        %3059 = vmatpush1.msra.mxu0 0.0
        %3060 = vmatprep.subr.mxu0 0.0
        %3061 = vmatpush1.msra.mxu0 0.0
        %3062 = vmatprep.subr.mxu0 0.0
        %3063 = vmatpush1.msra.mxu0 0.0
        %3064 = vmatprep.subr.mxu0 0.0
        %3065 = vmatpush1.msra.mxu0 0.0
        %3066 = vmatprep.subr.mxu0 0.0
        %3067 = vmatpush1.msra.mxu0 0.0
        %3068 = vmatprep.subr.mxu0 0.0
        %3069 = vmatpush1.msra.mxu0 0.0
        %3070 = vmatprep.subr.mxu0 0.0
        %3071 = vmatpush1.msra.mxu0 0.0
        %3072 = vmatprep.subr.mxu0 0.0
        %3073 = vmatpush1.msra.mxu0 0.0
        %3074 = vmatprep.subr.mxu0 0.0
        %3075 = vmatpush1.msra.mxu0 0.0
        %3076 = vmatprep.subr.mxu0 0.0
        %3077 = vmatpush1.msra.mxu0 0.0
        %3078 = vmatprep.subr.mxu0 0.0
        %3079 = vmatpush1.msra.mxu0 0.0
        %3080 = vmatprep.subr.mxu0 0.0
        %3081 = vmatpush1.msra.mxu0 0.0
        %3082 = vmatprep.subr.mxu0 0.0
        %3083 = vmatpush1.msra.mxu0 0.0
        %3084 = vmatprep.subr.mxu0 0.0
        %3085 = vmatpush1.msra.mxu0 0.0
        %3086 = vmatprep.subr.mxu0 0.0
        %3087 = vmatpush1.msra.mxu0 0.0
        %3088 = vmatprep.subr.mxu0 0.0
        %3089 = vmatpush1.msra.mxu0 0.0
        %3090 = vmatprep.subr.mxu0 0.0
        %3091 = vmatpush1.msra.mxu0 0.0
        %3092 = vmatprep.subr.mxu0 0.0
        %3093 = vmatpush1.msra.mxu0 0.0
        %3094 = vmatprep.subr.mxu0 0.0
        %3095 = vmatpush1.msra.mxu0 0.0
        %3096 = vmatprep.subr.mxu0 0.0
        %3097 = vmatpush1.msra.mxu0 0.0
        %3098 = vmatprep.subr.mxu0 0.0
        %3099 = vmatpush1.msra.mxu0 0.0
        %3100 = vmatprep.subr.mxu0 0.0
        %3101 = vmatpush1.msra.mxu0 0.0
        %3102 = vmatprep.subr.mxu0 0.0
        %3103 = vmatpush1.msra.mxu0 0.0
        %3104 = vmatprep.subr.mxu0 0.0
        %3105 = vmatpush1.msra.mxu0 0.0
        %3106 = vmatprep.subr.mxu0 0.0
        %3107 = vmatpush1.msra.mxu0 0.0
        %3108 = vmatprep.subr.mxu0 0.0
        %3109 = vmatpush1.msra.mxu0 0.0
        %3110 = vmatprep.subr.mxu0 0.0
        %3111 = vmatpush1.msra.mxu0 0.0
        %3112 = vmatprep.mubr.f32.mxu0 0.0
        %3113 = vmatmul.mubr.f32.gmra.mrb[0].mxu0 %v3046
        %v3114 = vpop.f32.mrb[0].mxu0
        %v3115 = vadd.f32 0.0, %v3114
        %v3116 = vpop.f32.mrb[0].mxu0
        %v3117 = vadd.f32 0.0, %v3116
        %3118 = vdwg.mxu0
        %3119 = vmatprep.subr.mxu0 0.0
        %3120 = vmatpush1.msra.mxu0 %v3044
        %3121 = vmatprep.subr.mxu0 0.0
        %3122 = vmatpush1.msra.mxu0 0.0
        %3123 = vmatprep.subr.mxu0 0.0
        %3124 = vmatpush1.msra.mxu0 0.0
        %3125 = vmatprep.subr.mxu0 0.0
        %3126 = vmatpush1.msra.mxu0 0.0
        %3127 = vmatprep.subr.mxu0 0.0
        %3128 = vmatpush1.msra.mxu0 0.0
        %3129 = vmatprep.subr.mxu0 0.0
        %3130 = vmatpush1.msra.mxu0 0.0
        %3131 = vmatprep.subr.mxu0 0.0
        %3132 = vmatpush1.msra.mxu0 0.0
        %3133 = vmatprep.subr.mxu0 0.0
        %3134 = vmatpush1.msra.mxu0 0.0
        %3135 = vmatprep.subr.mxu0 0.0
        %3136 = vmatpush1.msra.mxu0 0.0
        %3137 = vmatprep.subr.mxu0 0.0
        %3138 = vmatpush1.msra.mxu0 0.0
        %3139 = vmatprep.subr.mxu0 0.0
        %3140 = vmatpush1.msra.mxu0 0.0
        %3141 = vmatprep.subr.mxu0 0.0
        %3142 = vmatpush1.msra.mxu0 0.0
        %3143 = vmatprep.subr.mxu0 0.0
        %3144 = vmatpush1.msra.mxu0 0.0
        %3145 = vmatprep.subr.mxu0 0.0
        %3146 = vmatpush1.msra.mxu0 0.0
        %3147 = vmatprep.subr.mxu0 0.0
        %3148 = vmatpush1.msra.mxu0 0.0
        %3149 = vmatprep.subr.mxu0 0.0
        %3150 = vmatpush1.msra.mxu0 0.0
        %3151 = vmatprep.subr.mxu0 0.0
        %3152 = vmatpush1.msra.mxu0 0.0
        %3153 = vmatprep.subr.mxu0 0.0
        %3154 = vmatpush1.msra.mxu0 0.0
        %3155 = vmatprep.subr.mxu0 0.0
        %3156 = vmatpush1.msra.mxu0 0.0
        %3157 = vmatprep.subr.mxu0 0.0
        %3158 = vmatpush1.msra.mxu0 0.0
        %3159 = vmatprep.subr.mxu0 0.0
        %3160 = vmatpush1.msra.mxu0 0.0
        %3161 = vmatprep.subr.mxu0 0.0
        %3162 = vmatpush1.msra.mxu0 0.0
        %3163 = vmatprep.subr.mxu0 0.0
        %3164 = vmatpush1.msra.mxu0 0.0
        %3165 = vmatprep.subr.mxu0 0.0
        %3166 = vmatpush1.msra.mxu0 0.0
        %3167 = vmatprep.subr.mxu0 0.0
        %3168 = vmatpush1.msra.mxu0 0.0
        %3169 = vmatprep.subr.mxu0 0.0
        %3170 = vmatpush1.msra.mxu0 0.0
        %3171 = vmatprep.subr.mxu0 0.0
        %3172 = vmatpush1.msra.mxu0 0.0
        %3173 = vmatprep.subr.mxu0 0.0
        %3174 = vmatpush1.msra.mxu0 0.0
        %3175 = vmatprep.subr.mxu0 0.0
        %3176 = vmatpush1.msra.mxu0 0.0
        %3177 = vmatprep.subr.mxu0 0.0
        %3178 = vmatpush1.msra.mxu0 0.0
        %3179 = vmatprep.subr.mxu0 0.0
        %3180 = vmatpush1.msra.mxu0 0.0
        %3181 = vmatprep.subr.mxu0 0.0
        %3182 = vmatpush1.msra.mxu0 0.0
        %3183 = vmatprep.mubr.f32.mxu0 0.0
        %3184 = vmatmul.mubr.f32.gmra.mrb[0].mxu0 %v3046
        %v3185 = vpop.f32.mrb[0].mxu0
        %v3186 = vadd.f32 0.0, %v3185
        %v3187 = vpop.f32.mrb[0].mxu0
        %3188 = vdwg.mxu0
        %v3189 = vadd.f32 %v3031, %v3115
        %v3190 = vadd.f32 %v3032, %v3117
        %v3191 = vadd.f32 %v3033, %v3186
        %s3192 = scalar_lea.vmem %s4, 64
        %v3193 = vld [vmem:[%s3192] sm:$0xff]
        %3194 = vrot.lane.b32.xlu0 %v1941, 109
        %v3195 = vpop.permute.xlu0 %3194
        %3196 = vrot.lane.b32.xlu0 %v1942, 109
        %v3197 = vpop.permute.xlu0 %3196
        %3198 = vrot.lane.b32.xlu0 %v1943, 109
        %v3199 = vpop.permute.xlu0 %3198
        %v3200 = vsel %vm1528, %v3197, %v3199
        %v3201 = vsel %vm1528, %v3195, %v3197
        %v3202 = vsel %vm1528, %v3199, %v3195
        %v3204 = vsel %vm287, %v3193, 0
        %3206 = vmatprep.subr.mxu0 %v3200
        %3207 = vmatpush1.msra.mxu0 %v3201
        %3208 = vmatprep.subr.mxu0 0.0
        %3209 = vmatpush1.msra.mxu0 0.0
        %3210 = vmatprep.subr.mxu0 0.0
        %3211 = vmatpush1.msra.mxu0 0.0
        %3212 = vmatprep.subr.mxu0 0.0
        %3213 = vmatpush1.msra.mxu0 0.0
        %3214 = vmatprep.subr.mxu0 0.0
        %3215 = vmatpush1.msra.mxu0 0.0
        %3216 = vmatprep.subr.mxu0 0.0
        %3217 = vmatpush1.msra.mxu0 0.0
        %3218 = vmatprep.subr.mxu0 0.0
        %3219 = vmatpush1.msra.mxu0 0.0
        %3220 = vmatprep.subr.mxu0 0.0
        %3221 = vmatpush1.msra.mxu0 0.0
        %3222 = vmatprep.subr.mxu0 0.0
        %3223 = vmatpush1.msra.mxu0 0.0
        %3224 = vmatprep.subr.mxu0 0.0
        %3225 = vmatpush1.msra.mxu0 0.0
        %3226 = vmatprep.subr.mxu0 0.0
        %3227 = vmatpush1.msra.mxu0 0.0
        %3228 = vmatprep.subr.mxu0 0.0
        %3229 = vmatpush1.msra.mxu0 0.0
        %3230 = vmatprep.subr.mxu0 0.0
        %3231 = vmatpush1.msra.mxu0 0.0
        %3232 = vmatprep.subr.mxu0 0.0
        %3233 = vmatpush1.msra.mxu0 0.0
        %3234 = vmatprep.subr.mxu0 0.0
        %3235 = vmatpush1.msra.mxu0 0.0
        %3236 = vmatprep.subr.mxu0 0.0
        %3237 = vmatpush1.msra.mxu0 0.0
        %3238 = vmatprep.subr.mxu0 0.0
        %3239 = vmatpush1.msra.mxu0 0.0
        %3240 = vmatprep.subr.mxu0 0.0
        %3241 = vmatpush1.msra.mxu0 0.0
        %3242 = vmatprep.subr.mxu0 0.0
        %3243 = vmatpush1.msra.mxu0 0.0
        %3244 = vmatprep.subr.mxu0 0.0
        %3245 = vmatpush1.msra.mxu0 0.0
        %3246 = vmatprep.subr.mxu0 0.0
        %3247 = vmatpush1.msra.mxu0 0.0
        %3248 = vmatprep.subr.mxu0 0.0
        %3249 = vmatpush1.msra.mxu0 0.0
        %3250 = vmatprep.subr.mxu0 0.0
        %3251 = vmatpush1.msra.mxu0 0.0
        %3252 = vmatprep.subr.mxu0 0.0
        %3253 = vmatpush1.msra.mxu0 0.0
        %3254 = vmatprep.subr.mxu0 0.0
        %3255 = vmatpush1.msra.mxu0 0.0
        %3256 = vmatprep.subr.mxu0 0.0
        %3257 = vmatpush1.msra.mxu0 0.0
        %3258 = vmatprep.subr.mxu0 0.0
        %3259 = vmatpush1.msra.mxu0 0.0
        %3260 = vmatprep.subr.mxu0 0.0
        %3261 = vmatpush1.msra.mxu0 0.0
        %3262 = vmatprep.subr.mxu0 0.0
        %3263 = vmatpush1.msra.mxu0 0.0
        %3264 = vmatprep.subr.mxu0 0.0
        %3265 = vmatpush1.msra.mxu0 0.0
        %3266 = vmatprep.subr.mxu0 0.0
        %3267 = vmatpush1.msra.mxu0 0.0
        %3268 = vmatprep.subr.mxu0 0.0
        %3269 = vmatpush1.msra.mxu0 0.0
        %3270 = vmatprep.mubr.f32.mxu0 0.0
        %3271 = vmatmul.mubr.f32.gmra.mrb[0].mxu0 %v3204
        %v3272 = vpop.f32.mrb[0].mxu0
        %v3273 = vadd.f32 0.0, %v3272
        %v3274 = vpop.f32.mrb[0].mxu0
        %v3275 = vadd.f32 0.0, %v3274
        %3276 = vdwg.mxu0
        %3277 = vmatprep.subr.mxu0 0.0
        %3278 = vmatpush1.msra.mxu0 %v3202
        %3279 = vmatprep.subr.mxu0 0.0
        %3280 = vmatpush1.msra.mxu0 0.0
        %3281 = vmatprep.subr.mxu0 0.0
        %3282 = vmatpush1.msra.mxu0 0.0
        %3283 = vmatprep.subr.mxu0 0.0
        %3284 = vmatpush1.msra.mxu0 0.0
        %3285 = vmatprep.subr.mxu0 0.0
        %3286 = vmatpush1.msra.mxu0 0.0
        %3287 = vmatprep.subr.mxu0 0.0
        %3288 = vmatpush1.msra.mxu0 0.0
        %3289 = vmatprep.subr.mxu0 0.0
        %3290 = vmatpush1.msra.mxu0 0.0
        %3291 = vmatprep.subr.mxu0 0.0
        %3292 = vmatpush1.msra.mxu0 0.0
        %3293 = vmatprep.subr.mxu0 0.0
        %3294 = vmatpush1.msra.mxu0 0.0
        %3295 = vmatprep.subr.mxu0 0.0
        %3296 = vmatpush1.msra.mxu0 0.0
        %3297 = vmatprep.subr.mxu0 0.0
        %3298 = vmatpush1.msra.mxu0 0.0
        %3299 = vmatprep.subr.mxu0 0.0
        %3300 = vmatpush1.msra.mxu0 0.0
        %3301 = vmatprep.subr.mxu0 0.0
        %3302 = vmatpush1.msra.mxu0 0.0
        %3303 = vmatprep.subr.mxu0 0.0
        %3304 = vmatpush1.msra.mxu0 0.0
        %3305 = vmatprep.subr.mxu0 0.0
        %3306 = vmatpush1.msra.mxu0 0.0
        %3307 = vmatprep.subr.mxu0 0.0
        %3308 = vmatpush1.msra.mxu0 0.0
        %3309 = vmatprep.subr.mxu0 0.0
        %3310 = vmatpush1.msra.mxu0 0.0
        %3311 = vmatprep.subr.mxu0 0.0
        %3312 = vmatpush1.msra.mxu0 0.0
        %3313 = vmatprep.subr.mxu0 0.0
        %3314 = vmatpush1.msra.mxu0 0.0
        %3315 = vmatprep.subr.mxu0 0.0
        %3316 = vmatpush1.msra.mxu0 0.0
        %3317 = vmatprep.subr.mxu0 0.0
        %3318 = vmatpush1.msra.mxu0 0.0
        %3319 = vmatprep.subr.mxu0 0.0
        %3320 = vmatpush1.msra.mxu0 0.0
        %3321 = vmatprep.subr.mxu0 0.0
        %3322 = vmatpush1.msra.mxu0 0.0
        %3323 = vmatprep.subr.mxu0 0.0
        %3324 = vmatpush1.msra.mxu0 0.0
        %3325 = vmatprep.subr.mxu0 0.0
        %3326 = vmatpush1.msra.mxu0 0.0
        %3327 = vmatprep.subr.mxu0 0.0
        %3328 = vmatpush1.msra.mxu0 0.0
        %3329 = vmatprep.subr.mxu0 0.0
        %3330 = vmatpush1.msra.mxu0 0.0
        %3331 = vmatprep.subr.mxu0 0.0
        %3332 = vmatpush1.msra.mxu0 0.0
        %3333 = vmatprep.subr.mxu0 0.0
        %3334 = vmatpush1.msra.mxu0 0.0
        %3335 = vmatprep.subr.mxu0 0.0
        %3336 = vmatpush1.msra.mxu0 0.0
        %3337 = vmatprep.subr.mxu0 0.0
        %3338 = vmatpush1.msra.mxu0 0.0
        %3339 = vmatprep.subr.mxu0 0.0
        %3340 = vmatpush1.msra.mxu0 0.0
        %3341 = vmatprep.mubr.f32.mxu0 0.0
        %3342 = vmatmul.mubr.f32.gmra.mrb[0].mxu0 %v3204
        %v3343 = vpop.f32.mrb[0].mxu0
        %v3344 = vadd.f32 0.0, %v3343
        %v3345 = vpop.f32.mrb[0].mxu0
        %3346 = vdwg.mxu0
        %v3347 = vadd.f32 %v3189, %v3273
        %v3348 = vadd.f32 %v3190, %v3275
        %v3349 = vadd.f32 %v3191, %v3344
        %v3350 = vld [vmem:[%s5] sm:$0xff]
        %3352 = vset.pattern.permute.xlu0 0
        %3353 = vperm.xlu0 %3352, %v3350
        %v3354 = vpop.permute.xlu0 %3353
        %v3356 = vadd.f32 %v3347, %v3354
        %v3357 = vadd.f32 %v3348, %v3354
        %v3358 = vadd.f32 %v3349, %v3354
        %v3359 = vmul.f32 %v3356, %v1692
        %v3360 = vmul.f32 %v3357, %v1696
        %v3361 = vmul.f32 %v3358, %v1700
        %v3362 = vadd.f32 %v3359, %v3360
        %v3363 = vadd.f32 %v3362, %v3361
        %3364 = vadd.xlane.f32.xlu0 %v3363
        %v3365 = vpop.xlane.xlu0 %3364
        %v3366 = vmul.f32 %v3365, 0.00390625
        %v3367 = vmul.f32 %v3359, %v3356
        %v3368 = vmul.f32 %v3360, %v3357
        %v3369 = vmul.f32 %v3361, %v3358
        %v3370 = vadd.f32 %v3367, %v3368
        %v3371 = vadd.f32 %v3370, %v3369
        %3372 = vadd.xlane.f32.xlu0 %v3371
        %v3373 = vpop.xlane.xlu0 %3372
        %v3374 = vmul.f32 %v3373, 0.00390625
        %v3375 = vmul.f32 %v3366, %v3366
        %v3376 = vsub.f32 %v3374, %v3375
        %v3377 = vsub.f32 %v3356, %v3366
        %v3378 = vsub.f32 %v3357, %v3366
        %v3379 = vsub.f32 %v3358, %v3366
        %v3380 = vmul.f32 %v3377, %v1692
        %v3381 = vmul.f32 %v3378, %v1696
        %v3382 = vmul.f32 %v3379, %v1700
        %v3383 = vadd.f32 %v3376, 1e-05
        %v3384 = vrsqrt.pop %v3383
        %v3385 = vmul.f32 %v3380, %v3384
        %v3386 = vmul.f32 %v3381, %v3384
        %v3387 = vmul.f32 %v3382, %v3384
        %v3388 = vadd.f32 %v259, %v3385
        %v3389 = vadd.f32 %v260, %v3386
        %v3390 = vadd.f32 %v261, %v3387
        %3391 = vst [vmem:[%s244] sm:$0xff] %v3388
        %3392 = vst [vmem:[%s244 + $0x8] sm:$0xff] %v3389
        %3393 = vst [vmem:[%s244 + $0x10] sm:$0xff] %v3390
        %s3394 = sand.u32 %s159, 1
        %s3395 = scalar_lea.sflag [#allocation3], %s3394
        %s3396 = sand.u32 %s159, 1
        %s3397 = smul.addr %s3396, 24
        %s3398 = scalar_lea.vmem [#allocation2], %s3397
        // Predicated region
        $region45: #{tpu_custom_call.1} parent=43 // pred_check
          %p3399 = pneg %p169
        $region46: #{tpu_custom_call.1} parent=43 // pred_check_branch
          %3401 = sbr.rel (%p3399) target = $region48
        $region47: #{tpu_custom_call.1} parent=43 // pred_region
          %s3403 = ssub.s32 384, 384
          %3404 = vsyncadd %s3395, %s3403
          %s3405 = smul.addr %s20, 3
          %s3406 = smul.addr %s3405, 128
          %s3407 = scalar_lea.hbm %s6, %s3406
          %s3409 = sshll.u32 %s3398, 4
          %s3410 = int_to_ptr.vmem [resolvable:$true] %s3409
          %3412 = dma.vmem_to_hbm [thread:$0]  %s3410, 384, %s3407, %s3395
        $region48: #{tpu_custom_call.1} parent=43 // pred_fallthru
          _
      $region44: #{tpu_custom_call.1} parent=5 // pred_fallthru
        _
      %p3413 = scmp.le.s32.totalorder 2, %s15
      // Predicated region
      $region49: #{tpu_custom_call.1} parent=5 // pred_check
        %p3414 = pneg %p3413
      $region50: #{tpu_custom_call.1} parent=5 // pred_check_branch
        %3416 = sbr.rel (%p3414) target = $region52
      $region51: #{tpu_custom_call.1} parent=5 // pred_region
        %s3417 = ssub.s32 %s15, 2
        // Predicated region
        $region53: #{tpu_custom_call.1} parent=51 // pred_check
          %p3418 = pneg %p175
        $region54: #{tpu_custom_call.1} parent=51 // pred_check_branch
          %3420 = sbr.rel (%p3418) target = $region56
        $region55: #{tpu_custom_call.1} parent=51 // pred_region
          %s3421 = sand.u32 %s160, 1
          %s3422 = scalar_lea.sflag [#allocation3], %s3421
          %s3423 = sand.u32 %s160, 1
          %s3424 = smul.addr %s3423, 24
          %s3425 = scalar_lea.vmem [#allocation2], %s3424
          %3426 = dma.done %s3422, 384
        $region56: #{tpu_custom_call.1} parent=51 // pred_fallthru
          _
      $region52: #{tpu_custom_call.1} parent=5 // pred_fallthru
        _
    $region6: #{tpu_custom_call.1} parent=1 // loop_footer
      %s19 = sadd.s32 1, %s15
    $region7: #{tpu_custom_call.1} parent=1 // loop_footer_branch
      %14 = sbr.rel target = $region3
    $region8: #{tpu_custom_call.1} parent=1 // loop_exit
      _
    %3427 = vsyncpa [#allocation3], 1
    %s3428 = scalar_lea.sflag [#allocation3], 1
    %3429 = vsyncpa %s3428, 1

</llo_original>
